<compile_context>
chip_gen: v7x
topology: tpu7x:2x2x1
jax: 0.10.0
libtpu: 0.0.40
codegen_flags: <defaults>
</compile_context>

<pallas_src>
import functools

import jax
import jax.numpy as jnp
from jax.experimental import pallas as pl
from jax.experimental.pallas import tpu as pltpu


# ----------------------------------------------------------------------------
# Host-side weight packing (cheap, folded into the surrounding jit)
# ----------------------------------------------------------------------------
def _pack_conv_w(w):
    """(3,3,Cin,Cout) HWIO -> (Cout, 9*Cin) bf16; col = (dy*3+dx)*Cin + ci."""
    kh, kw, cin, cout = w.shape
    return jnp.transpose(w, (3, 0, 1, 2)).reshape(cout, kh * kw * cin).astype(jnp.bfloat16)


def _bias_col(b):
    return b.reshape(-1, 1).astype(jnp.float32)


def _permute_upsample(w, b, r=2):
    """Reorder the upsample conv output channels from PyTorch PixelShuffle order
    (c*r*r + g) to group-major order (g*C + c), so each shuffle group is a
    contiguous, 8-aligned sublane slice inside the kernel."""
    kh, kw, cin, cout = w.shape
    c = cout // (r * r)
    wp = w.reshape(kh, kw, cin, c, r * r).transpose(0, 1, 2, 4, 3).reshape(kh, kw, cin, cout)
    bp = b.reshape(c, r * r).transpose(1, 0).reshape(cout)
    return wp, bp


# ----------------------------------------------------------------------------
# The fused Pallas kernel
# ----------------------------------------------------------------------------
def make_edsr_kernel(num_blocks, F, H, W):
    P = H * W
    assert W & (W - 1) == 0, "W must be a power of two for the cheap lane->(h,w) split"
    log2w = W.bit_length() - 1

    def kernel(x_ref, wh_ref, bh_ref, w1_ref, b1_ref, w2_ref, b2_ref,
               wb_ref, bb_ref, wu_ref, bu_ref, wt_ref, bt_ref, o_ref):

        # ---- hoisted / memoized boundary masks (one per (rows, sh, sw)) ----
        mask_cache = {}

        def get_mask(rows, sh, sw):
            key = (rows, sh, sw)
            if key in mask_cache:
                return mask_cache[key]
            p_idx = jax.lax.broadcasted_iota(jnp.int32, (rows, P), 1)
            h_i = p_idx >> log2w
            w_i = p_idx & (W - 1)
            conds = []
            if sh < 0:
                conds.append(h_i >= -sh)
            elif sh > 0:
                conds.append(h_i < H - sh)
            if sw < 0:
                conds.append(w_i >= -sw)
            elif sw > 0:
                conds.append(w_i < W - sw)
            valid = conds[0]
            for c in conds[1:]:
                valid = jnp.logical_and(valid, c)
            mask_cache[key] = valid
            return valid

        def tap(act, sh, sw):
            """act spatially shifted by (sh, sw), zero-filled outside the image.
            tap(act, sh, sw)[c, h*W + w] == act[c, h+sh, w+sw] (zero-padded)."""
            if sh == 0 and sw == 0:
                return act
            k = (-(sh * W + sw)) % P
            t = pltpu.roll(act, k, axis=1)          # XLU lane rotation
            return jnp.where(get_mask(act.shape[0], sh, sw), t, 0.0)

        def conv3x3(act, w_bf16, bias, relu=False):
            """3x3 same-padded conv on a (C_in, P) activation -> (C_out, P).
            Single K = 9*C_in MXU matmul with bf16 operands, f32 accumulation."""
            taps = jnp.concatenate(
                [tap(act, dy - 1, dx - 1) for dy in range(3) for dx in range(3)],
                axis=0)                                           # (9*Cin, P) f32
            out = jnp.dot(w_bf16, taps.astype(jnp.bfloat16),
                          preferred_element_type=jnp.float32) + bias
            if relu:
                out = jnp.maximum(out, 0.0)
            return out

        x = x_ref[0].astype(jnp.float32)                          # (Cin_pad, P)

        # head
        h0 = conv3x3(x, wh_ref[...], bh_ref[...])                 # (F, P)

        # body: residual blocks + trailing conv + long skip from head
        r = h0
        for i in range(num_blocks):
            t = conv3x3(r, w1_ref[i], b1_ref[i], relu=True)
            r = conv3x3(t, w2_ref[i], b2_ref[i]) + r
        r = conv3x3(r, wb_ref[...], bb_ref[...]) + h0

        # upsample conv (+ fused ReLU; PixelShuffle is a pure permutation so
        # ReLU-before-shuffle == shuffle-before-ReLU).
        up = conv3x3(r, wu_ref[...], bu_ref[...], relu=True)      # (4F, P)
        groups = [up[g * F:(g + 1) * F, :] for g in range(4)]     # shuffle group g = 2a+b

        # tail conv fused with PixelShuffle via the sub-pixel convolution
        # identity; deduplicated taps (16 distinct) and ONE collapsed matmul.
        tap_cache = {}

        def group_tap(ip, jp, fh, fw):
            key = (ip, jp, fh, fw)
            if key not in tap_cache:
                tap_cache[key] = tap(groups[2 * ip + jp], fh, fw).astype(jnp.bfloat16)
            return tap_cache[key]

        cols = []
        for a in range(2):
            for b in range(2):
                rows = []
                for dy in range(3):
                    fh, ip = divmod(a + dy - 1, 2)
                    for dx in range(3):
                        fw, jp = divmod(b + dx - 1, 2)
                        rows.append(group_tap(ip, jp, fh, fw))
                cols.append(jnp.concatenate(rows, axis=0))        # (9F, P) bf16
        stack = jnp.concatenate(cols, axis=1)                      # (9F, 4P) bf16

        y = jnp.dot(wt_ref[...], stack, preferred_element_type=jnp.float32)  # (Cout, 4P)
        o_ref[0] = (y + bt_ref[...]).astype(o_ref.dtype)

    return kernel


def _full_spec(arr):
    zeros = (0,) * arr.ndim
    return pl.BlockSpec(arr.shape, lambda n, _z=zeros: _z)


# ----------------------------------------------------------------------------
# Forward pass (NCHW in / NCHW out, matching the PyTorch module)
# ----------------------------------------------------------------------------
@functools.partial(jax.jit, static_argnames=("num_blocks", "upscale"))
def edsr_forward(x_nchw, params, num_blocks, upscale=2):
    assert upscale == 2, "this script instantiates the scale=2 branch"
    N, Cin, H, W = x_nchw.shape
    F = params["head"][0].shape[-1]
    Cout = params["tail"][0].shape[-1]
    P = H * W

    # ---- input / head-weight channel padding to an 8-sublane multiple ----
    Cin_p = ((Cin + 7) // 8) * 8
    x_flat = x_nchw.reshape(N, Cin, P)
    w_head, b_head = params["head"]
    if Cin_p != Cin:
        x_flat = jnp.pad(x_flat, ((0, 0), (0, Cin_p - Cin), (0, 0)))
        w_head = jnp.pad(w_head, ((0, 0), (0, 0), (0, Cin_p - Cin), (0, 0)))

    # ---- pack weights for the kernel (K = 9*Cin layout, bf16) ----
    wh = _pack_conv_w(w_head)
    bh = _bias_col(b_head)
    w1 = jnp.stack([_pack_conv_w(params[f"rb{i}_c1"][0]) for i in range(num_blocks)])
    b1 = jnp.stack([_bias_col(params[f"rb{i}_c1"][1]) for i in range(num_blocks)])
    w2 = jnp.stack([_pack_conv_w(params[f"rb{i}_c2"][0]) for i in range(num_blocks)])
    b2 = jnp.stack([_bias_col(params[f"rb{i}_c2"][1]) for i in range(num_blocks)])
    wb = _pack_conv_w(params["body"][0])
    bb = _bias_col(params["body"][1])
    wu_raw, bu_raw = _permute_upsample(*params["up"], r=upscale)
    wu = _pack_conv_w(wu_raw)
    bu = _bias_col(bu_raw)
    wt = _pack_conv_w(params["tail"][0])
    bt = _bias_col(params["tail"][1])

    kernel = make_edsr_kernel(num_blocks, F, H, W)
    args = (x_flat, wh, bh, w1, b1, w2, b2, wb, bb, wu, bu, wt, bt)

    in_specs = [pl.BlockSpec((1, Cin_p, P), lambda n: (n, 0, 0))]
    in_specs += [_full_spec(a) for a in args[1:]]

    z = pl.pallas_call(
        kernel,
        out_shape=jax.ShapeDtypeStruct((N, Cout, 4 * P), jnp.float32),
        grid=(N,),
        in_specs=in_specs,
        out_specs=pl.BlockSpec((1, Cout, 4 * P), lambda n: (n, 0, 0)),
        compiler_params=pltpu.CompilerParams(
            dimension_semantics=("parallel",),
            internal_scratch_in_bytes=4 * 1024 * 1024,
        ),
    )(*args)

    # Tiny final interleave of the 4 output sub-images (pure permutation, XLA):
    # z[n, co, (2a+b)*P + h*W + w] holds output pixel (2h+a, 2w+b).
    y = z.reshape(N, Cout, 2, 2, H, W).transpose(0, 1, 4, 2, 5, 3)
    return y.reshape(N, Cout, H * upscale, W * upscale)


# ----------------------------------------------------------------------------
# Pure-JAX (XLA) reference of the PyTorch module, for a numerical check
# ----------------------------------------------------------------------------
def _ref_conv(x, w, b, relu=False):
    y = jax.lax.conv_general_dilated(
        x, w, window_strides=(1, 1), padding="SAME",
        dimension_numbers=("NCHW", "HWIO", "NCHW"))
    y = y + b.reshape(1, -1, 1, 1)
    if relu:
        y = jnp.maximum(y, 0.0)
    return y


def _ref_pixel_shuffle(x, r):
    n, c, h, w = x.shape
    co = c // (r * r)
    x = x.reshape(n, co, r, r, h, w).transpose(0, 1, 4, 2, 5, 3)
    return x.reshape(n, co, h * r, w * r)


def edsr_reference(x, params, num_blocks, upscale=2):
    h = _ref_conv(x, *params["head"])
    r = h
    for i in range(num_blocks):
        t = _ref_conv(r, *params[f"rb{i}_c1"], relu=True)
        r = _ref_conv(t, *params[f"rb{i}_c2"]) + r
    r = _ref_conv(r, *params["body"]) + h
    u = _ref_conv(r, *params["up"])
    u = _ref_pixel_shuffle(u, upscale)
    u = jnp.maximum(u, 0.0)
    return _ref_conv(u, *params["tail"])


# ----------------------------------------------------------------------------
# Parameter init (HWIO weights + bias, mirroring the PyTorch layer shapes)
# ----------------------------------------------------------------------------
def init_conv(key, cin, cout, dtype=jnp.float32):
    kw_, kb_ = jax.random.split(key)
    fan_in = 9 * cin
    scale = 1.0 / jnp.sqrt(jnp.asarray(fan_in, dtype))
    w = jax.random.uniform(kw_, (3, 3, cin, cout), dtype, -1.0, 1.0) * scale
    b = jax.random.uniform(kb_, (cout,), dtype, -1.0, 1.0) * scale
    return w, b


def init_edsr_params(key, input_channels, output_channels, num_channels,
                     upscale, num_blocks):
    assert upscale == 2
    params = {}
    keys = jax.random.split(key, 4 + 2 * num_blocks)
    ki = iter(keys)
    params["head"] = init_conv(next(ki), input_channels, num_channels)
    for i in range(num_blocks):
        params[f"rb{i}_c1"] = init_conv(next(ki), num_channels, num_channels)
        params[f"rb{i}_c2"] = init_conv(next(ki), num_channels, num_channels)
    params["body"] = init_conv(next(ki), num_channels, num_channels)
    params["up"] = init_conv(next(ki), num_channels, 4 * num_channels)
    params["tail"] = init_conv(next(ki), num_channels, output_channels)
    return params


if __name__ == "__main__":
    # EDSR(input_channels=4, output_channels=4, num_channels=32, upscale=2,
    #      num_blocks=4) on a (2, 4, 16, 16) input -> (2, 4, 32, 32) output.
    N, CIN, COUT, F, S, H, W = 2, 4, 4, 32, 2, 16, 16
    NUM_BLOCKS = 4

    key = jax.random.PRNGKey(0)
    kx, kp = jax.random.split(key)
    x = jax.random.normal(kx, (N, CIN, H, W), jnp.float32)
    params = init_edsr_params(kp, CIN, COUT, F, S, NUM_BLOCKS)

    out = edsr_forward(x, params, num_blocks=NUM_BLOCKS, upscale=S)
    out = jax.block_until_ready(out)

    assert out.shape == (N, COUT, H * S, W * S), out.shape
    assert bool(jnp.all(jnp.isfinite(out)))

    # Numerical check against the pure-JAX f32 reference of the PyTorch module.
    # Tolerance accounts for bf16 matmul operands in the Pallas path.
    ref = edsr_reference(x, params, NUM_BLOCKS, upscale=S)
    num = jnp.sqrt(jnp.sum((out - ref) ** 2))
    den = jnp.sqrt(jnp.sum(ref ** 2)) + 1e-8
    rel_err = float(num / den)
    assert rel_err < 5e-2, f"kernel/reference mismatch: rel_err={rel_err}"

    print("KERNEL_OK")
</pallas_src>

<mosaic_0001>
module attributes {stable_mosaic.version = 11 : i64} {
  func.func @kernel(%arg0: i32, %arg1: memref<1x8x256xf32, #tpu.memory_space<vmem>>, %arg2: memref<32x72xbf16, #tpu.memory_space<vmem>>, %arg3: memref<32x1xf32, #tpu.memory_space<vmem>>, %arg4: memref<4x32x288xbf16, #tpu.memory_space<vmem>>, %arg5: memref<4x32x1xf32, #tpu.memory_space<vmem>>, %arg6: memref<4x32x288xbf16, #tpu.memory_space<vmem>>, %arg7: memref<4x32x1xf32, #tpu.memory_space<vmem>>, %arg8: memref<32x288xbf16, #tpu.memory_space<vmem>>, %arg9: memref<32x1xf32, #tpu.memory_space<vmem>>, %arg10: memref<128x288xbf16, #tpu.memory_space<vmem>>, %arg11: memref<128x1xf32, #tpu.memory_space<vmem>>, %arg12: memref<4x288xbf16, #tpu.memory_space<vmem>>, %arg13: memref<4x1xf32, #tpu.memory_space<vmem>>, %arg14: memref<1x4x1024xf32, #tpu.memory_space<vmem>>) attributes {dimension_semantics = [#tpu.dimension_semantics<parallel>], iteration_bounds = array<i64: 2>, scalar_prefetch = 0 : i64, scratch_operands = 0 : i64, tpu.core_type = #tpu.core_type<tc>, window_params = [{transform_indices = @transform_0, window_bounds = array<i64: 1, 8, 256>}, {pipeline_mode = #tpu.pipeline_mode<synchronous>, transform_indices = @transform_1, window_bounds = array<i64: 32, 72>}, {pipeline_mode = #tpu.pipeline_mode<synchronous>, transform_indices = @transform_2, window_bounds = array<i64: 32, 1>}, {pipeline_mode = #tpu.pipeline_mode<synchronous>, transform_indices = @transform_3, window_bounds = array<i64: 4, 32, 288>}, {pipeline_mode = #tpu.pipeline_mode<synchronous>, transform_indices = @transform_4, window_bounds = array<i64: 4, 32, 1>}, {pipeline_mode = #tpu.pipeline_mode<synchronous>, transform_indices = @transform_5, window_bounds = array<i64: 4, 32, 288>}, {pipeline_mode = #tpu.pipeline_mode<synchronous>, transform_indices = @transform_6, window_bounds = array<i64: 4, 32, 1>}, {pipeline_mode = #tpu.pipeline_mode<synchronous>, transform_indices = @transform_7, window_bounds = array<i64: 32, 288>}, {pipeline_mode = #tpu.pipeline_mode<synchronous>, transform_indices = @transform_8, window_bounds = array<i64: 32, 1>}, {pipeline_mode = #tpu.pipeline_mode<synchronous>, transform_indices = @transform_9, window_bounds = array<i64: 128, 288>}, {pipeline_mode = #tpu.pipeline_mode<synchronous>, transform_indices = @transform_10, window_bounds = array<i64: 128, 1>}, {pipeline_mode = #tpu.pipeline_mode<synchronous>, transform_indices = @transform_11, window_bounds = array<i64: 4, 288>}, {pipeline_mode = #tpu.pipeline_mode<synchronous>, transform_indices = @transform_12, window_bounds = array<i64: 4, 1>}, {transform_indices = @transform_13, window_bounds = array<i64: 1, 4, 1024>}]} {
    %c0 = arith.constant 0 : index
    %c0_0 = arith.constant 0 : index
    %c0_1 = arith.constant 0 : index
    %0 = vector.load %arg1[%c0, %c0_0, %c0_1] : memref<1x8x256xf32, #tpu.memory_space<vmem>>, vector<1x8x256xf32>
    %1 = vector.shape_cast %0 : vector<1x8x256xf32> to vector<8x256xf32>
    %c0_2 = arith.constant 0 : index
    %c0_3 = arith.constant 0 : index
    %2 = vector.load %arg2[%c0_2, %c0_3] : memref<32x72xbf16, #tpu.memory_space<vmem>>, vector<32x72xbf16>
    %c0_4 = arith.constant 0 : index
    %c0_5 = arith.constant 0 : index
    %3 = vector.load %arg3[%c0_4, %c0_5] : memref<32x1xf32, #tpu.memory_space<vmem>>, vector<32x1xf32>
    %c17_i32 = arith.constant 17 : i32
    %4 = tpu.dynamic_rotate %1 by %c17_i32 dim 1 : vector<8x256xf32>, i32 -> vector<8x256xf32>
    %5 = tpu.iota {dimensions = array<i32: 1>} : vector<8x256xi32>
    %c4_i32 = arith.constant 4 : i32
    %6 = vector.broadcast %c4_i32 : i32 to vector<8x256xi32>
    %7 = arith.shrsi %5, %6 : vector<8x256xi32>
    %c15_i32 = arith.constant 15 : i32
    %8 = vector.broadcast %c15_i32 : i32 to vector<8x256xi32>
    %9 = arith.andi %5, %8 : vector<8x256xi32>
    %c1_i32 = arith.constant 1 : i32
    %10 = vector.broadcast %c1_i32 : i32 to vector<8x256xi32>
    %11 = arith.cmpi sge, %7, %10 : vector<8x256xi32>
    %c1_i32_6 = arith.constant 1 : i32
    %12 = vector.broadcast %c1_i32_6 : i32 to vector<8x256xi32>
    %13 = arith.cmpi sge, %9, %12 : vector<8x256xi32>
    %14 = arith.andi %11, %13 : vector<8x256xi1>
    %cst = arith.constant 0.000000e+00 : f32
    %15 = vector.broadcast %cst : f32 to vector<8x256xf32>
    %16 = arith.select %14, %4, %15 : vector<8x256xi1>, vector<8x256xf32>
    %c16_i32 = arith.constant 16 : i32
    %17 = tpu.dynamic_rotate %1 by %c16_i32 dim 1 : vector<8x256xf32>, i32 -> vector<8x256xf32>
    %18 = tpu.iota {dimensions = array<i32: 1>} : vector<8x256xi32>
    %c4_i32_7 = arith.constant 4 : i32
    %19 = vector.broadcast %c4_i32_7 : i32 to vector<8x256xi32>
    %20 = arith.shrsi %18, %19 : vector<8x256xi32>
    %c1_i32_8 = arith.constant 1 : i32
    %21 = vector.broadcast %c1_i32_8 : i32 to vector<8x256xi32>
    %22 = arith.cmpi sge, %20, %21 : vector<8x256xi32>
    %cst_9 = arith.constant 0.000000e+00 : f32
    %23 = vector.broadcast %cst_9 : f32 to vector<8x256xf32>
    %24 = arith.select %22, %17, %23 : vector<8x256xi1>, vector<8x256xf32>
    %c15_i32_10 = arith.constant 15 : i32
    %25 = tpu.dynamic_rotate %1 by %c15_i32_10 dim 1 : vector<8x256xf32>, i32 -> vector<8x256xf32>
    %26 = tpu.iota {dimensions = array<i32: 1>} : vector<8x256xi32>
    %c4_i32_11 = arith.constant 4 : i32
    %27 = vector.broadcast %c4_i32_11 : i32 to vector<8x256xi32>
    %28 = arith.shrsi %26, %27 : vector<8x256xi32>
    %c15_i32_12 = arith.constant 15 : i32
    %29 = vector.broadcast %c15_i32_12 : i32 to vector<8x256xi32>
    %30 = arith.andi %26, %29 : vector<8x256xi32>
    %c1_i32_13 = arith.constant 1 : i32
    %31 = vector.broadcast %c1_i32_13 : i32 to vector<8x256xi32>
    %32 = arith.cmpi sge, %28, %31 : vector<8x256xi32>
    %c15_i32_14 = arith.constant 15 : i32
    %33 = vector.broadcast %c15_i32_14 : i32 to vector<8x256xi32>
    %34 = arith.cmpi slt, %30, %33 : vector<8x256xi32>
    %35 = arith.andi %32, %34 : vector<8x256xi1>
    %cst_15 = arith.constant 0.000000e+00 : f32
    %36 = vector.broadcast %cst_15 : f32 to vector<8x256xf32>
    %37 = arith.select %35, %25, %36 : vector<8x256xi1>, vector<8x256xf32>
    %c1_i32_16 = arith.constant 1 : i32
    %38 = tpu.dynamic_rotate %1 by %c1_i32_16 dim 1 : vector<8x256xf32>, i32 -> vector<8x256xf32>
    %39 = tpu.iota {dimensions = array<i32: 1>} : vector<8x256xi32>
    %c15_i32_17 = arith.constant 15 : i32
    %40 = vector.broadcast %c15_i32_17 : i32 to vector<8x256xi32>
    %41 = arith.andi %39, %40 : vector<8x256xi32>
    %c1_i32_18 = arith.constant 1 : i32
    %42 = vector.broadcast %c1_i32_18 : i32 to vector<8x256xi32>
    %43 = arith.cmpi sge, %41, %42 : vector<8x256xi32>
    %cst_19 = arith.constant 0.000000e+00 : f32
    %44 = vector.broadcast %cst_19 : f32 to vector<8x256xf32>
    %45 = arith.select %43, %38, %44 : vector<8x256xi1>, vector<8x256xf32>
    %c255_i32 = arith.constant 255 : i32
    %46 = tpu.dynamic_rotate %1 by %c255_i32 dim 1 : vector<8x256xf32>, i32 -> vector<8x256xf32>
    %47 = tpu.iota {dimensions = array<i32: 1>} : vector<8x256xi32>
    %c15_i32_20 = arith.constant 15 : i32
    %48 = vector.broadcast %c15_i32_20 : i32 to vector<8x256xi32>
    %49 = arith.andi %47, %48 : vector<8x256xi32>
    %c15_i32_21 = arith.constant 15 : i32
    %50 = vector.broadcast %c15_i32_21 : i32 to vector<8x256xi32>
    %51 = arith.cmpi slt, %49, %50 : vector<8x256xi32>
    %cst_22 = arith.constant 0.000000e+00 : f32
    %52 = vector.broadcast %cst_22 : f32 to vector<8x256xf32>
    %53 = arith.select %51, %46, %52 : vector<8x256xi1>, vector<8x256xf32>
    %c241_i32 = arith.constant 241 : i32
    %54 = tpu.dynamic_rotate %1 by %c241_i32 dim 1 : vector<8x256xf32>, i32 -> vector<8x256xf32>
    %55 = tpu.iota {dimensions = array<i32: 1>} : vector<8x256xi32>
    %c4_i32_23 = arith.constant 4 : i32
    %56 = vector.broadcast %c4_i32_23 : i32 to vector<8x256xi32>
    %57 = arith.shrsi %55, %56 : vector<8x256xi32>
    %c15_i32_24 = arith.constant 15 : i32
    %58 = vector.broadcast %c15_i32_24 : i32 to vector<8x256xi32>
    %59 = arith.andi %55, %58 : vector<8x256xi32>
    %c15_i32_25 = arith.constant 15 : i32
    %60 = vector.broadcast %c15_i32_25 : i32 to vector<8x256xi32>
    %61 = arith.cmpi slt, %57, %60 : vector<8x256xi32>
    %c1_i32_26 = arith.constant 1 : i32
    %62 = vector.broadcast %c1_i32_26 : i32 to vector<8x256xi32>
    %63 = arith.cmpi sge, %59, %62 : vector<8x256xi32>
    %64 = arith.andi %61, %63 : vector<8x256xi1>
    %cst_27 = arith.constant 0.000000e+00 : f32
    %65 = vector.broadcast %cst_27 : f32 to vector<8x256xf32>
    %66 = arith.select %64, %54, %65 : vector<8x256xi1>, vector<8x256xf32>
    %c240_i32 = arith.constant 240 : i32
    %67 = tpu.dynamic_rotate %1 by %c240_i32 dim 1 : vector<8x256xf32>, i32 -> vector<8x256xf32>
    %68 = tpu.iota {dimensions = array<i32: 1>} : vector<8x256xi32>
    %c4_i32_28 = arith.constant 4 : i32
    %69 = vector.broadcast %c4_i32_28 : i32 to vector<8x256xi32>
    %70 = arith.shrsi %68, %69 : vector<8x256xi32>
    %c15_i32_29 = arith.constant 15 : i32
    %71 = vector.broadcast %c15_i32_29 : i32 to vector<8x256xi32>
    %72 = arith.cmpi slt, %70, %71 : vector<8x256xi32>
    %cst_30 = arith.constant 0.000000e+00 : f32
    %73 = vector.broadcast %cst_30 : f32 to vector<8x256xf32>
    %74 = arith.select %72, %67, %73 : vector<8x256xi1>, vector<8x256xf32>
    %c239_i32 = arith.constant 239 : i32
    %75 = tpu.dynamic_rotate %1 by %c239_i32 dim 1 : vector<8x256xf32>, i32 -> vector<8x256xf32>
    %76 = tpu.iota {dimensions = array<i32: 1>} : vector<8x256xi32>
    %c4_i32_31 = arith.constant 4 : i32
    %77 = vector.broadcast %c4_i32_31 : i32 to vector<8x256xi32>
    %78 = arith.shrsi %76, %77 : vector<8x256xi32>
    %c15_i32_32 = arith.constant 15 : i32
    %79 = vector.broadcast %c15_i32_32 : i32 to vector<8x256xi32>
    %80 = arith.andi %76, %79 : vector<8x256xi32>
    %c15_i32_33 = arith.constant 15 : i32
    %81 = vector.broadcast %c15_i32_33 : i32 to vector<8x256xi32>
    %82 = arith.cmpi slt, %78, %81 : vector<8x256xi32>
    %c15_i32_34 = arith.constant 15 : i32
    %83 = vector.broadcast %c15_i32_34 : i32 to vector<8x256xi32>
    %84 = arith.cmpi slt, %80, %83 : vector<8x256xi32>
    %85 = arith.andi %82, %84 : vector<8x256xi1>
    %cst_35 = arith.constant 0.000000e+00 : f32
    %86 = vector.broadcast %cst_35 : f32 to vector<8x256xf32>
    %87 = arith.select %85, %75, %86 : vector<8x256xi1>, vector<8x256xf32>
    %88 = tpu.concatenate %16, %24, %37, %45, %1, %53, %66, %74, %87 in 0 : vector<8x256xf32>, vector<8x256xf32>, vector<8x256xf32>, vector<8x256xf32>, vector<8x256xf32>, vector<8x256xf32>, vector<8x256xf32>, vector<8x256xf32>, vector<8x256xf32> -> vector<72x256xf32>
    %89 = arith.truncf %88 : vector<72x256xf32> to vector<72x256xbf16>
    %cst_36 = arith.constant dense<0.000000e+00> : vector<32x256xf32>
    %90 = tpu.matmul %2, %89, %cst_36 {dimension_numbers = #tpu.dot_dimension_numbers<[1], [0], [0], [1], [0, 0, 1, 1], [], []>} : vector<32x72xbf16>, vector<72x256xbf16>, vector<32x256xf32> -> vector<32x256xf32>
    %91 = vector.broadcast %3 : vector<32x1xf32> to vector<32x256xf32>
    %92 = arith.addf %90, %91 : vector<32x256xf32>
    %c0_37 = arith.constant 0 : index
    %c0_38 = arith.constant 0 : index
    %c0_39 = arith.constant 0 : index
    %93 = vector.load %arg4[%c0_37, %c0_38, %c0_39] : memref<4x32x288xbf16, #tpu.memory_space<vmem>>, vector<1x32x288xbf16>
    %94 = vector.shape_cast %93 : vector<1x32x288xbf16> to vector<32x288xbf16>
    %c0_40 = arith.constant 0 : index
    %c0_41 = arith.constant 0 : index
    %c0_42 = arith.constant 0 : index
    %95 = vector.load %arg5[%c0_40, %c0_41, %c0_42] : memref<4x32x1xf32, #tpu.memory_space<vmem>>, vector<1x32x1xf32>
    %96 = vector.shape_cast %95 : vector<1x32x1xf32> to vector<32x1xf32>
    %c17_i32_43 = arith.constant 17 : i32
    %97 = tpu.dynamic_rotate %92 by %c17_i32_43 dim 1 : vector<32x256xf32>, i32 -> vector<32x256xf32>
    %98 = tpu.iota {dimensions = array<i32: 1>} : vector<32x256xi32>
    %c4_i32_44 = arith.constant 4 : i32
    %99 = vector.broadcast %c4_i32_44 : i32 to vector<32x256xi32>
    %100 = arith.shrsi %98, %99 : vector<32x256xi32>
    %c15_i32_45 = arith.constant 15 : i32
    %101 = vector.broadcast %c15_i32_45 : i32 to vector<32x256xi32>
    %102 = arith.andi %98, %101 : vector<32x256xi32>
    %c1_i32_46 = arith.constant 1 : i32
    %103 = vector.broadcast %c1_i32_46 : i32 to vector<32x256xi32>
    %104 = arith.cmpi sge, %100, %103 : vector<32x256xi32>
    %c1_i32_47 = arith.constant 1 : i32
    %105 = vector.broadcast %c1_i32_47 : i32 to vector<32x256xi32>
    %106 = arith.cmpi sge, %102, %105 : vector<32x256xi32>
    %107 = arith.andi %104, %106 : vector<32x256xi1>
    %cst_48 = arith.constant 0.000000e+00 : f32
    %108 = vector.broadcast %cst_48 : f32 to vector<32x256xf32>
    %109 = arith.select %107, %97, %108 : vector<32x256xi1>, vector<32x256xf32>
    %c16_i32_49 = arith.constant 16 : i32
    %110 = tpu.dynamic_rotate %92 by %c16_i32_49 dim 1 : vector<32x256xf32>, i32 -> vector<32x256xf32>
    %111 = tpu.iota {dimensions = array<i32: 1>} : vector<32x256xi32>
    %c4_i32_50 = arith.constant 4 : i32
    %112 = vector.broadcast %c4_i32_50 : i32 to vector<32x256xi32>
    %113 = arith.shrsi %111, %112 : vector<32x256xi32>
    %c1_i32_51 = arith.constant 1 : i32
    %114 = vector.broadcast %c1_i32_51 : i32 to vector<32x256xi32>
    %115 = arith.cmpi sge, %113, %114 : vector<32x256xi32>
    %cst_52 = arith.constant 0.000000e+00 : f32
    %116 = vector.broadcast %cst_52 : f32 to vector<32x256xf32>
    %117 = arith.select %115, %110, %116 : vector<32x256xi1>, vector<32x256xf32>
    %c15_i32_53 = arith.constant 15 : i32
    %118 = tpu.dynamic_rotate %92 by %c15_i32_53 dim 1 : vector<32x256xf32>, i32 -> vector<32x256xf32>
    %119 = tpu.iota {dimensions = array<i32: 1>} : vector<32x256xi32>
    %c4_i32_54 = arith.constant 4 : i32
    %120 = vector.broadcast %c4_i32_54 : i32 to vector<32x256xi32>
    %121 = arith.shrsi %119, %120 : vector<32x256xi32>
    %c15_i32_55 = arith.constant 15 : i32
    %122 = vector.broadcast %c15_i32_55 : i32 to vector<32x256xi32>
    %123 = arith.andi %119, %122 : vector<32x256xi32>
    %c1_i32_56 = arith.constant 1 : i32
    %124 = vector.broadcast %c1_i32_56 : i32 to vector<32x256xi32>
    %125 = arith.cmpi sge, %121, %124 : vector<32x256xi32>
    %c15_i32_57 = arith.constant 15 : i32
    %126 = vector.broadcast %c15_i32_57 : i32 to vector<32x256xi32>
    %127 = arith.cmpi slt, %123, %126 : vector<32x256xi32>
    %128 = arith.andi %125, %127 : vector<32x256xi1>
    %cst_58 = arith.constant 0.000000e+00 : f32
    %129 = vector.broadcast %cst_58 : f32 to vector<32x256xf32>
    %130 = arith.select %128, %118, %129 : vector<32x256xi1>, vector<32x256xf32>
    %c1_i32_59 = arith.constant 1 : i32
    %131 = tpu.dynamic_rotate %92 by %c1_i32_59 dim 1 : vector<32x256xf32>, i32 -> vector<32x256xf32>
    %132 = tpu.iota {dimensions = array<i32: 1>} : vector<32x256xi32>
    %c15_i32_60 = arith.constant 15 : i32
    %133 = vector.broadcast %c15_i32_60 : i32 to vector<32x256xi32>
    %134 = arith.andi %132, %133 : vector<32x256xi32>
    %c1_i32_61 = arith.constant 1 : i32
    %135 = vector.broadcast %c1_i32_61 : i32 to vector<32x256xi32>
    %136 = arith.cmpi sge, %134, %135 : vector<32x256xi32>
    %cst_62 = arith.constant 0.000000e+00 : f32
    %137 = vector.broadcast %cst_62 : f32 to vector<32x256xf32>
    %138 = arith.select %136, %131, %137 : vector<32x256xi1>, vector<32x256xf32>
    %c255_i32_63 = arith.constant 255 : i32
    %139 = tpu.dynamic_rotate %92 by %c255_i32_63 dim 1 : vector<32x256xf32>, i32 -> vector<32x256xf32>
    %140 = tpu.iota {dimensions = array<i32: 1>} : vector<32x256xi32>
    %c15_i32_64 = arith.constant 15 : i32
    %141 = vector.broadcast %c15_i32_64 : i32 to vector<32x256xi32>
    %142 = arith.andi %140, %141 : vector<32x256xi32>
    %c15_i32_65 = arith.constant 15 : i32
    %143 = vector.broadcast %c15_i32_65 : i32 to vector<32x256xi32>
    %144 = arith.cmpi slt, %142, %143 : vector<32x256xi32>
    %cst_66 = arith.constant 0.000000e+00 : f32
    %145 = vector.broadcast %cst_66 : f32 to vector<32x256xf32>
    %146 = arith.select %144, %139, %145 : vector<32x256xi1>, vector<32x256xf32>
    %c241_i32_67 = arith.constant 241 : i32
    %147 = tpu.dynamic_rotate %92 by %c241_i32_67 dim 1 : vector<32x256xf32>, i32 -> vector<32x256xf32>
    %148 = tpu.iota {dimensions = array<i32: 1>} : vector<32x256xi32>
    %c4_i32_68 = arith.constant 4 : i32
    %149 = vector.broadcast %c4_i32_68 : i32 to vector<32x256xi32>
    %150 = arith.shrsi %148, %149 : vector<32x256xi32>
    %c15_i32_69 = arith.constant 15 : i32
    %151 = vector.broadcast %c15_i32_69 : i32 to vector<32x256xi32>
    %152 = arith.andi %148, %151 : vector<32x256xi32>
    %c15_i32_70 = arith.constant 15 : i32
    %153 = vector.broadcast %c15_i32_70 : i32 to vector<32x256xi32>
    %154 = arith.cmpi slt, %150, %153 : vector<32x256xi32>
    %c1_i32_71 = arith.constant 1 : i32
    %155 = vector.broadcast %c1_i32_71 : i32 to vector<32x256xi32>
    %156 = arith.cmpi sge, %152, %155 : vector<32x256xi32>
    %157 = arith.andi %154, %156 : vector<32x256xi1>
    %cst_72 = arith.constant 0.000000e+00 : f32
    %158 = vector.broadcast %cst_72 : f32 to vector<32x256xf32>
    %159 = arith.select %157, %147, %158 : vector<32x256xi1>, vector<32x256xf32>
    %c240_i32_73 = arith.constant 240 : i32
    %160 = tpu.dynamic_rotate %92 by %c240_i32_73 dim 1 : vector<32x256xf32>, i32 -> vector<32x256xf32>
    %161 = tpu.iota {dimensions = array<i32: 1>} : vector<32x256xi32>
    %c4_i32_74 = arith.constant 4 : i32
    %162 = vector.broadcast %c4_i32_74 : i32 to vector<32x256xi32>
    %163 = arith.shrsi %161, %162 : vector<32x256xi32>
    %c15_i32_75 = arith.constant 15 : i32
    %164 = vector.broadcast %c15_i32_75 : i32 to vector<32x256xi32>
    %165 = arith.cmpi slt, %163, %164 : vector<32x256xi32>
    %cst_76 = arith.constant 0.000000e+00 : f32
    %166 = vector.broadcast %cst_76 : f32 to vector<32x256xf32>
    %167 = arith.select %165, %160, %166 : vector<32x256xi1>, vector<32x256xf32>
    %c239_i32_77 = arith.constant 239 : i32
    %168 = tpu.dynamic_rotate %92 by %c239_i32_77 dim 1 : vector<32x256xf32>, i32 -> vector<32x256xf32>
    %169 = tpu.iota {dimensions = array<i32: 1>} : vector<32x256xi32>
    %c4_i32_78 = arith.constant 4 : i32
    %170 = vector.broadcast %c4_i32_78 : i32 to vector<32x256xi32>
    %171 = arith.shrsi %169, %170 : vector<32x256xi32>
    %c15_i32_79 = arith.constant 15 : i32
    %172 = vector.broadcast %c15_i32_79 : i32 to vector<32x256xi32>
    %173 = arith.andi %169, %172 : vector<32x256xi32>
    %c15_i32_80 = arith.constant 15 : i32
    %174 = vector.broadcast %c15_i32_80 : i32 to vector<32x256xi32>
    %175 = arith.cmpi slt, %171, %174 : vector<32x256xi32>
    %c15_i32_81 = arith.constant 15 : i32
    %176 = vector.broadcast %c15_i32_81 : i32 to vector<32x256xi32>
    %177 = arith.cmpi slt, %173, %176 : vector<32x256xi32>
    %178 = arith.andi %175, %177 : vector<32x256xi1>
    %cst_82 = arith.constant 0.000000e+00 : f32
    %179 = vector.broadcast %cst_82 : f32 to vector<32x256xf32>
    %180 = arith.select %178, %168, %179 : vector<32x256xi1>, vector<32x256xf32>
    %181 = tpu.concatenate %109, %117, %130, %138, %92, %146, %159, %167, %180 in 0 : vector<32x256xf32>, vector<32x256xf32>, vector<32x256xf32>, vector<32x256xf32>, vector<32x256xf32>, vector<32x256xf32>, vector<32x256xf32>, vector<32x256xf32>, vector<32x256xf32> -> vector<288x256xf32>
    %182 = arith.truncf %181 : vector<288x256xf32> to vector<288x256xbf16>
    %cst_83 = arith.constant dense<0.000000e+00> : vector<32x256xf32>
    %183 = tpu.matmul %94, %182, %cst_83 {dimension_numbers = #tpu.dot_dimension_numbers<[1], [0], [0], [1], [0, 0, 1, 1], [], []>} : vector<32x288xbf16>, vector<288x256xbf16>, vector<32x256xf32> -> vector<32x256xf32>
    %184 = vector.broadcast %96 : vector<32x1xf32> to vector<32x256xf32>
    %185 = arith.addf %183, %184 : vector<32x256xf32>
    %cst_84 = arith.constant 0.000000e+00 : f32
    %186 = vector.broadcast %cst_84 : f32 to vector<32x256xf32>
    %187 = arith.maximumf %185, %186 : vector<32x256xf32>
    %c0_85 = arith.constant 0 : index
    %c0_86 = arith.constant 0 : index
    %c0_87 = arith.constant 0 : index
    %188 = vector.load %arg6[%c0_85, %c0_86, %c0_87] : memref<4x32x288xbf16, #tpu.memory_space<vmem>>, vector<1x32x288xbf16>
    %189 = vector.shape_cast %188 : vector<1x32x288xbf16> to vector<32x288xbf16>
    %c0_88 = arith.constant 0 : index
    %c0_89 = arith.constant 0 : index
    %c0_90 = arith.constant 0 : index
    %190 = vector.load %arg7[%c0_88, %c0_89, %c0_90] : memref<4x32x1xf32, #tpu.memory_space<vmem>>, vector<1x32x1xf32>
    %191 = vector.shape_cast %190 : vector<1x32x1xf32> to vector<32x1xf32>
    %c17_i32_91 = arith.constant 17 : i32
    %192 = tpu.dynamic_rotate %187 by %c17_i32_91 dim 1 : vector<32x256xf32>, i32 -> vector<32x256xf32>
    %cst_92 = arith.constant 0.000000e+00 : f32
    %193 = vector.broadcast %cst_92 : f32 to vector<32x256xf32>
    %194 = arith.select %107, %192, %193 : vector<32x256xi1>, vector<32x256xf32>
    %c16_i32_93 = arith.constant 16 : i32
    %195 = tpu.dynamic_rotate %187 by %c16_i32_93 dim 1 : vector<32x256xf32>, i32 -> vector<32x256xf32>
    %cst_94 = arith.constant 0.000000e+00 : f32
    %196 = vector.broadcast %cst_94 : f32 to vector<32x256xf32>
    %197 = arith.select %115, %195, %196 : vector<32x256xi1>, vector<32x256xf32>
    %c15_i32_95 = arith.constant 15 : i32
    %198 = tpu.dynamic_rotate %187 by %c15_i32_95 dim 1 : vector<32x256xf32>, i32 -> vector<32x256xf32>
    %cst_96 = arith.constant 0.000000e+00 : f32
    %199 = vector.broadcast %cst_96 : f32 to vector<32x256xf32>
    %200 = arith.select %128, %198, %199 : vector<32x256xi1>, vector<32x256xf32>
    %c1_i32_97 = arith.constant 1 : i32
    %201 = tpu.dynamic_rotate %187 by %c1_i32_97 dim 1 : vector<32x256xf32>, i32 -> vector<32x256xf32>
    %cst_98 = arith.constant 0.000000e+00 : f32
    %202 = vector.broadcast %cst_98 : f32 to vector<32x256xf32>
    %203 = arith.select %136, %201, %202 : vector<32x256xi1>, vector<32x256xf32>
    %c255_i32_99 = arith.constant 255 : i32
    %204 = tpu.dynamic_rotate %187 by %c255_i32_99 dim 1 : vector<32x256xf32>, i32 -> vector<32x256xf32>
    %cst_100 = arith.constant 0.000000e+00 : f32
    %205 = vector.broadcast %cst_100 : f32 to vector<32x256xf32>
    %206 = arith.select %144, %204, %205 : vector<32x256xi1>, vector<32x256xf32>
    %c241_i32_101 = arith.constant 241 : i32
    %207 = tpu.dynamic_rotate %187 by %c241_i32_101 dim 1 : vector<32x256xf32>, i32 -> vector<32x256xf32>
    %cst_102 = arith.constant 0.000000e+00 : f32
    %208 = vector.broadcast %cst_102 : f32 to vector<32x256xf32>
    %209 = arith.select %157, %207, %208 : vector<32x256xi1>, vector<32x256xf32>
    %c240_i32_103 = arith.constant 240 : i32
    %210 = tpu.dynamic_rotate %187 by %c240_i32_103 dim 1 : vector<32x256xf32>, i32 -> vector<32x256xf32>
    %cst_104 = arith.constant 0.000000e+00 : f32
    %211 = vector.broadcast %cst_104 : f32 to vector<32x256xf32>
    %212 = arith.select %165, %210, %211 : vector<32x256xi1>, vector<32x256xf32>
    %c239_i32_105 = arith.constant 239 : i32
    %213 = tpu.dynamic_rotate %187 by %c239_i32_105 dim 1 : vector<32x256xf32>, i32 -> vector<32x256xf32>
    %cst_106 = arith.constant 0.000000e+00 : f32
    %214 = vector.broadcast %cst_106 : f32 to vector<32x256xf32>
    %215 = arith.select %178, %213, %214 : vector<32x256xi1>, vector<32x256xf32>
    %216 = tpu.concatenate %194, %197, %200, %203, %187, %206, %209, %212, %215 in 0 : vector<32x256xf32>, vector<32x256xf32>, vector<32x256xf32>, vector<32x256xf32>, vector<32x256xf32>, vector<32x256xf32>, vector<32x256xf32>, vector<32x256xf32>, vector<32x256xf32> -> vector<288x256xf32>
    %217 = arith.truncf %216 : vector<288x256xf32> to vector<288x256xbf16>
    %cst_107 = arith.constant dense<0.000000e+00> : vector<32x256xf32>
    %218 = tpu.matmul %189, %217, %cst_107 {dimension_numbers = #tpu.dot_dimension_numbers<[1], [0], [0], [1], [0, 0, 1, 1], [], []>} : vector<32x288xbf16>, vector<288x256xbf16>, vector<32x256xf32> -> vector<32x256xf32>
    %219 = vector.broadcast %191 : vector<32x1xf32> to vector<32x256xf32>
    %220 = arith.addf %218, %219 : vector<32x256xf32>
    %221 = arith.addf %220, %92 : vector<32x256xf32>
    %c1 = arith.constant 1 : index
    %c0_108 = arith.constant 0 : index
    %c0_109 = arith.constant 0 : index
    %222 = vector.load %arg4[%c1, %c0_108, %c0_109] : memref<4x32x288xbf16, #tpu.memory_space<vmem>>, vector<1x32x288xbf16>
    %223 = vector.shape_cast %222 : vector<1x32x288xbf16> to vector<32x288xbf16>
    %c1_110 = arith.constant 1 : index
    %c0_111 = arith.constant 0 : index
    %c0_112 = arith.constant 0 : index
    %224 = vector.load %arg5[%c1_110, %c0_111, %c0_112] : memref<4x32x1xf32, #tpu.memory_space<vmem>>, vector<1x32x1xf32>
    %225 = vector.shape_cast %224 : vector<1x32x1xf32> to vector<32x1xf32>
    %c17_i32_113 = arith.constant 17 : i32
    %226 = tpu.dynamic_rotate %221 by %c17_i32_113 dim 1 : vector<32x256xf32>, i32 -> vector<32x256xf32>
    %cst_114 = arith.constant 0.000000e+00 : f32
    %227 = vector.broadcast %cst_114 : f32 to vector<32x256xf32>
    %228 = arith.select %107, %226, %227 : vector<32x256xi1>, vector<32x256xf32>
    %c16_i32_115 = arith.constant 16 : i32
    %229 = tpu.dynamic_rotate %221 by %c16_i32_115 dim 1 : vector<32x256xf32>, i32 -> vector<32x256xf32>
    %cst_116 = arith.constant 0.000000e+00 : f32
    %230 = vector.broadcast %cst_116 : f32 to vector<32x256xf32>
    %231 = arith.select %115, %229, %230 : vector<32x256xi1>, vector<32x256xf32>
    %c15_i32_117 = arith.constant 15 : i32
    %232 = tpu.dynamic_rotate %221 by %c15_i32_117 dim 1 : vector<32x256xf32>, i32 -> vector<32x256xf32>
    %cst_118 = arith.constant 0.000000e+00 : f32
    %233 = vector.broadcast %cst_118 : f32 to vector<32x256xf32>
    %234 = arith.select %128, %232, %233 : vector<32x256xi1>, vector<32x256xf32>
    %c1_i32_119 = arith.constant 1 : i32
    %235 = tpu.dynamic_rotate %221 by %c1_i32_119 dim 1 : vector<32x256xf32>, i32 -> vector<32x256xf32>
    %cst_120 = arith.constant 0.000000e+00 : f32
    %236 = vector.broadcast %cst_120 : f32 to vector<32x256xf32>
    %237 = arith.select %136, %235, %236 : vector<32x256xi1>, vector<32x256xf32>
    %c255_i32_121 = arith.constant 255 : i32
    %238 = tpu.dynamic_rotate %221 by %c255_i32_121 dim 1 : vector<32x256xf32>, i32 -> vector<32x256xf32>
    %cst_122 = arith.constant 0.000000e+00 : f32
    %239 = vector.broadcast %cst_122 : f32 to vector<32x256xf32>
    %240 = arith.select %144, %238, %239 : vector<32x256xi1>, vector<32x256xf32>
    %c241_i32_123 = arith.constant 241 : i32
    %241 = tpu.dynamic_rotate %221 by %c241_i32_123 dim 1 : vector<32x256xf32>, i32 -> vector<32x256xf32>
    %cst_124 = arith.constant 0.000000e+00 : f32
    %242 = vector.broadcast %cst_124 : f32 to vector<32x256xf32>
    %243 = arith.select %157, %241, %242 : vector<32x256xi1>, vector<32x256xf32>
    %c240_i32_125 = arith.constant 240 : i32
    %244 = tpu.dynamic_rotate %221 by %c240_i32_125 dim 1 : vector<32x256xf32>, i32 -> vector<32x256xf32>
    %cst_126 = arith.constant 0.000000e+00 : f32
    %245 = vector.broadcast %cst_126 : f32 to vector<32x256xf32>
    %246 = arith.select %165, %244, %245 : vector<32x256xi1>, vector<32x256xf32>
    %c239_i32_127 = arith.constant 239 : i32
    %247 = tpu.dynamic_rotate %221 by %c239_i32_127 dim 1 : vector<32x256xf32>, i32 -> vector<32x256xf32>
    %cst_128 = arith.constant 0.000000e+00 : f32
    %248 = vector.broadcast %cst_128 : f32 to vector<32x256xf32>
    %249 = arith.select %178, %247, %248 : vector<32x256xi1>, vector<32x256xf32>
    %250 = tpu.concatenate %228, %231, %234, %237, %221, %240, %243, %246, %249 in 0 : vector<32x256xf32>, vector<32x256xf32>, vector<32x256xf32>, vector<32x256xf32>, vector<32x256xf32>, vector<32x256xf32>, vector<32x256xf32>, vector<32x256xf32>, vector<32x256xf32> -> vector<288x256xf32>
    %251 = arith.truncf %250 : vector<288x256xf32> to vector<288x256xbf16>
    %cst_129 = arith.constant dense<0.000000e+00> : vector<32x256xf32>
    %252 = tpu.matmul %223, %251, %cst_129 {dimension_numbers = #tpu.dot_dimension_numbers<[1], [0], [0], [1], [0, 0, 1, 1], [], []>} : vector<32x288xbf16>, vector<288x256xbf16>, vector<32x256xf32> -> vector<32x256xf32>
    %253 = vector.broadcast %225 : vector<32x1xf32> to vector<32x256xf32>
    %254 = arith.addf %252, %253 : vector<32x256xf32>
    %cst_130 = arith.constant 0.000000e+00 : f32
    %255 = vector.broadcast %cst_130 : f32 to vector<32x256xf32>
    %256 = arith.maximumf %254, %255 : vector<32x256xf32>
    %c1_131 = arith.constant 1 : index
    %c0_132 = arith.constant 0 : index
    %c0_133 = arith.constant 0 : index
    %257 = vector.load %arg6[%c1_131, %c0_132, %c0_133] : memref<4x32x288xbf16, #tpu.memory_space<vmem>>, vector<1x32x288xbf16>
    %258 = vector.shape_cast %257 : vector<1x32x288xbf16> to vector<32x288xbf16>
    %c1_134 = arith.constant 1 : index
    %c0_135 = arith.constant 0 : index
    %c0_136 = arith.constant 0 : index
    %259 = vector.load %arg7[%c1_134, %c0_135, %c0_136] : memref<4x32x1xf32, #tpu.memory_space<vmem>>, vector<1x32x1xf32>
    %260 = vector.shape_cast %259 : vector<1x32x1xf32> to vector<32x1xf32>
    %c17_i32_137 = arith.constant 17 : i32
    %261 = tpu.dynamic_rotate %256 by %c17_i32_137 dim 1 : vector<32x256xf32>, i32 -> vector<32x256xf32>
    %cst_138 = arith.constant 0.000000e+00 : f32
    %262 = vector.broadcast %cst_138 : f32 to vector<32x256xf32>
    %263 = arith.select %107, %261, %262 : vector<32x256xi1>, vector<32x256xf32>
    %c16_i32_139 = arith.constant 16 : i32
    %264 = tpu.dynamic_rotate %256 by %c16_i32_139 dim 1 : vector<32x256xf32>, i32 -> vector<32x256xf32>
    %cst_140 = arith.constant 0.000000e+00 : f32
    %265 = vector.broadcast %cst_140 : f32 to vector<32x256xf32>
    %266 = arith.select %115, %264, %265 : vector<32x256xi1>, vector<32x256xf32>
    %c15_i32_141 = arith.constant 15 : i32
    %267 = tpu.dynamic_rotate %256 by %c15_i32_141 dim 1 : vector<32x256xf32>, i32 -> vector<32x256xf32>
    %cst_142 = arith.constant 0.000000e+00 : f32
    %268 = vector.broadcast %cst_142 : f32 to vector<32x256xf32>
    %269 = arith.select %128, %267, %268 : vector<32x256xi1>, vector<32x256xf32>
    %c1_i32_143 = arith.constant 1 : i32
    %270 = tpu.dynamic_rotate %256 by %c1_i32_143 dim 1 : vector<32x256xf32>, i32 -> vector<32x256xf32>
    %cst_144 = arith.constant 0.000000e+00 : f32
    %271 = vector.broadcast %cst_144 : f32 to vector<32x256xf32>
    %272 = arith.select %136, %270, %271 : vector<32x256xi1>, vector<32x256xf32>
    %c255_i32_145 = arith.constant 255 : i32
    %273 = tpu.dynamic_rotate %256 by %c255_i32_145 dim 1 : vector<32x256xf32>, i32 -> vector<32x256xf32>
    %cst_146 = arith.constant 0.000000e+00 : f32
    %274 = vector.broadcast %cst_146 : f32 to vector<32x256xf32>
    %275 = arith.select %144, %273, %274 : vector<32x256xi1>, vector<32x256xf32>
    %c241_i32_147 = arith.constant 241 : i32
    %276 = tpu.dynamic_rotate %256 by %c241_i32_147 dim 1 : vector<32x256xf32>, i32 -> vector<32x256xf32>
    %cst_148 = arith.constant 0.000000e+00 : f32
    %277 = vector.broadcast %cst_148 : f32 to vector<32x256xf32>
    %278 = arith.select %157, %276, %277 : vector<32x256xi1>, vector<32x256xf32>
    %c240_i32_149 = arith.constant 240 : i32
    %279 = tpu.dynamic_rotate %256 by %c240_i32_149 dim 1 : vector<32x256xf32>, i32 -> vector<32x256xf32>
    %cst_150 = arith.constant 0.000000e+00 : f32
    %280 = vector.broadcast %cst_150 : f32 to vector<32x256xf32>
    %281 = arith.select %165, %279, %280 : vector<32x256xi1>, vector<32x256xf32>
    %c239_i32_151 = arith.constant 239 : i32
    %282 = tpu.dynamic_rotate %256 by %c239_i32_151 dim 1 : vector<32x256xf32>, i32 -> vector<32x256xf32>
    %cst_152 = arith.constant 0.000000e+00 : f32
    %283 = vector.broadcast %cst_152 : f32 to vector<32x256xf32>
    %284 = arith.select %178, %282, %283 : vector<32x256xi1>, vector<32x256xf32>
    %285 = tpu.concatenate %263, %266, %269, %272, %256, %275, %278, %281, %284 in 0 : vector<32x256xf32>, vector<32x256xf32>, vector<32x256xf32>, vector<32x256xf32>, vector<32x256xf32>, vector<32x256xf32>, vector<32x256xf32>, vector<32x256xf32>, vector<32x256xf32> -> vector<288x256xf32>
    %286 = arith.truncf %285 : vector<288x256xf32> to vector<288x256xbf16>
    %cst_153 = arith.constant dense<0.000000e+00> : vector<32x256xf32>
    %287 = tpu.matmul %258, %286, %cst_153 {dimension_numbers = #tpu.dot_dimension_numbers<[1], [0], [0], [1], [0, 0, 1, 1], [], []>} : vector<32x288xbf16>, vector<288x256xbf16>, vector<32x256xf32> -> vector<32x256xf32>
    %288 = vector.broadcast %260 : vector<32x1xf32> to vector<32x256xf32>
    %289 = arith.addf %287, %288 : vector<32x256xf32>
    %290 = arith.addf %289, %221 : vector<32x256xf32>
    %c2 = arith.constant 2 : index
    %c0_154 = arith.constant 0 : index
    %c0_155 = arith.constant 0 : index
    %291 = vector.load %arg4[%c2, %c0_154, %c0_155] : memref<4x32x288xbf16, #tpu.memory_space<vmem>>, vector<1x32x288xbf16>
    %292 = vector.shape_cast %291 : vector<1x32x288xbf16> to vector<32x288xbf16>
    %c2_156 = arith.constant 2 : index
    %c0_157 = arith.constant 0 : index
    %c0_158 = arith.constant 0 : index
    %293 = vector.load %arg5[%c2_156, %c0_157, %c0_158] : memref<4x32x1xf32, #tpu.memory_space<vmem>>, vector<1x32x1xf32>
    %294 = vector.shape_cast %293 : vector<1x32x1xf32> to vector<32x1xf32>
    %c17_i32_159 = arith.constant 17 : i32
    %295 = tpu.dynamic_rotate %290 by %c17_i32_159 dim 1 : vector<32x256xf32>, i32 -> vector<32x256xf32>
    %cst_160 = arith.constant 0.000000e+00 : f32
    %296 = vector.broadcast %cst_160 : f32 to vector<32x256xf32>
    %297 = arith.select %107, %295, %296 : vector<32x256xi1>, vector<32x256xf32>
    %c16_i32_161 = arith.constant 16 : i32
    %298 = tpu.dynamic_rotate %290 by %c16_i32_161 dim 1 : vector<32x256xf32>, i32 -> vector<32x256xf32>
    %cst_162 = arith.constant 0.000000e+00 : f32
    %299 = vector.broadcast %cst_162 : f32 to vector<32x256xf32>
    %300 = arith.select %115, %298, %299 : vector<32x256xi1>, vector<32x256xf32>
    %c15_i32_163 = arith.constant 15 : i32
    %301 = tpu.dynamic_rotate %290 by %c15_i32_163 dim 1 : vector<32x256xf32>, i32 -> vector<32x256xf32>
    %cst_164 = arith.constant 0.000000e+00 : f32
    %302 = vector.broadcast %cst_164 : f32 to vector<32x256xf32>
    %303 = arith.select %128, %301, %302 : vector<32x256xi1>, vector<32x256xf32>
    %c1_i32_165 = arith.constant 1 : i32
    %304 = tpu.dynamic_rotate %290 by %c1_i32_165 dim 1 : vector<32x256xf32>, i32 -> vector<32x256xf32>
    %cst_166 = arith.constant 0.000000e+00 : f32
    %305 = vector.broadcast %cst_166 : f32 to vector<32x256xf32>
    %306 = arith.select %136, %304, %305 : vector<32x256xi1>, vector<32x256xf32>
    %c255_i32_167 = arith.constant 255 : i32
    %307 = tpu.dynamic_rotate %290 by %c255_i32_167 dim 1 : vector<32x256xf32>, i32 -> vector<32x256xf32>
    %cst_168 = arith.constant 0.000000e+00 : f32
    %308 = vector.broadcast %cst_168 : f32 to vector<32x256xf32>
    %309 = arith.select %144, %307, %308 : vector<32x256xi1>, vector<32x256xf32>
    %c241_i32_169 = arith.constant 241 : i32
    %310 = tpu.dynamic_rotate %290 by %c241_i32_169 dim 1 : vector<32x256xf32>, i32 -> vector<32x256xf32>
    %cst_170 = arith.constant 0.000000e+00 : f32
    %311 = vector.broadcast %cst_170 : f32 to vector<32x256xf32>
    %312 = arith.select %157, %310, %311 : vector<32x256xi1>, vector<32x256xf32>
    %c240_i32_171 = arith.constant 240 : i32
    %313 = tpu.dynamic_rotate %290 by %c240_i32_171 dim 1 : vector<32x256xf32>, i32 -> vector<32x256xf32>
    %cst_172 = arith.constant 0.000000e+00 : f32
    %314 = vector.broadcast %cst_172 : f32 to vector<32x256xf32>
    %315 = arith.select %165, %313, %314 : vector<32x256xi1>, vector<32x256xf32>
    %c239_i32_173 = arith.constant 239 : i32
    %316 = tpu.dynamic_rotate %290 by %c239_i32_173 dim 1 : vector<32x256xf32>, i32 -> vector<32x256xf32>
    %cst_174 = arith.constant 0.000000e+00 : f32
    %317 = vector.broadcast %cst_174 : f32 to vector<32x256xf32>
    %318 = arith.select %178, %316, %317 : vector<32x256xi1>, vector<32x256xf32>
    %319 = tpu.concatenate %297, %300, %303, %306, %290, %309, %312, %315, %318 in 0 : vector<32x256xf32>, vector<32x256xf32>, vector<32x256xf32>, vector<32x256xf32>, vector<32x256xf32>, vector<32x256xf32>, vector<32x256xf32>, vector<32x256xf32>, vector<32x256xf32> -> vector<288x256xf32>
    %320 = arith.truncf %319 : vector<288x256xf32> to vector<288x256xbf16>
    %cst_175 = arith.constant dense<0.000000e+00> : vector<32x256xf32>
    %321 = tpu.matmul %292, %320, %cst_175 {dimension_numbers = #tpu.dot_dimension_numbers<[1], [0], [0], [1], [0, 0, 1, 1], [], []>} : vector<32x288xbf16>, vector<288x256xbf16>, vector<32x256xf32> -> vector<32x256xf32>
    %322 = vector.broadcast %294 : vector<32x1xf32> to vector<32x256xf32>
    %323 = arith.addf %321, %322 : vector<32x256xf32>
    %cst_176 = arith.constant 0.000000e+00 : f32
    %324 = vector.broadcast %cst_176 : f32 to vector<32x256xf32>
    %325 = arith.maximumf %323, %324 : vector<32x256xf32>
    %c2_177 = arith.constant 2 : index
    %c0_178 = arith.constant 0 : index
    %c0_179 = arith.constant 0 : index
    %326 = vector.load %arg6[%c2_177, %c0_178, %c0_179] : memref<4x32x288xbf16, #tpu.memory_space<vmem>>, vector<1x32x288xbf16>
    %327 = vector.shape_cast %326 : vector<1x32x288xbf16> to vector<32x288xbf16>
    %c2_180 = arith.constant 2 : index
    %c0_181 = arith.constant 0 : index
    %c0_182 = arith.constant 0 : index
    %328 = vector.load %arg7[%c2_180, %c0_181, %c0_182] : memref<4x32x1xf32, #tpu.memory_space<vmem>>, vector<1x32x1xf32>
    %329 = vector.shape_cast %328 : vector<1x32x1xf32> to vector<32x1xf32>
    %c17_i32_183 = arith.constant 17 : i32
    %330 = tpu.dynamic_rotate %325 by %c17_i32_183 dim 1 : vector<32x256xf32>, i32 -> vector<32x256xf32>
    %cst_184 = arith.constant 0.000000e+00 : f32
    %331 = vector.broadcast %cst_184 : f32 to vector<32x256xf32>
    %332 = arith.select %107, %330, %331 : vector<32x256xi1>, vector<32x256xf32>
    %c16_i32_185 = arith.constant 16 : i32
    %333 = tpu.dynamic_rotate %325 by %c16_i32_185 dim 1 : vector<32x256xf32>, i32 -> vector<32x256xf32>
    %cst_186 = arith.constant 0.000000e+00 : f32
    %334 = vector.broadcast %cst_186 : f32 to vector<32x256xf32>
    %335 = arith.select %115, %333, %334 : vector<32x256xi1>, vector<32x256xf32>
    %c15_i32_187 = arith.constant 15 : i32
    %336 = tpu.dynamic_rotate %325 by %c15_i32_187 dim 1 : vector<32x256xf32>, i32 -> vector<32x256xf32>
    %cst_188 = arith.constant 0.000000e+00 : f32
    %337 = vector.broadcast %cst_188 : f32 to vector<32x256xf32>
    %338 = arith.select %128, %336, %337 : vector<32x256xi1>, vector<32x256xf32>
    %c1_i32_189 = arith.constant 1 : i32
    %339 = tpu.dynamic_rotate %325 by %c1_i32_189 dim 1 : vector<32x256xf32>, i32 -> vector<32x256xf32>
    %cst_190 = arith.constant 0.000000e+00 : f32
    %340 = vector.broadcast %cst_190 : f32 to vector<32x256xf32>
    %341 = arith.select %136, %339, %340 : vector<32x256xi1>, vector<32x256xf32>
    %c255_i32_191 = arith.constant 255 : i32
    %342 = tpu.dynamic_rotate %325 by %c255_i32_191 dim 1 : vector<32x256xf32>, i32 -> vector<32x256xf32>
    %cst_192 = arith.constant 0.000000e+00 : f32
    %343 = vector.broadcast %cst_192 : f32 to vector<32x256xf32>
    %344 = arith.select %144, %342, %343 : vector<32x256xi1>, vector<32x256xf32>
    %c241_i32_193 = arith.constant 241 : i32
    %345 = tpu.dynamic_rotate %325 by %c241_i32_193 dim 1 : vector<32x256xf32>, i32 -> vector<32x256xf32>
    %cst_194 = arith.constant 0.000000e+00 : f32
    %346 = vector.broadcast %cst_194 : f32 to vector<32x256xf32>
    %347 = arith.select %157, %345, %346 : vector<32x256xi1>, vector<32x256xf32>
    %c240_i32_195 = arith.constant 240 : i32
    %348 = tpu.dynamic_rotate %325 by %c240_i32_195 dim 1 : vector<32x256xf32>, i32 -> vector<32x256xf32>
    %cst_196 = arith.constant 0.000000e+00 : f32
    %349 = vector.broadcast %cst_196 : f32 to vector<32x256xf32>
    %350 = arith.select %165, %348, %349 : vector<32x256xi1>, vector<32x256xf32>
    %c239_i32_197 = arith.constant 239 : i32
    %351 = tpu.dynamic_rotate %325 by %c239_i32_197 dim 1 : vector<32x256xf32>, i32 -> vector<32x256xf32>
    %cst_198 = arith.constant 0.000000e+00 : f32
    %352 = vector.broadcast %cst_198 : f32 to vector<32x256xf32>
    %353 = arith.select %178, %351, %352 : vector<32x256xi1>, vector<32x256xf32>
    %354 = tpu.concatenate %332, %335, %338, %341, %325, %344, %347, %350, %353 in 0 : vector<32x256xf32>, vector<32x256xf32>, vector<32x256xf32>, vector<32x256xf32>, vector<32x256xf32>, vector<32x256xf32>, vector<32x256xf32>, vector<32x256xf32>, vector<32x256xf32> -> vector<288x256xf32>
    %355 = arith.truncf %354 : vector<288x256xf32> to vector<288x256xbf16>
    %cst_199 = arith.constant dense<0.000000e+00> : vector<32x256xf32>
    %356 = tpu.matmul %327, %355, %cst_199 {dimension_numbers = #tpu.dot_dimension_numbers<[1], [0], [0], [1], [0, 0, 1, 1], [], []>} : vector<32x288xbf16>, vector<288x256xbf16>, vector<32x256xf32> -> vector<32x256xf32>
    %357 = vector.broadcast %329 : vector<32x1xf32> to vector<32x256xf32>
    %358 = arith.addf %356, %357 : vector<32x256xf32>
    %359 = arith.addf %358, %290 : vector<32x256xf32>
    %c3 = arith.constant 3 : index
    %c0_200 = arith.constant 0 : index
    %c0_201 = arith.constant 0 : index
    %360 = vector.load %arg4[%c3, %c0_200, %c0_201] : memref<4x32x288xbf16, #tpu.memory_space<vmem>>, vector<1x32x288xbf16>
    %361 = vector.shape_cast %360 : vector<1x32x288xbf16> to vector<32x288xbf16>
    %c3_202 = arith.constant 3 : index
    %c0_203 = arith.constant 0 : index
    %c0_204 = arith.constant 0 : index
    %362 = vector.load %arg5[%c3_202, %c0_203, %c0_204] : memref<4x32x1xf32, #tpu.memory_space<vmem>>, vector<1x32x1xf32>
    %363 = vector.shape_cast %362 : vector<1x32x1xf32> to vector<32x1xf32>
    %c17_i32_205 = arith.constant 17 : i32
    %364 = tpu.dynamic_rotate %359 by %c17_i32_205 dim 1 : vector<32x256xf32>, i32 -> vector<32x256xf32>
    %cst_206 = arith.constant 0.000000e+00 : f32
    %365 = vector.broadcast %cst_206 : f32 to vector<32x256xf32>
    %366 = arith.select %107, %364, %365 : vector<32x256xi1>, vector<32x256xf32>
    %c16_i32_207 = arith.constant 16 : i32
    %367 = tpu.dynamic_rotate %359 by %c16_i32_207 dim 1 : vector<32x256xf32>, i32 -> vector<32x256xf32>
    %cst_208 = arith.constant 0.000000e+00 : f32
    %368 = vector.broadcast %cst_208 : f32 to vector<32x256xf32>
    %369 = arith.select %115, %367, %368 : vector<32x256xi1>, vector<32x256xf32>
    %c15_i32_209 = arith.constant 15 : i32
    %370 = tpu.dynamic_rotate %359 by %c15_i32_209 dim 1 : vector<32x256xf32>, i32 -> vector<32x256xf32>
    %cst_210 = arith.constant 0.000000e+00 : f32
    %371 = vector.broadcast %cst_210 : f32 to vector<32x256xf32>
    %372 = arith.select %128, %370, %371 : vector<32x256xi1>, vector<32x256xf32>
    %c1_i32_211 = arith.constant 1 : i32
    %373 = tpu.dynamic_rotate %359 by %c1_i32_211 dim 1 : vector<32x256xf32>, i32 -> vector<32x256xf32>
    %cst_212 = arith.constant 0.000000e+00 : f32
    %374 = vector.broadcast %cst_212 : f32 to vector<32x256xf32>
    %375 = arith.select %136, %373, %374 : vector<32x256xi1>, vector<32x256xf32>
    %c255_i32_213 = arith.constant 255 : i32
    %376 = tpu.dynamic_rotate %359 by %c255_i32_213 dim 1 : vector<32x256xf32>, i32 -> vector<32x256xf32>
    %cst_214 = arith.constant 0.000000e+00 : f32
    %377 = vector.broadcast %cst_214 : f32 to vector<32x256xf32>
    %378 = arith.select %144, %376, %377 : vector<32x256xi1>, vector<32x256xf32>
    %c241_i32_215 = arith.constant 241 : i32
    %379 = tpu.dynamic_rotate %359 by %c241_i32_215 dim 1 : vector<32x256xf32>, i32 -> vector<32x256xf32>
    %cst_216 = arith.constant 0.000000e+00 : f32
    %380 = vector.broadcast %cst_216 : f32 to vector<32x256xf32>
    %381 = arith.select %157, %379, %380 : vector<32x256xi1>, vector<32x256xf32>
    %c240_i32_217 = arith.constant 240 : i32
    %382 = tpu.dynamic_rotate %359 by %c240_i32_217 dim 1 : vector<32x256xf32>, i32 -> vector<32x256xf32>
    %cst_218 = arith.constant 0.000000e+00 : f32
    %383 = vector.broadcast %cst_218 : f32 to vector<32x256xf32>
    %384 = arith.select %165, %382, %383 : vector<32x256xi1>, vector<32x256xf32>
    %c239_i32_219 = arith.constant 239 : i32
    %385 = tpu.dynamic_rotate %359 by %c239_i32_219 dim 1 : vector<32x256xf32>, i32 -> vector<32x256xf32>
    %cst_220 = arith.constant 0.000000e+00 : f32
    %386 = vector.broadcast %cst_220 : f32 to vector<32x256xf32>
    %387 = arith.select %178, %385, %386 : vector<32x256xi1>, vector<32x256xf32>
    %388 = tpu.concatenate %366, %369, %372, %375, %359, %378, %381, %384, %387 in 0 : vector<32x256xf32>, vector<32x256xf32>, vector<32x256xf32>, vector<32x256xf32>, vector<32x256xf32>, vector<32x256xf32>, vector<32x256xf32>, vector<32x256xf32>, vector<32x256xf32> -> vector<288x256xf32>
    %389 = arith.truncf %388 : vector<288x256xf32> to vector<288x256xbf16>
    %cst_221 = arith.constant dense<0.000000e+00> : vector<32x256xf32>
    %390 = tpu.matmul %361, %389, %cst_221 {dimension_numbers = #tpu.dot_dimension_numbers<[1], [0], [0], [1], [0, 0, 1, 1], [], []>} : vector<32x288xbf16>, vector<288x256xbf16>, vector<32x256xf32> -> vector<32x256xf32>
    %391 = vector.broadcast %363 : vector<32x1xf32> to vector<32x256xf32>
    %392 = arith.addf %390, %391 : vector<32x256xf32>
    %cst_222 = arith.constant 0.000000e+00 : f32
    %393 = vector.broadcast %cst_222 : f32 to vector<32x256xf32>
    %394 = arith.maximumf %392, %393 : vector<32x256xf32>
    %c3_223 = arith.constant 3 : index
    %c0_224 = arith.constant 0 : index
    %c0_225 = arith.constant 0 : index
    %395 = vector.load %arg6[%c3_223, %c0_224, %c0_225] : memref<4x32x288xbf16, #tpu.memory_space<vmem>>, vector<1x32x288xbf16>
    %396 = vector.shape_cast %395 : vector<1x32x288xbf16> to vector<32x288xbf16>
    %c3_226 = arith.constant 3 : index
    %c0_227 = arith.constant 0 : index
    %c0_228 = arith.constant 0 : index
    %397 = vector.load %arg7[%c3_226, %c0_227, %c0_228] : memref<4x32x1xf32, #tpu.memory_space<vmem>>, vector<1x32x1xf32>
    %398 = vector.shape_cast %397 : vector<1x32x1xf32> to vector<32x1xf32>
    %c17_i32_229 = arith.constant 17 : i32
    %399 = tpu.dynamic_rotate %394 by %c17_i32_229 dim 1 : vector<32x256xf32>, i32 -> vector<32x256xf32>
    %cst_230 = arith.constant 0.000000e+00 : f32
    %400 = vector.broadcast %cst_230 : f32 to vector<32x256xf32>
    %401 = arith.select %107, %399, %400 : vector<32x256xi1>, vector<32x256xf32>
    %c16_i32_231 = arith.constant 16 : i32
    %402 = tpu.dynamic_rotate %394 by %c16_i32_231 dim 1 : vector<32x256xf32>, i32 -> vector<32x256xf32>
    %cst_232 = arith.constant 0.000000e+00 : f32
    %403 = vector.broadcast %cst_232 : f32 to vector<32x256xf32>
    %404 = arith.select %115, %402, %403 : vector<32x256xi1>, vector<32x256xf32>
    %c15_i32_233 = arith.constant 15 : i32
    %405 = tpu.dynamic_rotate %394 by %c15_i32_233 dim 1 : vector<32x256xf32>, i32 -> vector<32x256xf32>
    %cst_234 = arith.constant 0.000000e+00 : f32
    %406 = vector.broadcast %cst_234 : f32 to vector<32x256xf32>
    %407 = arith.select %128, %405, %406 : vector<32x256xi1>, vector<32x256xf32>
    %c1_i32_235 = arith.constant 1 : i32
    %408 = tpu.dynamic_rotate %394 by %c1_i32_235 dim 1 : vector<32x256xf32>, i32 -> vector<32x256xf32>
    %cst_236 = arith.constant 0.000000e+00 : f32
    %409 = vector.broadcast %cst_236 : f32 to vector<32x256xf32>
    %410 = arith.select %136, %408, %409 : vector<32x256xi1>, vector<32x256xf32>
    %c255_i32_237 = arith.constant 255 : i32
    %411 = tpu.dynamic_rotate %394 by %c255_i32_237 dim 1 : vector<32x256xf32>, i32 -> vector<32x256xf32>
    %cst_238 = arith.constant 0.000000e+00 : f32
    %412 = vector.broadcast %cst_238 : f32 to vector<32x256xf32>
    %413 = arith.select %144, %411, %412 : vector<32x256xi1>, vector<32x256xf32>
    %c241_i32_239 = arith.constant 241 : i32
    %414 = tpu.dynamic_rotate %394 by %c241_i32_239 dim 1 : vector<32x256xf32>, i32 -> vector<32x256xf32>
    %cst_240 = arith.constant 0.000000e+00 : f32
    %415 = vector.broadcast %cst_240 : f32 to vector<32x256xf32>
    %416 = arith.select %157, %414, %415 : vector<32x256xi1>, vector<32x256xf32>
    %c240_i32_241 = arith.constant 240 : i32
    %417 = tpu.dynamic_rotate %394 by %c240_i32_241 dim 1 : vector<32x256xf32>, i32 -> vector<32x256xf32>
    %cst_242 = arith.constant 0.000000e+00 : f32
    %418 = vector.broadcast %cst_242 : f32 to vector<32x256xf32>
    %419 = arith.select %165, %417, %418 : vector<32x256xi1>, vector<32x256xf32>
    %c239_i32_243 = arith.constant 239 : i32
    %420 = tpu.dynamic_rotate %394 by %c239_i32_243 dim 1 : vector<32x256xf32>, i32 -> vector<32x256xf32>
    %cst_244 = arith.constant 0.000000e+00 : f32
    %421 = vector.broadcast %cst_244 : f32 to vector<32x256xf32>
    %422 = arith.select %178, %420, %421 : vector<32x256xi1>, vector<32x256xf32>
    %423 = tpu.concatenate %401, %404, %407, %410, %394, %413, %416, %419, %422 in 0 : vector<32x256xf32>, vector<32x256xf32>, vector<32x256xf32>, vector<32x256xf32>, vector<32x256xf32>, vector<32x256xf32>, vector<32x256xf32>, vector<32x256xf32>, vector<32x256xf32> -> vector<288x256xf32>
    %424 = arith.truncf %423 : vector<288x256xf32> to vector<288x256xbf16>
    %cst_245 = arith.constant dense<0.000000e+00> : vector<32x256xf32>
    %425 = tpu.matmul %396, %424, %cst_245 {dimension_numbers = #tpu.dot_dimension_numbers<[1], [0], [0], [1], [0, 0, 1, 1], [], []>} : vector<32x288xbf16>, vector<288x256xbf16>, vector<32x256xf32> -> vector<32x256xf32>
    %426 = vector.broadcast %398 : vector<32x1xf32> to vector<32x256xf32>
    %427 = arith.addf %425, %426 : vector<32x256xf32>
    %428 = arith.addf %427, %359 : vector<32x256xf32>
    %c0_246 = arith.constant 0 : index
    %c0_247 = arith.constant 0 : index
    %429 = vector.load %arg8[%c0_246, %c0_247] : memref<32x288xbf16, #tpu.memory_space<vmem>>, vector<32x288xbf16>
    %c0_248 = arith.constant 0 : index
    %c0_249 = arith.constant 0 : index
    %430 = vector.load %arg9[%c0_248, %c0_249] : memref<32x1xf32, #tpu.memory_space<vmem>>, vector<32x1xf32>
    %c17_i32_250 = arith.constant 17 : i32
    %431 = tpu.dynamic_rotate %428 by %c17_i32_250 dim 1 : vector<32x256xf32>, i32 -> vector<32x256xf32>
    %cst_251 = arith.constant 0.000000e+00 : f32
    %432 = vector.broadcast %cst_251 : f32 to vector<32x256xf32>
    %433 = arith.select %107, %431, %432 : vector<32x256xi1>, vector<32x256xf32>
    %c16_i32_252 = arith.constant 16 : i32
    %434 = tpu.dynamic_rotate %428 by %c16_i32_252 dim 1 : vector<32x256xf32>, i32 -> vector<32x256xf32>
    %cst_253 = arith.constant 0.000000e+00 : f32
    %435 = vector.broadcast %cst_253 : f32 to vector<32x256xf32>
    %436 = arith.select %115, %434, %435 : vector<32x256xi1>, vector<32x256xf32>
    %c15_i32_254 = arith.constant 15 : i32
    %437 = tpu.dynamic_rotate %428 by %c15_i32_254 dim 1 : vector<32x256xf32>, i32 -> vector<32x256xf32>
    %cst_255 = arith.constant 0.000000e+00 : f32
    %438 = vector.broadcast %cst_255 : f32 to vector<32x256xf32>
    %439 = arith.select %128, %437, %438 : vector<32x256xi1>, vector<32x256xf32>
    %c1_i32_256 = arith.constant 1 : i32
    %440 = tpu.dynamic_rotate %428 by %c1_i32_256 dim 1 : vector<32x256xf32>, i32 -> vector<32x256xf32>
    %cst_257 = arith.constant 0.000000e+00 : f32
    %441 = vector.broadcast %cst_257 : f32 to vector<32x256xf32>
    %442 = arith.select %136, %440, %441 : vector<32x256xi1>, vector<32x256xf32>
    %c255_i32_258 = arith.constant 255 : i32
    %443 = tpu.dynamic_rotate %428 by %c255_i32_258 dim 1 : vector<32x256xf32>, i32 -> vector<32x256xf32>
    %cst_259 = arith.constant 0.000000e+00 : f32
    %444 = vector.broadcast %cst_259 : f32 to vector<32x256xf32>
    %445 = arith.select %144, %443, %444 : vector<32x256xi1>, vector<32x256xf32>
    %c241_i32_260 = arith.constant 241 : i32
    %446 = tpu.dynamic_rotate %428 by %c241_i32_260 dim 1 : vector<32x256xf32>, i32 -> vector<32x256xf32>
    %cst_261 = arith.constant 0.000000e+00 : f32
    %447 = vector.broadcast %cst_261 : f32 to vector<32x256xf32>
    %448 = arith.select %157, %446, %447 : vector<32x256xi1>, vector<32x256xf32>
    %c240_i32_262 = arith.constant 240 : i32
    %449 = tpu.dynamic_rotate %428 by %c240_i32_262 dim 1 : vector<32x256xf32>, i32 -> vector<32x256xf32>
    %cst_263 = arith.constant 0.000000e+00 : f32
    %450 = vector.broadcast %cst_263 : f32 to vector<32x256xf32>
    %451 = arith.select %165, %449, %450 : vector<32x256xi1>, vector<32x256xf32>
    %c239_i32_264 = arith.constant 239 : i32
    %452 = tpu.dynamic_rotate %428 by %c239_i32_264 dim 1 : vector<32x256xf32>, i32 -> vector<32x256xf32>
    %cst_265 = arith.constant 0.000000e+00 : f32
    %453 = vector.broadcast %cst_265 : f32 to vector<32x256xf32>
    %454 = arith.select %178, %452, %453 : vector<32x256xi1>, vector<32x256xf32>
    %455 = tpu.concatenate %433, %436, %439, %442, %428, %445, %448, %451, %454 in 0 : vector<32x256xf32>, vector<32x256xf32>, vector<32x256xf32>, vector<32x256xf32>, vector<32x256xf32>, vector<32x256xf32>, vector<32x256xf32>, vector<32x256xf32>, vector<32x256xf32> -> vector<288x256xf32>
    %456 = arith.truncf %455 : vector<288x256xf32> to vector<288x256xbf16>
    %cst_266 = arith.constant dense<0.000000e+00> : vector<32x256xf32>
    %457 = tpu.matmul %429, %456, %cst_266 {dimension_numbers = #tpu.dot_dimension_numbers<[1], [0], [0], [1], [0, 0, 1, 1], [], []>} : vector<32x288xbf16>, vector<288x256xbf16>, vector<32x256xf32> -> vector<32x256xf32>
    %458 = vector.broadcast %430 : vector<32x1xf32> to vector<32x256xf32>
    %459 = arith.addf %457, %458 : vector<32x256xf32>
    %460 = arith.addf %459, %92 : vector<32x256xf32>
    %c0_267 = arith.constant 0 : index
    %c0_268 = arith.constant 0 : index
    %461 = vector.load %arg10[%c0_267, %c0_268] : memref<128x288xbf16, #tpu.memory_space<vmem>>, vector<128x288xbf16>
    %c0_269 = arith.constant 0 : index
    %c0_270 = arith.constant 0 : index
    %462 = vector.load %arg11[%c0_269, %c0_270] : memref<128x1xf32, #tpu.memory_space<vmem>>, vector<128x1xf32>
    %c17_i32_271 = arith.constant 17 : i32
    %463 = tpu.dynamic_rotate %460 by %c17_i32_271 dim 1 : vector<32x256xf32>, i32 -> vector<32x256xf32>
    %cst_272 = arith.constant 0.000000e+00 : f32
    %464 = vector.broadcast %cst_272 : f32 to vector<32x256xf32>
    %465 = arith.select %107, %463, %464 : vector<32x256xi1>, vector<32x256xf32>
    %c16_i32_273 = arith.constant 16 : i32
    %466 = tpu.dynamic_rotate %460 by %c16_i32_273 dim 1 : vector<32x256xf32>, i32 -> vector<32x256xf32>
    %cst_274 = arith.constant 0.000000e+00 : f32
    %467 = vector.broadcast %cst_274 : f32 to vector<32x256xf32>
    %468 = arith.select %115, %466, %467 : vector<32x256xi1>, vector<32x256xf32>
    %c15_i32_275 = arith.constant 15 : i32
    %469 = tpu.dynamic_rotate %460 by %c15_i32_275 dim 1 : vector<32x256xf32>, i32 -> vector<32x256xf32>
    %cst_276 = arith.constant 0.000000e+00 : f32
    %470 = vector.broadcast %cst_276 : f32 to vector<32x256xf32>
    %471 = arith.select %128, %469, %470 : vector<32x256xi1>, vector<32x256xf32>
    %c1_i32_277 = arith.constant 1 : i32
    %472 = tpu.dynamic_rotate %460 by %c1_i32_277 dim 1 : vector<32x256xf32>, i32 -> vector<32x256xf32>
    %cst_278 = arith.constant 0.000000e+00 : f32
    %473 = vector.broadcast %cst_278 : f32 to vector<32x256xf32>
    %474 = arith.select %136, %472, %473 : vector<32x256xi1>, vector<32x256xf32>
    %c255_i32_279 = arith.constant 255 : i32
    %475 = tpu.dynamic_rotate %460 by %c255_i32_279 dim 1 : vector<32x256xf32>, i32 -> vector<32x256xf32>
    %cst_280 = arith.constant 0.000000e+00 : f32
    %476 = vector.broadcast %cst_280 : f32 to vector<32x256xf32>
    %477 = arith.select %144, %475, %476 : vector<32x256xi1>, vector<32x256xf32>
    %c241_i32_281 = arith.constant 241 : i32
    %478 = tpu.dynamic_rotate %460 by %c241_i32_281 dim 1 : vector<32x256xf32>, i32 -> vector<32x256xf32>
    %cst_282 = arith.constant 0.000000e+00 : f32
    %479 = vector.broadcast %cst_282 : f32 to vector<32x256xf32>
    %480 = arith.select %157, %478, %479 : vector<32x256xi1>, vector<32x256xf32>
    %c240_i32_283 = arith.constant 240 : i32
    %481 = tpu.dynamic_rotate %460 by %c240_i32_283 dim 1 : vector<32x256xf32>, i32 -> vector<32x256xf32>
    %cst_284 = arith.constant 0.000000e+00 : f32
    %482 = vector.broadcast %cst_284 : f32 to vector<32x256xf32>
    %483 = arith.select %165, %481, %482 : vector<32x256xi1>, vector<32x256xf32>
    %c239_i32_285 = arith.constant 239 : i32
    %484 = tpu.dynamic_rotate %460 by %c239_i32_285 dim 1 : vector<32x256xf32>, i32 -> vector<32x256xf32>
    %cst_286 = arith.constant 0.000000e+00 : f32
    %485 = vector.broadcast %cst_286 : f32 to vector<32x256xf32>
    %486 = arith.select %178, %484, %485 : vector<32x256xi1>, vector<32x256xf32>
    %487 = tpu.concatenate %465, %468, %471, %474, %460, %477, %480, %483, %486 in 0 : vector<32x256xf32>, vector<32x256xf32>, vector<32x256xf32>, vector<32x256xf32>, vector<32x256xf32>, vector<32x256xf32>, vector<32x256xf32>, vector<32x256xf32>, vector<32x256xf32> -> vector<288x256xf32>
    %488 = arith.truncf %487 : vector<288x256xf32> to vector<288x256xbf16>
    %cst_287 = arith.constant dense<0.000000e+00> : vector<128x256xf32>
    %489 = tpu.matmul %461, %488, %cst_287 {dimension_numbers = #tpu.dot_dimension_numbers<[1], [0], [0], [1], [0, 0, 1, 1], [], []>} : vector<128x288xbf16>, vector<288x256xbf16>, vector<128x256xf32> -> vector<128x256xf32>
    %490 = vector.broadcast %462 : vector<128x1xf32> to vector<128x256xf32>
    %491 = arith.addf %489, %490 : vector<128x256xf32>
    %cst_288 = arith.constant 0.000000e+00 : f32
    %492 = vector.broadcast %cst_288 : f32 to vector<128x256xf32>
    %493 = arith.maximumf %491, %492 : vector<128x256xf32>
    %494 = vector.extract_strided_slice %493 {offsets = [0, 0], sizes = [32, 256], strides = [1, 1]} : vector<128x256xf32> to vector<32x256xf32>
    %495 = vector.extract_strided_slice %493 {offsets = [32, 0], sizes = [32, 256], strides = [1, 1]} : vector<128x256xf32> to vector<32x256xf32>
    %496 = vector.extract_strided_slice %493 {offsets = [64, 0], sizes = [32, 256], strides = [1, 1]} : vector<128x256xf32> to vector<32x256xf32>
    %497 = vector.extract_strided_slice %493 {offsets = [96, 0], sizes = [32, 256], strides = [1, 1]} : vector<128x256xf32> to vector<32x256xf32>
    %c17_i32_289 = arith.constant 17 : i32
    %498 = tpu.dynamic_rotate %497 by %c17_i32_289 dim 1 : vector<32x256xf32>, i32 -> vector<32x256xf32>
    %cst_290 = arith.constant 0.000000e+00 : f32
    %499 = vector.broadcast %cst_290 : f32 to vector<32x256xf32>
    %500 = arith.select %107, %498, %499 : vector<32x256xi1>, vector<32x256xf32>
    %501 = arith.truncf %500 : vector<32x256xf32> to vector<32x256xbf16>
    %c16_i32_291 = arith.constant 16 : i32
    %502 = tpu.dynamic_rotate %496 by %c16_i32_291 dim 1 : vector<32x256xf32>, i32 -> vector<32x256xf32>
    %cst_292 = arith.constant 0.000000e+00 : f32
    %503 = vector.broadcast %cst_292 : f32 to vector<32x256xf32>
    %504 = arith.select %115, %502, %503 : vector<32x256xi1>, vector<32x256xf32>
    %505 = arith.truncf %504 : vector<32x256xf32> to vector<32x256xbf16>
    %c16_i32_293 = arith.constant 16 : i32
    %506 = tpu.dynamic_rotate %497 by %c16_i32_293 dim 1 : vector<32x256xf32>, i32 -> vector<32x256xf32>
    %cst_294 = arith.constant 0.000000e+00 : f32
    %507 = vector.broadcast %cst_294 : f32 to vector<32x256xf32>
    %508 = arith.select %115, %506, %507 : vector<32x256xi1>, vector<32x256xf32>
    %509 = arith.truncf %508 : vector<32x256xf32> to vector<32x256xbf16>
    %c1_i32_295 = arith.constant 1 : i32
    %510 = tpu.dynamic_rotate %495 by %c1_i32_295 dim 1 : vector<32x256xf32>, i32 -> vector<32x256xf32>
    %cst_296 = arith.constant 0.000000e+00 : f32
    %511 = vector.broadcast %cst_296 : f32 to vector<32x256xf32>
    %512 = arith.select %136, %510, %511 : vector<32x256xi1>, vector<32x256xf32>
    %513 = arith.truncf %512 : vector<32x256xf32> to vector<32x256xbf16>
    %514 = arith.truncf %494 : vector<32x256xf32> to vector<32x256xbf16>
    %515 = arith.truncf %495 : vector<32x256xf32> to vector<32x256xbf16>
    %c1_i32_297 = arith.constant 1 : i32
    %516 = tpu.dynamic_rotate %497 by %c1_i32_297 dim 1 : vector<32x256xf32>, i32 -> vector<32x256xf32>
    %cst_298 = arith.constant 0.000000e+00 : f32
    %517 = vector.broadcast %cst_298 : f32 to vector<32x256xf32>
    %518 = arith.select %136, %516, %517 : vector<32x256xi1>, vector<32x256xf32>
    %519 = arith.truncf %518 : vector<32x256xf32> to vector<32x256xbf16>
    %520 = arith.truncf %496 : vector<32x256xf32> to vector<32x256xbf16>
    %521 = arith.truncf %497 : vector<32x256xf32> to vector<32x256xbf16>
    %522 = tpu.concatenate %501, %505, %509, %513, %514, %515, %519, %520, %521 in 0 : vector<32x256xbf16>, vector<32x256xbf16>, vector<32x256xbf16>, vector<32x256xbf16>, vector<32x256xbf16>, vector<32x256xbf16>, vector<32x256xbf16>, vector<32x256xbf16>, vector<32x256xbf16> -> vector<288x256xbf16>
    %c15_i32_299 = arith.constant 15 : i32
    %523 = tpu.dynamic_rotate %496 by %c15_i32_299 dim 1 : vector<32x256xf32>, i32 -> vector<32x256xf32>
    %cst_300 = arith.constant 0.000000e+00 : f32
    %524 = vector.broadcast %cst_300 : f32 to vector<32x256xf32>
    %525 = arith.select %128, %523, %524 : vector<32x256xi1>, vector<32x256xf32>
    %526 = arith.truncf %525 : vector<32x256xf32> to vector<32x256xbf16>
    %c255_i32_301 = arith.constant 255 : i32
    %527 = tpu.dynamic_rotate %494 by %c255_i32_301 dim 1 : vector<32x256xf32>, i32 -> vector<32x256xf32>
    %cst_302 = arith.constant 0.000000e+00 : f32
    %528 = vector.broadcast %cst_302 : f32 to vector<32x256xf32>
    %529 = arith.select %144, %527, %528 : vector<32x256xi1>, vector<32x256xf32>
    %530 = arith.truncf %529 : vector<32x256xf32> to vector<32x256xbf16>
    %c255_i32_303 = arith.constant 255 : i32
    %531 = tpu.dynamic_rotate %496 by %c255_i32_303 dim 1 : vector<32x256xf32>, i32 -> vector<32x256xf32>
    %cst_304 = arith.constant 0.000000e+00 : f32
    %532 = vector.broadcast %cst_304 : f32 to vector<32x256xf32>
    %533 = arith.select %144, %531, %532 : vector<32x256xi1>, vector<32x256xf32>
    %534 = arith.truncf %533 : vector<32x256xf32> to vector<32x256xbf16>
    %535 = tpu.concatenate %505, %509, %526, %514, %515, %530, %520, %521, %534 in 0 : vector<32x256xbf16>, vector<32x256xbf16>, vector<32x256xbf16>, vector<32x256xbf16>, vector<32x256xbf16>, vector<32x256xbf16>, vector<32x256xbf16>, vector<32x256xbf16>, vector<32x256xbf16> -> vector<288x256xbf16>
    %c241_i32_305 = arith.constant 241 : i32
    %536 = tpu.dynamic_rotate %495 by %c241_i32_305 dim 1 : vector<32x256xf32>, i32 -> vector<32x256xf32>
    %cst_306 = arith.constant 0.000000e+00 : f32
    %537 = vector.broadcast %cst_306 : f32 to vector<32x256xf32>
    %538 = arith.select %157, %536, %537 : vector<32x256xi1>, vector<32x256xf32>
    %539 = arith.truncf %538 : vector<32x256xf32> to vector<32x256xbf16>
    %c240_i32_307 = arith.constant 240 : i32
    %540 = tpu.dynamic_rotate %494 by %c240_i32_307 dim 1 : vector<32x256xf32>, i32 -> vector<32x256xf32>
    %cst_308 = arith.constant 0.000000e+00 : f32
    %541 = vector.broadcast %cst_308 : f32 to vector<32x256xf32>
    %542 = arith.select %165, %540, %541 : vector<32x256xi1>, vector<32x256xf32>
    %543 = arith.truncf %542 : vector<32x256xf32> to vector<32x256xbf16>
    %c240_i32_309 = arith.constant 240 : i32
    %544 = tpu.dynamic_rotate %495 by %c240_i32_309 dim 1 : vector<32x256xf32>, i32 -> vector<32x256xf32>
    %cst_310 = arith.constant 0.000000e+00 : f32
    %545 = vector.broadcast %cst_310 : f32 to vector<32x256xf32>
    %546 = arith.select %165, %544, %545 : vector<32x256xi1>, vector<32x256xf32>
    %547 = arith.truncf %546 : vector<32x256xf32> to vector<32x256xbf16>
    %548 = tpu.concatenate %513, %514, %515, %519, %520, %521, %539, %543, %547 in 0 : vector<32x256xbf16>, vector<32x256xbf16>, vector<32x256xbf16>, vector<32x256xbf16>, vector<32x256xbf16>, vector<32x256xbf16>, vector<32x256xbf16>, vector<32x256xbf16>, vector<32x256xbf16> -> vector<288x256xbf16>
    %c239_i32_311 = arith.constant 239 : i32
    %549 = tpu.dynamic_rotate %494 by %c239_i32_311 dim 1 : vector<32x256xf32>, i32 -> vector<32x256xf32>
    %cst_312 = arith.constant 0.000000e+00 : f32
    %550 = vector.broadcast %cst_312 : f32 to vector<32x256xf32>
    %551 = arith.select %178, %549, %550 : vector<32x256xi1>, vector<32x256xf32>
    %552 = arith.truncf %551 : vector<32x256xf32> to vector<32x256xbf16>
    %553 = tpu.concatenate %514, %515, %530, %520, %521, %534, %543, %547, %552 in 0 : vector<32x256xbf16>, vector<32x256xbf16>, vector<32x256xbf16>, vector<32x256xbf16>, vector<32x256xbf16>, vector<32x256xbf16>, vector<32x256xbf16>, vector<32x256xbf16>, vector<32x256xbf16> -> vector<288x256xbf16>
    %554 = tpu.concatenate %522, %535, %548, %553 in 1 : vector<288x256xbf16>, vector<288x256xbf16>, vector<288x256xbf16>, vector<288x256xbf16> -> vector<288x1024xbf16>
    %c0_313 = arith.constant 0 : index
    %c0_314 = arith.constant 0 : index
    %555 = vector.load %arg12[%c0_313, %c0_314] : memref<4x288xbf16, #tpu.memory_space<vmem>>, vector<4x288xbf16>
    %cst_315 = arith.constant dense<0.000000e+00> : vector<4x1024xf32>
    %556 = tpu.matmul %555, %554, %cst_315 {dimension_numbers = #tpu.dot_dimension_numbers<[1], [0], [0], [1], [0, 0, 1, 1], [], []>} : vector<4x288xbf16>, vector<288x1024xbf16>, vector<4x1024xf32> -> vector<4x1024xf32>
    %c0_316 = arith.constant 0 : index
    %c0_317 = arith.constant 0 : index
    %557 = vector.load %arg13[%c0_316, %c0_317] : memref<4x1xf32, #tpu.memory_space<vmem>>, vector<4x1xf32>
    %558 = vector.broadcast %557 : vector<4x1xf32> to vector<4x1024xf32>
    %559 = arith.addf %556, %558 : vector<4x1024xf32>
    %c0_318 = arith.constant 0 : index
    %c0_319 = arith.constant 0 : index
    %c0_320 = arith.constant 0 : index
    %560 = vector.load %arg14[%c0_318, %c0_319, %c0_320] : memref<1x4x1024xf32, #tpu.memory_space<vmem>>, vector<1x4x1024xf32>
    %561 = vector.shape_cast %560 : vector<1x4x1024xf32> to vector<4x1024xf32>
    %562 = vector.shape_cast %559 : vector<4x1024xf32> to vector<1x4x1024xf32>
    tpu.vector_store %arg14[%c0_318, %c0_319, %c0_320], %562 {strides = array<i32>} : memref<1x4x1024xf32, #tpu.memory_space<vmem>>, vector<1x4x1024xf32>,
    return
  }
  func.func @transform_0(%arg0: i32) -> (i32, i32, i32) {
    %c0_i32 = arith.constant 0 : i32
    %c0_i32_0 = arith.constant 0 : i32
    %c0_i32_1 = arith.constant 0 : i32
    return %arg0, %c0_i32, %c0_i32_0 : i32, i32, i32
  }
  func.func @transform_1(%arg0: i32) -> (i32, i32) {
    %c0_i32 = arith.constant 0 : i32
    %c0_i32_0 = arith.constant 0 : i32
    %c0_i32_1 = arith.constant 0 : i32
    return %c0_i32, %c0_i32_0 : i32, i32
  }
  func.func @transform_2(%arg0: i32) -> (i32, i32) {
    %c0_i32 = arith.constant 0 : i32
    %c0_i32_0 = arith.constant 0 : i32
    %c0_i32_1 = arith.constant 0 : i32
    return %c0_i32, %c0_i32_0 : i32, i32
  }
  func.func @transform_3(%arg0: i32) -> (i32, i32, i32) {
    %c0_i32 = arith.constant 0 : i32
    %c0_i32_0 = arith.constant 0 : i32
    %c0_i32_1 = arith.constant 0 : i32
    %c0_i32_2 = arith.constant 0 : i32
    return %c0_i32, %c0_i32_0, %c0_i32_1 : i32, i32, i32
  }
  func.func @transform_4(%arg0: i32) -> (i32, i32, i32) {
    %c0_i32 = arith.constant 0 : i32
    %c0_i32_0 = arith.constant 0 : i32
    %c0_i32_1 = arith.constant 0 : i32
    %c0_i32_2 = arith.constant 0 : i32
    return %c0_i32, %c0_i32_0, %c0_i32_1 : i32, i32, i32
  }
  func.func @transform_5(%arg0: i32) -> (i32, i32, i32) {
    %c0_i32 = arith.constant 0 : i32
    %c0_i32_0 = arith.constant 0 : i32
    %c0_i32_1 = arith.constant 0 : i32
    %c0_i32_2 = arith.constant 0 : i32
    return %c0_i32, %c0_i32_0, %c0_i32_1 : i32, i32, i32
  }
  func.func @transform_6(%arg0: i32) -> (i32, i32, i32) {
    %c0_i32 = arith.constant 0 : i32
    %c0_i32_0 = arith.constant 0 : i32
    %c0_i32_1 = arith.constant 0 : i32
    %c0_i32_2 = arith.constant 0 : i32
    return %c0_i32, %c0_i32_0, %c0_i32_1 : i32, i32, i32
  }
  func.func @transform_7(%arg0: i32) -> (i32, i32) {
    %c0_i32 = arith.constant 0 : i32
    %c0_i32_0 = arith.constant 0 : i32
    %c0_i32_1 = arith.constant 0 : i32
    return %c0_i32, %c0_i32_0 : i32, i32
  }
  func.func @transform_8(%arg0: i32) -> (i32, i32) {
    %c0_i32 = arith.constant 0 : i32
    %c0_i32_0 = arith.constant 0 : i32
    %c0_i32_1 = arith.constant 0 : i32
    return %c0_i32, %c0_i32_0 : i32, i32
  }
  func.func @transform_9(%arg0: i32) -> (i32, i32) {
    %c0_i32 = arith.constant 0 : i32
    %c0_i32_0 = arith.constant 0 : i32
    %c0_i32_1 = arith.constant 0 : i32
    return %c0_i32, %c0_i32_0 : i32, i32
  }
  func.func @transform_10(%arg0: i32) -> (i32, i32) {
    %c0_i32 = arith.constant 0 : i32
    %c0_i32_0 = arith.constant 0 : i32
    %c0_i32_1 = arith.constant 0 : i32
    return %c0_i32, %c0_i32_0 : i32, i32
  }
  func.func @transform_11(%arg0: i32) -> (i32, i32) {
    %c0_i32 = arith.constant 0 : i32
    %c0_i32_0 = arith.constant 0 : i32
    %c0_i32_1 = arith.constant 0 : i32
    return %c0_i32, %c0_i32_0 : i32, i32
  }
  func.func @transform_12(%arg0: i32) -> (i32, i32) {
    %c0_i32 = arith.constant 0 : i32
    %c0_i32_0 = arith.constant 0 : i32
    %c0_i32_1 = arith.constant 0 : i32
    return %c0_i32, %c0_i32_0 : i32, i32
  }
  func.func @transform_13(%arg0: i32) -> (i32, i32, i32) {
    %c0_i32 = arith.constant 0 : i32
    %c0_i32_0 = arith.constant 0 : i32
    %c0_i32_1 = arith.constant 0 : i32
    return %arg0, %c0_i32, %c0_i32_0 : i32, i32, i32
  }
}

</mosaic_0001>

<llo_original>
// kernel: edsr_forward.1
$region0: #{edsr_forward.1}
  #allocation0 [shape = 'u32[]', space=smem, size = 0x4, offset = 0x4, fixed_abs, tag = 'smem constant byte address 0x4 - core index']
  #allocation1 [shape = 'u32[8192,128]{1,0:T(1,128)}', space=vmem, size = 0x400000, scoped, tag = 'internal scratch']
  %s0 = inlined_call_operand.vmem [shape: f32[2,8,256], index: 0, kind: input, shape index: {}]
  %s1 = inlined_call_operand.vmem [shape: bf16[32,72], index: 1, kind: input, shape index: {}]
  %s2 = inlined_call_operand.vmem [shape: f32[32,1], index: 2, kind: input, shape index: {}]
  %s3 = inlined_call_operand.vmem [shape: bf16[4,32,288], index: 3, kind: input, shape index: {}]
  %s4 = inlined_call_operand.vmem [shape: f32[4,32,1], index: 4, kind: input, shape index: {}]
  %s5 = inlined_call_operand.vmem [shape: bf16[4,32,288], index: 5, kind: input, shape index: {}]
  %s6 = inlined_call_operand.vmem [shape: f32[4,32,1], index: 6, kind: input, shape index: {}]
  %s7 = inlined_call_operand.vmem [shape: bf16[32,288], index: 7, kind: input, shape index: {}]
  %s8 = inlined_call_operand.vmem [shape: f32[32,1], index: 8, kind: input, shape index: {}]
  %s9 = inlined_call_operand.vmem [shape: bf16[128,288], index: 9, kind: input, shape index: {}]
  %s10 = inlined_call_operand.vmem [shape: f32[128,1], index: 10, kind: input, shape index: {}]
  %s11 = inlined_call_operand.vmem [shape: bf16[4,288], index: 11, kind: input, shape index: {}]
  %s12 = inlined_call_operand.vmem [shape: f32[4,1], index: 12, kind: input, shape index: {}]
  %s13 = inlined_call_operand.vmem [shape: f32[2,4,1024], index: 13, kind: output, shape index: {}]
  %s14 = sld [smem:[#allocation0]]
  $region85: #{edsr_forward.1} parent=0
    _
  %s16 = ssub.s32 1, %s14
  %s17 = scalar_select 0, %s16, %s14
  loop: start=0, step=1, limit=4
  $region2: #{edsr_forward.1} parent=0 // loop_pre_header
    _
  $region3: #{edsr_forward.1} parent=0 // loop_header
    %s19 = sphi 0, %s23
    %p20 = scmp.ge.s32.totalorder %s19, 4
    %s29 = sphi 0, %s31
    %s32 = sphi 0, %s29
    %s33 = sphi 0, %s32
    %s49 = sphi 0, %s33
    %s53 = sphi 0, %s53
    %s55 = sphi 0, %s53
    %s56 = sphi 0, %s55
    %s70 = sphi 0, %s56
    %s74 = sphi 0, %s74
    %s76 = sphi 0, %s74
    %s77 = sphi 0, %s76
    %s91 = sphi 0, %s77
    %s95 = sphi 0, %s95
    %s97 = sphi 0, %s95
    %s98 = sphi 0, %s97
    %s112 = sphi 0, %s98
    %s116 = sphi 0, %s116
    %s118 = sphi 0, %s116
    %s119 = sphi 0, %s118
    %s133 = sphi 0, %s119
    %s137 = sphi 0, %s137
    %s139 = sphi 0, %s137
    %s140 = sphi 0, %s139
    %s154 = sphi 0, %s140
    %s158 = sphi 0, %s158
    %s160 = sphi 0, %s158
    %s161 = sphi 0, %s160
    %s175 = sphi 0, %s161
    %s179 = sphi 0, %s179
    %s181 = sphi 0, %s179
    %s182 = sphi 0, %s181
    %s196 = sphi 0, %s182
    %s200 = sphi 0, %s200
    %s202 = sphi 0, %s200
    %s203 = sphi 0, %s202
    %s217 = sphi 0, %s203
    %s221 = sphi 0, %s221
    %s223 = sphi 0, %s221
    %s224 = sphi 0, %s223
    %s238 = sphi 0, %s224
    %s242 = sphi 0, %s242
    %s244 = sphi 0, %s242
    %s245 = sphi 0, %s244
    %s259 = sphi 0, %s245
    %s263 = sphi 0, %s263
    %s265 = sphi 0, %s263
    %s266 = sphi 0, %s265
    %s280 = sphi 0, %s266
    %s284 = sphi 0, %s284
    %s286 = sphi 0, %s284
    %s287 = sphi 0, %s286
    %s301 = sphi 0, %s287
    %s307 = sphi 0, %s309
    %s310 = sphi 0, %s307
    %s311 = sphi 0, %s310
    %s327 = sphi 0, %s311
  $region4: #{edsr_forward.1} parent=0 // loop_header_branch
    %22 = sbr.rel (%p20) target = $region8
  $region5: #{edsr_forward.1} parent=0 // loop_body
    %s24 = ssub.s32 %s19, 1
    %s25 = ssub.s32 %s19, 2
    %s26 = sadd.s32 %s19, 1
    %s27 = ssub.s32 %s19, %s26
    %p28 = scmp.eq.s32.totalorder %s27, 0
    %s30 = sadd.s32 %s29, 1
    %s31 = scalar_select %p28, %s29, %s30
    %p34 = pneg %p28
    %p35 = scmp.eq.s32.totalorder %s19, 1
    %p36 = por %p34, %p35
    %p37 = scmp.ne.s32.totalorder %s29, %s32
    %p38 = scmp.eq.s32.totalorder %s19, 0
    %p39 = por %p37, %p38
    %p40 = scmp.ne.s32.totalorder %s29, %s32
    %p41 = scmp.eq.s32.totalorder %s24, 1
    %p42 = por %p40, %p41
    %p43 = scmp.ne.s32.totalorder %s32, %s33
    %p44 = scmp.eq.s32.totalorder %s24, 0
    %p45 = por %p43, %p44
    %p46 = scmp.ne.s32.totalorder %s32, %s33
    %p47 = scmp.eq.s32.totalorder %s25, 1
    %p48 = por %p46, %p47
    %p50 = scmp.ne.s32.totalorder %s33, %s49
    %p51 = scmp.eq.s32.totalorder %s25, 0
    %p52 = por %p50, %p51
    %s54 = sadd.s32 %s53, 1
    %p57 = scmp.eq.s32.totalorder %s19, 1
    %p58 = scmp.ne.s32.totalorder %s53, %s55
    %p59 = scmp.eq.s32.totalorder %s19, 0
    %p60 = por %p58, %p59
    %p61 = scmp.ne.s32.totalorder %s53, %s55
    %p62 = scmp.eq.s32.totalorder %s24, 1
    %p63 = por %p61, %p62
    %p64 = scmp.ne.s32.totalorder %s55, %s56
    %p65 = scmp.eq.s32.totalorder %s24, 0
    %p66 = por %p64, %p65
    %p67 = scmp.ne.s32.totalorder %s55, %s56
    %p68 = scmp.eq.s32.totalorder %s25, 1
    %p69 = por %p67, %p68
    %p71 = scmp.ne.s32.totalorder %s56, %s70
    %p72 = scmp.eq.s32.totalorder %s25, 0
    %p73 = por %p71, %p72
    %s75 = sadd.s32 %s74, 1
    %p78 = scmp.eq.s32.totalorder %s19, 1
    %p79 = scmp.ne.s32.totalorder %s74, %s76
    %p80 = scmp.eq.s32.totalorder %s19, 0
    %p81 = por %p79, %p80
    %p82 = scmp.ne.s32.totalorder %s74, %s76
    %p83 = scmp.eq.s32.totalorder %s24, 1
    %p84 = por %p82, %p83
    %p85 = scmp.ne.s32.totalorder %s76, %s77
    %p86 = scmp.eq.s32.totalorder %s24, 0
    %p87 = por %p85, %p86
    %p88 = scmp.ne.s32.totalorder %s76, %s77
    %p89 = scmp.eq.s32.totalorder %s25, 1
    %p90 = por %p88, %p89
    %p92 = scmp.ne.s32.totalorder %s77, %s91
    %p93 = scmp.eq.s32.totalorder %s25, 0
    %p94 = por %p92, %p93
    %s96 = sadd.s32 %s95, 1
    %p99 = scmp.eq.s32.totalorder %s19, 1
    %p100 = scmp.ne.s32.totalorder %s95, %s97
    %p101 = scmp.eq.s32.totalorder %s19, 0
    %p102 = por %p100, %p101
    %p103 = scmp.ne.s32.totalorder %s95, %s97
    %p104 = scmp.eq.s32.totalorder %s24, 1
    %p105 = por %p103, %p104
    %p106 = scmp.ne.s32.totalorder %s97, %s98
    %p107 = scmp.eq.s32.totalorder %s24, 0
    %p108 = por %p106, %p107
    %p109 = scmp.ne.s32.totalorder %s97, %s98
    %p110 = scmp.eq.s32.totalorder %s25, 1
    %p111 = por %p109, %p110
    %p113 = scmp.ne.s32.totalorder %s98, %s112
    %p114 = scmp.eq.s32.totalorder %s25, 0
    %p115 = por %p113, %p114
    %s117 = sadd.s32 %s116, 1
    %p120 = scmp.eq.s32.totalorder %s19, 1
    %p121 = scmp.ne.s32.totalorder %s116, %s118
    %p122 = scmp.eq.s32.totalorder %s19, 0
    %p123 = por %p121, %p122
    %p124 = scmp.ne.s32.totalorder %s116, %s118
    %p125 = scmp.eq.s32.totalorder %s24, 1
    %p126 = por %p124, %p125
    %p127 = scmp.ne.s32.totalorder %s118, %s119
    %p128 = scmp.eq.s32.totalorder %s24, 0
    %p129 = por %p127, %p128
    %p130 = scmp.ne.s32.totalorder %s118, %s119
    %p131 = scmp.eq.s32.totalorder %s25, 1
    %p132 = por %p130, %p131
    %p134 = scmp.ne.s32.totalorder %s119, %s133
    %p135 = scmp.eq.s32.totalorder %s25, 0
    %p136 = por %p134, %p135
    %s138 = sadd.s32 %s137, 1
    %p141 = scmp.eq.s32.totalorder %s19, 1
    %p142 = scmp.ne.s32.totalorder %s137, %s139
    %p143 = scmp.eq.s32.totalorder %s19, 0
    %p144 = por %p142, %p143
    %p145 = scmp.ne.s32.totalorder %s137, %s139
    %p146 = scmp.eq.s32.totalorder %s24, 1
    %p147 = por %p145, %p146
    %p148 = scmp.ne.s32.totalorder %s139, %s140
    %p149 = scmp.eq.s32.totalorder %s24, 0
    %p150 = por %p148, %p149
    %p151 = scmp.ne.s32.totalorder %s139, %s140
    %p152 = scmp.eq.s32.totalorder %s25, 1
    %p153 = por %p151, %p152
    %p155 = scmp.ne.s32.totalorder %s140, %s154
    %p156 = scmp.eq.s32.totalorder %s25, 0
    %p157 = por %p155, %p156
    %s159 = sadd.s32 %s158, 1
    %p162 = scmp.eq.s32.totalorder %s19, 1
    %p163 = scmp.ne.s32.totalorder %s158, %s160
    %p164 = scmp.eq.s32.totalorder %s19, 0
    %p165 = por %p163, %p164
    %p166 = scmp.ne.s32.totalorder %s158, %s160
    %p167 = scmp.eq.s32.totalorder %s24, 1
    %p168 = por %p166, %p167
    %p169 = scmp.ne.s32.totalorder %s160, %s161
    %p170 = scmp.eq.s32.totalorder %s24, 0
    %p171 = por %p169, %p170
    %p172 = scmp.ne.s32.totalorder %s160, %s161
    %p173 = scmp.eq.s32.totalorder %s25, 1
    %p174 = por %p172, %p173
    %p176 = scmp.ne.s32.totalorder %s161, %s175
    %p177 = scmp.eq.s32.totalorder %s25, 0
    %p178 = por %p176, %p177
    %s180 = sadd.s32 %s179, 1
    %p183 = scmp.eq.s32.totalorder %s19, 1
    %p184 = scmp.ne.s32.totalorder %s179, %s181
    %p185 = scmp.eq.s32.totalorder %s19, 0
    %p186 = por %p184, %p185
    %p187 = scmp.ne.s32.totalorder %s179, %s181
    %p188 = scmp.eq.s32.totalorder %s24, 1
    %p189 = por %p187, %p188
    %p190 = scmp.ne.s32.totalorder %s181, %s182
    %p191 = scmp.eq.s32.totalorder %s24, 0
    %p192 = por %p190, %p191
    %p193 = scmp.ne.s32.totalorder %s181, %s182
    %p194 = scmp.eq.s32.totalorder %s25, 1
    %p195 = por %p193, %p194
    %p197 = scmp.ne.s32.totalorder %s182, %s196
    %p198 = scmp.eq.s32.totalorder %s25, 0
    %p199 = por %p197, %p198
    %s201 = sadd.s32 %s200, 1
    %p204 = scmp.eq.s32.totalorder %s19, 1
    %p205 = scmp.ne.s32.totalorder %s200, %s202
    %p206 = scmp.eq.s32.totalorder %s19, 0
    %p207 = por %p205, %p206
    %p208 = scmp.ne.s32.totalorder %s200, %s202
    %p209 = scmp.eq.s32.totalorder %s24, 1
    %p210 = por %p208, %p209
    %p211 = scmp.ne.s32.totalorder %s202, %s203
    %p212 = scmp.eq.s32.totalorder %s24, 0
    %p213 = por %p211, %p212
    %p214 = scmp.ne.s32.totalorder %s202, %s203
    %p215 = scmp.eq.s32.totalorder %s25, 1
    %p216 = por %p214, %p215
    %p218 = scmp.ne.s32.totalorder %s203, %s217
    %p219 = scmp.eq.s32.totalorder %s25, 0
    %p220 = por %p218, %p219
    %s222 = sadd.s32 %s221, 1
    %p225 = scmp.eq.s32.totalorder %s19, 1
    %p226 = scmp.ne.s32.totalorder %s221, %s223
    %p227 = scmp.eq.s32.totalorder %s19, 0
    %p228 = por %p226, %p227
    %p229 = scmp.ne.s32.totalorder %s221, %s223
    %p230 = scmp.eq.s32.totalorder %s24, 1
    %p231 = por %p229, %p230
    %p232 = scmp.ne.s32.totalorder %s223, %s224
    %p233 = scmp.eq.s32.totalorder %s24, 0
    %p234 = por %p232, %p233
    %p235 = scmp.ne.s32.totalorder %s223, %s224
    %p236 = scmp.eq.s32.totalorder %s25, 1
    %p237 = por %p235, %p236
    %p239 = scmp.ne.s32.totalorder %s224, %s238
    %p240 = scmp.eq.s32.totalorder %s25, 0
    %p241 = por %p239, %p240
    %s243 = sadd.s32 %s242, 1
    %p246 = scmp.eq.s32.totalorder %s19, 1
    %p247 = scmp.ne.s32.totalorder %s242, %s244
    %p248 = scmp.eq.s32.totalorder %s19, 0
    %p249 = por %p247, %p248
    %p250 = scmp.ne.s32.totalorder %s242, %s244
    %p251 = scmp.eq.s32.totalorder %s24, 1
    %p252 = por %p250, %p251
    %p253 = scmp.ne.s32.totalorder %s244, %s245
    %p254 = scmp.eq.s32.totalorder %s24, 0
    %p255 = por %p253, %p254
    %p256 = scmp.ne.s32.totalorder %s244, %s245
    %p257 = scmp.eq.s32.totalorder %s25, 1
    %p258 = por %p256, %p257
    %p260 = scmp.ne.s32.totalorder %s245, %s259
    %p261 = scmp.eq.s32.totalorder %s25, 0
    %p262 = por %p260, %p261
    %s264 = sadd.s32 %s263, 1
    %p267 = scmp.eq.s32.totalorder %s19, 1
    %p268 = scmp.ne.s32.totalorder %s263, %s265
    %p269 = scmp.eq.s32.totalorder %s19, 0
    %p270 = por %p268, %p269
    %p271 = scmp.ne.s32.totalorder %s263, %s265
    %p272 = scmp.eq.s32.totalorder %s24, 1
    %p273 = por %p271, %p272
    %p274 = scmp.ne.s32.totalorder %s265, %s266
    %p275 = scmp.eq.s32.totalorder %s24, 0
    %p276 = por %p274, %p275
    %p277 = scmp.ne.s32.totalorder %s265, %s266
    %p278 = scmp.eq.s32.totalorder %s25, 1
    %p279 = por %p277, %p278
    %p281 = scmp.ne.s32.totalorder %s266, %s280
    %p282 = scmp.eq.s32.totalorder %s25, 0
    %p283 = por %p281, %p282
    %s285 = sadd.s32 %s284, 1
    %p288 = scmp.eq.s32.totalorder %s19, 1
    %p289 = scmp.ne.s32.totalorder %s284, %s286
    %p290 = scmp.eq.s32.totalorder %s19, 0
    %p291 = por %p289, %p290
    %p292 = scmp.ne.s32.totalorder %s284, %s286
    %p293 = scmp.eq.s32.totalorder %s24, 1
    %p294 = por %p292, %p293
    %p295 = scmp.ne.s32.totalorder %s286, %s287
    %p296 = scmp.eq.s32.totalorder %s24, 0
    %p297 = por %p295, %p296
    %p298 = scmp.ne.s32.totalorder %s286, %s287
    %p299 = scmp.eq.s32.totalorder %s25, 1
    %p300 = por %p298, %p299
    %p302 = scmp.ne.s32.totalorder %s287, %s301
    %p303 = scmp.eq.s32.totalorder %s25, 0
    %p304 = por %p302, %p303
    %s305 = ssub.s32 %s19, %s26
    %p306 = scmp.eq.s32.totalorder %s305, 0
    %s308 = sadd.s32 %s307, 1
    %s309 = scalar_select %p306, %s307, %s308
    %p312 = pneg %p306
    %p313 = scmp.eq.s32.totalorder %s19, 1
    %p314 = por %p312, %p313
    %p315 = scmp.ne.s32.totalorder %s307, %s310
    %p316 = scmp.eq.s32.totalorder %s19, 0
    %p317 = por %p315, %p316
    %p318 = scmp.ne.s32.totalorder %s307, %s310
    %p319 = scmp.eq.s32.totalorder %s24, 1
    %p320 = por %p318, %p319
    %p321 = scmp.ne.s32.totalorder %s310, %s311
    %p322 = scmp.eq.s32.totalorder %s24, 0
    %p323 = por %p321, %p322
    %p324 = scmp.ne.s32.totalorder %s310, %s311
    %p325 = scmp.eq.s32.totalorder %s25, 1
    %p326 = por %p324, %p325
    %p328 = scmp.ne.s32.totalorder %s311, %s327
    %p329 = scmp.eq.s32.totalorder %s25, 0
    %p330 = por %p328, %p329
    %p331 = scmp.le.s32.totalorder 1, %s19
    %p332 = scmp.lt.s32.totalorder %s19, 3
    %p333 = pnand %p331, %p332
    %p334 = pneg %p333
    // Predicated region
    $region9: #{edsr_forward.1} parent=5 // pred_check
      _
    $region10: #{edsr_forward.1} parent=5 // pred_check_branch
      %336 = sbr.rel (%p333) target = $region12
    $region11: #{edsr_forward.1} parent=5 // pred_region
      %s337 = ssub.s32 %s19, 1
      // Predicated region
      $region13: #{edsr_forward.1} parent=11 // pred_check
        %p338 = pneg %p66
      $region14: #{edsr_forward.1} parent=11 // pred_check_branch
        %340 = sbr.rel (%p338) target = $region16
      $region15: #{edsr_forward.1} parent=11 // pred_region
        _
      $region16: #{edsr_forward.1} parent=11 // pred_fallthru
        _
      // Predicated region
      $region17: #{edsr_forward.1} parent=11 // pred_check
        %p341 = pneg %p87
      $region18: #{edsr_forward.1} parent=11 // pred_check_branch
        %343 = sbr.rel (%p341) target = $region20
      $region19: #{edsr_forward.1} parent=11 // pred_region
        _
      $region20: #{edsr_forward.1} parent=11 // pred_fallthru
        _
      // Predicated region
      $region21: #{edsr_forward.1} parent=11 // pred_check
        %p344 = pneg %p108
      $region22: #{edsr_forward.1} parent=11 // pred_check_branch
        %346 = sbr.rel (%p344) target = $region24
      $region23: #{edsr_forward.1} parent=11 // pred_region
        _
      $region24: #{edsr_forward.1} parent=11 // pred_fallthru
        _
      // Predicated region
      $region25: #{edsr_forward.1} parent=11 // pred_check
        %p347 = pneg %p129
      $region26: #{edsr_forward.1} parent=11 // pred_check_branch
        %349 = sbr.rel (%p347) target = $region28
      $region27: #{edsr_forward.1} parent=11 // pred_region
        _
      $region28: #{edsr_forward.1} parent=11 // pred_fallthru
        _
      // Predicated region
      $region29: #{edsr_forward.1} parent=11 // pred_check
        %p350 = pneg %p150
      $region30: #{edsr_forward.1} parent=11 // pred_check_branch
        %352 = sbr.rel (%p350) target = $region32
      $region31: #{edsr_forward.1} parent=11 // pred_region
        _
      $region32: #{edsr_forward.1} parent=11 // pred_fallthru
        _
      // Predicated region
      $region33: #{edsr_forward.1} parent=11 // pred_check
        %p353 = pneg %p171
      $region34: #{edsr_forward.1} parent=11 // pred_check_branch
        %355 = sbr.rel (%p353) target = $region36
      $region35: #{edsr_forward.1} parent=11 // pred_region
        _
      $region36: #{edsr_forward.1} parent=11 // pred_fallthru
        _
      // Predicated region
      $region37: #{edsr_forward.1} parent=11 // pred_check
        %p356 = pneg %p192
      $region38: #{edsr_forward.1} parent=11 // pred_check_branch
        %358 = sbr.rel (%p356) target = $region40
      $region39: #{edsr_forward.1} parent=11 // pred_region
        _
      $region40: #{edsr_forward.1} parent=11 // pred_fallthru
        _
      // Predicated region
      $region41: #{edsr_forward.1} parent=11 // pred_check
        %p359 = pneg %p213
      $region42: #{edsr_forward.1} parent=11 // pred_check_branch
        %361 = sbr.rel (%p359) target = $region44
      $region43: #{edsr_forward.1} parent=11 // pred_region
        _
      $region44: #{edsr_forward.1} parent=11 // pred_fallthru
        _
      // Predicated region
      $region45: #{edsr_forward.1} parent=11 // pred_check
        %p362 = pneg %p234
      $region46: #{edsr_forward.1} parent=11 // pred_check_branch
        %364 = sbr.rel (%p362) target = $region48
      $region47: #{edsr_forward.1} parent=11 // pred_region
        _
      $region48: #{edsr_forward.1} parent=11 // pred_fallthru
        _
      // Predicated region
      $region49: #{edsr_forward.1} parent=11 // pred_check
        %p365 = pneg %p255
      $region50: #{edsr_forward.1} parent=11 // pred_check_branch
        %367 = sbr.rel (%p365) target = $region52
      $region51: #{edsr_forward.1} parent=11 // pred_region
        _
      $region52: #{edsr_forward.1} parent=11 // pred_fallthru
        _
      // Predicated region
      $region53: #{edsr_forward.1} parent=11 // pred_check
        %p368 = pneg %p276
      $region54: #{edsr_forward.1} parent=11 // pred_check_branch
        %370 = sbr.rel (%p368) target = $region56
      $region55: #{edsr_forward.1} parent=11 // pred_region
        _
      $region56: #{edsr_forward.1} parent=11 // pred_fallthru
        _
      // Predicated region
      $region57: #{edsr_forward.1} parent=11 // pred_check
        %p371 = pneg %p297
      $region58: #{edsr_forward.1} parent=11 // pred_check_branch
        %373 = sbr.rel (%p371) target = $region60
      $region59: #{edsr_forward.1} parent=11 // pred_region
        _
      $region60: #{edsr_forward.1} parent=11 // pred_fallthru
        _
    $region12: #{edsr_forward.1} parent=5 // pred_fallthru
      _
    %p374 = scmp.lt.s32.totalorder %s19, 2
    // Predicated region
    $region61: #{edsr_forward.1} parent=5 // pred_check
      %p375 = pneg %p374
    $region62: #{edsr_forward.1} parent=5 // pred_check_branch
      %377 = sbr.rel (%p375) target = $region64
    $region63: #{edsr_forward.1} parent=5 // pred_region
      // Predicated region
      $region65: #{edsr_forward.1} parent=63 // pred_check
        %p378 = pneg %p39
      $region66: #{edsr_forward.1} parent=63 // pred_check_branch
        %380 = sbr.rel (%p378) target = $region68
      $region67: #{edsr_forward.1} parent=63 // pred_region
        %p381 = scmp.lt.s32.totalorder %s19, 1
        %s382 = scalar_select %p381, %s19, 1
        %s383 = smul.addr %s382, 2
        %s384 = smul.addr %s383, 8
        %s385 = scalar_lea.vmem %s0, %s384
      $region68: #{edsr_forward.1} parent=63 // pred_fallthru
        _
    $region64: #{edsr_forward.1} parent=5 // pred_fallthru
      _
    %p386 = scmp.le.s32.totalorder 1, %s19
    %p387 = scmp.lt.s32.totalorder %s19, 3
    %p388 = pnand %p386, %p387
    %p389 = pneg %p388
    // Predicated region
    $region69: #{edsr_forward.1} parent=5 // pred_check
      _
    $region70: #{edsr_forward.1} parent=5 // pred_check_branch
      %391 = sbr.rel (%p388) target = $region72
    $region71: #{edsr_forward.1} parent=5 // pred_region
      %s392 = ssub.s32 %s19, 1
      %p393 = scmp.lt.s32.totalorder %s24, 1
      %s394 = scalar_select %p393, %s24, 1
      %s395 = smul.addr %s394, 2
      %s396 = smul.addr %s395, 8
      %s397 = scalar_lea.vmem %s0, %s396
      %p398 = pneg %p45
      %p399 = pneg %p42
      %p400 = pneg %p66
      %p401 = pneg %p63
      %p402 = pneg %p87
      %p403 = pneg %p84
      %p404 = pneg %p108
      %p405 = pneg %p105
      %p406 = pneg %p129
      %p407 = pneg %p126
      %p408 = pneg %p150
      %p409 = pneg %p147
      %p410 = pneg %p171
      %p411 = pneg %p168
      %p412 = pneg %p192
      %p413 = pneg %p189
      %p414 = pneg %p213
      %p415 = pneg %p210
      %p416 = pneg %p234
      %p417 = pneg %p231
      %p418 = pneg %p255
      %p419 = pneg %p252
      %p420 = pneg %p276
      %p421 = pneg %p273
      %p422 = pneg %p297
      %p423 = pneg %p294
      %p424 = pneg %p323
      %p425 = pneg %p320
      %p426 = scmp.lt.s32.totalorder %s24, 1
      %s427 = scalar_select %p426, %s24, 1
      %s428 = smul.addr %s427, 8
      %s429 = smul.addr %s428, 4
      %s430 = scalar_lea.vmem %s13, %s429
      %p431 = scmp.lt.s32.totalorder %s24, 1
      %s432 = scalar_select %p431, %s24, 1
      %s433 = smul.addr %s432, 2
      %s434 = smul.addr %s433, 8
      %s435 = scalar_lea.vmem %s0, %s434
      %p436 = scmp.lt.s32.totalorder %s24, 1
      %s437 = scalar_select %p436, %s24, 1
      %s438 = smul.addr %s437, 8
      %s439 = smul.addr %s438, 4
      %s440 = scalar_lea.vmem %s13, %s439
      %v442 = vld [vmem:[%s435] sm:$0xff]
      %v443 = vld [vmem:[%s435 + $0x8] sm:$0xff]
      %v444 = vld [vmem:[%s1] sm:$0xf]
      %v445 = vld [vmem:[%s1 + $0x4] sm:$0xf]
      %v446 = vld [vmem:[%s1 + $0x8] sm:$0xf]
      %v447 = vld [vmem:[%s1 + $0xc] sm:$0xf]
      %v448 = vld [vmem:[%s2] sm:$0xff]
      %v449 = vld [vmem:[%s2 + $0x8] sm:$0xff]
      %v450 = vld [vmem:[%s2 + $0x10] sm:$0xff]
      %v451 = vld [vmem:[%s2 + $0x18] sm:$0xff]
      %452 = vrot.lane.b32.xlu0 %v442, 17
      %v453 = vpop.permute.xlu0 %452
      %454 = vrot.lane.b32.xlu0 %v443, 17
      %v455 = vpop.permute.xlu0 %454
      %v456 = vlaneseq
      %v457 = vand.u32 %v456, 127
      %vm458 = vcmp.lt.s32.totalorder %v457, 17
      %v459 = vsel %vm458, %v453, %v455
      %v460 = vsel %vm458, %v455, %v453
      %v461 = vadd.s32 %v457, 128
      %v462 = vshra.s32 %v457, 4
      %v463 = vshra.s32 %v461, 4
      %v464 = vand.u32 %v457, 15
      %v465 = vand.u32 %v461, 15
      %vm466 = vcmp.ge.s32.totalorder %v462, 1
      %vm467 = vcmp.ge.s32.totalorder %v463, 1
      %vm468 = vcmp.ge.s32.totalorder %v464, 1
      %vm469 = vcmp.ge.s32.totalorder %v465, 1
      %vm470 = vmand %vm466, %vm468
      %vm471 = vmand %vm467, %vm469
      %v472 = vsel %vm470, %v460, 0.0
      %v473 = vsel %vm471, %v459, 0.0
      %474 = vrot.lane.b32.xlu0 %v442, 16
      %v475 = vpop.permute.xlu0 %474
      %476 = vrot.lane.b32.xlu0 %v443, 16
      %v477 = vpop.permute.xlu0 %476
      %vm478 = vcmp.lt.s32.totalorder %v457, 16
      %v479 = vsel %vm478, %v475, %v477
      %v480 = vsel %vm478, %v477, %v475
      %v481 = vsel %vm466, %v480, 0.0
      %v482 = vsel %vm467, %v479, 0.0
      %483 = vrot.lane.b32.xlu0 %v442, 15
      %v484 = vpop.permute.xlu0 %483
      %485 = vrot.lane.b32.xlu0 %v443, 15
      %v486 = vpop.permute.xlu0 %485
      %vm487 = vcmp.lt.s32.totalorder %v457, 15
      %v488 = vsel %vm487, %v484, %v486
      %v489 = vsel %vm487, %v486, %v484
      %vm490 = vcmp.lt.s32.totalorder %v464, 15
      %vm491 = vcmp.lt.s32.totalorder %v465, 15
      %vm492 = vmand %vm466, %vm490
      %vm493 = vmand %vm467, %vm491
      %v494 = vsel %vm492, %v489, 0.0
      %v495 = vsel %vm493, %v488, 0.0
      %496 = vrot.lane.b32.xlu0 %v442, 1
      %v497 = vpop.permute.xlu0 %496
      %498 = vrot.lane.b32.xlu0 %v443, 1
      %v499 = vpop.permute.xlu0 %498
      %vm500 = vcmp.lt.s32.totalorder %v457, 1
      %v501 = vsel %vm500, %v497, %v499
      %v502 = vsel %vm500, %v499, %v497
      %v503 = vsel %vm468, %v502, 0.0
      %v504 = vsel %vm469, %v501, 0.0
      %505 = vrot.lane.b32.xlu0 %v442, 127
      %v506 = vpop.permute.xlu0 %505
      %507 = vrot.lane.b32.xlu0 %v443, 127
      %v508 = vpop.permute.xlu0 %507
      %vm509 = vcmp.lt.s32.totalorder %v457, 127
      %v510 = vsel %vm509, %v506, %v508
      %v511 = vsel %vm509, %v508, %v506
      %v512 = vsel %vm490, %v510, 0.0
      %v513 = vsel %vm491, %v511, 0.0
      %514 = vrot.lane.b32.xlu0 %v442, 113
      %v515 = vpop.permute.xlu0 %514
      %516 = vrot.lane.b32.xlu0 %v443, 113
      %v517 = vpop.permute.xlu0 %516
      %vm518 = vcmp.lt.s32.totalorder %v457, 113
      %v519 = vsel %vm518, %v515, %v517
      %v520 = vsel %vm518, %v517, %v515
      %vm521 = vcmp.lt.s32.totalorder %v462, 15
      %vm522 = vcmp.lt.s32.totalorder %v463, 15
      %vm523 = vmand %vm521, %vm468
      %vm524 = vmand %vm522, %vm469
      %v525 = vsel %vm523, %v519, 0.0
      %v526 = vsel %vm524, %v520, 0.0
      %527 = vrot.lane.b32.xlu0 %v442, 112
      %v528 = vpop.permute.xlu0 %527
      %529 = vrot.lane.b32.xlu0 %v443, 112
      %v530 = vpop.permute.xlu0 %529
      %vm531 = vcmp.lt.s32.totalorder %v457, 112
      %v532 = vsel %vm531, %v528, %v530
      %v533 = vsel %vm531, %v530, %v528
      %v534 = vsel %vm521, %v532, 0.0
      %v535 = vsel %vm522, %v533, 0.0
      %536 = vrot.lane.b32.xlu0 %v442, 111
      %v537 = vpop.permute.xlu0 %536
      %538 = vrot.lane.b32.xlu0 %v443, 111
      %v539 = vpop.permute.xlu0 %538
      %vm540 = vcmp.lt.s32.totalorder %v457, 111
      %v541 = vsel %vm540, %v537, %v539
      %v542 = vsel %vm540, %v539, %v537
      %vm543 = vmand %vm521, %vm490
      %vm544 = vmand %vm522, %vm491
      %v545 = vsel %vm543, %v541, 0.0
      %v546 = vsel %vm544, %v542, 0.0
      %v547 = vpack.c.bf16 %v481, %v472
      %v548 = vpack.c.bf16 %v482, %v473
      %v549 = vpack.c.bf16 %v503, %v494
      %v550 = vpack.c.bf16 %v504, %v495
      %v551 = vpack.c.bf16 %v512, %v442
      %v552 = vpack.c.bf16 %v513, %v443
      %v553 = vpack.c.bf16 %v534, %v525
      %v554 = vpack.c.bf16 %v535, %v526
      %v555 = vpack.c.bf16 %v545, %v545
      %v556 = vpack.c.bf16 %v546, %v546
      %558 = vset.pattern.permute.xlu0 0
      %559 = vperm.xlu0 %558, %v448
      %v560 = vpop.permute.xlu0 %559
      %563 = vset.pattern.permute.xlu0 0
      %564 = vperm.xlu0 %563, %v449
      %v565 = vpop.permute.xlu0 %564
      %568 = vset.pattern.permute.xlu0 0
      %569 = vperm.xlu0 %568, %v450
      %v570 = vpop.permute.xlu0 %569
      %573 = vset.pattern.permute.xlu0 0
      %574 = vperm.xlu0 %573, %v451
      %v575 = vpop.permute.xlu0 %574
      %v581 = vunpack.c.l.b16 %v444
      %v582 = vunpack.c.l.b16 %v445
      %v583 = vunpack.c.l.b16 %v446
      %v584 = vunpack.c.l.b16 %v447
      %v585 = vpack.c.b16 %v582, %v581
      %v586 = vpack.c.b16 %v584, %v583
      %vm587 = vcmask 588800
      %v589 = vsel %vm587, %v585, 0
      %v592 = vsel %vm587, %v586, 0
      %vm594 = vcmask 1043456
      %v596 = vsel %vm594, %v555, 0
      %v599 = vsel %vm594, %v556, 0
      %601 = vmatprep.subr.bf16.mxu0 %v548
      %602 = vmatpush1.bf16.msra.mxu0 %v547
      %603 = vmatprep.subr.bf16.mxu0 %v550
      %604 = vmatpush1.bf16.msra.mxu0 %v549
      %605 = vmatprep.subr.bf16.mxu0 %v552
      %606 = vmatpush1.bf16.msra.mxu0 %v551
      %607 = vmatprep.subr.bf16.mxu0 %v554
      %608 = vmatpush1.bf16.msra.mxu0 %v553
      %609 = vmatprep.subr.bf16.mxu0 %v599
      %610 = vmatpush1.bf16.msra.mxu0 %v596
      %611 = vmatprep.subr.bf16.mxu0 0
      %612 = vmatpush1.bf16.msra.mxu0 0
      %613 = vmatprep.subr.bf16.mxu0 0
      %614 = vmatpush1.bf16.msra.mxu0 0
      %615 = vmatprep.subr.bf16.mxu0 0
      %616 = vmatpush1.bf16.msra.mxu0 0
      %617 = vmatprep.subr.bf16.mxu0 0
      %618 = vmatpush1.bf16.msra.mxu0 0
      %619 = vmatprep.subr.bf16.mxu0 0
      %620 = vmatpush1.bf16.msra.mxu0 0
      %621 = vmatprep.subr.bf16.mxu0 0
      %622 = vmatpush1.bf16.msra.mxu0 0
      %623 = vmatprep.subr.bf16.mxu0 0
      %624 = vmatpush1.bf16.msra.mxu0 0
      %625 = vmatprep.subr.bf16.mxu0 0
      %626 = vmatpush1.bf16.msra.mxu0 0
      %627 = vmatprep.subr.bf16.mxu0 0
      %628 = vmatpush1.bf16.msra.mxu0 0
      %629 = vmatprep.subr.bf16.mxu0 0
      %630 = vmatpush1.bf16.msra.mxu0 0
      %631 = vmatprep.subr.bf16.mxu0 0
      %632 = vmatpush1.bf16.msra.mxu0 0
      %633 = vmatprep.mubr.bf16.mxu0 0
      %634 = vmatmul.mubr.bf16.gmra.mrb[0].mxu0 %v589
      %v635 = vpop.f32.mrb[0].mxu0
      %v636 = vadd.f32 %v560, %v635
      %v637 = vpop.f32.mrb[0].mxu0
      %v638 = vadd.f32 %v560, %v637
      %v639 = vpop.f32.mrb[0].mxu0
      %v640 = vadd.f32 %v565, %v639
      %v641 = vpop.f32.mrb[0].mxu0
      %v642 = vadd.f32 %v565, %v641
      %643 = vmatprep.mubr.bf16.mxu0 0
      %644 = vmatmul.mubr.bf16.gmra.mrb[0].mxu0 %v592
      %v645 = vpop.f32.mrb[0].mxu0
      %v646 = vadd.f32 %v570, %v645
      %v647 = vpop.f32.mrb[0].mxu0
      %v648 = vadd.f32 %v570, %v647
      %v649 = vpop.f32.mrb[0].mxu0
      %v650 = vadd.f32 %v575, %v649
      %v651 = vpop.f32.mrb[0].mxu0
      %v652 = vadd.f32 %v575, %v651
      %653 = vdwg.mxu0
      %v654 = vld [vmem:[%s3] sm:$0xff]
      %v655 = vld [vmem:[%s3 + $0x8] sm:$0xf]
      %v656 = vld [vmem:[%s3 + $0xc] sm:$0xff]
      %v657 = vld [vmem:[%s3 + $0x14] sm:$0xf]
      %v658 = vld [vmem:[%s3 + $0x18] sm:$0xff]
      %v659 = vld [vmem:[%s3 + $0x20] sm:$0xf]
      %v660 = vld [vmem:[%s3 + $0x24] sm:$0xff]
      %v661 = vld [vmem:[%s3 + $0x2c] sm:$0xf]
      %v662 = vld [vmem:[%s4] sm:$0xff]
      %v663 = vld [vmem:[%s4 + $0x8] sm:$0xff]
      %v664 = vld [vmem:[%s4 + $0x10] sm:$0xff]
      %v665 = vld [vmem:[%s4 + $0x18] sm:$0xff]
      %666 = vrot.lane.b32.xlu0 %v636, 17
      %v667 = vpop.permute.xlu0 %666
      %668 = vrot.lane.b32.xlu0 %v640, 17
      %v669 = vpop.permute.xlu0 %668
      %670 = vrot.lane.b32.xlu0 %v646, 17
      %v671 = vpop.permute.xlu0 %670
      %672 = vrot.lane.b32.xlu0 %v650, 17
      %v673 = vpop.permute.xlu0 %672
      %674 = vrot.lane.b32.xlu0 %v638, 17
      %v675 = vpop.permute.xlu0 %674
      %676 = vrot.lane.b32.xlu0 %v642, 17
      %v677 = vpop.permute.xlu0 %676
      %678 = vrot.lane.b32.xlu0 %v648, 17
      %v679 = vpop.permute.xlu0 %678
      %680 = vrot.lane.b32.xlu0 %v652, 17
      %v681 = vpop.permute.xlu0 %680
      %v682 = vsel %vm458, %v667, %v675
      %v683 = vsel %vm458, %v669, %v677
      %v684 = vsel %vm458, %v671, %v679
      %v685 = vsel %vm458, %v673, %v681
      %v686 = vsel %vm458, %v675, %v667
      %v687 = vsel %vm458, %v677, %v669
      %v688 = vsel %vm458, %v679, %v671
      %v689 = vsel %vm458, %v681, %v673
      %v690 = vsel %vm470, %v686, 0.0
      %v691 = vsel %vm471, %v682, 0.0
      %v692 = vsel %vm470, %v687, 0.0
      %v693 = vsel %vm471, %v683, 0.0
      %v694 = vsel %vm470, %v688, 0.0
      %v695 = vsel %vm471, %v684, 0.0
      %v696 = vsel %vm470, %v689, 0.0
      %v697 = vsel %vm471, %v685, 0.0
      %698 = vrot.lane.b32.xlu0 %v636, 16
      %v699 = vpop.permute.xlu0 %698
      %700 = vrot.lane.b32.xlu0 %v640, 16
      %v701 = vpop.permute.xlu0 %700
      %702 = vrot.lane.b32.xlu0 %v646, 16
      %v703 = vpop.permute.xlu0 %702
      %704 = vrot.lane.b32.xlu0 %v650, 16
      %v705 = vpop.permute.xlu0 %704
      %706 = vrot.lane.b32.xlu0 %v638, 16
      %v707 = vpop.permute.xlu0 %706
      %708 = vrot.lane.b32.xlu0 %v642, 16
      %v709 = vpop.permute.xlu0 %708
      %710 = vrot.lane.b32.xlu0 %v648, 16
      %v711 = vpop.permute.xlu0 %710
      %712 = vrot.lane.b32.xlu0 %v652, 16
      %v713 = vpop.permute.xlu0 %712
      %v714 = vsel %vm478, %v699, %v707
      %v715 = vsel %vm478, %v701, %v709
      %v716 = vsel %vm478, %v703, %v711
      %v717 = vsel %vm478, %v705, %v713
      %v718 = vsel %vm478, %v707, %v699
      %v719 = vsel %vm478, %v709, %v701
      %v720 = vsel %vm478, %v711, %v703
      %v721 = vsel %vm478, %v713, %v705
      %v722 = vsel %vm466, %v718, 0.0
      %v723 = vsel %vm467, %v714, 0.0
      %v724 = vsel %vm466, %v719, 0.0
      %v725 = vsel %vm467, %v715, 0.0
      %v726 = vsel %vm466, %v720, 0.0
      %v727 = vsel %vm467, %v716, 0.0
      %v728 = vsel %vm466, %v721, 0.0
      %v729 = vsel %vm467, %v717, 0.0
      %730 = vrot.lane.b32.xlu0 %v636, 15
      %v731 = vpop.permute.xlu0 %730
      %732 = vrot.lane.b32.xlu0 %v640, 15
      %v733 = vpop.permute.xlu0 %732
      %734 = vrot.lane.b32.xlu0 %v646, 15
      %v735 = vpop.permute.xlu0 %734
      %736 = vrot.lane.b32.xlu0 %v650, 15
      %v737 = vpop.permute.xlu0 %736
      %738 = vrot.lane.b32.xlu0 %v638, 15
      %v739 = vpop.permute.xlu0 %738
      %740 = vrot.lane.b32.xlu0 %v642, 15
      %v741 = vpop.permute.xlu0 %740
      %742 = vrot.lane.b32.xlu0 %v648, 15
      %v743 = vpop.permute.xlu0 %742
      %744 = vrot.lane.b32.xlu0 %v652, 15
      %v745 = vpop.permute.xlu0 %744
      %v746 = vsel %vm487, %v731, %v739
      %v747 = vsel %vm487, %v733, %v741
      %v748 = vsel %vm487, %v735, %v743
      %v749 = vsel %vm487, %v737, %v745
      %v750 = vsel %vm487, %v739, %v731
      %v751 = vsel %vm487, %v741, %v733
      %v752 = vsel %vm487, %v743, %v735
      %v753 = vsel %vm487, %v745, %v737
      %v754 = vsel %vm492, %v750, 0.0
      %v755 = vsel %vm493, %v746, 0.0
      %v756 = vsel %vm492, %v751, 0.0
      %v757 = vsel %vm493, %v747, 0.0
      %v758 = vsel %vm492, %v752, 0.0
      %v759 = vsel %vm493, %v748, 0.0
      %v760 = vsel %vm492, %v753, 0.0
      %v761 = vsel %vm493, %v749, 0.0
      %762 = vrot.lane.b32.xlu0 %v636, 1
      %v763 = vpop.permute.xlu0 %762
      %764 = vrot.lane.b32.xlu0 %v640, 1
      %v765 = vpop.permute.xlu0 %764
      %766 = vrot.lane.b32.xlu0 %v646, 1
      %v767 = vpop.permute.xlu0 %766
      %768 = vrot.lane.b32.xlu0 %v650, 1
      %v769 = vpop.permute.xlu0 %768
      %770 = vrot.lane.b32.xlu0 %v638, 1
      %v771 = vpop.permute.xlu0 %770
      %772 = vrot.lane.b32.xlu0 %v642, 1
      %v773 = vpop.permute.xlu0 %772
      %774 = vrot.lane.b32.xlu0 %v648, 1
      %v775 = vpop.permute.xlu0 %774
      %776 = vrot.lane.b32.xlu0 %v652, 1
      %v777 = vpop.permute.xlu0 %776
      %v778 = vsel %vm500, %v763, %v771
      %v779 = vsel %vm500, %v765, %v773
      %v780 = vsel %vm500, %v767, %v775
      %v781 = vsel %vm500, %v769, %v777
      %v782 = vsel %vm500, %v771, %v763
      %v783 = vsel %vm500, %v773, %v765
      %v784 = vsel %vm500, %v775, %v767
      %v785 = vsel %vm500, %v777, %v769
      %v786 = vsel %vm468, %v782, 0.0
      %v787 = vsel %vm469, %v778, 0.0
      %v788 = vsel %vm468, %v783, 0.0
      %v789 = vsel %vm469, %v779, 0.0
      %v790 = vsel %vm468, %v784, 0.0
      %v791 = vsel %vm469, %v780, 0.0
      %v792 = vsel %vm468, %v785, 0.0
      %v793 = vsel %vm469, %v781, 0.0
      %794 = vrot.lane.b32.xlu0 %v636, 127
      %v795 = vpop.permute.xlu0 %794
      %796 = vrot.lane.b32.xlu0 %v640, 127
      %v797 = vpop.permute.xlu0 %796
      %798 = vrot.lane.b32.xlu0 %v646, 127
      %v799 = vpop.permute.xlu0 %798
      %800 = vrot.lane.b32.xlu0 %v650, 127
      %v801 = vpop.permute.xlu0 %800
      %802 = vrot.lane.b32.xlu0 %v638, 127
      %v803 = vpop.permute.xlu0 %802
      %804 = vrot.lane.b32.xlu0 %v642, 127
      %v805 = vpop.permute.xlu0 %804
      %806 = vrot.lane.b32.xlu0 %v648, 127
      %v807 = vpop.permute.xlu0 %806
      %808 = vrot.lane.b32.xlu0 %v652, 127
      %v809 = vpop.permute.xlu0 %808
      %v810 = vsel %vm509, %v795, %v803
      %v811 = vsel %vm509, %v797, %v805
      %v812 = vsel %vm509, %v799, %v807
      %v813 = vsel %vm509, %v801, %v809
      %v814 = vsel %vm509, %v803, %v795
      %v815 = vsel %vm509, %v805, %v797
      %v816 = vsel %vm509, %v807, %v799
      %v817 = vsel %vm509, %v809, %v801
      %v818 = vsel %vm490, %v810, 0.0
      %v819 = vsel %vm491, %v814, 0.0
      %v820 = vsel %vm490, %v811, 0.0
      %v821 = vsel %vm491, %v815, 0.0
      %v822 = vsel %vm490, %v812, 0.0
      %v823 = vsel %vm491, %v816, 0.0
      %v824 = vsel %vm490, %v813, 0.0
      %v825 = vsel %vm491, %v817, 0.0
      %826 = vrot.lane.b32.xlu0 %v636, 113
      %v827 = vpop.permute.xlu0 %826
      %828 = vrot.lane.b32.xlu0 %v640, 113
      %v829 = vpop.permute.xlu0 %828
      %830 = vrot.lane.b32.xlu0 %v646, 113
      %v831 = vpop.permute.xlu0 %830
      %832 = vrot.lane.b32.xlu0 %v650, 113
      %v833 = vpop.permute.xlu0 %832
      %834 = vrot.lane.b32.xlu0 %v638, 113
      %v835 = vpop.permute.xlu0 %834
      %836 = vrot.lane.b32.xlu0 %v642, 113
      %v837 = vpop.permute.xlu0 %836
      %838 = vrot.lane.b32.xlu0 %v648, 113
      %v839 = vpop.permute.xlu0 %838
      %840 = vrot.lane.b32.xlu0 %v652, 113
      %v841 = vpop.permute.xlu0 %840
      %v842 = vsel %vm518, %v827, %v835
      %v843 = vsel %vm518, %v829, %v837
      %v844 = vsel %vm518, %v831, %v839
      %v845 = vsel %vm518, %v833, %v841
      %v846 = vsel %vm518, %v835, %v827
      %v847 = vsel %vm518, %v837, %v829
      %v848 = vsel %vm518, %v839, %v831
      %v849 = vsel %vm518, %v841, %v833
      %v850 = vsel %vm523, %v842, 0.0
      %v851 = vsel %vm524, %v846, 0.0
      %v852 = vsel %vm523, %v843, 0.0
      %v853 = vsel %vm524, %v847, 0.0
      %v854 = vsel %vm523, %v844, 0.0
      %v855 = vsel %vm524, %v848, 0.0
      %v856 = vsel %vm523, %v845, 0.0
      %v857 = vsel %vm524, %v849, 0.0
      %858 = vrot.lane.b32.xlu0 %v636, 112
      %v859 = vpop.permute.xlu0 %858
      %860 = vrot.lane.b32.xlu0 %v640, 112
      %v861 = vpop.permute.xlu0 %860
      %862 = vrot.lane.b32.xlu0 %v646, 112
      %v863 = vpop.permute.xlu0 %862
      %864 = vrot.lane.b32.xlu0 %v650, 112
      %v865 = vpop.permute.xlu0 %864
      %866 = vrot.lane.b32.xlu0 %v638, 112
      %v867 = vpop.permute.xlu0 %866
      %868 = vrot.lane.b32.xlu0 %v642, 112
      %v869 = vpop.permute.xlu0 %868
      %870 = vrot.lane.b32.xlu0 %v648, 112
      %v871 = vpop.permute.xlu0 %870
      %872 = vrot.lane.b32.xlu0 %v652, 112
      %v873 = vpop.permute.xlu0 %872
      %v874 = vsel %vm531, %v859, %v867
      %v875 = vsel %vm531, %v861, %v869
      %v876 = vsel %vm531, %v863, %v871
      %v877 = vsel %vm531, %v865, %v873
      %v878 = vsel %vm531, %v867, %v859
      %v879 = vsel %vm531, %v869, %v861
      %v880 = vsel %vm531, %v871, %v863
      %v881 = vsel %vm531, %v873, %v865
      %v882 = vsel %vm521, %v874, 0.0
      %v883 = vsel %vm522, %v878, 0.0
      %v884 = vsel %vm521, %v875, 0.0
      %v885 = vsel %vm522, %v879, 0.0
      %v886 = vsel %vm521, %v876, 0.0
      %v887 = vsel %vm522, %v880, 0.0
      %v888 = vsel %vm521, %v877, 0.0
      %v889 = vsel %vm522, %v881, 0.0
      %890 = vrot.lane.b32.xlu0 %v636, 111
      %v891 = vpop.permute.xlu0 %890
      %892 = vrot.lane.b32.xlu0 %v640, 111
      %v893 = vpop.permute.xlu0 %892
      %894 = vrot.lane.b32.xlu0 %v646, 111
      %v895 = vpop.permute.xlu0 %894
      %896 = vrot.lane.b32.xlu0 %v650, 111
      %v897 = vpop.permute.xlu0 %896
      %898 = vrot.lane.b32.xlu0 %v638, 111
      %v899 = vpop.permute.xlu0 %898
      %900 = vrot.lane.b32.xlu0 %v642, 111
      %v901 = vpop.permute.xlu0 %900
      %902 = vrot.lane.b32.xlu0 %v648, 111
      %v903 = vpop.permute.xlu0 %902
      %904 = vrot.lane.b32.xlu0 %v652, 111
      %v905 = vpop.permute.xlu0 %904
      %v906 = vsel %vm540, %v891, %v899
      %v907 = vsel %vm540, %v893, %v901
      %v908 = vsel %vm540, %v895, %v903
      %v909 = vsel %vm540, %v897, %v905
      %v910 = vsel %vm540, %v899, %v891
      %v911 = vsel %vm540, %v901, %v893
      %v912 = vsel %vm540, %v903, %v895
      %v913 = vsel %vm540, %v905, %v897
      %v914 = vsel %vm543, %v906, 0.0
      %v915 = vsel %vm544, %v910, 0.0
      %v916 = vsel %vm543, %v907, 0.0
      %v917 = vsel %vm544, %v911, 0.0
      %v918 = vsel %vm543, %v908, 0.0
      %v919 = vsel %vm544, %v912, 0.0
      %v920 = vsel %vm543, %v909, 0.0
      %v921 = vsel %vm544, %v913, 0.0
      %v922 = vpack.c.bf16 %v692, %v690
      %v923 = vpack.c.bf16 %v693, %v691
      %v924 = vpack.c.bf16 %v696, %v694
      %v925 = vpack.c.bf16 %v697, %v695
      %v926 = vpack.c.bf16 %v724, %v722
      %v927 = vpack.c.bf16 %v725, %v723
      %v928 = vpack.c.bf16 %v728, %v726
      %v929 = vpack.c.bf16 %v729, %v727
      %v930 = vpack.c.bf16 %v756, %v754
      %v931 = vpack.c.bf16 %v757, %v755
      %v932 = vpack.c.bf16 %v760, %v758
      %v933 = vpack.c.bf16 %v761, %v759
      %v934 = vpack.c.bf16 %v788, %v786
      %v935 = vpack.c.bf16 %v789, %v787
      %v936 = vpack.c.bf16 %v792, %v790
      %v937 = vpack.c.bf16 %v793, %v791
      %v938 = vpack.c.bf16 %v640, %v636
      %v939 = vpack.c.bf16 %v642, %v638
      %v940 = vpack.c.bf16 %v650, %v646
      %v941 = vpack.c.bf16 %v652, %v648
      %v942 = vpack.c.bf16 %v820, %v818
      %v943 = vpack.c.bf16 %v821, %v819
      %v944 = vpack.c.bf16 %v824, %v822
      %v945 = vpack.c.bf16 %v825, %v823
      %v946 = vpack.c.bf16 %v852, %v850
      %v947 = vpack.c.bf16 %v853, %v851
      %v948 = vpack.c.bf16 %v856, %v854
      %v949 = vpack.c.bf16 %v857, %v855
      %v950 = vpack.c.bf16 %v884, %v882
      %v951 = vpack.c.bf16 %v885, %v883
      %v952 = vpack.c.bf16 %v888, %v886
      %v953 = vpack.c.bf16 %v889, %v887
      %v954 = vpack.c.bf16 %v916, %v914
      %v955 = vpack.c.bf16 %v917, %v915
      %v956 = vpack.c.bf16 %v920, %v918
      %v957 = vpack.c.bf16 %v921, %v919
      %959 = vset.pattern.permute.xlu0 0
      %960 = vperm.xlu0 %959, %v662
      %v961 = vpop.permute.xlu0 %960
      %964 = vset.pattern.permute.xlu0 0
      %965 = vperm.xlu0 %964, %v663
      %v966 = vpop.permute.xlu0 %965
      %969 = vset.pattern.permute.xlu0 0
      %970 = vperm.xlu0 %969, %v664
      %v971 = vpop.permute.xlu0 %970
      %974 = vset.pattern.permute.xlu0 0
      %975 = vperm.xlu0 %974, %v665
      %v976 = vpop.permute.xlu0 %975
      %v986 = vunpack.c.l.b16 %v654
      %v987 = vunpack.c.h.b16 %v654
      %v988 = vunpack.c.l.b16 %v655
      %v989 = vunpack.c.l.b16 %v656
      %v990 = vunpack.c.h.b16 %v656
      %v991 = vunpack.c.l.b16 %v657
      %v992 = vunpack.c.l.b16 %v658
      %v993 = vunpack.c.h.b16 %v658
      %v994 = vunpack.c.l.b16 %v659
      %v995 = vunpack.c.l.b16 %v660
      %v996 = vunpack.c.h.b16 %v660
      %v997 = vunpack.c.l.b16 %v661
      %v998 = vpack.c.b16 %v989, %v986
      %v999 = vpack.c.b16 %v990, %v987
      %v1000 = vpack.c.b16 %v991, %v988
      %v1001 = vpack.c.b16 %v995, %v992
      %v1002 = vpack.c.b16 %v996, %v993
      %v1003 = vpack.c.b16 %v997, %v994
      %vm1008 = vcmask 261120
      %v1010 = vsel %vm1008, %v1000, 0
      %v1013 = vsel %vm1008, %v1003, 0
      %1015 = vmatprep.subr.bf16.mxu0 %v923
      %1016 = vmatpush1.bf16.msra.mxu0 %v922
      %1017 = vmatprep.subr.bf16.mxu0 %v925
      %1018 = vmatpush1.bf16.msra.mxu0 %v924
      %1019 = vmatprep.subr.bf16.mxu0 %v927
      %1020 = vmatpush1.bf16.msra.mxu0 %v926
      %1021 = vmatprep.subr.bf16.mxu0 %v929
      %1022 = vmatpush1.bf16.msra.mxu0 %v928
      %1023 = vmatprep.subr.bf16.mxu0 %v931
      %1024 = vmatpush1.bf16.msra.mxu0 %v930
      %1025 = vmatprep.subr.bf16.mxu0 %v933
      %1026 = vmatpush1.bf16.msra.mxu0 %v932
      %1027 = vmatprep.subr.bf16.mxu0 %v935
      %1028 = vmatpush1.bf16.msra.mxu0 %v934
      %1029 = vmatprep.subr.bf16.mxu0 %v937
      %1030 = vmatpush1.bf16.msra.mxu0 %v936
      %1031 = vmatprep.subr.bf16.mxu0 %v939
      %1032 = vmatpush1.bf16.msra.mxu0 %v938
      %1033 = vmatprep.subr.bf16.mxu0 %v941
      %1034 = vmatpush1.bf16.msra.mxu0 %v940
      %1035 = vmatprep.subr.bf16.mxu0 %v943
      %1036 = vmatpush1.bf16.msra.mxu0 %v942
      %1037 = vmatprep.subr.bf16.mxu0 %v945
      %1038 = vmatpush1.bf16.msra.mxu0 %v944
      %1039 = vmatprep.subr.bf16.mxu0 %v947
      %1040 = vmatpush1.bf16.msra.mxu0 %v946
      %1041 = vmatprep.subr.bf16.mxu0 %v949
      %1042 = vmatpush1.bf16.msra.mxu0 %v948
      %1043 = vmatprep.subr.bf16.mxu0 %v951
      %1044 = vmatpush1.bf16.msra.mxu0 %v950
      %1045 = vmatprep.subr.bf16.mxu0 %v953
      %1046 = vmatpush1.bf16.msra.mxu0 %v952
      %1047 = vmatprep.mubr.bf16.mxu0 %v999
      %1048 = vmatmul.mubr.bf16.gmra.mrb[0].mxu0 %v998
      %v1049 = vpop.f32.mrb[0].mxu0
      %v1050 = vadd.f32 %v961, %v1049
      %v1051 = vpop.f32.mrb[0].mxu0
      %v1052 = vadd.f32 %v961, %v1051
      %v1053 = vpop.f32.mrb[0].mxu0
      %v1054 = vadd.f32 %v966, %v1053
      %v1055 = vpop.f32.mrb[0].mxu0
      %v1056 = vadd.f32 %v966, %v1055
      %1057 = vmatprep.mubr.bf16.mxu0 %v1002
      %1058 = vmatmul.mubr.bf16.gmra.mrb[0].mxu0 %v1001
      %v1059 = vpop.f32.mrb[0].mxu0
      %v1060 = vadd.f32 %v971, %v1059
      %v1061 = vpop.f32.mrb[0].mxu0
      %v1062 = vadd.f32 %v971, %v1061
      %v1063 = vpop.f32.mrb[0].mxu0
      %v1064 = vadd.f32 %v976, %v1063
      %v1065 = vpop.f32.mrb[0].mxu0
      %v1066 = vadd.f32 %v976, %v1065
      %1067 = vdwg.mxu0
      %1068 = vmatprep.subr.bf16.mxu0 %v955
      %1069 = vmatpush1.bf16.msra.mxu0 %v954
      %1070 = vmatprep.subr.bf16.mxu0 %v957
      %1071 = vmatpush1.bf16.msra.mxu0 %v956
      %1072 = vmatprep.subr.bf16.mxu0 0
      %1073 = vmatpush1.bf16.msra.mxu0 0
      %1074 = vmatprep.subr.bf16.mxu0 0
      %1075 = vmatpush1.bf16.msra.mxu0 0
      %1076 = vmatprep.subr.bf16.mxu0 0
      %1077 = vmatpush1.bf16.msra.mxu0 0
      %1078 = vmatprep.subr.bf16.mxu0 0
      %1079 = vmatpush1.bf16.msra.mxu0 0
      %1080 = vmatprep.subr.bf16.mxu0 0
      %1081 = vmatpush1.bf16.msra.mxu0 0
      %1082 = vmatprep.subr.bf16.mxu0 0
      %1083 = vmatpush1.bf16.msra.mxu0 0
      %1084 = vmatprep.subr.bf16.mxu0 0
      %1085 = vmatpush1.bf16.msra.mxu0 0
      %1086 = vmatprep.subr.bf16.mxu0 0
      %1087 = vmatpush1.bf16.msra.mxu0 0
      %1088 = vmatprep.subr.bf16.mxu0 0
      %1089 = vmatpush1.bf16.msra.mxu0 0
      %1090 = vmatprep.subr.bf16.mxu0 0
      %1091 = vmatpush1.bf16.msra.mxu0 0
      %1092 = vmatprep.subr.bf16.mxu0 0
      %1093 = vmatpush1.bf16.msra.mxu0 0
      %1094 = vmatprep.subr.bf16.mxu0 0
      %1095 = vmatpush1.bf16.msra.mxu0 0
      %1096 = vmatprep.subr.bf16.mxu0 0
      %1097 = vmatpush1.bf16.msra.mxu0 0
      %1098 = vmatprep.subr.bf16.mxu0 0
      %1099 = vmatpush1.bf16.msra.mxu0 0
      %1100 = vmatprep.mubr.bf16.mxu0 0
      %1101 = vmatmul.mubr.bf16.gmra.mrb[0].mxu0 %v1010
      %v1102 = vpop.f32.mrb[0].mxu0
      %v1103 = vadd.f32 %v1050, %v1102
      %v1104 = vpop.f32.mrb[0].mxu0
      %v1105 = vadd.f32 %v1052, %v1104
      %v1106 = vpop.f32.mrb[0].mxu0
      %v1107 = vadd.f32 %v1054, %v1106
      %v1108 = vpop.f32.mrb[0].mxu0
      %v1109 = vadd.f32 %v1056, %v1108
      %1110 = vmatprep.mubr.bf16.mxu0 0
      %1111 = vmatmul.mubr.bf16.gmra.mrb[0].mxu0 %v1013
      %v1112 = vpop.f32.mrb[0].mxu0
      %v1113 = vadd.f32 %v1060, %v1112
      %v1114 = vpop.f32.mrb[0].mxu0
      %v1115 = vadd.f32 %v1062, %v1114
      %v1116 = vpop.f32.mrb[0].mxu0
      %v1117 = vadd.f32 %v1064, %v1116
      %v1118 = vpop.f32.mrb[0].mxu0
      %v1119 = vadd.f32 %v1066, %v1118
      %1120 = vdwg.mxu0
      %v1121 = vmax.f32 %v1103, 0.0
      %v1122 = vmax.f32 %v1105, 0.0
      %v1123 = vmax.f32 %v1107, 0.0
      %v1124 = vmax.f32 %v1109, 0.0
      %v1125 = vmax.f32 %v1113, 0.0
      %v1126 = vmax.f32 %v1115, 0.0
      %v1127 = vmax.f32 %v1117, 0.0
      %v1128 = vmax.f32 %v1119, 0.0
      %v1129 = vld [vmem:[%s5] sm:$0xff]
      %v1130 = vld [vmem:[%s5 + $0x8] sm:$0xf]
      %v1131 = vld [vmem:[%s5 + $0xc] sm:$0xff]
      %v1132 = vld [vmem:[%s5 + $0x14] sm:$0xf]
      %v1133 = vld [vmem:[%s5 + $0x18] sm:$0xff]
      %v1134 = vld [vmem:[%s5 + $0x20] sm:$0xf]
      %v1135 = vld [vmem:[%s5 + $0x24] sm:$0xff]
      %v1136 = vld [vmem:[%s5 + $0x2c] sm:$0xf]
      %v1137 = vld [vmem:[%s6] sm:$0xff]
      %v1138 = vld [vmem:[%s6 + $0x8] sm:$0xff]
      %v1139 = vld [vmem:[%s6 + $0x10] sm:$0xff]
      %v1140 = vld [vmem:[%s6 + $0x18] sm:$0xff]
      %1141 = vrot.lane.b32.xlu0 %v1121, 17
      %v1142 = vpop.permute.xlu0 %1141
      %1143 = vrot.lane.b32.xlu0 %v1123, 17
      %v1144 = vpop.permute.xlu0 %1143
      %1145 = vrot.lane.b32.xlu0 %v1125, 17
      %v1146 = vpop.permute.xlu0 %1145
      %1147 = vrot.lane.b32.xlu0 %v1127, 17
      %v1148 = vpop.permute.xlu0 %1147
      %1149 = vrot.lane.b32.xlu0 %v1122, 17
      %v1150 = vpop.permute.xlu0 %1149
      %1151 = vrot.lane.b32.xlu0 %v1124, 17
      %v1152 = vpop.permute.xlu0 %1151
      %1153 = vrot.lane.b32.xlu0 %v1126, 17
      %v1154 = vpop.permute.xlu0 %1153
      %1155 = vrot.lane.b32.xlu0 %v1128, 17
      %v1156 = vpop.permute.xlu0 %1155
      %v1157 = vsel %vm458, %v1142, %v1150
      %v1158 = vsel %vm458, %v1144, %v1152
      %v1159 = vsel %vm458, %v1146, %v1154
      %v1160 = vsel %vm458, %v1148, %v1156
      %v1161 = vsel %vm458, %v1150, %v1142
      %v1162 = vsel %vm458, %v1152, %v1144
      %v1163 = vsel %vm458, %v1154, %v1146
      %v1164 = vsel %vm458, %v1156, %v1148
      %v1165 = vsel %vm470, %v1161, 0.0
      %v1166 = vsel %vm471, %v1157, 0.0
      %v1167 = vsel %vm470, %v1162, 0.0
      %v1168 = vsel %vm471, %v1158, 0.0
      %v1169 = vsel %vm470, %v1163, 0.0
      %v1170 = vsel %vm471, %v1159, 0.0
      %v1171 = vsel %vm470, %v1164, 0.0
      %v1172 = vsel %vm471, %v1160, 0.0
      %1173 = vrot.lane.b32.xlu0 %v1121, 16
      %v1174 = vpop.permute.xlu0 %1173
      %1175 = vrot.lane.b32.xlu0 %v1123, 16
      %v1176 = vpop.permute.xlu0 %1175
      %1177 = vrot.lane.b32.xlu0 %v1125, 16
      %v1178 = vpop.permute.xlu0 %1177
      %1179 = vrot.lane.b32.xlu0 %v1127, 16
      %v1180 = vpop.permute.xlu0 %1179
      %1181 = vrot.lane.b32.xlu0 %v1122, 16
      %v1182 = vpop.permute.xlu0 %1181
      %1183 = vrot.lane.b32.xlu0 %v1124, 16
      %v1184 = vpop.permute.xlu0 %1183
      %1185 = vrot.lane.b32.xlu0 %v1126, 16
      %v1186 = vpop.permute.xlu0 %1185
      %1187 = vrot.lane.b32.xlu0 %v1128, 16
      %v1188 = vpop.permute.xlu0 %1187
      %v1189 = vsel %vm478, %v1174, %v1182
      %v1190 = vsel %vm478, %v1176, %v1184
      %v1191 = vsel %vm478, %v1178, %v1186
      %v1192 = vsel %vm478, %v1180, %v1188
      %v1193 = vsel %vm478, %v1182, %v1174
      %v1194 = vsel %vm478, %v1184, %v1176
      %v1195 = vsel %vm478, %v1186, %v1178
      %v1196 = vsel %vm478, %v1188, %v1180
      %v1197 = vsel %vm466, %v1193, 0.0
      %v1198 = vsel %vm467, %v1189, 0.0
      %v1199 = vsel %vm466, %v1194, 0.0
      %v1200 = vsel %vm467, %v1190, 0.0
      %v1201 = vsel %vm466, %v1195, 0.0
      %v1202 = vsel %vm467, %v1191, 0.0
      %v1203 = vsel %vm466, %v1196, 0.0
      %v1204 = vsel %vm467, %v1192, 0.0
      %1205 = vrot.lane.b32.xlu0 %v1121, 15
      %v1206 = vpop.permute.xlu0 %1205
      %1207 = vrot.lane.b32.xlu0 %v1123, 15
      %v1208 = vpop.permute.xlu0 %1207
      %1209 = vrot.lane.b32.xlu0 %v1125, 15
      %v1210 = vpop.permute.xlu0 %1209
      %1211 = vrot.lane.b32.xlu0 %v1127, 15
      %v1212 = vpop.permute.xlu0 %1211
      %1213 = vrot.lane.b32.xlu0 %v1122, 15
      %v1214 = vpop.permute.xlu0 %1213
      %1215 = vrot.lane.b32.xlu0 %v1124, 15
      %v1216 = vpop.permute.xlu0 %1215
      %1217 = vrot.lane.b32.xlu0 %v1126, 15
      %v1218 = vpop.permute.xlu0 %1217
      %1219 = vrot.lane.b32.xlu0 %v1128, 15
      %v1220 = vpop.permute.xlu0 %1219
      %v1221 = vsel %vm487, %v1206, %v1214
      %v1222 = vsel %vm487, %v1208, %v1216
      %v1223 = vsel %vm487, %v1210, %v1218
      %v1224 = vsel %vm487, %v1212, %v1220
      %v1225 = vsel %vm487, %v1214, %v1206
      %v1226 = vsel %vm487, %v1216, %v1208
      %v1227 = vsel %vm487, %v1218, %v1210
      %v1228 = vsel %vm487, %v1220, %v1212
      %v1229 = vsel %vm492, %v1225, 0.0
      %v1230 = vsel %vm493, %v1221, 0.0
      %v1231 = vsel %vm492, %v1226, 0.0
      %v1232 = vsel %vm493, %v1222, 0.0
      %v1233 = vsel %vm492, %v1227, 0.0
      %v1234 = vsel %vm493, %v1223, 0.0
      %v1235 = vsel %vm492, %v1228, 0.0
      %v1236 = vsel %vm493, %v1224, 0.0
      %1237 = vrot.lane.b32.xlu0 %v1121, 1
      %v1238 = vpop.permute.xlu0 %1237
      %1239 = vrot.lane.b32.xlu0 %v1123, 1
      %v1240 = vpop.permute.xlu0 %1239
      %1241 = vrot.lane.b32.xlu0 %v1125, 1
      %v1242 = vpop.permute.xlu0 %1241
      %1243 = vrot.lane.b32.xlu0 %v1127, 1
      %v1244 = vpop.permute.xlu0 %1243
      %1245 = vrot.lane.b32.xlu0 %v1122, 1
      %v1246 = vpop.permute.xlu0 %1245
      %1247 = vrot.lane.b32.xlu0 %v1124, 1
      %v1248 = vpop.permute.xlu0 %1247
      %1249 = vrot.lane.b32.xlu0 %v1126, 1
      %v1250 = vpop.permute.xlu0 %1249
      %1251 = vrot.lane.b32.xlu0 %v1128, 1
      %v1252 = vpop.permute.xlu0 %1251
      %v1253 = vsel %vm500, %v1238, %v1246
      %v1254 = vsel %vm500, %v1240, %v1248
      %v1255 = vsel %vm500, %v1242, %v1250
      %v1256 = vsel %vm500, %v1244, %v1252
      %v1257 = vsel %vm500, %v1246, %v1238
      %v1258 = vsel %vm500, %v1248, %v1240
      %v1259 = vsel %vm500, %v1250, %v1242
      %v1260 = vsel %vm500, %v1252, %v1244
      %v1261 = vsel %vm468, %v1257, 0.0
      %v1262 = vsel %vm469, %v1253, 0.0
      %v1263 = vsel %vm468, %v1258, 0.0
      %v1264 = vsel %vm469, %v1254, 0.0
      %v1265 = vsel %vm468, %v1259, 0.0
      %v1266 = vsel %vm469, %v1255, 0.0
      %v1267 = vsel %vm468, %v1260, 0.0
      %v1268 = vsel %vm469, %v1256, 0.0
      %1269 = vrot.lane.b32.xlu0 %v1121, 127
      %v1270 = vpop.permute.xlu0 %1269
      %1271 = vrot.lane.b32.xlu0 %v1123, 127
      %v1272 = vpop.permute.xlu0 %1271
      %1273 = vrot.lane.b32.xlu0 %v1125, 127
      %v1274 = vpop.permute.xlu0 %1273
      %1275 = vrot.lane.b32.xlu0 %v1127, 127
      %v1276 = vpop.permute.xlu0 %1275
      %1277 = vrot.lane.b32.xlu0 %v1122, 127
      %v1278 = vpop.permute.xlu0 %1277
      %1279 = vrot.lane.b32.xlu0 %v1124, 127
      %v1280 = vpop.permute.xlu0 %1279
      %1281 = vrot.lane.b32.xlu0 %v1126, 127
      %v1282 = vpop.permute.xlu0 %1281
      %1283 = vrot.lane.b32.xlu0 %v1128, 127
      %v1284 = vpop.permute.xlu0 %1283
      %v1285 = vsel %vm509, %v1270, %v1278
      %v1286 = vsel %vm509, %v1272, %v1280
      %v1287 = vsel %vm509, %v1274, %v1282
      %v1288 = vsel %vm509, %v1276, %v1284
      %v1289 = vsel %vm509, %v1278, %v1270
      %v1290 = vsel %vm509, %v1280, %v1272
      %v1291 = vsel %vm509, %v1282, %v1274
      %v1292 = vsel %vm509, %v1284, %v1276
      %v1293 = vsel %vm490, %v1285, 0.0
      %v1294 = vsel %vm491, %v1289, 0.0
      %v1295 = vsel %vm490, %v1286, 0.0
      %v1296 = vsel %vm491, %v1290, 0.0
      %v1297 = vsel %vm490, %v1287, 0.0
      %v1298 = vsel %vm491, %v1291, 0.0
      %v1299 = vsel %vm490, %v1288, 0.0
      %v1300 = vsel %vm491, %v1292, 0.0
      %1301 = vrot.lane.b32.xlu0 %v1121, 113
      %v1302 = vpop.permute.xlu0 %1301
      %1303 = vrot.lane.b32.xlu0 %v1123, 113
      %v1304 = vpop.permute.xlu0 %1303
      %1305 = vrot.lane.b32.xlu0 %v1125, 113
      %v1306 = vpop.permute.xlu0 %1305
      %1307 = vrot.lane.b32.xlu0 %v1127, 113
      %v1308 = vpop.permute.xlu0 %1307
      %1309 = vrot.lane.b32.xlu0 %v1122, 113
      %v1310 = vpop.permute.xlu0 %1309
      %1311 = vrot.lane.b32.xlu0 %v1124, 113
      %v1312 = vpop.permute.xlu0 %1311
      %1313 = vrot.lane.b32.xlu0 %v1126, 113
      %v1314 = vpop.permute.xlu0 %1313
      %1315 = vrot.lane.b32.xlu0 %v1128, 113
      %v1316 = vpop.permute.xlu0 %1315
      %v1317 = vsel %vm518, %v1302, %v1310
      %v1318 = vsel %vm518, %v1304, %v1312
      %v1319 = vsel %vm518, %v1306, %v1314
      %v1320 = vsel %vm518, %v1308, %v1316
      %v1321 = vsel %vm518, %v1310, %v1302
      %v1322 = vsel %vm518, %v1312, %v1304
      %v1323 = vsel %vm518, %v1314, %v1306
      %v1324 = vsel %vm518, %v1316, %v1308
      %v1325 = vsel %vm523, %v1317, 0.0
      %v1326 = vsel %vm524, %v1321, 0.0
      %v1327 = vsel %vm523, %v1318, 0.0
      %v1328 = vsel %vm524, %v1322, 0.0
      %v1329 = vsel %vm523, %v1319, 0.0
      %v1330 = vsel %vm524, %v1323, 0.0
      %v1331 = vsel %vm523, %v1320, 0.0
      %v1332 = vsel %vm524, %v1324, 0.0
      %1333 = vrot.lane.b32.xlu0 %v1121, 112
      %v1334 = vpop.permute.xlu0 %1333
      %1335 = vrot.lane.b32.xlu0 %v1123, 112
      %v1336 = vpop.permute.xlu0 %1335
      %1337 = vrot.lane.b32.xlu0 %v1125, 112
      %v1338 = vpop.permute.xlu0 %1337
      %1339 = vrot.lane.b32.xlu0 %v1127, 112
      %v1340 = vpop.permute.xlu0 %1339
      %1341 = vrot.lane.b32.xlu0 %v1122, 112
      %v1342 = vpop.permute.xlu0 %1341
      %1343 = vrot.lane.b32.xlu0 %v1124, 112
      %v1344 = vpop.permute.xlu0 %1343
      %1345 = vrot.lane.b32.xlu0 %v1126, 112
      %v1346 = vpop.permute.xlu0 %1345
      %1347 = vrot.lane.b32.xlu0 %v1128, 112
      %v1348 = vpop.permute.xlu0 %1347
      %v1349 = vsel %vm531, %v1334, %v1342
      %v1350 = vsel %vm531, %v1336, %v1344
      %v1351 = vsel %vm531, %v1338, %v1346
      %v1352 = vsel %vm531, %v1340, %v1348
      %v1353 = vsel %vm531, %v1342, %v1334
      %v1354 = vsel %vm531, %v1344, %v1336
      %v1355 = vsel %vm531, %v1346, %v1338
      %v1356 = vsel %vm531, %v1348, %v1340
      %v1357 = vsel %vm521, %v1349, 0.0
      %v1358 = vsel %vm522, %v1353, 0.0
      %v1359 = vsel %vm521, %v1350, 0.0
      %v1360 = vsel %vm522, %v1354, 0.0
      %v1361 = vsel %vm521, %v1351, 0.0
      %v1362 = vsel %vm522, %v1355, 0.0
      %v1363 = vsel %vm521, %v1352, 0.0
      %v1364 = vsel %vm522, %v1356, 0.0
      %1365 = vrot.lane.b32.xlu0 %v1121, 111
      %v1366 = vpop.permute.xlu0 %1365
      %1367 = vrot.lane.b32.xlu0 %v1123, 111
      %v1368 = vpop.permute.xlu0 %1367
      %1369 = vrot.lane.b32.xlu0 %v1125, 111
      %v1370 = vpop.permute.xlu0 %1369
      %1371 = vrot.lane.b32.xlu0 %v1127, 111
      %v1372 = vpop.permute.xlu0 %1371
      %1373 = vrot.lane.b32.xlu0 %v1122, 111
      %v1374 = vpop.permute.xlu0 %1373
      %1375 = vrot.lane.b32.xlu0 %v1124, 111
      %v1376 = vpop.permute.xlu0 %1375
      %1377 = vrot.lane.b32.xlu0 %v1126, 111
      %v1378 = vpop.permute.xlu0 %1377
      %1379 = vrot.lane.b32.xlu0 %v1128, 111
      %v1380 = vpop.permute.xlu0 %1379
      %v1381 = vsel %vm540, %v1366, %v1374
      %v1382 = vsel %vm540, %v1368, %v1376
      %v1383 = vsel %vm540, %v1370, %v1378
      %v1384 = vsel %vm540, %v1372, %v1380
      %v1385 = vsel %vm540, %v1374, %v1366
      %v1386 = vsel %vm540, %v1376, %v1368
      %v1387 = vsel %vm540, %v1378, %v1370
      %v1388 = vsel %vm540, %v1380, %v1372
      %v1389 = vsel %vm543, %v1381, 0.0
      %v1390 = vsel %vm544, %v1385, 0.0
      %v1391 = vsel %vm543, %v1382, 0.0
      %v1392 = vsel %vm544, %v1386, 0.0
      %v1393 = vsel %vm543, %v1383, 0.0
      %v1394 = vsel %vm544, %v1387, 0.0
      %v1395 = vsel %vm543, %v1384, 0.0
      %v1396 = vsel %vm544, %v1388, 0.0
      %v1397 = vpack.c.bf16 %v1167, %v1165
      %v1398 = vpack.c.bf16 %v1168, %v1166
      %v1399 = vpack.c.bf16 %v1171, %v1169
      %v1400 = vpack.c.bf16 %v1172, %v1170
      %v1401 = vpack.c.bf16 %v1199, %v1197
      %v1402 = vpack.c.bf16 %v1200, %v1198
      %v1403 = vpack.c.bf16 %v1203, %v1201
      %v1404 = vpack.c.bf16 %v1204, %v1202
      %v1405 = vpack.c.bf16 %v1231, %v1229
      %v1406 = vpack.c.bf16 %v1232, %v1230
      %v1407 = vpack.c.bf16 %v1235, %v1233
      %v1408 = vpack.c.bf16 %v1236, %v1234
      %v1409 = vpack.c.bf16 %v1263, %v1261
      %v1410 = vpack.c.bf16 %v1264, %v1262
      %v1411 = vpack.c.bf16 %v1267, %v1265
      %v1412 = vpack.c.bf16 %v1268, %v1266
      %v1413 = vpack.c.bf16 %v1123, %v1121
      %v1414 = vpack.c.bf16 %v1124, %v1122
      %v1415 = vpack.c.bf16 %v1127, %v1125
      %v1416 = vpack.c.bf16 %v1128, %v1126
      %v1417 = vpack.c.bf16 %v1295, %v1293
      %v1418 = vpack.c.bf16 %v1296, %v1294
      %v1419 = vpack.c.bf16 %v1299, %v1297
      %v1420 = vpack.c.bf16 %v1300, %v1298
      %v1421 = vpack.c.bf16 %v1327, %v1325
      %v1422 = vpack.c.bf16 %v1328, %v1326
      %v1423 = vpack.c.bf16 %v1331, %v1329
      %v1424 = vpack.c.bf16 %v1332, %v1330
      %v1425 = vpack.c.bf16 %v1359, %v1357
      %v1426 = vpack.c.bf16 %v1360, %v1358
      %v1427 = vpack.c.bf16 %v1363, %v1361
      %v1428 = vpack.c.bf16 %v1364, %v1362
      %v1429 = vpack.c.bf16 %v1391, %v1389
      %v1430 = vpack.c.bf16 %v1392, %v1390
      %v1431 = vpack.c.bf16 %v1395, %v1393
      %v1432 = vpack.c.bf16 %v1396, %v1394
      %1434 = vset.pattern.permute.xlu0 0
      %1435 = vperm.xlu0 %1434, %v1137
      %v1436 = vpop.permute.xlu0 %1435
      %1439 = vset.pattern.permute.xlu0 0
      %1440 = vperm.xlu0 %1439, %v1138
      %v1441 = vpop.permute.xlu0 %1440
      %1444 = vset.pattern.permute.xlu0 0
      %1445 = vperm.xlu0 %1444, %v1139
      %v1446 = vpop.permute.xlu0 %1445
      %1449 = vset.pattern.permute.xlu0 0
      %1450 = vperm.xlu0 %1449, %v1140
      %v1451 = vpop.permute.xlu0 %1450
      %v1461 = vunpack.c.l.b16 %v1129
      %v1462 = vunpack.c.h.b16 %v1129
      %v1463 = vunpack.c.l.b16 %v1130
      %v1464 = vunpack.c.l.b16 %v1131
      %v1465 = vunpack.c.h.b16 %v1131
      %v1466 = vunpack.c.l.b16 %v1132
      %v1467 = vunpack.c.l.b16 %v1133
      %v1468 = vunpack.c.h.b16 %v1133
      %v1469 = vunpack.c.l.b16 %v1134
      %v1470 = vunpack.c.l.b16 %v1135
      %v1471 = vunpack.c.h.b16 %v1135
      %v1472 = vunpack.c.l.b16 %v1136
      %v1473 = vpack.c.b16 %v1464, %v1461
      %v1474 = vpack.c.b16 %v1465, %v1462
      %v1475 = vpack.c.b16 %v1466, %v1463
      %v1476 = vpack.c.b16 %v1470, %v1467
      %v1477 = vpack.c.b16 %v1471, %v1468
      %v1478 = vpack.c.b16 %v1472, %v1469
      %v1484 = vsel %vm1008, %v1475, 0
      %v1487 = vsel %vm1008, %v1478, 0
      %1489 = vmatprep.subr.bf16.mxu0 %v1398
      %1490 = vmatpush1.bf16.msra.mxu0 %v1397
      %1491 = vmatprep.subr.bf16.mxu0 %v1400
      %1492 = vmatpush1.bf16.msra.mxu0 %v1399
      %1493 = vmatprep.subr.bf16.mxu0 %v1402
      %1494 = vmatpush1.bf16.msra.mxu0 %v1401
      %1495 = vmatprep.subr.bf16.mxu0 %v1404
      %1496 = vmatpush1.bf16.msra.mxu0 %v1403
      %1497 = vmatprep.subr.bf16.mxu0 %v1406
      %1498 = vmatpush1.bf16.msra.mxu0 %v1405
      %1499 = vmatprep.subr.bf16.mxu0 %v1408
      %1500 = vmatpush1.bf16.msra.mxu0 %v1407
      %1501 = vmatprep.subr.bf16.mxu0 %v1410
      %1502 = vmatpush1.bf16.msra.mxu0 %v1409
      %1503 = vmatprep.subr.bf16.mxu0 %v1412
      %1504 = vmatpush1.bf16.msra.mxu0 %v1411
      %1505 = vmatprep.subr.bf16.mxu0 %v1414
      %1506 = vmatpush1.bf16.msra.mxu0 %v1413
      %1507 = vmatprep.subr.bf16.mxu0 %v1416
      %1508 = vmatpush1.bf16.msra.mxu0 %v1415
      %1509 = vmatprep.subr.bf16.mxu0 %v1418
      %1510 = vmatpush1.bf16.msra.mxu0 %v1417
      %1511 = vmatprep.subr.bf16.mxu0 %v1420
      %1512 = vmatpush1.bf16.msra.mxu0 %v1419
      %1513 = vmatprep.subr.bf16.mxu0 %v1422
      %1514 = vmatpush1.bf16.msra.mxu0 %v1421
      %1515 = vmatprep.subr.bf16.mxu0 %v1424
      %1516 = vmatpush1.bf16.msra.mxu0 %v1423
      %1517 = vmatprep.subr.bf16.mxu0 %v1426
      %1518 = vmatpush1.bf16.msra.mxu0 %v1425
      %1519 = vmatprep.subr.bf16.mxu0 %v1428
      %1520 = vmatpush1.bf16.msra.mxu0 %v1427
      %1521 = vmatprep.mubr.bf16.mxu0 %v1474
      %1522 = vmatmul.mubr.bf16.gmra.mrb[0].mxu0 %v1473
      %v1523 = vpop.f32.mrb[0].mxu0
      %v1524 = vadd.f32 %v1436, %v1523
      %v1525 = vpop.f32.mrb[0].mxu0
      %v1526 = vadd.f32 %v1436, %v1525
      %v1527 = vpop.f32.mrb[0].mxu0
      %v1528 = vadd.f32 %v1441, %v1527
      %v1529 = vpop.f32.mrb[0].mxu0
      %v1530 = vadd.f32 %v1441, %v1529
      %1531 = vmatprep.mubr.bf16.mxu0 %v1477
      %1532 = vmatmul.mubr.bf16.gmra.mrb[0].mxu0 %v1476
      %v1533 = vpop.f32.mrb[0].mxu0
      %v1534 = vadd.f32 %v1446, %v1533
      %v1535 = vpop.f32.mrb[0].mxu0
      %v1536 = vadd.f32 %v1446, %v1535
      %v1537 = vpop.f32.mrb[0].mxu0
      %v1538 = vadd.f32 %v1451, %v1537
      %v1539 = vpop.f32.mrb[0].mxu0
      %v1540 = vadd.f32 %v1451, %v1539
      %1541 = vdwg.mxu0
      %1542 = vmatprep.subr.bf16.mxu0 %v1430
      %1543 = vmatpush1.bf16.msra.mxu0 %v1429
      %1544 = vmatprep.subr.bf16.mxu0 %v1432
      %1545 = vmatpush1.bf16.msra.mxu0 %v1431
      %1546 = vmatprep.subr.bf16.mxu0 0
      %1547 = vmatpush1.bf16.msra.mxu0 0
      %1548 = vmatprep.subr.bf16.mxu0 0
      %1549 = vmatpush1.bf16.msra.mxu0 0
      %1550 = vmatprep.subr.bf16.mxu0 0
      %1551 = vmatpush1.bf16.msra.mxu0 0
      %1552 = vmatprep.subr.bf16.mxu0 0
      %1553 = vmatpush1.bf16.msra.mxu0 0
      %1554 = vmatprep.subr.bf16.mxu0 0
      %1555 = vmatpush1.bf16.msra.mxu0 0
      %1556 = vmatprep.subr.bf16.mxu0 0
      %1557 = vmatpush1.bf16.msra.mxu0 0
      %1558 = vmatprep.subr.bf16.mxu0 0
      %1559 = vmatpush1.bf16.msra.mxu0 0
      %1560 = vmatprep.subr.bf16.mxu0 0
      %1561 = vmatpush1.bf16.msra.mxu0 0
      %1562 = vmatprep.subr.bf16.mxu0 0
      %1563 = vmatpush1.bf16.msra.mxu0 0
      %1564 = vmatprep.subr.bf16.mxu0 0
      %1565 = vmatpush1.bf16.msra.mxu0 0
      %1566 = vmatprep.subr.bf16.mxu0 0
      %1567 = vmatpush1.bf16.msra.mxu0 0
      %1568 = vmatprep.subr.bf16.mxu0 0
      %1569 = vmatpush1.bf16.msra.mxu0 0
      %1570 = vmatprep.subr.bf16.mxu0 0
      %1571 = vmatpush1.bf16.msra.mxu0 0
      %1572 = vmatprep.subr.bf16.mxu0 0
      %1573 = vmatpush1.bf16.msra.mxu0 0
      %1574 = vmatprep.mubr.bf16.mxu0 0
      %1575 = vmatmul.mubr.bf16.gmra.mrb[0].mxu0 %v1484
      %v1576 = vpop.f32.mrb[0].mxu0
      %v1577 = vadd.f32 %v1524, %v1576
      %v1578 = vpop.f32.mrb[0].mxu0
      %v1579 = vadd.f32 %v1526, %v1578
      %v1580 = vpop.f32.mrb[0].mxu0
      %v1581 = vadd.f32 %v1528, %v1580
      %v1582 = vpop.f32.mrb[0].mxu0
      %v1583 = vadd.f32 %v1530, %v1582
      %1584 = vmatprep.mubr.bf16.mxu0 0
      %1585 = vmatmul.mubr.bf16.gmra.mrb[0].mxu0 %v1487
      %v1586 = vpop.f32.mrb[0].mxu0
      %v1587 = vadd.f32 %v1534, %v1586
      %v1588 = vpop.f32.mrb[0].mxu0
      %v1589 = vadd.f32 %v1536, %v1588
      %v1590 = vpop.f32.mrb[0].mxu0
      %v1591 = vadd.f32 %v1538, %v1590
      %v1592 = vpop.f32.mrb[0].mxu0
      %v1593 = vadd.f32 %v1540, %v1592
      %1594 = vdwg.mxu0
      %v1595 = vadd.f32 %v1577, %v636
      %v1596 = vadd.f32 %v1579, %v638
      %v1597 = vadd.f32 %v1581, %v640
      %v1598 = vadd.f32 %v1583, %v642
      %v1599 = vadd.f32 %v1587, %v646
      %v1600 = vadd.f32 %v1589, %v648
      %v1601 = vadd.f32 %v1591, %v650
      %v1602 = vadd.f32 %v1593, %v652
      %s1603 = scalar_lea.vmem %s3, 48
      %v1604 = vld [vmem:[%s1603] sm:$0xff]
      %v1605 = vld [vmem:[%s1603 + $0x8] sm:$0xf]
      %v1606 = vld [vmem:[%s1603 + $0xc] sm:$0xff]
      %v1607 = vld [vmem:[%s1603 + $0x14] sm:$0xf]
      %v1608 = vld [vmem:[%s1603 + $0x18] sm:$0xff]
      %v1609 = vld [vmem:[%s1603 + $0x20] sm:$0xf]
      %v1610 = vld [vmem:[%s1603 + $0x24] sm:$0xff]
      %v1611 = vld [vmem:[%s1603 + $0x2c] sm:$0xf]
      %s1612 = scalar_lea.vmem %s4, 32
      %v1613 = vld [vmem:[%s1612] sm:$0xff]
      %v1614 = vld [vmem:[%s1612 + $0x8] sm:$0xff]
      %v1615 = vld [vmem:[%s1612 + $0x10] sm:$0xff]
      %v1616 = vld [vmem:[%s1612 + $0x18] sm:$0xff]
      %1617 = vrot.lane.b32.xlu0 %v1595, 17
      %v1618 = vpop.permute.xlu0 %1617
      %1619 = vrot.lane.b32.xlu0 %v1597, 17
      %v1620 = vpop.permute.xlu0 %1619
      %1621 = vrot.lane.b32.xlu0 %v1599, 17
      %v1622 = vpop.permute.xlu0 %1621
      %1623 = vrot.lane.b32.xlu0 %v1601, 17
      %v1624 = vpop.permute.xlu0 %1623
      %1625 = vrot.lane.b32.xlu0 %v1596, 17
      %v1626 = vpop.permute.xlu0 %1625
      %1627 = vrot.lane.b32.xlu0 %v1598, 17
      %v1628 = vpop.permute.xlu0 %1627
      %1629 = vrot.lane.b32.xlu0 %v1600, 17
      %v1630 = vpop.permute.xlu0 %1629
      %1631 = vrot.lane.b32.xlu0 %v1602, 17
      %v1632 = vpop.permute.xlu0 %1631
      %v1633 = vsel %vm458, %v1618, %v1626
      %v1634 = vsel %vm458, %v1620, %v1628
      %v1635 = vsel %vm458, %v1622, %v1630
      %v1636 = vsel %vm458, %v1624, %v1632
      %v1637 = vsel %vm458, %v1626, %v1618
      %v1638 = vsel %vm458, %v1628, %v1620
      %v1639 = vsel %vm458, %v1630, %v1622
      %v1640 = vsel %vm458, %v1632, %v1624
      %v1641 = vsel %vm470, %v1637, 0.0
      %v1642 = vsel %vm471, %v1633, 0.0
      %v1643 = vsel %vm470, %v1638, 0.0
      %v1644 = vsel %vm471, %v1634, 0.0
      %v1645 = vsel %vm470, %v1639, 0.0
      %v1646 = vsel %vm471, %v1635, 0.0
      %v1647 = vsel %vm470, %v1640, 0.0
      %v1648 = vsel %vm471, %v1636, 0.0
      %1649 = vrot.lane.b32.xlu0 %v1595, 16
      %v1650 = vpop.permute.xlu0 %1649
      %1651 = vrot.lane.b32.xlu0 %v1597, 16
      %v1652 = vpop.permute.xlu0 %1651
      %1653 = vrot.lane.b32.xlu0 %v1599, 16
      %v1654 = vpop.permute.xlu0 %1653
      %1655 = vrot.lane.b32.xlu0 %v1601, 16
      %v1656 = vpop.permute.xlu0 %1655
      %1657 = vrot.lane.b32.xlu0 %v1596, 16
      %v1658 = vpop.permute.xlu0 %1657
      %1659 = vrot.lane.b32.xlu0 %v1598, 16
      %v1660 = vpop.permute.xlu0 %1659
      %1661 = vrot.lane.b32.xlu0 %v1600, 16
      %v1662 = vpop.permute.xlu0 %1661
      %1663 = vrot.lane.b32.xlu0 %v1602, 16
      %v1664 = vpop.permute.xlu0 %1663
      %v1665 = vsel %vm478, %v1650, %v1658
      %v1666 = vsel %vm478, %v1652, %v1660
      %v1667 = vsel %vm478, %v1654, %v1662
      %v1668 = vsel %vm478, %v1656, %v1664
      %v1669 = vsel %vm478, %v1658, %v1650
      %v1670 = vsel %vm478, %v1660, %v1652
      %v1671 = vsel %vm478, %v1662, %v1654
      %v1672 = vsel %vm478, %v1664, %v1656
      %v1673 = vsel %vm466, %v1669, 0.0
      %v1674 = vsel %vm467, %v1665, 0.0
      %v1675 = vsel %vm466, %v1670, 0.0
      %v1676 = vsel %vm467, %v1666, 0.0
      %v1677 = vsel %vm466, %v1671, 0.0
      %v1678 = vsel %vm467, %v1667, 0.0
      %v1679 = vsel %vm466, %v1672, 0.0
      %v1680 = vsel %vm467, %v1668, 0.0
      %1681 = vrot.lane.b32.xlu0 %v1595, 15
      %v1682 = vpop.permute.xlu0 %1681
      %1683 = vrot.lane.b32.xlu0 %v1597, 15
      %v1684 = vpop.permute.xlu0 %1683
      %1685 = vrot.lane.b32.xlu0 %v1599, 15
      %v1686 = vpop.permute.xlu0 %1685
      %1687 = vrot.lane.b32.xlu0 %v1601, 15
      %v1688 = vpop.permute.xlu0 %1687
      %1689 = vrot.lane.b32.xlu0 %v1596, 15
      %v1690 = vpop.permute.xlu0 %1689
      %1691 = vrot.lane.b32.xlu0 %v1598, 15
      %v1692 = vpop.permute.xlu0 %1691
      %1693 = vrot.lane.b32.xlu0 %v1600, 15
      %v1694 = vpop.permute.xlu0 %1693
      %1695 = vrot.lane.b32.xlu0 %v1602, 15
      %v1696 = vpop.permute.xlu0 %1695
      %v1697 = vsel %vm487, %v1682, %v1690
      %v1698 = vsel %vm487, %v1684, %v1692
      %v1699 = vsel %vm487, %v1686, %v1694
      %v1700 = vsel %vm487, %v1688, %v1696
      %v1701 = vsel %vm487, %v1690, %v1682
      %v1702 = vsel %vm487, %v1692, %v1684
      %v1703 = vsel %vm487, %v1694, %v1686
      %v1704 = vsel %vm487, %v1696, %v1688
      %v1705 = vsel %vm492, %v1701, 0.0
      %v1706 = vsel %vm493, %v1697, 0.0
      %v1707 = vsel %vm492, %v1702, 0.0
      %v1708 = vsel %vm493, %v1698, 0.0
      %v1709 = vsel %vm492, %v1703, 0.0
      %v1710 = vsel %vm493, %v1699, 0.0
      %v1711 = vsel %vm492, %v1704, 0.0
      %v1712 = vsel %vm493, %v1700, 0.0
      %1713 = vrot.lane.b32.xlu0 %v1595, 1
      %v1714 = vpop.permute.xlu0 %1713
      %1715 = vrot.lane.b32.xlu0 %v1597, 1
      %v1716 = vpop.permute.xlu0 %1715
      %1717 = vrot.lane.b32.xlu0 %v1599, 1
      %v1718 = vpop.permute.xlu0 %1717
      %1719 = vrot.lane.b32.xlu0 %v1601, 1
      %v1720 = vpop.permute.xlu0 %1719
      %1721 = vrot.lane.b32.xlu0 %v1596, 1
      %v1722 = vpop.permute.xlu0 %1721
      %1723 = vrot.lane.b32.xlu0 %v1598, 1
      %v1724 = vpop.permute.xlu0 %1723
      %1725 = vrot.lane.b32.xlu0 %v1600, 1
      %v1726 = vpop.permute.xlu0 %1725
      %1727 = vrot.lane.b32.xlu0 %v1602, 1
      %v1728 = vpop.permute.xlu0 %1727
      %v1729 = vsel %vm500, %v1714, %v1722
      %v1730 = vsel %vm500, %v1716, %v1724
      %v1731 = vsel %vm500, %v1718, %v1726
      %v1732 = vsel %vm500, %v1720, %v1728
      %v1733 = vsel %vm500, %v1722, %v1714
      %v1734 = vsel %vm500, %v1724, %v1716
      %v1735 = vsel %vm500, %v1726, %v1718
      %v1736 = vsel %vm500, %v1728, %v1720
      %v1737 = vsel %vm468, %v1733, 0.0
      %v1738 = vsel %vm469, %v1729, 0.0
      %v1739 = vsel %vm468, %v1734, 0.0
      %v1740 = vsel %vm469, %v1730, 0.0
      %v1741 = vsel %vm468, %v1735, 0.0
      %v1742 = vsel %vm469, %v1731, 0.0
      %v1743 = vsel %vm468, %v1736, 0.0
      %v1744 = vsel %vm469, %v1732, 0.0
      %1745 = vrot.lane.b32.xlu0 %v1595, 127
      %v1746 = vpop.permute.xlu0 %1745
      %1747 = vrot.lane.b32.xlu0 %v1597, 127
      %v1748 = vpop.permute.xlu0 %1747
      %1749 = vrot.lane.b32.xlu0 %v1599, 127
      %v1750 = vpop.permute.xlu0 %1749
      %1751 = vrot.lane.b32.xlu0 %v1601, 127
      %v1752 = vpop.permute.xlu0 %1751
      %1753 = vrot.lane.b32.xlu0 %v1596, 127
      %v1754 = vpop.permute.xlu0 %1753
      %1755 = vrot.lane.b32.xlu0 %v1598, 127
      %v1756 = vpop.permute.xlu0 %1755
      %1757 = vrot.lane.b32.xlu0 %v1600, 127
      %v1758 = vpop.permute.xlu0 %1757
      %1759 = vrot.lane.b32.xlu0 %v1602, 127
      %v1760 = vpop.permute.xlu0 %1759
      %v1761 = vsel %vm509, %v1746, %v1754
      %v1762 = vsel %vm509, %v1748, %v1756
      %v1763 = vsel %vm509, %v1750, %v1758
      %v1764 = vsel %vm509, %v1752, %v1760
      %v1765 = vsel %vm509, %v1754, %v1746
      %v1766 = vsel %vm509, %v1756, %v1748
      %v1767 = vsel %vm509, %v1758, %v1750
      %v1768 = vsel %vm509, %v1760, %v1752
      %v1769 = vsel %vm490, %v1761, 0.0
      %v1770 = vsel %vm491, %v1765, 0.0
      %v1771 = vsel %vm490, %v1762, 0.0
      %v1772 = vsel %vm491, %v1766, 0.0
      %v1773 = vsel %vm490, %v1763, 0.0
      %v1774 = vsel %vm491, %v1767, 0.0
      %v1775 = vsel %vm490, %v1764, 0.0
      %v1776 = vsel %vm491, %v1768, 0.0
      %1777 = vrot.lane.b32.xlu0 %v1595, 113
      %v1778 = vpop.permute.xlu0 %1777
      %1779 = vrot.lane.b32.xlu0 %v1597, 113
      %v1780 = vpop.permute.xlu0 %1779
      %1781 = vrot.lane.b32.xlu0 %v1599, 113
      %v1782 = vpop.permute.xlu0 %1781
      %1783 = vrot.lane.b32.xlu0 %v1601, 113
      %v1784 = vpop.permute.xlu0 %1783
      %1785 = vrot.lane.b32.xlu0 %v1596, 113
      %v1786 = vpop.permute.xlu0 %1785
      %1787 = vrot.lane.b32.xlu0 %v1598, 113
      %v1788 = vpop.permute.xlu0 %1787
      %1789 = vrot.lane.b32.xlu0 %v1600, 113
      %v1790 = vpop.permute.xlu0 %1789
      %1791 = vrot.lane.b32.xlu0 %v1602, 113
      %v1792 = vpop.permute.xlu0 %1791
      %v1793 = vsel %vm518, %v1778, %v1786
      %v1794 = vsel %vm518, %v1780, %v1788
      %v1795 = vsel %vm518, %v1782, %v1790
      %v1796 = vsel %vm518, %v1784, %v1792
      %v1797 = vsel %vm518, %v1786, %v1778
      %v1798 = vsel %vm518, %v1788, %v1780
      %v1799 = vsel %vm518, %v1790, %v1782
      %v1800 = vsel %vm518, %v1792, %v1784
      %v1801 = vsel %vm523, %v1793, 0.0
      %v1802 = vsel %vm524, %v1797, 0.0
      %v1803 = vsel %vm523, %v1794, 0.0
      %v1804 = vsel %vm524, %v1798, 0.0
      %v1805 = vsel %vm523, %v1795, 0.0
      %v1806 = vsel %vm524, %v1799, 0.0
      %v1807 = vsel %vm523, %v1796, 0.0
      %v1808 = vsel %vm524, %v1800, 0.0
      %1809 = vrot.lane.b32.xlu0 %v1595, 112
      %v1810 = vpop.permute.xlu0 %1809
      %1811 = vrot.lane.b32.xlu0 %v1597, 112
      %v1812 = vpop.permute.xlu0 %1811
      %1813 = vrot.lane.b32.xlu0 %v1599, 112
      %v1814 = vpop.permute.xlu0 %1813
      %1815 = vrot.lane.b32.xlu0 %v1601, 112
      %v1816 = vpop.permute.xlu0 %1815
      %1817 = vrot.lane.b32.xlu0 %v1596, 112
      %v1818 = vpop.permute.xlu0 %1817
      %1819 = vrot.lane.b32.xlu0 %v1598, 112
      %v1820 = vpop.permute.xlu0 %1819
      %1821 = vrot.lane.b32.xlu0 %v1600, 112
      %v1822 = vpop.permute.xlu0 %1821
      %1823 = vrot.lane.b32.xlu0 %v1602, 112
      %v1824 = vpop.permute.xlu0 %1823
      %v1825 = vsel %vm531, %v1810, %v1818
      %v1826 = vsel %vm531, %v1812, %v1820
      %v1827 = vsel %vm531, %v1814, %v1822
      %v1828 = vsel %vm531, %v1816, %v1824
      %v1829 = vsel %vm531, %v1818, %v1810
      %v1830 = vsel %vm531, %v1820, %v1812
      %v1831 = vsel %vm531, %v1822, %v1814
      %v1832 = vsel %vm531, %v1824, %v1816
      %v1833 = vsel %vm521, %v1825, 0.0
      %v1834 = vsel %vm522, %v1829, 0.0
      %v1835 = vsel %vm521, %v1826, 0.0
      %v1836 = vsel %vm522, %v1830, 0.0
      %v1837 = vsel %vm521, %v1827, 0.0
      %v1838 = vsel %vm522, %v1831, 0.0
      %v1839 = vsel %vm521, %v1828, 0.0
      %v1840 = vsel %vm522, %v1832, 0.0
      %1841 = vrot.lane.b32.xlu0 %v1595, 111
      %v1842 = vpop.permute.xlu0 %1841
      %1843 = vrot.lane.b32.xlu0 %v1597, 111
      %v1844 = vpop.permute.xlu0 %1843
      %1845 = vrot.lane.b32.xlu0 %v1599, 111
      %v1846 = vpop.permute.xlu0 %1845
      %1847 = vrot.lane.b32.xlu0 %v1601, 111
      %v1848 = vpop.permute.xlu0 %1847
      %1849 = vrot.lane.b32.xlu0 %v1596, 111
      %v1850 = vpop.permute.xlu0 %1849
      %1851 = vrot.lane.b32.xlu0 %v1598, 111
      %v1852 = vpop.permute.xlu0 %1851
      %1853 = vrot.lane.b32.xlu0 %v1600, 111
      %v1854 = vpop.permute.xlu0 %1853
      %1855 = vrot.lane.b32.xlu0 %v1602, 111
      %v1856 = vpop.permute.xlu0 %1855
      %v1857 = vsel %vm540, %v1842, %v1850
      %v1858 = vsel %vm540, %v1844, %v1852
      %v1859 = vsel %vm540, %v1846, %v1854
      %v1860 = vsel %vm540, %v1848, %v1856
      %v1861 = vsel %vm540, %v1850, %v1842
      %v1862 = vsel %vm540, %v1852, %v1844
      %v1863 = vsel %vm540, %v1854, %v1846
      %v1864 = vsel %vm540, %v1856, %v1848
      %v1865 = vsel %vm543, %v1857, 0.0
      %v1866 = vsel %vm544, %v1861, 0.0
      %v1867 = vsel %vm543, %v1858, 0.0
      %v1868 = vsel %vm544, %v1862, 0.0
      %v1869 = vsel %vm543, %v1859, 0.0
      %v1870 = vsel %vm544, %v1863, 0.0
      %v1871 = vsel %vm543, %v1860, 0.0
      %v1872 = vsel %vm544, %v1864, 0.0
      %v1873 = vpack.c.bf16 %v1643, %v1641
      %v1874 = vpack.c.bf16 %v1644, %v1642
      %v1875 = vpack.c.bf16 %v1647, %v1645
      %v1876 = vpack.c.bf16 %v1648, %v1646
      %v1877 = vpack.c.bf16 %v1675, %v1673
      %v1878 = vpack.c.bf16 %v1676, %v1674
      %v1879 = vpack.c.bf16 %v1679, %v1677
      %v1880 = vpack.c.bf16 %v1680, %v1678
      %v1881 = vpack.c.bf16 %v1707, %v1705
      %v1882 = vpack.c.bf16 %v1708, %v1706
      %v1883 = vpack.c.bf16 %v1711, %v1709
      %v1884 = vpack.c.bf16 %v1712, %v1710
      %v1885 = vpack.c.bf16 %v1739, %v1737
      %v1886 = vpack.c.bf16 %v1740, %v1738
      %v1887 = vpack.c.bf16 %v1743, %v1741
      %v1888 = vpack.c.bf16 %v1744, %v1742
      %v1889 = vpack.c.bf16 %v1597, %v1595
      %v1890 = vpack.c.bf16 %v1598, %v1596
      %v1891 = vpack.c.bf16 %v1601, %v1599
      %v1892 = vpack.c.bf16 %v1602, %v1600
      %v1893 = vpack.c.bf16 %v1771, %v1769
      %v1894 = vpack.c.bf16 %v1772, %v1770
      %v1895 = vpack.c.bf16 %v1775, %v1773
      %v1896 = vpack.c.bf16 %v1776, %v1774
      %v1897 = vpack.c.bf16 %v1803, %v1801
      %v1898 = vpack.c.bf16 %v1804, %v1802
      %v1899 = vpack.c.bf16 %v1807, %v1805
      %v1900 = vpack.c.bf16 %v1808, %v1806
      %v1901 = vpack.c.bf16 %v1835, %v1833
      %v1902 = vpack.c.bf16 %v1836, %v1834
      %v1903 = vpack.c.bf16 %v1839, %v1837
      %v1904 = vpack.c.bf16 %v1840, %v1838
      %v1905 = vpack.c.bf16 %v1867, %v1865
      %v1906 = vpack.c.bf16 %v1868, %v1866
      %v1907 = vpack.c.bf16 %v1871, %v1869
      %v1908 = vpack.c.bf16 %v1872, %v1870
      %1910 = vset.pattern.permute.xlu0 0
      %1911 = vperm.xlu0 %1910, %v1613
      %v1912 = vpop.permute.xlu0 %1911
      %1915 = vset.pattern.permute.xlu0 0
      %1916 = vperm.xlu0 %1915, %v1614
      %v1917 = vpop.permute.xlu0 %1916
      %1920 = vset.pattern.permute.xlu0 0
      %1921 = vperm.xlu0 %1920, %v1615
      %v1922 = vpop.permute.xlu0 %1921
      %1925 = vset.pattern.permute.xlu0 0
      %1926 = vperm.xlu0 %1925, %v1616
      %v1927 = vpop.permute.xlu0 %1926
      %v1937 = vunpack.c.l.b16 %v1604
      %v1938 = vunpack.c.h.b16 %v1604
      %v1939 = vunpack.c.l.b16 %v1605
      %v1940 = vunpack.c.l.b16 %v1606
      %v1941 = vunpack.c.h.b16 %v1606
      %v1942 = vunpack.c.l.b16 %v1607
      %v1943 = vunpack.c.l.b16 %v1608
      %v1944 = vunpack.c.h.b16 %v1608
      %v1945 = vunpack.c.l.b16 %v1609
      %v1946 = vunpack.c.l.b16 %v1610
      %v1947 = vunpack.c.h.b16 %v1610
      %v1948 = vunpack.c.l.b16 %v1611
      %v1949 = vpack.c.b16 %v1940, %v1937
      %v1950 = vpack.c.b16 %v1941, %v1938
      %v1951 = vpack.c.b16 %v1942, %v1939
      %v1952 = vpack.c.b16 %v1946, %v1943
      %v1953 = vpack.c.b16 %v1947, %v1944
      %v1954 = vpack.c.b16 %v1948, %v1945
      %v1960 = vsel %vm1008, %v1951, 0
      %v1963 = vsel %vm1008, %v1954, 0
      %1965 = vmatprep.subr.bf16.mxu0 %v1874
      %1966 = vmatpush1.bf16.msra.mxu0 %v1873
      %1967 = vmatprep.subr.bf16.mxu0 %v1876
      %1968 = vmatpush1.bf16.msra.mxu0 %v1875
      %1969 = vmatprep.subr.bf16.mxu0 %v1878
      %1970 = vmatpush1.bf16.msra.mxu0 %v1877
      %1971 = vmatprep.subr.bf16.mxu0 %v1880
      %1972 = vmatpush1.bf16.msra.mxu0 %v1879
      %1973 = vmatprep.subr.bf16.mxu0 %v1882
      %1974 = vmatpush1.bf16.msra.mxu0 %v1881
      %1975 = vmatprep.subr.bf16.mxu0 %v1884
      %1976 = vmatpush1.bf16.msra.mxu0 %v1883
      %1977 = vmatprep.subr.bf16.mxu0 %v1886
      %1978 = vmatpush1.bf16.msra.mxu0 %v1885
      %1979 = vmatprep.subr.bf16.mxu0 %v1888
      %1980 = vmatpush1.bf16.msra.mxu0 %v1887
      %1981 = vmatprep.subr.bf16.mxu0 %v1890
      %1982 = vmatpush1.bf16.msra.mxu0 %v1889
      %1983 = vmatprep.subr.bf16.mxu0 %v1892
      %1984 = vmatpush1.bf16.msra.mxu0 %v1891
      %1985 = vmatprep.subr.bf16.mxu0 %v1894
      %1986 = vmatpush1.bf16.msra.mxu0 %v1893
      %1987 = vmatprep.subr.bf16.mxu0 %v1896
      %1988 = vmatpush1.bf16.msra.mxu0 %v1895
      %1989 = vmatprep.subr.bf16.mxu0 %v1898
      %1990 = vmatpush1.bf16.msra.mxu0 %v1897
      %1991 = vmatprep.subr.bf16.mxu0 %v1900
      %1992 = vmatpush1.bf16.msra.mxu0 %v1899
      %1993 = vmatprep.subr.bf16.mxu0 %v1902
      %1994 = vmatpush1.bf16.msra.mxu0 %v1901
      %1995 = vmatprep.subr.bf16.mxu0 %v1904
      %1996 = vmatpush1.bf16.msra.mxu0 %v1903
      %1997 = vmatprep.mubr.bf16.mxu0 %v1950
      %1998 = vmatmul.mubr.bf16.gmra.mrb[0].mxu0 %v1949
      %v1999 = vpop.f32.mrb[0].mxu0
      %v2000 = vadd.f32 %v1912, %v1999
      %v2001 = vpop.f32.mrb[0].mxu0
      %v2002 = vadd.f32 %v1912, %v2001
      %v2003 = vpop.f32.mrb[0].mxu0
      %v2004 = vadd.f32 %v1917, %v2003
      %v2005 = vpop.f32.mrb[0].mxu0
      %v2006 = vadd.f32 %v1917, %v2005
      %2007 = vmatprep.mubr.bf16.mxu0 %v1953
      %2008 = vmatmul.mubr.bf16.gmra.mrb[0].mxu0 %v1952
      %v2009 = vpop.f32.mrb[0].mxu0
      %v2010 = vadd.f32 %v1922, %v2009
      %v2011 = vpop.f32.mrb[0].mxu0
      %v2012 = vadd.f32 %v1922, %v2011
      %v2013 = vpop.f32.mrb[0].mxu0
      %v2014 = vadd.f32 %v1927, %v2013
      %v2015 = vpop.f32.mrb[0].mxu0
      %v2016 = vadd.f32 %v1927, %v2015
      %2017 = vdwg.mxu0
      %2018 = vmatprep.subr.bf16.mxu0 %v1906
      %2019 = vmatpush1.bf16.msra.mxu0 %v1905
      %2020 = vmatprep.subr.bf16.mxu0 %v1908
      %2021 = vmatpush1.bf16.msra.mxu0 %v1907
      %2022 = vmatprep.subr.bf16.mxu0 0
      %2023 = vmatpush1.bf16.msra.mxu0 0
      %2024 = vmatprep.subr.bf16.mxu0 0
      %2025 = vmatpush1.bf16.msra.mxu0 0
      %2026 = vmatprep.subr.bf16.mxu0 0
      %2027 = vmatpush1.bf16.msra.mxu0 0
      %2028 = vmatprep.subr.bf16.mxu0 0
      %2029 = vmatpush1.bf16.msra.mxu0 0
      %2030 = vmatprep.subr.bf16.mxu0 0
      %2031 = vmatpush1.bf16.msra.mxu0 0
      %2032 = vmatprep.subr.bf16.mxu0 0
      %2033 = vmatpush1.bf16.msra.mxu0 0
      %2034 = vmatprep.subr.bf16.mxu0 0
      %2035 = vmatpush1.bf16.msra.mxu0 0
      %2036 = vmatprep.subr.bf16.mxu0 0
      %2037 = vmatpush1.bf16.msra.mxu0 0
      %2038 = vmatprep.subr.bf16.mxu0 0
      %2039 = vmatpush1.bf16.msra.mxu0 0
      %2040 = vmatprep.subr.bf16.mxu0 0
      %2041 = vmatpush1.bf16.msra.mxu0 0
      %2042 = vmatprep.subr.bf16.mxu0 0
      %2043 = vmatpush1.bf16.msra.mxu0 0
      %2044 = vmatprep.subr.bf16.mxu0 0
      %2045 = vmatpush1.bf16.msra.mxu0 0
      %2046 = vmatprep.subr.bf16.mxu0 0
      %2047 = vmatpush1.bf16.msra.mxu0 0
      %2048 = vmatprep.subr.bf16.mxu0 0
      %2049 = vmatpush1.bf16.msra.mxu0 0
      %2050 = vmatprep.mubr.bf16.mxu0 0
      %2051 = vmatmul.mubr.bf16.gmra.mrb[0].mxu0 %v1960
      %v2052 = vpop.f32.mrb[0].mxu0
      %v2053 = vadd.f32 %v2000, %v2052
      %v2054 = vpop.f32.mrb[0].mxu0
      %v2055 = vadd.f32 %v2002, %v2054
      %v2056 = vpop.f32.mrb[0].mxu0
      %v2057 = vadd.f32 %v2004, %v2056
      %v2058 = vpop.f32.mrb[0].mxu0
      %v2059 = vadd.f32 %v2006, %v2058
      %2060 = vmatprep.mubr.bf16.mxu0 0
      %2061 = vmatmul.mubr.bf16.gmra.mrb[0].mxu0 %v1963
      %v2062 = vpop.f32.mrb[0].mxu0
      %v2063 = vadd.f32 %v2010, %v2062
      %v2064 = vpop.f32.mrb[0].mxu0
      %v2065 = vadd.f32 %v2012, %v2064
      %v2066 = vpop.f32.mrb[0].mxu0
      %v2067 = vadd.f32 %v2014, %v2066
      %v2068 = vpop.f32.mrb[0].mxu0
      %v2069 = vadd.f32 %v2016, %v2068
      %2070 = vdwg.mxu0
      %v2071 = vmax.f32 %v2053, 0.0
      %v2072 = vmax.f32 %v2055, 0.0
      %v2073 = vmax.f32 %v2057, 0.0
      %v2074 = vmax.f32 %v2059, 0.0
      %v2075 = vmax.f32 %v2063, 0.0
      %v2076 = vmax.f32 %v2065, 0.0
      %v2077 = vmax.f32 %v2067, 0.0
      %v2078 = vmax.f32 %v2069, 0.0
      %s2079 = scalar_lea.vmem %s5, 48
      %v2080 = vld [vmem:[%s2079] sm:$0xff]
      %v2081 = vld [vmem:[%s2079 + $0x8] sm:$0xf]
      %v2082 = vld [vmem:[%s2079 + $0xc] sm:$0xff]
      %v2083 = vld [vmem:[%s2079 + $0x14] sm:$0xf]
      %v2084 = vld [vmem:[%s2079 + $0x18] sm:$0xff]
      %v2085 = vld [vmem:[%s2079 + $0x20] sm:$0xf]
      %v2086 = vld [vmem:[%s2079 + $0x24] sm:$0xff]
      %v2087 = vld [vmem:[%s2079 + $0x2c] sm:$0xf]
      %s2088 = scalar_lea.vmem %s6, 32
      %v2089 = vld [vmem:[%s2088] sm:$0xff]
      %v2090 = vld [vmem:[%s2088 + $0x8] sm:$0xff]
      %v2091 = vld [vmem:[%s2088 + $0x10] sm:$0xff]
      %v2092 = vld [vmem:[%s2088 + $0x18] sm:$0xff]
      %2093 = vrot.lane.b32.xlu0 %v2071, 17
      %v2094 = vpop.permute.xlu0 %2093
      %2095 = vrot.lane.b32.xlu0 %v2073, 17
      %v2096 = vpop.permute.xlu0 %2095
      %2097 = vrot.lane.b32.xlu0 %v2075, 17
      %v2098 = vpop.permute.xlu0 %2097
      %2099 = vrot.lane.b32.xlu0 %v2077, 17
      %v2100 = vpop.permute.xlu0 %2099
      %2101 = vrot.lane.b32.xlu0 %v2072, 17
      %v2102 = vpop.permute.xlu0 %2101
      %2103 = vrot.lane.b32.xlu0 %v2074, 17
      %v2104 = vpop.permute.xlu0 %2103
      %2105 = vrot.lane.b32.xlu0 %v2076, 17
      %v2106 = vpop.permute.xlu0 %2105
      %2107 = vrot.lane.b32.xlu0 %v2078, 17
      %v2108 = vpop.permute.xlu0 %2107
      %v2109 = vsel %vm458, %v2094, %v2102
      %v2110 = vsel %vm458, %v2096, %v2104
      %v2111 = vsel %vm458, %v2098, %v2106
      %v2112 = vsel %vm458, %v2100, %v2108
      %v2113 = vsel %vm458, %v2102, %v2094
      %v2114 = vsel %vm458, %v2104, %v2096
      %v2115 = vsel %vm458, %v2106, %v2098
      %v2116 = vsel %vm458, %v2108, %v2100
      %v2117 = vsel %vm470, %v2113, 0.0
      %v2118 = vsel %vm471, %v2109, 0.0
      %v2119 = vsel %vm470, %v2114, 0.0
      %v2120 = vsel %vm471, %v2110, 0.0
      %v2121 = vsel %vm470, %v2115, 0.0
      %v2122 = vsel %vm471, %v2111, 0.0
      %v2123 = vsel %vm470, %v2116, 0.0
      %v2124 = vsel %vm471, %v2112, 0.0
      %2125 = vrot.lane.b32.xlu0 %v2071, 16
      %v2126 = vpop.permute.xlu0 %2125
      %2127 = vrot.lane.b32.xlu0 %v2073, 16
      %v2128 = vpop.permute.xlu0 %2127
      %2129 = vrot.lane.b32.xlu0 %v2075, 16
      %v2130 = vpop.permute.xlu0 %2129
      %2131 = vrot.lane.b32.xlu0 %v2077, 16
      %v2132 = vpop.permute.xlu0 %2131
      %2133 = vrot.lane.b32.xlu0 %v2072, 16
      %v2134 = vpop.permute.xlu0 %2133
      %2135 = vrot.lane.b32.xlu0 %v2074, 16
      %v2136 = vpop.permute.xlu0 %2135
      %2137 = vrot.lane.b32.xlu0 %v2076, 16
      %v2138 = vpop.permute.xlu0 %2137
      %2139 = vrot.lane.b32.xlu0 %v2078, 16
      %v2140 = vpop.permute.xlu0 %2139
      %v2141 = vsel %vm478, %v2126, %v2134
      %v2142 = vsel %vm478, %v2128, %v2136
      %v2143 = vsel %vm478, %v2130, %v2138
      %v2144 = vsel %vm478, %v2132, %v2140
      %v2145 = vsel %vm478, %v2134, %v2126
      %v2146 = vsel %vm478, %v2136, %v2128
      %v2147 = vsel %vm478, %v2138, %v2130
      %v2148 = vsel %vm478, %v2140, %v2132
      %v2149 = vsel %vm466, %v2145, 0.0
      %v2150 = vsel %vm467, %v2141, 0.0
      %v2151 = vsel %vm466, %v2146, 0.0
      %v2152 = vsel %vm467, %v2142, 0.0
      %v2153 = vsel %vm466, %v2147, 0.0
      %v2154 = vsel %vm467, %v2143, 0.0
      %v2155 = vsel %vm466, %v2148, 0.0
      %v2156 = vsel %vm467, %v2144, 0.0
      %2157 = vrot.lane.b32.xlu0 %v2071, 15
      %v2158 = vpop.permute.xlu0 %2157
      %2159 = vrot.lane.b32.xlu0 %v2073, 15
      %v2160 = vpop.permute.xlu0 %2159
      %2161 = vrot.lane.b32.xlu0 %v2075, 15
      %v2162 = vpop.permute.xlu0 %2161
      %2163 = vrot.lane.b32.xlu0 %v2077, 15
      %v2164 = vpop.permute.xlu0 %2163
      %2165 = vrot.lane.b32.xlu0 %v2072, 15
      %v2166 = vpop.permute.xlu0 %2165
      %2167 = vrot.lane.b32.xlu0 %v2074, 15
      %v2168 = vpop.permute.xlu0 %2167
      %2169 = vrot.lane.b32.xlu0 %v2076, 15
      %v2170 = vpop.permute.xlu0 %2169
      %2171 = vrot.lane.b32.xlu0 %v2078, 15
      %v2172 = vpop.permute.xlu0 %2171
      %v2173 = vsel %vm487, %v2158, %v2166
      %v2174 = vsel %vm487, %v2160, %v2168
      %v2175 = vsel %vm487, %v2162, %v2170
      %v2176 = vsel %vm487, %v2164, %v2172
      %v2177 = vsel %vm487, %v2166, %v2158
      %v2178 = vsel %vm487, %v2168, %v2160
      %v2179 = vsel %vm487, %v2170, %v2162
      %v2180 = vsel %vm487, %v2172, %v2164
      %v2181 = vsel %vm492, %v2177, 0.0
      %v2182 = vsel %vm493, %v2173, 0.0
      %v2183 = vsel %vm492, %v2178, 0.0
      %v2184 = vsel %vm493, %v2174, 0.0
      %v2185 = vsel %vm492, %v2179, 0.0
      %v2186 = vsel %vm493, %v2175, 0.0
      %v2187 = vsel %vm492, %v2180, 0.0
      %v2188 = vsel %vm493, %v2176, 0.0
      %2189 = vrot.lane.b32.xlu0 %v2071, 1
      %v2190 = vpop.permute.xlu0 %2189
      %2191 = vrot.lane.b32.xlu0 %v2073, 1
      %v2192 = vpop.permute.xlu0 %2191
      %2193 = vrot.lane.b32.xlu0 %v2075, 1
      %v2194 = vpop.permute.xlu0 %2193
      %2195 = vrot.lane.b32.xlu0 %v2077, 1
      %v2196 = vpop.permute.xlu0 %2195
      %2197 = vrot.lane.b32.xlu0 %v2072, 1
      %v2198 = vpop.permute.xlu0 %2197
      %2199 = vrot.lane.b32.xlu0 %v2074, 1
      %v2200 = vpop.permute.xlu0 %2199
      %2201 = vrot.lane.b32.xlu0 %v2076, 1
      %v2202 = vpop.permute.xlu0 %2201
      %2203 = vrot.lane.b32.xlu0 %v2078, 1
      %v2204 = vpop.permute.xlu0 %2203
      %v2205 = vsel %vm500, %v2190, %v2198
      %v2206 = vsel %vm500, %v2192, %v2200
      %v2207 = vsel %vm500, %v2194, %v2202
      %v2208 = vsel %vm500, %v2196, %v2204
      %v2209 = vsel %vm500, %v2198, %v2190
      %v2210 = vsel %vm500, %v2200, %v2192
      %v2211 = vsel %vm500, %v2202, %v2194
      %v2212 = vsel %vm500, %v2204, %v2196
      %v2213 = vsel %vm468, %v2209, 0.0
      %v2214 = vsel %vm469, %v2205, 0.0
      %v2215 = vsel %vm468, %v2210, 0.0
      %v2216 = vsel %vm469, %v2206, 0.0
      %v2217 = vsel %vm468, %v2211, 0.0
      %v2218 = vsel %vm469, %v2207, 0.0
      %v2219 = vsel %vm468, %v2212, 0.0
      %v2220 = vsel %vm469, %v2208, 0.0
      %2221 = vrot.lane.b32.xlu0 %v2071, 127
      %v2222 = vpop.permute.xlu0 %2221
      %2223 = vrot.lane.b32.xlu0 %v2073, 127
      %v2224 = vpop.permute.xlu0 %2223
      %2225 = vrot.lane.b32.xlu0 %v2075, 127
      %v2226 = vpop.permute.xlu0 %2225
      %2227 = vrot.lane.b32.xlu0 %v2077, 127
      %v2228 = vpop.permute.xlu0 %2227
      %2229 = vrot.lane.b32.xlu0 %v2072, 127
      %v2230 = vpop.permute.xlu0 %2229
      %2231 = vrot.lane.b32.xlu0 %v2074, 127
      %v2232 = vpop.permute.xlu0 %2231
      %2233 = vrot.lane.b32.xlu0 %v2076, 127
      %v2234 = vpop.permute.xlu0 %2233
      %2235 = vrot.lane.b32.xlu0 %v2078, 127
      %v2236 = vpop.permute.xlu0 %2235
      %v2237 = vsel %vm509, %v2222, %v2230
      %v2238 = vsel %vm509, %v2224, %v2232
      %v2239 = vsel %vm509, %v2226, %v2234
      %v2240 = vsel %vm509, %v2228, %v2236
      %v2241 = vsel %vm509, %v2230, %v2222
      %v2242 = vsel %vm509, %v2232, %v2224
      %v2243 = vsel %vm509, %v2234, %v2226
      %v2244 = vsel %vm509, %v2236, %v2228
      %v2245 = vsel %vm490, %v2237, 0.0
      %v2246 = vsel %vm491, %v2241, 0.0
      %v2247 = vsel %vm490, %v2238, 0.0
      %v2248 = vsel %vm491, %v2242, 0.0
      %v2249 = vsel %vm490, %v2239, 0.0
      %v2250 = vsel %vm491, %v2243, 0.0
      %v2251 = vsel %vm490, %v2240, 0.0
      %v2252 = vsel %vm491, %v2244, 0.0
      %2253 = vrot.lane.b32.xlu0 %v2071, 113
      %v2254 = vpop.permute.xlu0 %2253
      %2255 = vrot.lane.b32.xlu0 %v2073, 113
      %v2256 = vpop.permute.xlu0 %2255
      %2257 = vrot.lane.b32.xlu0 %v2075, 113
      %v2258 = vpop.permute.xlu0 %2257
      %2259 = vrot.lane.b32.xlu0 %v2077, 113
      %v2260 = vpop.permute.xlu0 %2259
      %2261 = vrot.lane.b32.xlu0 %v2072, 113
      %v2262 = vpop.permute.xlu0 %2261
      %2263 = vrot.lane.b32.xlu0 %v2074, 113
      %v2264 = vpop.permute.xlu0 %2263
      %2265 = vrot.lane.b32.xlu0 %v2076, 113
      %v2266 = vpop.permute.xlu0 %2265
      %2267 = vrot.lane.b32.xlu0 %v2078, 113
      %v2268 = vpop.permute.xlu0 %2267
      %v2269 = vsel %vm518, %v2254, %v2262
      %v2270 = vsel %vm518, %v2256, %v2264
      %v2271 = vsel %vm518, %v2258, %v2266
      %v2272 = vsel %vm518, %v2260, %v2268
      %v2273 = vsel %vm518, %v2262, %v2254
      %v2274 = vsel %vm518, %v2264, %v2256
      %v2275 = vsel %vm518, %v2266, %v2258
      %v2276 = vsel %vm518, %v2268, %v2260
      %v2277 = vsel %vm523, %v2269, 0.0
      %v2278 = vsel %vm524, %v2273, 0.0
      %v2279 = vsel %vm523, %v2270, 0.0
      %v2280 = vsel %vm524, %v2274, 0.0
      %v2281 = vsel %vm523, %v2271, 0.0
      %v2282 = vsel %vm524, %v2275, 0.0
      %v2283 = vsel %vm523, %v2272, 0.0
      %v2284 = vsel %vm524, %v2276, 0.0
      %2285 = vrot.lane.b32.xlu0 %v2071, 112
      %v2286 = vpop.permute.xlu0 %2285
      %2287 = vrot.lane.b32.xlu0 %v2073, 112
      %v2288 = vpop.permute.xlu0 %2287
      %2289 = vrot.lane.b32.xlu0 %v2075, 112
      %v2290 = vpop.permute.xlu0 %2289
      %2291 = vrot.lane.b32.xlu0 %v2077, 112
      %v2292 = vpop.permute.xlu0 %2291
      %2293 = vrot.lane.b32.xlu0 %v2072, 112
      %v2294 = vpop.permute.xlu0 %2293
      %2295 = vrot.lane.b32.xlu0 %v2074, 112
      %v2296 = vpop.permute.xlu0 %2295
      %2297 = vrot.lane.b32.xlu0 %v2076, 112
      %v2298 = vpop.permute.xlu0 %2297
      %2299 = vrot.lane.b32.xlu0 %v2078, 112
      %v2300 = vpop.permute.xlu0 %2299
      %v2301 = vsel %vm531, %v2286, %v2294
      %v2302 = vsel %vm531, %v2288, %v2296
      %v2303 = vsel %vm531, %v2290, %v2298
      %v2304 = vsel %vm531, %v2292, %v2300
      %v2305 = vsel %vm531, %v2294, %v2286
      %v2306 = vsel %vm531, %v2296, %v2288
      %v2307 = vsel %vm531, %v2298, %v2290
      %v2308 = vsel %vm531, %v2300, %v2292
      %v2309 = vsel %vm521, %v2301, 0.0
      %v2310 = vsel %vm522, %v2305, 0.0
      %v2311 = vsel %vm521, %v2302, 0.0
      %v2312 = vsel %vm522, %v2306, 0.0
      %v2313 = vsel %vm521, %v2303, 0.0
      %v2314 = vsel %vm522, %v2307, 0.0
      %v2315 = vsel %vm521, %v2304, 0.0
      %v2316 = vsel %vm522, %v2308, 0.0
      %2317 = vrot.lane.b32.xlu0 %v2071, 111
      %v2318 = vpop.permute.xlu0 %2317
      %2319 = vrot.lane.b32.xlu0 %v2073, 111
      %v2320 = vpop.permute.xlu0 %2319
      %2321 = vrot.lane.b32.xlu0 %v2075, 111
      %v2322 = vpop.permute.xlu0 %2321
      %2323 = vrot.lane.b32.xlu0 %v2077, 111
      %v2324 = vpop.permute.xlu0 %2323
      %2325 = vrot.lane.b32.xlu0 %v2072, 111
      %v2326 = vpop.permute.xlu0 %2325
      %2327 = vrot.lane.b32.xlu0 %v2074, 111
      %v2328 = vpop.permute.xlu0 %2327
      %2329 = vrot.lane.b32.xlu0 %v2076, 111
      %v2330 = vpop.permute.xlu0 %2329
      %2331 = vrot.lane.b32.xlu0 %v2078, 111
      %v2332 = vpop.permute.xlu0 %2331
      %v2333 = vsel %vm540, %v2318, %v2326
      %v2334 = vsel %vm540, %v2320, %v2328
      %v2335 = vsel %vm540, %v2322, %v2330
      %v2336 = vsel %vm540, %v2324, %v2332
      %v2337 = vsel %vm540, %v2326, %v2318
      %v2338 = vsel %vm540, %v2328, %v2320
      %v2339 = vsel %vm540, %v2330, %v2322
      %v2340 = vsel %vm540, %v2332, %v2324
      %v2341 = vsel %vm543, %v2333, 0.0
      %v2342 = vsel %vm544, %v2337, 0.0
      %v2343 = vsel %vm543, %v2334, 0.0
      %v2344 = vsel %vm544, %v2338, 0.0
      %v2345 = vsel %vm543, %v2335, 0.0
      %v2346 = vsel %vm544, %v2339, 0.0
      %v2347 = vsel %vm543, %v2336, 0.0
      %v2348 = vsel %vm544, %v2340, 0.0
      %v2349 = vpack.c.bf16 %v2119, %v2117
      %v2350 = vpack.c.bf16 %v2120, %v2118
      %v2351 = vpack.c.bf16 %v2123, %v2121
      %v2352 = vpack.c.bf16 %v2124, %v2122
      %v2353 = vpack.c.bf16 %v2151, %v2149
      %v2354 = vpack.c.bf16 %v2152, %v2150
      %v2355 = vpack.c.bf16 %v2155, %v2153
      %v2356 = vpack.c.bf16 %v2156, %v2154
      %v2357 = vpack.c.bf16 %v2183, %v2181
      %v2358 = vpack.c.bf16 %v2184, %v2182
      %v2359 = vpack.c.bf16 %v2187, %v2185
      %v2360 = vpack.c.bf16 %v2188, %v2186
      %v2361 = vpack.c.bf16 %v2215, %v2213
      %v2362 = vpack.c.bf16 %v2216, %v2214
      %v2363 = vpack.c.bf16 %v2219, %v2217
      %v2364 = vpack.c.bf16 %v2220, %v2218
      %v2365 = vpack.c.bf16 %v2073, %v2071
      %v2366 = vpack.c.bf16 %v2074, %v2072
      %v2367 = vpack.c.bf16 %v2077, %v2075
      %v2368 = vpack.c.bf16 %v2078, %v2076
      %v2369 = vpack.c.bf16 %v2247, %v2245
      %v2370 = vpack.c.bf16 %v2248, %v2246
      %v2371 = vpack.c.bf16 %v2251, %v2249
      %v2372 = vpack.c.bf16 %v2252, %v2250
      %v2373 = vpack.c.bf16 %v2279, %v2277
      %v2374 = vpack.c.bf16 %v2280, %v2278
      %v2375 = vpack.c.bf16 %v2283, %v2281
      %v2376 = vpack.c.bf16 %v2284, %v2282
      %v2377 = vpack.c.bf16 %v2311, %v2309
      %v2378 = vpack.c.bf16 %v2312, %v2310
      %v2379 = vpack.c.bf16 %v2315, %v2313
      %v2380 = vpack.c.bf16 %v2316, %v2314
      %v2381 = vpack.c.bf16 %v2343, %v2341
      %v2382 = vpack.c.bf16 %v2344, %v2342
      %v2383 = vpack.c.bf16 %v2347, %v2345
      %v2384 = vpack.c.bf16 %v2348, %v2346
      %2386 = vset.pattern.permute.xlu0 0
      %2387 = vperm.xlu0 %2386, %v2089
      %v2388 = vpop.permute.xlu0 %2387
      %2391 = vset.pattern.permute.xlu0 0
      %2392 = vperm.xlu0 %2391, %v2090
      %v2393 = vpop.permute.xlu0 %2392
      %2396 = vset.pattern.permute.xlu0 0
      %2397 = vperm.xlu0 %2396, %v2091
      %v2398 = vpop.permute.xlu0 %2397
      %2401 = vset.pattern.permute.xlu0 0
      %2402 = vperm.xlu0 %2401, %v2092
      %v2403 = vpop.permute.xlu0 %2402
      %v2413 = vunpack.c.l.b16 %v2080
      %v2414 = vunpack.c.h.b16 %v2080
      %v2415 = vunpack.c.l.b16 %v2081
      %v2416 = vunpack.c.l.b16 %v2082
      %v2417 = vunpack.c.h.b16 %v2082
      %v2418 = vunpack.c.l.b16 %v2083
      %v2419 = vunpack.c.l.b16 %v2084
      %v2420 = vunpack.c.h.b16 %v2084
      %v2421 = vunpack.c.l.b16 %v2085
      %v2422 = vunpack.c.l.b16 %v2086
      %v2423 = vunpack.c.h.b16 %v2086
      %v2424 = vunpack.c.l.b16 %v2087
      %v2425 = vpack.c.b16 %v2416, %v2413
      %v2426 = vpack.c.b16 %v2417, %v2414
      %v2427 = vpack.c.b16 %v2418, %v2415
      %v2428 = vpack.c.b16 %v2422, %v2419
      %v2429 = vpack.c.b16 %v2423, %v2420
      %v2430 = vpack.c.b16 %v2424, %v2421
      %v2436 = vsel %vm1008, %v2427, 0
      %v2439 = vsel %vm1008, %v2430, 0
      %2441 = vmatprep.subr.bf16.mxu0 %v2350
      %2442 = vmatpush1.bf16.msra.mxu0 %v2349
      %2443 = vmatprep.subr.bf16.mxu0 %v2352
      %2444 = vmatpush1.bf16.msra.mxu0 %v2351
      %2445 = vmatprep.subr.bf16.mxu0 %v2354
      %2446 = vmatpush1.bf16.msra.mxu0 %v2353
      %2447 = vmatprep.subr.bf16.mxu0 %v2356
      %2448 = vmatpush1.bf16.msra.mxu0 %v2355
      %2449 = vmatprep.subr.bf16.mxu0 %v2358
      %2450 = vmatpush1.bf16.msra.mxu0 %v2357
      %2451 = vmatprep.subr.bf16.mxu0 %v2360
      %2452 = vmatpush1.bf16.msra.mxu0 %v2359
      %2453 = vmatprep.subr.bf16.mxu0 %v2362
      %2454 = vmatpush1.bf16.msra.mxu0 %v2361
      %2455 = vmatprep.subr.bf16.mxu0 %v2364
      %2456 = vmatpush1.bf16.msra.mxu0 %v2363
      %2457 = vmatprep.subr.bf16.mxu0 %v2366
      %2458 = vmatpush1.bf16.msra.mxu0 %v2365
      %2459 = vmatprep.subr.bf16.mxu0 %v2368
      %2460 = vmatpush1.bf16.msra.mxu0 %v2367
      %2461 = vmatprep.subr.bf16.mxu0 %v2370
      %2462 = vmatpush1.bf16.msra.mxu0 %v2369
      %2463 = vmatprep.subr.bf16.mxu0 %v2372
      %2464 = vmatpush1.bf16.msra.mxu0 %v2371
      %2465 = vmatprep.subr.bf16.mxu0 %v2374
      %2466 = vmatpush1.bf16.msra.mxu0 %v2373
      %2467 = vmatprep.subr.bf16.mxu0 %v2376
      %2468 = vmatpush1.bf16.msra.mxu0 %v2375
      %2469 = vmatprep.subr.bf16.mxu0 %v2378
      %2470 = vmatpush1.bf16.msra.mxu0 %v2377
      %2471 = vmatprep.subr.bf16.mxu0 %v2380
      %2472 = vmatpush1.bf16.msra.mxu0 %v2379
      %2473 = vmatprep.mubr.bf16.mxu0 %v2426
      %2474 = vmatmul.mubr.bf16.gmra.mrb[0].mxu0 %v2425
      %v2475 = vpop.f32.mrb[0].mxu0
      %v2476 = vadd.f32 %v2388, %v2475
      %v2477 = vpop.f32.mrb[0].mxu0
      %v2478 = vadd.f32 %v2388, %v2477
      %v2479 = vpop.f32.mrb[0].mxu0
      %v2480 = vadd.f32 %v2393, %v2479
      %v2481 = vpop.f32.mrb[0].mxu0
      %v2482 = vadd.f32 %v2393, %v2481
      %2483 = vmatprep.mubr.bf16.mxu0 %v2429
      %2484 = vmatmul.mubr.bf16.gmra.mrb[0].mxu0 %v2428
      %v2485 = vpop.f32.mrb[0].mxu0
      %v2486 = vadd.f32 %v2398, %v2485
      %v2487 = vpop.f32.mrb[0].mxu0
      %v2488 = vadd.f32 %v2398, %v2487
      %v2489 = vpop.f32.mrb[0].mxu0
      %v2490 = vadd.f32 %v2403, %v2489
      %v2491 = vpop.f32.mrb[0].mxu0
      %v2492 = vadd.f32 %v2403, %v2491
      %2493 = vdwg.mxu0
      %2494 = vmatprep.subr.bf16.mxu0 %v2382
      %2495 = vmatpush1.bf16.msra.mxu0 %v2381
      %2496 = vmatprep.subr.bf16.mxu0 %v2384
      %2497 = vmatpush1.bf16.msra.mxu0 %v2383
      %2498 = vmatprep.subr.bf16.mxu0 0
      %2499 = vmatpush1.bf16.msra.mxu0 0
      %2500 = vmatprep.subr.bf16.mxu0 0
      %2501 = vmatpush1.bf16.msra.mxu0 0
      %2502 = vmatprep.subr.bf16.mxu0 0
      %2503 = vmatpush1.bf16.msra.mxu0 0
      %2504 = vmatprep.subr.bf16.mxu0 0
      %2505 = vmatpush1.bf16.msra.mxu0 0
      %2506 = vmatprep.subr.bf16.mxu0 0
      %2507 = vmatpush1.bf16.msra.mxu0 0
      %2508 = vmatprep.subr.bf16.mxu0 0
      %2509 = vmatpush1.bf16.msra.mxu0 0
      %2510 = vmatprep.subr.bf16.mxu0 0
      %2511 = vmatpush1.bf16.msra.mxu0 0
      %2512 = vmatprep.subr.bf16.mxu0 0
      %2513 = vmatpush1.bf16.msra.mxu0 0
      %2514 = vmatprep.subr.bf16.mxu0 0
      %2515 = vmatpush1.bf16.msra.mxu0 0
      %2516 = vmatprep.subr.bf16.mxu0 0
      %2517 = vmatpush1.bf16.msra.mxu0 0
      %2518 = vmatprep.subr.bf16.mxu0 0
      %2519 = vmatpush1.bf16.msra.mxu0 0
      %2520 = vmatprep.subr.bf16.mxu0 0
      %2521 = vmatpush1.bf16.msra.mxu0 0
      %2522 = vmatprep.subr.bf16.mxu0 0
      %2523 = vmatpush1.bf16.msra.mxu0 0
      %2524 = vmatprep.subr.bf16.mxu0 0
      %2525 = vmatpush1.bf16.msra.mxu0 0
      %2526 = vmatprep.mubr.bf16.mxu0 0
      %2527 = vmatmul.mubr.bf16.gmra.mrb[0].mxu0 %v2436
      %v2528 = vpop.f32.mrb[0].mxu0
      %v2529 = vadd.f32 %v2476, %v2528
      %v2530 = vpop.f32.mrb[0].mxu0
      %v2531 = vadd.f32 %v2478, %v2530
      %v2532 = vpop.f32.mrb[0].mxu0
      %v2533 = vadd.f32 %v2480, %v2532
      %v2534 = vpop.f32.mrb[0].mxu0
      %v2535 = vadd.f32 %v2482, %v2534
      %2536 = vmatprep.mubr.bf16.mxu0 0
      %2537 = vmatmul.mubr.bf16.gmra.mrb[0].mxu0 %v2439
      %v2538 = vpop.f32.mrb[0].mxu0
      %v2539 = vadd.f32 %v2486, %v2538
      %v2540 = vpop.f32.mrb[0].mxu0
      %v2541 = vadd.f32 %v2488, %v2540
      %v2542 = vpop.f32.mrb[0].mxu0
      %v2543 = vadd.f32 %v2490, %v2542
      %v2544 = vpop.f32.mrb[0].mxu0
      %v2545 = vadd.f32 %v2492, %v2544
      %2546 = vdwg.mxu0
      %v2547 = vadd.f32 %v2529, %v1595
      %v2548 = vadd.f32 %v2531, %v1596
      %v2549 = vadd.f32 %v2533, %v1597
      %v2550 = vadd.f32 %v2535, %v1598
      %v2551 = vadd.f32 %v2539, %v1599
      %v2552 = vadd.f32 %v2541, %v1600
      %v2553 = vadd.f32 %v2543, %v1601
      %v2554 = vadd.f32 %v2545, %v1602
      %s2555 = scalar_lea.vmem %s3, 96
      %v2556 = vld [vmem:[%s2555] sm:$0xff]
      %v2557 = vld [vmem:[%s2555 + $0x8] sm:$0xf]
      %v2558 = vld [vmem:[%s2555 + $0xc] sm:$0xff]
      %v2559 = vld [vmem:[%s2555 + $0x14] sm:$0xf]
      %v2560 = vld [vmem:[%s2555 + $0x18] sm:$0xff]
      %v2561 = vld [vmem:[%s2555 + $0x20] sm:$0xf]
      %v2562 = vld [vmem:[%s2555 + $0x24] sm:$0xff]
      %v2563 = vld [vmem:[%s2555 + $0x2c] sm:$0xf]
      %s2564 = scalar_lea.vmem %s4, 64
      %v2565 = vld [vmem:[%s2564] sm:$0xff]
      %v2566 = vld [vmem:[%s2564 + $0x8] sm:$0xff]
      %v2567 = vld [vmem:[%s2564 + $0x10] sm:$0xff]
      %v2568 = vld [vmem:[%s2564 + $0x18] sm:$0xff]
      %2569 = vrot.lane.b32.xlu0 %v2547, 17
      %v2570 = vpop.permute.xlu0 %2569
      %2571 = vrot.lane.b32.xlu0 %v2549, 17
      %v2572 = vpop.permute.xlu0 %2571
      %2573 = vrot.lane.b32.xlu0 %v2551, 17
      %v2574 = vpop.permute.xlu0 %2573
      %2575 = vrot.lane.b32.xlu0 %v2553, 17
      %v2576 = vpop.permute.xlu0 %2575
      %2577 = vrot.lane.b32.xlu0 %v2548, 17
      %v2578 = vpop.permute.xlu0 %2577
      %2579 = vrot.lane.b32.xlu0 %v2550, 17
      %v2580 = vpop.permute.xlu0 %2579
      %2581 = vrot.lane.b32.xlu0 %v2552, 17
      %v2582 = vpop.permute.xlu0 %2581
      %2583 = vrot.lane.b32.xlu0 %v2554, 17
      %v2584 = vpop.permute.xlu0 %2583
      %v2585 = vsel %vm458, %v2570, %v2578
      %v2586 = vsel %vm458, %v2572, %v2580
      %v2587 = vsel %vm458, %v2574, %v2582
      %v2588 = vsel %vm458, %v2576, %v2584
      %v2589 = vsel %vm458, %v2578, %v2570
      %v2590 = vsel %vm458, %v2580, %v2572
      %v2591 = vsel %vm458, %v2582, %v2574
      %v2592 = vsel %vm458, %v2584, %v2576
      %v2593 = vsel %vm470, %v2589, 0.0
      %v2594 = vsel %vm471, %v2585, 0.0
      %v2595 = vsel %vm470, %v2590, 0.0
      %v2596 = vsel %vm471, %v2586, 0.0
      %v2597 = vsel %vm470, %v2591, 0.0
      %v2598 = vsel %vm471, %v2587, 0.0
      %v2599 = vsel %vm470, %v2592, 0.0
      %v2600 = vsel %vm471, %v2588, 0.0
      %2601 = vrot.lane.b32.xlu0 %v2547, 16
      %v2602 = vpop.permute.xlu0 %2601
      %2603 = vrot.lane.b32.xlu0 %v2549, 16
      %v2604 = vpop.permute.xlu0 %2603
      %2605 = vrot.lane.b32.xlu0 %v2551, 16
      %v2606 = vpop.permute.xlu0 %2605
      %2607 = vrot.lane.b32.xlu0 %v2553, 16
      %v2608 = vpop.permute.xlu0 %2607
      %2609 = vrot.lane.b32.xlu0 %v2548, 16
      %v2610 = vpop.permute.xlu0 %2609
      %2611 = vrot.lane.b32.xlu0 %v2550, 16
      %v2612 = vpop.permute.xlu0 %2611
      %2613 = vrot.lane.b32.xlu0 %v2552, 16
      %v2614 = vpop.permute.xlu0 %2613
      %2615 = vrot.lane.b32.xlu0 %v2554, 16
      %v2616 = vpop.permute.xlu0 %2615
      %v2617 = vsel %vm478, %v2602, %v2610
      %v2618 = vsel %vm478, %v2604, %v2612
      %v2619 = vsel %vm478, %v2606, %v2614
      %v2620 = vsel %vm478, %v2608, %v2616
      %v2621 = vsel %vm478, %v2610, %v2602
      %v2622 = vsel %vm478, %v2612, %v2604
      %v2623 = vsel %vm478, %v2614, %v2606
      %v2624 = vsel %vm478, %v2616, %v2608
      %v2625 = vsel %vm466, %v2621, 0.0
      %v2626 = vsel %vm467, %v2617, 0.0
      %v2627 = vsel %vm466, %v2622, 0.0
      %v2628 = vsel %vm467, %v2618, 0.0
      %v2629 = vsel %vm466, %v2623, 0.0
      %v2630 = vsel %vm467, %v2619, 0.0
      %v2631 = vsel %vm466, %v2624, 0.0
      %v2632 = vsel %vm467, %v2620, 0.0
      %2633 = vrot.lane.b32.xlu0 %v2547, 15
      %v2634 = vpop.permute.xlu0 %2633
      %2635 = vrot.lane.b32.xlu0 %v2549, 15
      %v2636 = vpop.permute.xlu0 %2635
      %2637 = vrot.lane.b32.xlu0 %v2551, 15
      %v2638 = vpop.permute.xlu0 %2637
      %2639 = vrot.lane.b32.xlu0 %v2553, 15
      %v2640 = vpop.permute.xlu0 %2639
      %2641 = vrot.lane.b32.xlu0 %v2548, 15
      %v2642 = vpop.permute.xlu0 %2641
      %2643 = vrot.lane.b32.xlu0 %v2550, 15
      %v2644 = vpop.permute.xlu0 %2643
      %2645 = vrot.lane.b32.xlu0 %v2552, 15
      %v2646 = vpop.permute.xlu0 %2645
      %2647 = vrot.lane.b32.xlu0 %v2554, 15
      %v2648 = vpop.permute.xlu0 %2647
      %v2649 = vsel %vm487, %v2634, %v2642
      %v2650 = vsel %vm487, %v2636, %v2644
      %v2651 = vsel %vm487, %v2638, %v2646
      %v2652 = vsel %vm487, %v2640, %v2648
      %v2653 = vsel %vm487, %v2642, %v2634
      %v2654 = vsel %vm487, %v2644, %v2636
      %v2655 = vsel %vm487, %v2646, %v2638
      %v2656 = vsel %vm487, %v2648, %v2640
      %v2657 = vsel %vm492, %v2653, 0.0
      %v2658 = vsel %vm493, %v2649, 0.0
      %v2659 = vsel %vm492, %v2654, 0.0
      %v2660 = vsel %vm493, %v2650, 0.0
      %v2661 = vsel %vm492, %v2655, 0.0
      %v2662 = vsel %vm493, %v2651, 0.0
      %v2663 = vsel %vm492, %v2656, 0.0
      %v2664 = vsel %vm493, %v2652, 0.0
      %2665 = vrot.lane.b32.xlu0 %v2547, 1
      %v2666 = vpop.permute.xlu0 %2665
      %2667 = vrot.lane.b32.xlu0 %v2549, 1
      %v2668 = vpop.permute.xlu0 %2667
      %2669 = vrot.lane.b32.xlu0 %v2551, 1
      %v2670 = vpop.permute.xlu0 %2669
      %2671 = vrot.lane.b32.xlu0 %v2553, 1
      %v2672 = vpop.permute.xlu0 %2671
      %2673 = vrot.lane.b32.xlu0 %v2548, 1
      %v2674 = vpop.permute.xlu0 %2673
      %2675 = vrot.lane.b32.xlu0 %v2550, 1
      %v2676 = vpop.permute.xlu0 %2675
      %2677 = vrot.lane.b32.xlu0 %v2552, 1
      %v2678 = vpop.permute.xlu0 %2677
      %2679 = vrot.lane.b32.xlu0 %v2554, 1
      %v2680 = vpop.permute.xlu0 %2679
      %v2681 = vsel %vm500, %v2666, %v2674
      %v2682 = vsel %vm500, %v2668, %v2676
      %v2683 = vsel %vm500, %v2670, %v2678
      %v2684 = vsel %vm500, %v2672, %v2680
      %v2685 = vsel %vm500, %v2674, %v2666
      %v2686 = vsel %vm500, %v2676, %v2668
      %v2687 = vsel %vm500, %v2678, %v2670
      %v2688 = vsel %vm500, %v2680, %v2672
      %v2689 = vsel %vm468, %v2685, 0.0
      %v2690 = vsel %vm469, %v2681, 0.0
      %v2691 = vsel %vm468, %v2686, 0.0
      %v2692 = vsel %vm469, %v2682, 0.0
      %v2693 = vsel %vm468, %v2687, 0.0
      %v2694 = vsel %vm469, %v2683, 0.0
      %v2695 = vsel %vm468, %v2688, 0.0
      %v2696 = vsel %vm469, %v2684, 0.0
      %2697 = vrot.lane.b32.xlu0 %v2547, 127
      %v2698 = vpop.permute.xlu0 %2697
      %2699 = vrot.lane.b32.xlu0 %v2549, 127
      %v2700 = vpop.permute.xlu0 %2699
      %2701 = vrot.lane.b32.xlu0 %v2551, 127
      %v2702 = vpop.permute.xlu0 %2701
      %2703 = vrot.lane.b32.xlu0 %v2553, 127
      %v2704 = vpop.permute.xlu0 %2703
      %2705 = vrot.lane.b32.xlu0 %v2548, 127
      %v2706 = vpop.permute.xlu0 %2705
      %2707 = vrot.lane.b32.xlu0 %v2550, 127
      %v2708 = vpop.permute.xlu0 %2707
      %2709 = vrot.lane.b32.xlu0 %v2552, 127
      %v2710 = vpop.permute.xlu0 %2709
      %2711 = vrot.lane.b32.xlu0 %v2554, 127
      %v2712 = vpop.permute.xlu0 %2711
      %v2713 = vsel %vm509, %v2698, %v2706
      %v2714 = vsel %vm509, %v2700, %v2708
      %v2715 = vsel %vm509, %v2702, %v2710
      %v2716 = vsel %vm509, %v2704, %v2712
      %v2717 = vsel %vm509, %v2706, %v2698
      %v2718 = vsel %vm509, %v2708, %v2700
      %v2719 = vsel %vm509, %v2710, %v2702
      %v2720 = vsel %vm509, %v2712, %v2704
      %v2721 = vsel %vm490, %v2713, 0.0
      %v2722 = vsel %vm491, %v2717, 0.0
      %v2723 = vsel %vm490, %v2714, 0.0
      %v2724 = vsel %vm491, %v2718, 0.0
      %v2725 = vsel %vm490, %v2715, 0.0
      %v2726 = vsel %vm491, %v2719, 0.0
      %v2727 = vsel %vm490, %v2716, 0.0
      %v2728 = vsel %vm491, %v2720, 0.0
      %2729 = vrot.lane.b32.xlu0 %v2547, 113
      %v2730 = vpop.permute.xlu0 %2729
      %2731 = vrot.lane.b32.xlu0 %v2549, 113
      %v2732 = vpop.permute.xlu0 %2731
      %2733 = vrot.lane.b32.xlu0 %v2551, 113
      %v2734 = vpop.permute.xlu0 %2733
      %2735 = vrot.lane.b32.xlu0 %v2553, 113
      %v2736 = vpop.permute.xlu0 %2735
      %2737 = vrot.lane.b32.xlu0 %v2548, 113
      %v2738 = vpop.permute.xlu0 %2737
      %2739 = vrot.lane.b32.xlu0 %v2550, 113
      %v2740 = vpop.permute.xlu0 %2739
      %2741 = vrot.lane.b32.xlu0 %v2552, 113
      %v2742 = vpop.permute.xlu0 %2741
      %2743 = vrot.lane.b32.xlu0 %v2554, 113
      %v2744 = vpop.permute.xlu0 %2743
      %v2745 = vsel %vm518, %v2730, %v2738
      %v2746 = vsel %vm518, %v2732, %v2740
      %v2747 = vsel %vm518, %v2734, %v2742
      %v2748 = vsel %vm518, %v2736, %v2744
      %v2749 = vsel %vm518, %v2738, %v2730
      %v2750 = vsel %vm518, %v2740, %v2732
      %v2751 = vsel %vm518, %v2742, %v2734
      %v2752 = vsel %vm518, %v2744, %v2736
      %v2753 = vsel %vm523, %v2745, 0.0
      %v2754 = vsel %vm524, %v2749, 0.0
      %v2755 = vsel %vm523, %v2746, 0.0
      %v2756 = vsel %vm524, %v2750, 0.0
      %v2757 = vsel %vm523, %v2747, 0.0
      %v2758 = vsel %vm524, %v2751, 0.0
      %v2759 = vsel %vm523, %v2748, 0.0
      %v2760 = vsel %vm524, %v2752, 0.0
      %2761 = vrot.lane.b32.xlu0 %v2547, 112
      %v2762 = vpop.permute.xlu0 %2761
      %2763 = vrot.lane.b32.xlu0 %v2549, 112
      %v2764 = vpop.permute.xlu0 %2763
      %2765 = vrot.lane.b32.xlu0 %v2551, 112
      %v2766 = vpop.permute.xlu0 %2765
      %2767 = vrot.lane.b32.xlu0 %v2553, 112
      %v2768 = vpop.permute.xlu0 %2767
      %2769 = vrot.lane.b32.xlu0 %v2548, 112
      %v2770 = vpop.permute.xlu0 %2769
      %2771 = vrot.lane.b32.xlu0 %v2550, 112
      %v2772 = vpop.permute.xlu0 %2771
      %2773 = vrot.lane.b32.xlu0 %v2552, 112
      %v2774 = vpop.permute.xlu0 %2773
      %2775 = vrot.lane.b32.xlu0 %v2554, 112
      %v2776 = vpop.permute.xlu0 %2775
      %v2777 = vsel %vm531, %v2762, %v2770
      %v2778 = vsel %vm531, %v2764, %v2772
      %v2779 = vsel %vm531, %v2766, %v2774
      %v2780 = vsel %vm531, %v2768, %v2776
      %v2781 = vsel %vm531, %v2770, %v2762
      %v2782 = vsel %vm531, %v2772, %v2764
      %v2783 = vsel %vm531, %v2774, %v2766
      %v2784 = vsel %vm531, %v2776, %v2768
      %v2785 = vsel %vm521, %v2777, 0.0
      %v2786 = vsel %vm522, %v2781, 0.0
      %v2787 = vsel %vm521, %v2778, 0.0
      %v2788 = vsel %vm522, %v2782, 0.0
      %v2789 = vsel %vm521, %v2779, 0.0
      %v2790 = vsel %vm522, %v2783, 0.0
      %v2791 = vsel %vm521, %v2780, 0.0
      %v2792 = vsel %vm522, %v2784, 0.0
      %2793 = vrot.lane.b32.xlu0 %v2547, 111
      %v2794 = vpop.permute.xlu0 %2793
      %2795 = vrot.lane.b32.xlu0 %v2549, 111
      %v2796 = vpop.permute.xlu0 %2795
      %2797 = vrot.lane.b32.xlu0 %v2551, 111
      %v2798 = vpop.permute.xlu0 %2797
      %2799 = vrot.lane.b32.xlu0 %v2553, 111
      %v2800 = vpop.permute.xlu0 %2799
      %2801 = vrot.lane.b32.xlu0 %v2548, 111
      %v2802 = vpop.permute.xlu0 %2801
      %2803 = vrot.lane.b32.xlu0 %v2550, 111
      %v2804 = vpop.permute.xlu0 %2803
      %2805 = vrot.lane.b32.xlu0 %v2552, 111
      %v2806 = vpop.permute.xlu0 %2805
      %2807 = vrot.lane.b32.xlu0 %v2554, 111
      %v2808 = vpop.permute.xlu0 %2807
      %v2809 = vsel %vm540, %v2794, %v2802
      %v2810 = vsel %vm540, %v2796, %v2804
      %v2811 = vsel %vm540, %v2798, %v2806
      %v2812 = vsel %vm540, %v2800, %v2808
      %v2813 = vsel %vm540, %v2802, %v2794
      %v2814 = vsel %vm540, %v2804, %v2796
      %v2815 = vsel %vm540, %v2806, %v2798
      %v2816 = vsel %vm540, %v2808, %v2800
      %v2817 = vsel %vm543, %v2809, 0.0
      %v2818 = vsel %vm544, %v2813, 0.0
      %v2819 = vsel %vm543, %v2810, 0.0
      %v2820 = vsel %vm544, %v2814, 0.0
      %v2821 = vsel %vm543, %v2811, 0.0
      %v2822 = vsel %vm544, %v2815, 0.0
      %v2823 = vsel %vm543, %v2812, 0.0
      %v2824 = vsel %vm544, %v2816, 0.0
      %v2825 = vpack.c.bf16 %v2595, %v2593
      %v2826 = vpack.c.bf16 %v2596, %v2594
      %v2827 = vpack.c.bf16 %v2599, %v2597
      %v2828 = vpack.c.bf16 %v2600, %v2598
      %v2829 = vpack.c.bf16 %v2627, %v2625
      %v2830 = vpack.c.bf16 %v2628, %v2626
      %v2831 = vpack.c.bf16 %v2631, %v2629
      %v2832 = vpack.c.bf16 %v2632, %v2630
      %v2833 = vpack.c.bf16 %v2659, %v2657
      %v2834 = vpack.c.bf16 %v2660, %v2658
      %v2835 = vpack.c.bf16 %v2663, %v2661
      %v2836 = vpack.c.bf16 %v2664, %v2662
      %v2837 = vpack.c.bf16 %v2691, %v2689
      %v2838 = vpack.c.bf16 %v2692, %v2690
      %v2839 = vpack.c.bf16 %v2695, %v2693
      %v2840 = vpack.c.bf16 %v2696, %v2694
      %v2841 = vpack.c.bf16 %v2549, %v2547
      %v2842 = vpack.c.bf16 %v2550, %v2548
      %v2843 = vpack.c.bf16 %v2553, %v2551
      %v2844 = vpack.c.bf16 %v2554, %v2552
      %v2845 = vpack.c.bf16 %v2723, %v2721
      %v2846 = vpack.c.bf16 %v2724, %v2722
      %v2847 = vpack.c.bf16 %v2727, %v2725
      %v2848 = vpack.c.bf16 %v2728, %v2726
      %v2849 = vpack.c.bf16 %v2755, %v2753
      %v2850 = vpack.c.bf16 %v2756, %v2754
      %v2851 = vpack.c.bf16 %v2759, %v2757
      %v2852 = vpack.c.bf16 %v2760, %v2758
      %v2853 = vpack.c.bf16 %v2787, %v2785
      %v2854 = vpack.c.bf16 %v2788, %v2786
      %v2855 = vpack.c.bf16 %v2791, %v2789
      %v2856 = vpack.c.bf16 %v2792, %v2790
      %v2857 = vpack.c.bf16 %v2819, %v2817
      %v2858 = vpack.c.bf16 %v2820, %v2818
      %v2859 = vpack.c.bf16 %v2823, %v2821
      %v2860 = vpack.c.bf16 %v2824, %v2822
      %2862 = vset.pattern.permute.xlu0 0
      %2863 = vperm.xlu0 %2862, %v2565
      %v2864 = vpop.permute.xlu0 %2863
      %2867 = vset.pattern.permute.xlu0 0
      %2868 = vperm.xlu0 %2867, %v2566
      %v2869 = vpop.permute.xlu0 %2868
      %2872 = vset.pattern.permute.xlu0 0
      %2873 = vperm.xlu0 %2872, %v2567
      %v2874 = vpop.permute.xlu0 %2873
      %2877 = vset.pattern.permute.xlu0 0
      %2878 = vperm.xlu0 %2877, %v2568
      %v2879 = vpop.permute.xlu0 %2878
      %v2889 = vunpack.c.l.b16 %v2556
      %v2890 = vunpack.c.h.b16 %v2556
      %v2891 = vunpack.c.l.b16 %v2557
      %v2892 = vunpack.c.l.b16 %v2558
      %v2893 = vunpack.c.h.b16 %v2558
      %v2894 = vunpack.c.l.b16 %v2559
      %v2895 = vunpack.c.l.b16 %v2560
      %v2896 = vunpack.c.h.b16 %v2560
      %v2897 = vunpack.c.l.b16 %v2561
      %v2898 = vunpack.c.l.b16 %v2562
      %v2899 = vunpack.c.h.b16 %v2562
      %v2900 = vunpack.c.l.b16 %v2563
      %v2901 = vpack.c.b16 %v2892, %v2889
      %v2902 = vpack.c.b16 %v2893, %v2890
      %v2903 = vpack.c.b16 %v2894, %v2891
      %v2904 = vpack.c.b16 %v2898, %v2895
      %v2905 = vpack.c.b16 %v2899, %v2896
      %v2906 = vpack.c.b16 %v2900, %v2897
      %v2912 = vsel %vm1008, %v2903, 0
      %v2915 = vsel %vm1008, %v2906, 0
      %2917 = vmatprep.subr.bf16.mxu0 %v2826
      %2918 = vmatpush1.bf16.msra.mxu0 %v2825
      %2919 = vmatprep.subr.bf16.mxu0 %v2828
      %2920 = vmatpush1.bf16.msra.mxu0 %v2827
      %2921 = vmatprep.subr.bf16.mxu0 %v2830
      %2922 = vmatpush1.bf16.msra.mxu0 %v2829
      %2923 = vmatprep.subr.bf16.mxu0 %v2832
      %2924 = vmatpush1.bf16.msra.mxu0 %v2831
      %2925 = vmatprep.subr.bf16.mxu0 %v2834
      %2926 = vmatpush1.bf16.msra.mxu0 %v2833
      %2927 = vmatprep.subr.bf16.mxu0 %v2836
      %2928 = vmatpush1.bf16.msra.mxu0 %v2835
      %2929 = vmatprep.subr.bf16.mxu0 %v2838
      %2930 = vmatpush1.bf16.msra.mxu0 %v2837
      %2931 = vmatprep.subr.bf16.mxu0 %v2840
      %2932 = vmatpush1.bf16.msra.mxu0 %v2839
      %2933 = vmatprep.subr.bf16.mxu0 %v2842
      %2934 = vmatpush1.bf16.msra.mxu0 %v2841
      %2935 = vmatprep.subr.bf16.mxu0 %v2844
      %2936 = vmatpush1.bf16.msra.mxu0 %v2843
      %2937 = vmatprep.subr.bf16.mxu0 %v2846
      %2938 = vmatpush1.bf16.msra.mxu0 %v2845
      %2939 = vmatprep.subr.bf16.mxu0 %v2848
      %2940 = vmatpush1.bf16.msra.mxu0 %v2847
      %2941 = vmatprep.subr.bf16.mxu0 %v2850
      %2942 = vmatpush1.bf16.msra.mxu0 %v2849
      %2943 = vmatprep.subr.bf16.mxu0 %v2852
      %2944 = vmatpush1.bf16.msra.mxu0 %v2851
      %2945 = vmatprep.subr.bf16.mxu0 %v2854
      %2946 = vmatpush1.bf16.msra.mxu0 %v2853
      %2947 = vmatprep.subr.bf16.mxu0 %v2856
      %2948 = vmatpush1.bf16.msra.mxu0 %v2855
      %2949 = vmatprep.mubr.bf16.mxu0 %v2902
      %2950 = vmatmul.mubr.bf16.gmra.mrb[0].mxu0 %v2901
      %v2951 = vpop.f32.mrb[0].mxu0
      %v2952 = vadd.f32 %v2864, %v2951
      %v2953 = vpop.f32.mrb[0].mxu0
      %v2954 = vadd.f32 %v2864, %v2953
      %v2955 = vpop.f32.mrb[0].mxu0
      %v2956 = vadd.f32 %v2869, %v2955
      %v2957 = vpop.f32.mrb[0].mxu0
      %v2958 = vadd.f32 %v2869, %v2957
      %2959 = vmatprep.mubr.bf16.mxu0 %v2905
      %2960 = vmatmul.mubr.bf16.gmra.mrb[0].mxu0 %v2904
      %v2961 = vpop.f32.mrb[0].mxu0
      %v2962 = vadd.f32 %v2874, %v2961
      %v2963 = vpop.f32.mrb[0].mxu0
      %v2964 = vadd.f32 %v2874, %v2963
      %v2965 = vpop.f32.mrb[0].mxu0
      %v2966 = vadd.f32 %v2879, %v2965
      %v2967 = vpop.f32.mrb[0].mxu0
      %v2968 = vadd.f32 %v2879, %v2967
      %2969 = vdwg.mxu0
      %2970 = vmatprep.subr.bf16.mxu0 %v2858
      %2971 = vmatpush1.bf16.msra.mxu0 %v2857
      %2972 = vmatprep.subr.bf16.mxu0 %v2860
      %2973 = vmatpush1.bf16.msra.mxu0 %v2859
      %2974 = vmatprep.subr.bf16.mxu0 0
      %2975 = vmatpush1.bf16.msra.mxu0 0
      %2976 = vmatprep.subr.bf16.mxu0 0
      %2977 = vmatpush1.bf16.msra.mxu0 0
      %2978 = vmatprep.subr.bf16.mxu0 0
      %2979 = vmatpush1.bf16.msra.mxu0 0
      %2980 = vmatprep.subr.bf16.mxu0 0
      %2981 = vmatpush1.bf16.msra.mxu0 0
      %2982 = vmatprep.subr.bf16.mxu0 0
      %2983 = vmatpush1.bf16.msra.mxu0 0
      %2984 = vmatprep.subr.bf16.mxu0 0
      %2985 = vmatpush1.bf16.msra.mxu0 0
      %2986 = vmatprep.subr.bf16.mxu0 0
      %2987 = vmatpush1.bf16.msra.mxu0 0
      %2988 = vmatprep.subr.bf16.mxu0 0
      %2989 = vmatpush1.bf16.msra.mxu0 0
      %2990 = vmatprep.subr.bf16.mxu0 0
      %2991 = vmatpush1.bf16.msra.mxu0 0
      %2992 = vmatprep.subr.bf16.mxu0 0
      %2993 = vmatpush1.bf16.msra.mxu0 0
      %2994 = vmatprep.subr.bf16.mxu0 0
      %2995 = vmatpush1.bf16.msra.mxu0 0
      %2996 = vmatprep.subr.bf16.mxu0 0
      %2997 = vmatpush1.bf16.msra.mxu0 0
      %2998 = vmatprep.subr.bf16.mxu0 0
      %2999 = vmatpush1.bf16.msra.mxu0 0
      %3000 = vmatprep.subr.bf16.mxu0 0
      %3001 = vmatpush1.bf16.msra.mxu0 0
      %3002 = vmatprep.mubr.bf16.mxu0 0
      %3003 = vmatmul.mubr.bf16.gmra.mrb[0].mxu0 %v2912
      %v3004 = vpop.f32.mrb[0].mxu0
      %v3005 = vadd.f32 %v2952, %v3004
      %v3006 = vpop.f32.mrb[0].mxu0
      %v3007 = vadd.f32 %v2954, %v3006
      %v3008 = vpop.f32.mrb[0].mxu0
      %v3009 = vadd.f32 %v2956, %v3008
      %v3010 = vpop.f32.mrb[0].mxu0
      %v3011 = vadd.f32 %v2958, %v3010
      %3012 = vmatprep.mubr.bf16.mxu0 0
      %3013 = vmatmul.mubr.bf16.gmra.mrb[0].mxu0 %v2915
      %v3014 = vpop.f32.mrb[0].mxu0
      %v3015 = vadd.f32 %v2962, %v3014
      %v3016 = vpop.f32.mrb[0].mxu0
      %v3017 = vadd.f32 %v2964, %v3016
      %v3018 = vpop.f32.mrb[0].mxu0
      %v3019 = vadd.f32 %v2966, %v3018
      %v3020 = vpop.f32.mrb[0].mxu0
      %v3021 = vadd.f32 %v2968, %v3020
      %3022 = vdwg.mxu0
      %v3023 = vmax.f32 %v3005, 0.0
      %v3024 = vmax.f32 %v3007, 0.0
      %v3025 = vmax.f32 %v3009, 0.0
      %v3026 = vmax.f32 %v3011, 0.0
      %v3027 = vmax.f32 %v3015, 0.0
      %v3028 = vmax.f32 %v3017, 0.0
      %v3029 = vmax.f32 %v3019, 0.0
      %v3030 = vmax.f32 %v3021, 0.0
      %s3031 = scalar_lea.vmem %s5, 96
      %v3032 = vld [vmem:[%s3031] sm:$0xff]
      %v3033 = vld [vmem:[%s3031 + $0x8] sm:$0xf]
      %v3034 = vld [vmem:[%s3031 + $0xc] sm:$0xff]
      %v3035 = vld [vmem:[%s3031 + $0x14] sm:$0xf]
      %v3036 = vld [vmem:[%s3031 + $0x18] sm:$0xff]
      %v3037 = vld [vmem:[%s3031 + $0x20] sm:$0xf]
      %v3038 = vld [vmem:[%s3031 + $0x24] sm:$0xff]
      %v3039 = vld [vmem:[%s3031 + $0x2c] sm:$0xf]
      %s3040 = scalar_lea.vmem %s6, 64
      %v3041 = vld [vmem:[%s3040] sm:$0xff]
      %v3042 = vld [vmem:[%s3040 + $0x8] sm:$0xff]
      %v3043 = vld [vmem:[%s3040 + $0x10] sm:$0xff]
      %v3044 = vld [vmem:[%s3040 + $0x18] sm:$0xff]
      %3045 = vrot.lane.b32.xlu0 %v3023, 17
      %v3046 = vpop.permute.xlu0 %3045
      %3047 = vrot.lane.b32.xlu0 %v3025, 17
      %v3048 = vpop.permute.xlu0 %3047
      %3049 = vrot.lane.b32.xlu0 %v3027, 17
      %v3050 = vpop.permute.xlu0 %3049
      %3051 = vrot.lane.b32.xlu0 %v3029, 17
      %v3052 = vpop.permute.xlu0 %3051
      %3053 = vrot.lane.b32.xlu0 %v3024, 17
      %v3054 = vpop.permute.xlu0 %3053
      %3055 = vrot.lane.b32.xlu0 %v3026, 17
      %v3056 = vpop.permute.xlu0 %3055
      %3057 = vrot.lane.b32.xlu0 %v3028, 17
      %v3058 = vpop.permute.xlu0 %3057
      %3059 = vrot.lane.b32.xlu0 %v3030, 17
      %v3060 = vpop.permute.xlu0 %3059
      %v3061 = vsel %vm458, %v3046, %v3054
      %v3062 = vsel %vm458, %v3048, %v3056
      %v3063 = vsel %vm458, %v3050, %v3058
      %v3064 = vsel %vm458, %v3052, %v3060
      %v3065 = vsel %vm458, %v3054, %v3046
      %v3066 = vsel %vm458, %v3056, %v3048
      %v3067 = vsel %vm458, %v3058, %v3050
      %v3068 = vsel %vm458, %v3060, %v3052
      %v3069 = vsel %vm470, %v3065, 0.0
      %v3070 = vsel %vm471, %v3061, 0.0
      %v3071 = vsel %vm470, %v3066, 0.0
      %v3072 = vsel %vm471, %v3062, 0.0
      %v3073 = vsel %vm470, %v3067, 0.0
      %v3074 = vsel %vm471, %v3063, 0.0
      %v3075 = vsel %vm470, %v3068, 0.0
      %v3076 = vsel %vm471, %v3064, 0.0
      %3077 = vrot.lane.b32.xlu0 %v3023, 16
      %v3078 = vpop.permute.xlu0 %3077
      %3079 = vrot.lane.b32.xlu0 %v3025, 16
      %v3080 = vpop.permute.xlu0 %3079
      %3081 = vrot.lane.b32.xlu0 %v3027, 16
      %v3082 = vpop.permute.xlu0 %3081
      %3083 = vrot.lane.b32.xlu0 %v3029, 16
      %v3084 = vpop.permute.xlu0 %3083
      %3085 = vrot.lane.b32.xlu0 %v3024, 16
      %v3086 = vpop.permute.xlu0 %3085
      %3087 = vrot.lane.b32.xlu0 %v3026, 16
      %v3088 = vpop.permute.xlu0 %3087
      %3089 = vrot.lane.b32.xlu0 %v3028, 16
      %v3090 = vpop.permute.xlu0 %3089
      %3091 = vrot.lane.b32.xlu0 %v3030, 16
      %v3092 = vpop.permute.xlu0 %3091
      %v3093 = vsel %vm478, %v3078, %v3086
      %v3094 = vsel %vm478, %v3080, %v3088
      %v3095 = vsel %vm478, %v3082, %v3090
      %v3096 = vsel %vm478, %v3084, %v3092
      %v3097 = vsel %vm478, %v3086, %v3078
      %v3098 = vsel %vm478, %v3088, %v3080
      %v3099 = vsel %vm478, %v3090, %v3082
      %v3100 = vsel %vm478, %v3092, %v3084
      %v3101 = vsel %vm466, %v3097, 0.0
      %v3102 = vsel %vm467, %v3093, 0.0
      %v3103 = vsel %vm466, %v3098, 0.0
      %v3104 = vsel %vm467, %v3094, 0.0
      %v3105 = vsel %vm466, %v3099, 0.0
      %v3106 = vsel %vm467, %v3095, 0.0
      %v3107 = vsel %vm466, %v3100, 0.0
      %v3108 = vsel %vm467, %v3096, 0.0
      %3109 = vrot.lane.b32.xlu0 %v3023, 15
      %v3110 = vpop.permute.xlu0 %3109
      %3111 = vrot.lane.b32.xlu0 %v3025, 15
      %v3112 = vpop.permute.xlu0 %3111
      %3113 = vrot.lane.b32.xlu0 %v3027, 15
      %v3114 = vpop.permute.xlu0 %3113
      %3115 = vrot.lane.b32.xlu0 %v3029, 15
      %v3116 = vpop.permute.xlu0 %3115
      %3117 = vrot.lane.b32.xlu0 %v3024, 15
      %v3118 = vpop.permute.xlu0 %3117
      %3119 = vrot.lane.b32.xlu0 %v3026, 15
      %v3120 = vpop.permute.xlu0 %3119
      %3121 = vrot.lane.b32.xlu0 %v3028, 15
      %v3122 = vpop.permute.xlu0 %3121
      %3123 = vrot.lane.b32.xlu0 %v3030, 15
      %v3124 = vpop.permute.xlu0 %3123
      %v3125 = vsel %vm487, %v3110, %v3118
      %v3126 = vsel %vm487, %v3112, %v3120
      %v3127 = vsel %vm487, %v3114, %v3122
      %v3128 = vsel %vm487, %v3116, %v3124
      %v3129 = vsel %vm487, %v3118, %v3110
      %v3130 = vsel %vm487, %v3120, %v3112
      %v3131 = vsel %vm487, %v3122, %v3114
      %v3132 = vsel %vm487, %v3124, %v3116
      %v3133 = vsel %vm492, %v3129, 0.0
      %v3134 = vsel %vm493, %v3125, 0.0
      %v3135 = vsel %vm492, %v3130, 0.0
      %v3136 = vsel %vm493, %v3126, 0.0
      %v3137 = vsel %vm492, %v3131, 0.0
      %v3138 = vsel %vm493, %v3127, 0.0
      %v3139 = vsel %vm492, %v3132, 0.0
      %v3140 = vsel %vm493, %v3128, 0.0
      %3141 = vrot.lane.b32.xlu0 %v3023, 1
      %v3142 = vpop.permute.xlu0 %3141
      %3143 = vrot.lane.b32.xlu0 %v3025, 1
      %v3144 = vpop.permute.xlu0 %3143
      %3145 = vrot.lane.b32.xlu0 %v3027, 1
      %v3146 = vpop.permute.xlu0 %3145
      %3147 = vrot.lane.b32.xlu0 %v3029, 1
      %v3148 = vpop.permute.xlu0 %3147
      %3149 = vrot.lane.b32.xlu0 %v3024, 1
      %v3150 = vpop.permute.xlu0 %3149
      %3151 = vrot.lane.b32.xlu0 %v3026, 1
      %v3152 = vpop.permute.xlu0 %3151
      %3153 = vrot.lane.b32.xlu0 %v3028, 1
      %v3154 = vpop.permute.xlu0 %3153
      %3155 = vrot.lane.b32.xlu0 %v3030, 1
      %v3156 = vpop.permute.xlu0 %3155
      %v3157 = vsel %vm500, %v3142, %v3150
      %v3158 = vsel %vm500, %v3144, %v3152
      %v3159 = vsel %vm500, %v3146, %v3154
      %v3160 = vsel %vm500, %v3148, %v3156
      %v3161 = vsel %vm500, %v3150, %v3142
      %v3162 = vsel %vm500, %v3152, %v3144
      %v3163 = vsel %vm500, %v3154, %v3146
      %v3164 = vsel %vm500, %v3156, %v3148
      %v3165 = vsel %vm468, %v3161, 0.0
      %v3166 = vsel %vm469, %v3157, 0.0
      %v3167 = vsel %vm468, %v3162, 0.0
      %v3168 = vsel %vm469, %v3158, 0.0
      %v3169 = vsel %vm468, %v3163, 0.0
      %v3170 = vsel %vm469, %v3159, 0.0
      %v3171 = vsel %vm468, %v3164, 0.0
      %v3172 = vsel %vm469, %v3160, 0.0
      %3173 = vrot.lane.b32.xlu0 %v3023, 127
      %v3174 = vpop.permute.xlu0 %3173
      %3175 = vrot.lane.b32.xlu0 %v3025, 127
      %v3176 = vpop.permute.xlu0 %3175
      %3177 = vrot.lane.b32.xlu0 %v3027, 127
      %v3178 = vpop.permute.xlu0 %3177
      %3179 = vrot.lane.b32.xlu0 %v3029, 127
      %v3180 = vpop.permute.xlu0 %3179
      %3181 = vrot.lane.b32.xlu0 %v3024, 127
      %v3182 = vpop.permute.xlu0 %3181
      %3183 = vrot.lane.b32.xlu0 %v3026, 127
      %v3184 = vpop.permute.xlu0 %3183
      %3185 = vrot.lane.b32.xlu0 %v3028, 127
      %v3186 = vpop.permute.xlu0 %3185
      %3187 = vrot.lane.b32.xlu0 %v3030, 127
      %v3188 = vpop.permute.xlu0 %3187
      %v3189 = vsel %vm509, %v3174, %v3182
      %v3190 = vsel %vm509, %v3176, %v3184
      %v3191 = vsel %vm509, %v3178, %v3186
      %v3192 = vsel %vm509, %v3180, %v3188
      %v3193 = vsel %vm509, %v3182, %v3174
      %v3194 = vsel %vm509, %v3184, %v3176
      %v3195 = vsel %vm509, %v3186, %v3178
      %v3196 = vsel %vm509, %v3188, %v3180
      %v3197 = vsel %vm490, %v3189, 0.0
      %v3198 = vsel %vm491, %v3193, 0.0
      %v3199 = vsel %vm490, %v3190, 0.0
      %v3200 = vsel %vm491, %v3194, 0.0
      %v3201 = vsel %vm490, %v3191, 0.0
      %v3202 = vsel %vm491, %v3195, 0.0
      %v3203 = vsel %vm490, %v3192, 0.0
      %v3204 = vsel %vm491, %v3196, 0.0
      %3205 = vrot.lane.b32.xlu0 %v3023, 113
      %v3206 = vpop.permute.xlu0 %3205
      %3207 = vrot.lane.b32.xlu0 %v3025, 113
      %v3208 = vpop.permute.xlu0 %3207
      %3209 = vrot.lane.b32.xlu0 %v3027, 113
      %v3210 = vpop.permute.xlu0 %3209
      %3211 = vrot.lane.b32.xlu0 %v3029, 113
      %v3212 = vpop.permute.xlu0 %3211
      %3213 = vrot.lane.b32.xlu0 %v3024, 113
      %v3214 = vpop.permute.xlu0 %3213
      %3215 = vrot.lane.b32.xlu0 %v3026, 113
      %v3216 = vpop.permute.xlu0 %3215
      %3217 = vrot.lane.b32.xlu0 %v3028, 113
      %v3218 = vpop.permute.xlu0 %3217
      %3219 = vrot.lane.b32.xlu0 %v3030, 113
      %v3220 = vpop.permute.xlu0 %3219
      %v3221 = vsel %vm518, %v3206, %v3214
      %v3222 = vsel %vm518, %v3208, %v3216
      %v3223 = vsel %vm518, %v3210, %v3218
      %v3224 = vsel %vm518, %v3212, %v3220
      %v3225 = vsel %vm518, %v3214, %v3206
      %v3226 = vsel %vm518, %v3216, %v3208
      %v3227 = vsel %vm518, %v3218, %v3210
      %v3228 = vsel %vm518, %v3220, %v3212
      %v3229 = vsel %vm523, %v3221, 0.0
      %v3230 = vsel %vm524, %v3225, 0.0
      %v3231 = vsel %vm523, %v3222, 0.0
      %v3232 = vsel %vm524, %v3226, 0.0
      %v3233 = vsel %vm523, %v3223, 0.0
      %v3234 = vsel %vm524, %v3227, 0.0
      %v3235 = vsel %vm523, %v3224, 0.0
      %v3236 = vsel %vm524, %v3228, 0.0
      %3237 = vrot.lane.b32.xlu0 %v3023, 112
      %v3238 = vpop.permute.xlu0 %3237
      %3239 = vrot.lane.b32.xlu0 %v3025, 112
      %v3240 = vpop.permute.xlu0 %3239
      %3241 = vrot.lane.b32.xlu0 %v3027, 112
      %v3242 = vpop.permute.xlu0 %3241
      %3243 = vrot.lane.b32.xlu0 %v3029, 112
      %v3244 = vpop.permute.xlu0 %3243
      %3245 = vrot.lane.b32.xlu0 %v3024, 112
      %v3246 = vpop.permute.xlu0 %3245
      %3247 = vrot.lane.b32.xlu0 %v3026, 112
      %v3248 = vpop.permute.xlu0 %3247
      %3249 = vrot.lane.b32.xlu0 %v3028, 112
      %v3250 = vpop.permute.xlu0 %3249
      %3251 = vrot.lane.b32.xlu0 %v3030, 112
      %v3252 = vpop.permute.xlu0 %3251
      %v3253 = vsel %vm531, %v3238, %v3246
      %v3254 = vsel %vm531, %v3240, %v3248
      %v3255 = vsel %vm531, %v3242, %v3250
      %v3256 = vsel %vm531, %v3244, %v3252
      %v3257 = vsel %vm531, %v3246, %v3238
      %v3258 = vsel %vm531, %v3248, %v3240
      %v3259 = vsel %vm531, %v3250, %v3242
      %v3260 = vsel %vm531, %v3252, %v3244
      %v3261 = vsel %vm521, %v3253, 0.0
      %v3262 = vsel %vm522, %v3257, 0.0
      %v3263 = vsel %vm521, %v3254, 0.0
      %v3264 = vsel %vm522, %v3258, 0.0
      %v3265 = vsel %vm521, %v3255, 0.0
      %v3266 = vsel %vm522, %v3259, 0.0
      %v3267 = vsel %vm521, %v3256, 0.0
      %v3268 = vsel %vm522, %v3260, 0.0
      %3269 = vrot.lane.b32.xlu0 %v3023, 111
      %v3270 = vpop.permute.xlu0 %3269
      %3271 = vrot.lane.b32.xlu0 %v3025, 111
      %v3272 = vpop.permute.xlu0 %3271
      %3273 = vrot.lane.b32.xlu0 %v3027, 111
      %v3274 = vpop.permute.xlu0 %3273
      %3275 = vrot.lane.b32.xlu0 %v3029, 111
      %v3276 = vpop.permute.xlu0 %3275
      %3277 = vrot.lane.b32.xlu0 %v3024, 111
      %v3278 = vpop.permute.xlu0 %3277
      %3279 = vrot.lane.b32.xlu0 %v3026, 111
      %v3280 = vpop.permute.xlu0 %3279
      %3281 = vrot.lane.b32.xlu0 %v3028, 111
      %v3282 = vpop.permute.xlu0 %3281
      %3283 = vrot.lane.b32.xlu0 %v3030, 111
      %v3284 = vpop.permute.xlu0 %3283
      %v3285 = vsel %vm540, %v3270, %v3278
      %v3286 = vsel %vm540, %v3272, %v3280
      %v3287 = vsel %vm540, %v3274, %v3282
      %v3288 = vsel %vm540, %v3276, %v3284
      %v3289 = vsel %vm540, %v3278, %v3270
      %v3290 = vsel %vm540, %v3280, %v3272
      %v3291 = vsel %vm540, %v3282, %v3274
      %v3292 = vsel %vm540, %v3284, %v3276
      %v3293 = vsel %vm543, %v3285, 0.0
      %v3294 = vsel %vm544, %v3289, 0.0
      %v3295 = vsel %vm543, %v3286, 0.0
      %v3296 = vsel %vm544, %v3290, 0.0
      %v3297 = vsel %vm543, %v3287, 0.0
      %v3298 = vsel %vm544, %v3291, 0.0
      %v3299 = vsel %vm543, %v3288, 0.0
      %v3300 = vsel %vm544, %v3292, 0.0
      %v3301 = vpack.c.bf16 %v3071, %v3069
      %v3302 = vpack.c.bf16 %v3072, %v3070
      %v3303 = vpack.c.bf16 %v3075, %v3073
      %v3304 = vpack.c.bf16 %v3076, %v3074
      %v3305 = vpack.c.bf16 %v3103, %v3101
      %v3306 = vpack.c.bf16 %v3104, %v3102
      %v3307 = vpack.c.bf16 %v3107, %v3105
      %v3308 = vpack.c.bf16 %v3108, %v3106
      %v3309 = vpack.c.bf16 %v3135, %v3133
      %v3310 = vpack.c.bf16 %v3136, %v3134
      %v3311 = vpack.c.bf16 %v3139, %v3137
      %v3312 = vpack.c.bf16 %v3140, %v3138
      %v3313 = vpack.c.bf16 %v3167, %v3165
      %v3314 = vpack.c.bf16 %v3168, %v3166
      %v3315 = vpack.c.bf16 %v3171, %v3169
      %v3316 = vpack.c.bf16 %v3172, %v3170
      %v3317 = vpack.c.bf16 %v3025, %v3023
      %v3318 = vpack.c.bf16 %v3026, %v3024
      %v3319 = vpack.c.bf16 %v3029, %v3027
      %v3320 = vpack.c.bf16 %v3030, %v3028
      %v3321 = vpack.c.bf16 %v3199, %v3197
      %v3322 = vpack.c.bf16 %v3200, %v3198
      %v3323 = vpack.c.bf16 %v3203, %v3201
      %v3324 = vpack.c.bf16 %v3204, %v3202
      %v3325 = vpack.c.bf16 %v3231, %v3229
      %v3326 = vpack.c.bf16 %v3232, %v3230
      %v3327 = vpack.c.bf16 %v3235, %v3233
      %v3328 = vpack.c.bf16 %v3236, %v3234
      %v3329 = vpack.c.bf16 %v3263, %v3261
      %v3330 = vpack.c.bf16 %v3264, %v3262
      %v3331 = vpack.c.bf16 %v3267, %v3265
      %v3332 = vpack.c.bf16 %v3268, %v3266
      %v3333 = vpack.c.bf16 %v3295, %v3293
      %v3334 = vpack.c.bf16 %v3296, %v3294
      %v3335 = vpack.c.bf16 %v3299, %v3297
      %v3336 = vpack.c.bf16 %v3300, %v3298
      %3338 = vset.pattern.permute.xlu0 0
      %3339 = vperm.xlu0 %3338, %v3041
      %v3340 = vpop.permute.xlu0 %3339
      %3343 = vset.pattern.permute.xlu0 0
      %3344 = vperm.xlu0 %3343, %v3042
      %v3345 = vpop.permute.xlu0 %3344
      %3348 = vset.pattern.permute.xlu0 0
      %3349 = vperm.xlu0 %3348, %v3043
      %v3350 = vpop.permute.xlu0 %3349
      %3353 = vset.pattern.permute.xlu0 0
      %3354 = vperm.xlu0 %3353, %v3044
      %v3355 = vpop.permute.xlu0 %3354
      %v3365 = vunpack.c.l.b16 %v3032
      %v3366 = vunpack.c.h.b16 %v3032
      %v3367 = vunpack.c.l.b16 %v3033
      %v3368 = vunpack.c.l.b16 %v3034
      %v3369 = vunpack.c.h.b16 %v3034
      %v3370 = vunpack.c.l.b16 %v3035
      %v3371 = vunpack.c.l.b16 %v3036
      %v3372 = vunpack.c.h.b16 %v3036
      %v3373 = vunpack.c.l.b16 %v3037
      %v3374 = vunpack.c.l.b16 %v3038
      %v3375 = vunpack.c.h.b16 %v3038
      %v3376 = vunpack.c.l.b16 %v3039
      %v3377 = vpack.c.b16 %v3368, %v3365
      %v3378 = vpack.c.b16 %v3369, %v3366
      %v3379 = vpack.c.b16 %v3370, %v3367
      %v3380 = vpack.c.b16 %v3374, %v3371
      %v3381 = vpack.c.b16 %v3375, %v3372
      %v3382 = vpack.c.b16 %v3376, %v3373
      %v3388 = vsel %vm1008, %v3379, 0
      %v3391 = vsel %vm1008, %v3382, 0
      %3393 = vmatprep.subr.bf16.mxu0 %v3302
      %3394 = vmatpush1.bf16.msra.mxu0 %v3301
      %3395 = vmatprep.subr.bf16.mxu0 %v3304
      %3396 = vmatpush1.bf16.msra.mxu0 %v3303
      %3397 = vmatprep.subr.bf16.mxu0 %v3306
      %3398 = vmatpush1.bf16.msra.mxu0 %v3305
      %3399 = vmatprep.subr.bf16.mxu0 %v3308
      %3400 = vmatpush1.bf16.msra.mxu0 %v3307
      %3401 = vmatprep.subr.bf16.mxu0 %v3310
      %3402 = vmatpush1.bf16.msra.mxu0 %v3309
      %3403 = vmatprep.subr.bf16.mxu0 %v3312
      %3404 = vmatpush1.bf16.msra.mxu0 %v3311
      %3405 = vmatprep.subr.bf16.mxu0 %v3314
      %3406 = vmatpush1.bf16.msra.mxu0 %v3313
      %3407 = vmatprep.subr.bf16.mxu0 %v3316
      %3408 = vmatpush1.bf16.msra.mxu0 %v3315
      %3409 = vmatprep.subr.bf16.mxu0 %v3318
      %3410 = vmatpush1.bf16.msra.mxu0 %v3317
      %3411 = vmatprep.subr.bf16.mxu0 %v3320
      %3412 = vmatpush1.bf16.msra.mxu0 %v3319
      %3413 = vmatprep.subr.bf16.mxu0 %v3322
      %3414 = vmatpush1.bf16.msra.mxu0 %v3321
      %3415 = vmatprep.subr.bf16.mxu0 %v3324
      %3416 = vmatpush1.bf16.msra.mxu0 %v3323
      %3417 = vmatprep.subr.bf16.mxu0 %v3326
      %3418 = vmatpush1.bf16.msra.mxu0 %v3325
      %3419 = vmatprep.subr.bf16.mxu0 %v3328
      %3420 = vmatpush1.bf16.msra.mxu0 %v3327
      %3421 = vmatprep.subr.bf16.mxu0 %v3330
      %3422 = vmatpush1.bf16.msra.mxu0 %v3329
      %3423 = vmatprep.subr.bf16.mxu0 %v3332
      %3424 = vmatpush1.bf16.msra.mxu0 %v3331
      %3425 = vmatprep.mubr.bf16.mxu0 %v3378
      %3426 = vmatmul.mubr.bf16.gmra.mrb[0].mxu0 %v3377
      %v3427 = vpop.f32.mrb[0].mxu0
      %v3428 = vadd.f32 %v3340, %v3427
      %v3429 = vpop.f32.mrb[0].mxu0
      %v3430 = vadd.f32 %v3340, %v3429
      %v3431 = vpop.f32.mrb[0].mxu0
      %v3432 = vadd.f32 %v3345, %v3431
      %v3433 = vpop.f32.mrb[0].mxu0
      %v3434 = vadd.f32 %v3345, %v3433
      %3435 = vmatprep.mubr.bf16.mxu0 %v3381
      %3436 = vmatmul.mubr.bf16.gmra.mrb[0].mxu0 %v3380
      %v3437 = vpop.f32.mrb[0].mxu0
      %v3438 = vadd.f32 %v3350, %v3437
      %v3439 = vpop.f32.mrb[0].mxu0
      %v3440 = vadd.f32 %v3350, %v3439
      %v3441 = vpop.f32.mrb[0].mxu0
      %v3442 = vadd.f32 %v3355, %v3441
      %v3443 = vpop.f32.mrb[0].mxu0
      %v3444 = vadd.f32 %v3355, %v3443
      %3445 = vdwg.mxu0
      %3446 = vmatprep.subr.bf16.mxu0 %v3334
      %3447 = vmatpush1.bf16.msra.mxu0 %v3333
      %3448 = vmatprep.subr.bf16.mxu0 %v3336
      %3449 = vmatpush1.bf16.msra.mxu0 %v3335
      %3450 = vmatprep.subr.bf16.mxu0 0
      %3451 = vmatpush1.bf16.msra.mxu0 0
      %3452 = vmatprep.subr.bf16.mxu0 0
      %3453 = vmatpush1.bf16.msra.mxu0 0
      %3454 = vmatprep.subr.bf16.mxu0 0
      %3455 = vmatpush1.bf16.msra.mxu0 0
      %3456 = vmatprep.subr.bf16.mxu0 0
      %3457 = vmatpush1.bf16.msra.mxu0 0
      %3458 = vmatprep.subr.bf16.mxu0 0
      %3459 = vmatpush1.bf16.msra.mxu0 0
      %3460 = vmatprep.subr.bf16.mxu0 0
      %3461 = vmatpush1.bf16.msra.mxu0 0
      %3462 = vmatprep.subr.bf16.mxu0 0
      %3463 = vmatpush1.bf16.msra.mxu0 0
      %3464 = vmatprep.subr.bf16.mxu0 0
      %3465 = vmatpush1.bf16.msra.mxu0 0
      %3466 = vmatprep.subr.bf16.mxu0 0
      %3467 = vmatpush1.bf16.msra.mxu0 0
      %3468 = vmatprep.subr.bf16.mxu0 0
      %3469 = vmatpush1.bf16.msra.mxu0 0
      %3470 = vmatprep.subr.bf16.mxu0 0
      %3471 = vmatpush1.bf16.msra.mxu0 0
      %3472 = vmatprep.subr.bf16.mxu0 0
      %3473 = vmatpush1.bf16.msra.mxu0 0
      %3474 = vmatprep.subr.bf16.mxu0 0
      %3475 = vmatpush1.bf16.msra.mxu0 0
      %3476 = vmatprep.subr.bf16.mxu0 0
      %3477 = vmatpush1.bf16.msra.mxu0 0
      %3478 = vmatprep.mubr.bf16.mxu0 0
      %3479 = vmatmul.mubr.bf16.gmra.mrb[0].mxu0 %v3388
      %v3480 = vpop.f32.mrb[0].mxu0
      %v3481 = vadd.f32 %v3428, %v3480
      %v3482 = vpop.f32.mrb[0].mxu0
      %v3483 = vadd.f32 %v3430, %v3482
      %v3484 = vpop.f32.mrb[0].mxu0
      %v3485 = vadd.f32 %v3432, %v3484
      %v3486 = vpop.f32.mrb[0].mxu0
      %v3487 = vadd.f32 %v3434, %v3486
      %3488 = vmatprep.mubr.bf16.mxu0 0
      %3489 = vmatmul.mubr.bf16.gmra.mrb[0].mxu0 %v3391
      %v3490 = vpop.f32.mrb[0].mxu0
      %v3491 = vadd.f32 %v3438, %v3490
      %v3492 = vpop.f32.mrb[0].mxu0
      %v3493 = vadd.f32 %v3440, %v3492
      %v3494 = vpop.f32.mrb[0].mxu0
      %v3495 = vadd.f32 %v3442, %v3494
      %v3496 = vpop.f32.mrb[0].mxu0
      %v3497 = vadd.f32 %v3444, %v3496
      %3498 = vdwg.mxu0
      %v3499 = vadd.f32 %v3481, %v2547
      %v3500 = vadd.f32 %v3483, %v2548
      %v3501 = vadd.f32 %v3485, %v2549
      %v3502 = vadd.f32 %v3487, %v2550
      %v3503 = vadd.f32 %v3491, %v2551
      %v3504 = vadd.f32 %v3493, %v2552
      %v3505 = vadd.f32 %v3495, %v2553
      %v3506 = vadd.f32 %v3497, %v2554
      %s3507 = scalar_lea.vmem %s3, 144
      %v3508 = vld [vmem:[%s3507] sm:$0xff]
      %v3509 = vld [vmem:[%s3507 + $0x8] sm:$0xf]
      %v3510 = vld [vmem:[%s3507 + $0xc] sm:$0xff]
      %v3511 = vld [vmem:[%s3507 + $0x14] sm:$0xf]
      %v3512 = vld [vmem:[%s3507 + $0x18] sm:$0xff]
      %v3513 = vld [vmem:[%s3507 + $0x20] sm:$0xf]
      %v3514 = vld [vmem:[%s3507 + $0x24] sm:$0xff]
      %v3515 = vld [vmem:[%s3507 + $0x2c] sm:$0xf]
      %s3516 = scalar_lea.vmem %s4, 96
      %v3517 = vld [vmem:[%s3516] sm:$0xff]
      %v3518 = vld [vmem:[%s3516 + $0x8] sm:$0xff]
      %v3519 = vld [vmem:[%s3516 + $0x10] sm:$0xff]
      %v3520 = vld [vmem:[%s3516 + $0x18] sm:$0xff]
      %3521 = vrot.lane.b32.xlu0 %v3499, 17
      %v3522 = vpop.permute.xlu0 %3521
      %3523 = vrot.lane.b32.xlu0 %v3501, 17
      %v3524 = vpop.permute.xlu0 %3523
      %3525 = vrot.lane.b32.xlu0 %v3503, 17
      %v3526 = vpop.permute.xlu0 %3525
      %3527 = vrot.lane.b32.xlu0 %v3505, 17
      %v3528 = vpop.permute.xlu0 %3527
      %3529 = vrot.lane.b32.xlu0 %v3500, 17
      %v3530 = vpop.permute.xlu0 %3529
      %3531 = vrot.lane.b32.xlu0 %v3502, 17
      %v3532 = vpop.permute.xlu0 %3531
      %3533 = vrot.lane.b32.xlu0 %v3504, 17
      %v3534 = vpop.permute.xlu0 %3533
      %3535 = vrot.lane.b32.xlu0 %v3506, 17
      %v3536 = vpop.permute.xlu0 %3535
      %v3537 = vsel %vm458, %v3522, %v3530
      %v3538 = vsel %vm458, %v3524, %v3532
      %v3539 = vsel %vm458, %v3526, %v3534
      %v3540 = vsel %vm458, %v3528, %v3536
      %v3541 = vsel %vm458, %v3530, %v3522
      %v3542 = vsel %vm458, %v3532, %v3524
      %v3543 = vsel %vm458, %v3534, %v3526
      %v3544 = vsel %vm458, %v3536, %v3528
      %v3545 = vsel %vm470, %v3541, 0.0
      %v3546 = vsel %vm471, %v3537, 0.0
      %v3547 = vsel %vm470, %v3542, 0.0
      %v3548 = vsel %vm471, %v3538, 0.0
      %v3549 = vsel %vm470, %v3543, 0.0
      %v3550 = vsel %vm471, %v3539, 0.0
      %v3551 = vsel %vm470, %v3544, 0.0
      %v3552 = vsel %vm471, %v3540, 0.0
      %3553 = vrot.lane.b32.xlu0 %v3499, 16
      %v3554 = vpop.permute.xlu0 %3553
      %3555 = vrot.lane.b32.xlu0 %v3501, 16
      %v3556 = vpop.permute.xlu0 %3555
      %3557 = vrot.lane.b32.xlu0 %v3503, 16
      %v3558 = vpop.permute.xlu0 %3557
      %3559 = vrot.lane.b32.xlu0 %v3505, 16
      %v3560 = vpop.permute.xlu0 %3559
      %3561 = vrot.lane.b32.xlu0 %v3500, 16
      %v3562 = vpop.permute.xlu0 %3561
      %3563 = vrot.lane.b32.xlu0 %v3502, 16
      %v3564 = vpop.permute.xlu0 %3563
      %3565 = vrot.lane.b32.xlu0 %v3504, 16
      %v3566 = vpop.permute.xlu0 %3565
      %3567 = vrot.lane.b32.xlu0 %v3506, 16
      %v3568 = vpop.permute.xlu0 %3567
      %v3569 = vsel %vm478, %v3554, %v3562
      %v3570 = vsel %vm478, %v3556, %v3564
      %v3571 = vsel %vm478, %v3558, %v3566
      %v3572 = vsel %vm478, %v3560, %v3568
      %v3573 = vsel %vm478, %v3562, %v3554
      %v3574 = vsel %vm478, %v3564, %v3556
      %v3575 = vsel %vm478, %v3566, %v3558
      %v3576 = vsel %vm478, %v3568, %v3560
      %v3577 = vsel %vm466, %v3573, 0.0
      %v3578 = vsel %vm467, %v3569, 0.0
      %v3579 = vsel %vm466, %v3574, 0.0
      %v3580 = vsel %vm467, %v3570, 0.0
      %v3581 = vsel %vm466, %v3575, 0.0
      %v3582 = vsel %vm467, %v3571, 0.0
      %v3583 = vsel %vm466, %v3576, 0.0
      %v3584 = vsel %vm467, %v3572, 0.0
      %3585 = vrot.lane.b32.xlu0 %v3499, 15
      %v3586 = vpop.permute.xlu0 %3585
      %3587 = vrot.lane.b32.xlu0 %v3501, 15
      %v3588 = vpop.permute.xlu0 %3587
      %3589 = vrot.lane.b32.xlu0 %v3503, 15
      %v3590 = vpop.permute.xlu0 %3589
      %3591 = vrot.lane.b32.xlu0 %v3505, 15
      %v3592 = vpop.permute.xlu0 %3591
      %3593 = vrot.lane.b32.xlu0 %v3500, 15
      %v3594 = vpop.permute.xlu0 %3593
      %3595 = vrot.lane.b32.xlu0 %v3502, 15
      %v3596 = vpop.permute.xlu0 %3595
      %3597 = vrot.lane.b32.xlu0 %v3504, 15
      %v3598 = vpop.permute.xlu0 %3597
      %3599 = vrot.lane.b32.xlu0 %v3506, 15
      %v3600 = vpop.permute.xlu0 %3599
      %v3601 = vsel %vm487, %v3586, %v3594
      %v3602 = vsel %vm487, %v3588, %v3596
      %v3603 = vsel %vm487, %v3590, %v3598
      %v3604 = vsel %vm487, %v3592, %v3600
      %v3605 = vsel %vm487, %v3594, %v3586
      %v3606 = vsel %vm487, %v3596, %v3588
      %v3607 = vsel %vm487, %v3598, %v3590
      %v3608 = vsel %vm487, %v3600, %v3592
      %v3609 = vsel %vm492, %v3605, 0.0
      %v3610 = vsel %vm493, %v3601, 0.0
      %v3611 = vsel %vm492, %v3606, 0.0
      %v3612 = vsel %vm493, %v3602, 0.0
      %v3613 = vsel %vm492, %v3607, 0.0
      %v3614 = vsel %vm493, %v3603, 0.0
      %v3615 = vsel %vm492, %v3608, 0.0
      %v3616 = vsel %vm493, %v3604, 0.0
      %3617 = vrot.lane.b32.xlu0 %v3499, 1
      %v3618 = vpop.permute.xlu0 %3617
      %3619 = vrot.lane.b32.xlu0 %v3501, 1
      %v3620 = vpop.permute.xlu0 %3619
      %3621 = vrot.lane.b32.xlu0 %v3503, 1
      %v3622 = vpop.permute.xlu0 %3621
      %3623 = vrot.lane.b32.xlu0 %v3505, 1
      %v3624 = vpop.permute.xlu0 %3623
      %3625 = vrot.lane.b32.xlu0 %v3500, 1
      %v3626 = vpop.permute.xlu0 %3625
      %3627 = vrot.lane.b32.xlu0 %v3502, 1
      %v3628 = vpop.permute.xlu0 %3627
      %3629 = vrot.lane.b32.xlu0 %v3504, 1
      %v3630 = vpop.permute.xlu0 %3629
      %3631 = vrot.lane.b32.xlu0 %v3506, 1
      %v3632 = vpop.permute.xlu0 %3631
      %v3633 = vsel %vm500, %v3618, %v3626
      %v3634 = vsel %vm500, %v3620, %v3628
      %v3635 = vsel %vm500, %v3622, %v3630
      %v3636 = vsel %vm500, %v3624, %v3632
      %v3637 = vsel %vm500, %v3626, %v3618
      %v3638 = vsel %vm500, %v3628, %v3620
      %v3639 = vsel %vm500, %v3630, %v3622
      %v3640 = vsel %vm500, %v3632, %v3624
      %v3641 = vsel %vm468, %v3637, 0.0
      %v3642 = vsel %vm469, %v3633, 0.0
      %v3643 = vsel %vm468, %v3638, 0.0
      %v3644 = vsel %vm469, %v3634, 0.0
      %v3645 = vsel %vm468, %v3639, 0.0
      %v3646 = vsel %vm469, %v3635, 0.0
      %v3647 = vsel %vm468, %v3640, 0.0
      %v3648 = vsel %vm469, %v3636, 0.0
      %3649 = vrot.lane.b32.xlu0 %v3499, 127
      %v3650 = vpop.permute.xlu0 %3649
      %3651 = vrot.lane.b32.xlu0 %v3501, 127
      %v3652 = vpop.permute.xlu0 %3651
      %3653 = vrot.lane.b32.xlu0 %v3503, 127
      %v3654 = vpop.permute.xlu0 %3653
      %3655 = vrot.lane.b32.xlu0 %v3505, 127
      %v3656 = vpop.permute.xlu0 %3655
      %3657 = vrot.lane.b32.xlu0 %v3500, 127
      %v3658 = vpop.permute.xlu0 %3657
      %3659 = vrot.lane.b32.xlu0 %v3502, 127
      %v3660 = vpop.permute.xlu0 %3659
      %3661 = vrot.lane.b32.xlu0 %v3504, 127
      %v3662 = vpop.permute.xlu0 %3661
      %3663 = vrot.lane.b32.xlu0 %v3506, 127
      %v3664 = vpop.permute.xlu0 %3663
      %v3665 = vsel %vm509, %v3650, %v3658
      %v3666 = vsel %vm509, %v3652, %v3660
      %v3667 = vsel %vm509, %v3654, %v3662
      %v3668 = vsel %vm509, %v3656, %v3664
      %v3669 = vsel %vm509, %v3658, %v3650
      %v3670 = vsel %vm509, %v3660, %v3652
      %v3671 = vsel %vm509, %v3662, %v3654
      %v3672 = vsel %vm509, %v3664, %v3656
      %v3673 = vsel %vm490, %v3665, 0.0
      %v3674 = vsel %vm491, %v3669, 0.0
      %v3675 = vsel %vm490, %v3666, 0.0
      %v3676 = vsel %vm491, %v3670, 0.0
      %v3677 = vsel %vm490, %v3667, 0.0
      %v3678 = vsel %vm491, %v3671, 0.0
      %v3679 = vsel %vm490, %v3668, 0.0
      %v3680 = vsel %vm491, %v3672, 0.0
      %3681 = vrot.lane.b32.xlu0 %v3499, 113
      %v3682 = vpop.permute.xlu0 %3681
      %3683 = vrot.lane.b32.xlu0 %v3501, 113
      %v3684 = vpop.permute.xlu0 %3683
      %3685 = vrot.lane.b32.xlu0 %v3503, 113
      %v3686 = vpop.permute.xlu0 %3685
      %3687 = vrot.lane.b32.xlu0 %v3505, 113
      %v3688 = vpop.permute.xlu0 %3687
      %3689 = vrot.lane.b32.xlu0 %v3500, 113
      %v3690 = vpop.permute.xlu0 %3689
      %3691 = vrot.lane.b32.xlu0 %v3502, 113
      %v3692 = vpop.permute.xlu0 %3691
      %3693 = vrot.lane.b32.xlu0 %v3504, 113
      %v3694 = vpop.permute.xlu0 %3693
      %3695 = vrot.lane.b32.xlu0 %v3506, 113
      %v3696 = vpop.permute.xlu0 %3695
      %v3697 = vsel %vm518, %v3682, %v3690
      %v3698 = vsel %vm518, %v3684, %v3692
      %v3699 = vsel %vm518, %v3686, %v3694
      %v3700 = vsel %vm518, %v3688, %v3696
      %v3701 = vsel %vm518, %v3690, %v3682
      %v3702 = vsel %vm518, %v3692, %v3684
      %v3703 = vsel %vm518, %v3694, %v3686
      %v3704 = vsel %vm518, %v3696, %v3688
      %v3705 = vsel %vm523, %v3697, 0.0
      %v3706 = vsel %vm524, %v3701, 0.0
      %v3707 = vsel %vm523, %v3698, 0.0
      %v3708 = vsel %vm524, %v3702, 0.0
      %v3709 = vsel %vm523, %v3699, 0.0
      %v3710 = vsel %vm524, %v3703, 0.0
      %v3711 = vsel %vm523, %v3700, 0.0
      %v3712 = vsel %vm524, %v3704, 0.0
      %3713 = vrot.lane.b32.xlu0 %v3499, 112
      %v3714 = vpop.permute.xlu0 %3713
      %3715 = vrot.lane.b32.xlu0 %v3501, 112
      %v3716 = vpop.permute.xlu0 %3715
      %3717 = vrot.lane.b32.xlu0 %v3503, 112
      %v3718 = vpop.permute.xlu0 %3717
      %3719 = vrot.lane.b32.xlu0 %v3505, 112
      %v3720 = vpop.permute.xlu0 %3719
      %3721 = vrot.lane.b32.xlu0 %v3500, 112
      %v3722 = vpop.permute.xlu0 %3721
      %3723 = vrot.lane.b32.xlu0 %v3502, 112
      %v3724 = vpop.permute.xlu0 %3723
      %3725 = vrot.lane.b32.xlu0 %v3504, 112
      %v3726 = vpop.permute.xlu0 %3725
      %3727 = vrot.lane.b32.xlu0 %v3506, 112
      %v3728 = vpop.permute.xlu0 %3727
      %v3729 = vsel %vm531, %v3714, %v3722
      %v3730 = vsel %vm531, %v3716, %v3724
      %v3731 = vsel %vm531, %v3718, %v3726
      %v3732 = vsel %vm531, %v3720, %v3728
      %v3733 = vsel %vm531, %v3722, %v3714
      %v3734 = vsel %vm531, %v3724, %v3716
      %v3735 = vsel %vm531, %v3726, %v3718
      %v3736 = vsel %vm531, %v3728, %v3720
      %v3737 = vsel %vm521, %v3729, 0.0
      %v3738 = vsel %vm522, %v3733, 0.0
      %v3739 = vsel %vm521, %v3730, 0.0
      %v3740 = vsel %vm522, %v3734, 0.0
      %v3741 = vsel %vm521, %v3731, 0.0
      %v3742 = vsel %vm522, %v3735, 0.0
      %v3743 = vsel %vm521, %v3732, 0.0
      %v3744 = vsel %vm522, %v3736, 0.0
      %3745 = vrot.lane.b32.xlu0 %v3499, 111
      %v3746 = vpop.permute.xlu0 %3745
      %3747 = vrot.lane.b32.xlu0 %v3501, 111
      %v3748 = vpop.permute.xlu0 %3747
      %3749 = vrot.lane.b32.xlu0 %v3503, 111
      %v3750 = vpop.permute.xlu0 %3749
      %3751 = vrot.lane.b32.xlu0 %v3505, 111
      %v3752 = vpop.permute.xlu0 %3751
      %3753 = vrot.lane.b32.xlu0 %v3500, 111
      %v3754 = vpop.permute.xlu0 %3753
      %3755 = vrot.lane.b32.xlu0 %v3502, 111
      %v3756 = vpop.permute.xlu0 %3755
      %3757 = vrot.lane.b32.xlu0 %v3504, 111
      %v3758 = vpop.permute.xlu0 %3757
      %3759 = vrot.lane.b32.xlu0 %v3506, 111
      %v3760 = vpop.permute.xlu0 %3759
      %v3761 = vsel %vm540, %v3746, %v3754
      %v3762 = vsel %vm540, %v3748, %v3756
      %v3763 = vsel %vm540, %v3750, %v3758
      %v3764 = vsel %vm540, %v3752, %v3760
      %v3765 = vsel %vm540, %v3754, %v3746
      %v3766 = vsel %vm540, %v3756, %v3748
      %v3767 = vsel %vm540, %v3758, %v3750
      %v3768 = vsel %vm540, %v3760, %v3752
      %v3769 = vsel %vm543, %v3761, 0.0
      %v3770 = vsel %vm544, %v3765, 0.0
      %v3771 = vsel %vm543, %v3762, 0.0
      %v3772 = vsel %vm544, %v3766, 0.0
      %v3773 = vsel %vm543, %v3763, 0.0
      %v3774 = vsel %vm544, %v3767, 0.0
      %v3775 = vsel %vm543, %v3764, 0.0
      %v3776 = vsel %vm544, %v3768, 0.0
      %v3777 = vpack.c.bf16 %v3547, %v3545
      %v3778 = vpack.c.bf16 %v3548, %v3546
      %v3779 = vpack.c.bf16 %v3551, %v3549
      %v3780 = vpack.c.bf16 %v3552, %v3550
      %v3781 = vpack.c.bf16 %v3579, %v3577
      %v3782 = vpack.c.bf16 %v3580, %v3578
      %v3783 = vpack.c.bf16 %v3583, %v3581
      %v3784 = vpack.c.bf16 %v3584, %v3582
      %v3785 = vpack.c.bf16 %v3611, %v3609
      %v3786 = vpack.c.bf16 %v3612, %v3610
      %v3787 = vpack.c.bf16 %v3615, %v3613
      %v3788 = vpack.c.bf16 %v3616, %v3614
      %v3789 = vpack.c.bf16 %v3643, %v3641
      %v3790 = vpack.c.bf16 %v3644, %v3642
      %v3791 = vpack.c.bf16 %v3647, %v3645
      %v3792 = vpack.c.bf16 %v3648, %v3646
      %v3793 = vpack.c.bf16 %v3501, %v3499
      %v3794 = vpack.c.bf16 %v3502, %v3500
      %v3795 = vpack.c.bf16 %v3505, %v3503
      %v3796 = vpack.c.bf16 %v3506, %v3504
      %v3797 = vpack.c.bf16 %v3675, %v3673
      %v3798 = vpack.c.bf16 %v3676, %v3674
      %v3799 = vpack.c.bf16 %v3679, %v3677
      %v3800 = vpack.c.bf16 %v3680, %v3678
      %v3801 = vpack.c.bf16 %v3707, %v3705
      %v3802 = vpack.c.bf16 %v3708, %v3706
      %v3803 = vpack.c.bf16 %v3711, %v3709
      %v3804 = vpack.c.bf16 %v3712, %v3710
      %v3805 = vpack.c.bf16 %v3739, %v3737
      %v3806 = vpack.c.bf16 %v3740, %v3738
      %v3807 = vpack.c.bf16 %v3743, %v3741
      %v3808 = vpack.c.bf16 %v3744, %v3742
      %v3809 = vpack.c.bf16 %v3771, %v3769
      %v3810 = vpack.c.bf16 %v3772, %v3770
      %v3811 = vpack.c.bf16 %v3775, %v3773
      %v3812 = vpack.c.bf16 %v3776, %v3774
      %3814 = vset.pattern.permute.xlu0 0
      %3815 = vperm.xlu0 %3814, %v3517
      %v3816 = vpop.permute.xlu0 %3815
      %3819 = vset.pattern.permute.xlu0 0
      %3820 = vperm.xlu0 %3819, %v3518
      %v3821 = vpop.permute.xlu0 %3820
      %3824 = vset.pattern.permute.xlu0 0
      %3825 = vperm.xlu0 %3824, %v3519
      %v3826 = vpop.permute.xlu0 %3825
      %3829 = vset.pattern.permute.xlu0 0
      %3830 = vperm.xlu0 %3829, %v3520
      %v3831 = vpop.permute.xlu0 %3830
      %v3841 = vunpack.c.l.b16 %v3508
      %v3842 = vunpack.c.h.b16 %v3508
      %v3843 = vunpack.c.l.b16 %v3509
      %v3844 = vunpack.c.l.b16 %v3510
      %v3845 = vunpack.c.h.b16 %v3510
      %v3846 = vunpack.c.l.b16 %v3511
      %v3847 = vunpack.c.l.b16 %v3512
      %v3848 = vunpack.c.h.b16 %v3512
      %v3849 = vunpack.c.l.b16 %v3513
      %v3850 = vunpack.c.l.b16 %v3514
      %v3851 = vunpack.c.h.b16 %v3514
      %v3852 = vunpack.c.l.b16 %v3515
      %v3853 = vpack.c.b16 %v3844, %v3841
      %v3854 = vpack.c.b16 %v3845, %v3842
      %v3855 = vpack.c.b16 %v3846, %v3843
      %v3856 = vpack.c.b16 %v3850, %v3847
      %v3857 = vpack.c.b16 %v3851, %v3848
      %v3858 = vpack.c.b16 %v3852, %v3849
      %v3864 = vsel %vm1008, %v3855, 0
      %v3867 = vsel %vm1008, %v3858, 0
      %3869 = vmatprep.subr.bf16.mxu0 %v3778
      %3870 = vmatpush1.bf16.msra.mxu0 %v3777
      %3871 = vmatprep.subr.bf16.mxu0 %v3780
      %3872 = vmatpush1.bf16.msra.mxu0 %v3779
      %3873 = vmatprep.subr.bf16.mxu0 %v3782
      %3874 = vmatpush1.bf16.msra.mxu0 %v3781
      %3875 = vmatprep.subr.bf16.mxu0 %v3784
      %3876 = vmatpush1.bf16.msra.mxu0 %v3783
      %3877 = vmatprep.subr.bf16.mxu0 %v3786
      %3878 = vmatpush1.bf16.msra.mxu0 %v3785
      %3879 = vmatprep.subr.bf16.mxu0 %v3788
      %3880 = vmatpush1.bf16.msra.mxu0 %v3787
      %3881 = vmatprep.subr.bf16.mxu0 %v3790
      %3882 = vmatpush1.bf16.msra.mxu0 %v3789
      %3883 = vmatprep.subr.bf16.mxu0 %v3792
      %3884 = vmatpush1.bf16.msra.mxu0 %v3791
      %3885 = vmatprep.subr.bf16.mxu0 %v3794
      %3886 = vmatpush1.bf16.msra.mxu0 %v3793
      %3887 = vmatprep.subr.bf16.mxu0 %v3796
      %3888 = vmatpush1.bf16.msra.mxu0 %v3795
      %3889 = vmatprep.subr.bf16.mxu0 %v3798
      %3890 = vmatpush1.bf16.msra.mxu0 %v3797
      %3891 = vmatprep.subr.bf16.mxu0 %v3800
      %3892 = vmatpush1.bf16.msra.mxu0 %v3799
      %3893 = vmatprep.subr.bf16.mxu0 %v3802
      %3894 = vmatpush1.bf16.msra.mxu0 %v3801
      %3895 = vmatprep.subr.bf16.mxu0 %v3804
      %3896 = vmatpush1.bf16.msra.mxu0 %v3803
      %3897 = vmatprep.subr.bf16.mxu0 %v3806
      %3898 = vmatpush1.bf16.msra.mxu0 %v3805
      %3899 = vmatprep.subr.bf16.mxu0 %v3808
      %3900 = vmatpush1.bf16.msra.mxu0 %v3807
      %3901 = vmatprep.mubr.bf16.mxu0 %v3854
      %3902 = vmatmul.mubr.bf16.gmra.mrb[0].mxu0 %v3853
      %v3903 = vpop.f32.mrb[0].mxu0
      %v3904 = vadd.f32 %v3816, %v3903
      %v3905 = vpop.f32.mrb[0].mxu0
      %v3906 = vadd.f32 %v3816, %v3905
      %v3907 = vpop.f32.mrb[0].mxu0
      %v3908 = vadd.f32 %v3821, %v3907
      %v3909 = vpop.f32.mrb[0].mxu0
      %v3910 = vadd.f32 %v3821, %v3909
      %3911 = vmatprep.mubr.bf16.mxu0 %v3857
      %3912 = vmatmul.mubr.bf16.gmra.mrb[0].mxu0 %v3856
      %v3913 = vpop.f32.mrb[0].mxu0
      %v3914 = vadd.f32 %v3826, %v3913
      %v3915 = vpop.f32.mrb[0].mxu0
      %v3916 = vadd.f32 %v3826, %v3915
      %v3917 = vpop.f32.mrb[0].mxu0
      %v3918 = vadd.f32 %v3831, %v3917
      %v3919 = vpop.f32.mrb[0].mxu0
      %v3920 = vadd.f32 %v3831, %v3919
      %3921 = vdwg.mxu0
      %3922 = vmatprep.subr.bf16.mxu0 %v3810
      %3923 = vmatpush1.bf16.msra.mxu0 %v3809
      %3924 = vmatprep.subr.bf16.mxu0 %v3812
      %3925 = vmatpush1.bf16.msra.mxu0 %v3811
      %3926 = vmatprep.subr.bf16.mxu0 0
      %3927 = vmatpush1.bf16.msra.mxu0 0
      %3928 = vmatprep.subr.bf16.mxu0 0
      %3929 = vmatpush1.bf16.msra.mxu0 0
      %3930 = vmatprep.subr.bf16.mxu0 0
      %3931 = vmatpush1.bf16.msra.mxu0 0
      %3932 = vmatprep.subr.bf16.mxu0 0
      %3933 = vmatpush1.bf16.msra.mxu0 0
      %3934 = vmatprep.subr.bf16.mxu0 0
      %3935 = vmatpush1.bf16.msra.mxu0 0
      %3936 = vmatprep.subr.bf16.mxu0 0
      %3937 = vmatpush1.bf16.msra.mxu0 0
      %3938 = vmatprep.subr.bf16.mxu0 0
      %3939 = vmatpush1.bf16.msra.mxu0 0
      %3940 = vmatprep.subr.bf16.mxu0 0
      %3941 = vmatpush1.bf16.msra.mxu0 0
      %3942 = vmatprep.subr.bf16.mxu0 0
      %3943 = vmatpush1.bf16.msra.mxu0 0
      %3944 = vmatprep.subr.bf16.mxu0 0
      %3945 = vmatpush1.bf16.msra.mxu0 0
      %3946 = vmatprep.subr.bf16.mxu0 0
      %3947 = vmatpush1.bf16.msra.mxu0 0
      %3948 = vmatprep.subr.bf16.mxu0 0
      %3949 = vmatpush1.bf16.msra.mxu0 0
      %3950 = vmatprep.subr.bf16.mxu0 0
      %3951 = vmatpush1.bf16.msra.mxu0 0
      %3952 = vmatprep.subr.bf16.mxu0 0
      %3953 = vmatpush1.bf16.msra.mxu0 0
      %3954 = vmatprep.mubr.bf16.mxu0 0
      %3955 = vmatmul.mubr.bf16.gmra.mrb[0].mxu0 %v3864
      %v3956 = vpop.f32.mrb[0].mxu0
      %v3957 = vadd.f32 %v3904, %v3956
      %v3958 = vpop.f32.mrb[0].mxu0
      %v3959 = vadd.f32 %v3906, %v3958
      %v3960 = vpop.f32.mrb[0].mxu0
      %v3961 = vadd.f32 %v3908, %v3960
      %v3962 = vpop.f32.mrb[0].mxu0
      %v3963 = vadd.f32 %v3910, %v3962
      %3964 = vmatprep.mubr.bf16.mxu0 0
      %3965 = vmatmul.mubr.bf16.gmra.mrb[0].mxu0 %v3867
      %v3966 = vpop.f32.mrb[0].mxu0
      %v3967 = vadd.f32 %v3914, %v3966
      %v3968 = vpop.f32.mrb[0].mxu0
      %v3969 = vadd.f32 %v3916, %v3968
      %v3970 = vpop.f32.mrb[0].mxu0
      %v3971 = vadd.f32 %v3918, %v3970
      %v3972 = vpop.f32.mrb[0].mxu0
      %v3973 = vadd.f32 %v3920, %v3972
      %3974 = vdwg.mxu0
      %v3975 = vmax.f32 %v3957, 0.0
      %v3976 = vmax.f32 %v3959, 0.0
      %v3977 = vmax.f32 %v3961, 0.0
      %v3978 = vmax.f32 %v3963, 0.0
      %v3979 = vmax.f32 %v3967, 0.0
      %v3980 = vmax.f32 %v3969, 0.0
      %v3981 = vmax.f32 %v3971, 0.0
      %v3982 = vmax.f32 %v3973, 0.0
      %s3983 = scalar_lea.vmem %s5, 144
      %v3984 = vld [vmem:[%s3983] sm:$0xff]
      %v3985 = vld [vmem:[%s3983 + $0x8] sm:$0xf]
      %v3986 = vld [vmem:[%s3983 + $0xc] sm:$0xff]
      %v3987 = vld [vmem:[%s3983 + $0x14] sm:$0xf]
      %v3988 = vld [vmem:[%s3983 + $0x18] sm:$0xff]
      %v3989 = vld [vmem:[%s3983 + $0x20] sm:$0xf]
      %v3990 = vld [vmem:[%s3983 + $0x24] sm:$0xff]
      %v3991 = vld [vmem:[%s3983 + $0x2c] sm:$0xf]
      %s3992 = scalar_lea.vmem %s6, 96
      %v3993 = vld [vmem:[%s3992] sm:$0xff]
      %v3994 = vld [vmem:[%s3992 + $0x8] sm:$0xff]
      %v3995 = vld [vmem:[%s3992 + $0x10] sm:$0xff]
      %v3996 = vld [vmem:[%s3992 + $0x18] sm:$0xff]
      %3997 = vrot.lane.b32.xlu0 %v3975, 17
      %v3998 = vpop.permute.xlu0 %3997
      %3999 = vrot.lane.b32.xlu0 %v3977, 17
      %v4000 = vpop.permute.xlu0 %3999
      %4001 = vrot.lane.b32.xlu0 %v3979, 17
      %v4002 = vpop.permute.xlu0 %4001
      %4003 = vrot.lane.b32.xlu0 %v3981, 17
      %v4004 = vpop.permute.xlu0 %4003
      %4005 = vrot.lane.b32.xlu0 %v3976, 17
      %v4006 = vpop.permute.xlu0 %4005
      %4007 = vrot.lane.b32.xlu0 %v3978, 17
      %v4008 = vpop.permute.xlu0 %4007
      %4009 = vrot.lane.b32.xlu0 %v3980, 17
      %v4010 = vpop.permute.xlu0 %4009
      %4011 = vrot.lane.b32.xlu0 %v3982, 17
      %v4012 = vpop.permute.xlu0 %4011
      %v4013 = vsel %vm458, %v3998, %v4006
      %v4014 = vsel %vm458, %v4000, %v4008
      %v4015 = vsel %vm458, %v4002, %v4010
      %v4016 = vsel %vm458, %v4004, %v4012
      %v4017 = vsel %vm458, %v4006, %v3998
      %v4018 = vsel %vm458, %v4008, %v4000
      %v4019 = vsel %vm458, %v4010, %v4002
      %v4020 = vsel %vm458, %v4012, %v4004
      %v4021 = vsel %vm470, %v4017, 0.0
      %v4022 = vsel %vm471, %v4013, 0.0
      %v4023 = vsel %vm470, %v4018, 0.0
      %v4024 = vsel %vm471, %v4014, 0.0
      %v4025 = vsel %vm470, %v4019, 0.0
      %v4026 = vsel %vm471, %v4015, 0.0
      %v4027 = vsel %vm470, %v4020, 0.0
      %v4028 = vsel %vm471, %v4016, 0.0
      %4029 = vrot.lane.b32.xlu0 %v3975, 16
      %v4030 = vpop.permute.xlu0 %4029
      %4031 = vrot.lane.b32.xlu0 %v3977, 16
      %v4032 = vpop.permute.xlu0 %4031
      %4033 = vrot.lane.b32.xlu0 %v3979, 16
      %v4034 = vpop.permute.xlu0 %4033
      %4035 = vrot.lane.b32.xlu0 %v3981, 16
      %v4036 = vpop.permute.xlu0 %4035
      %4037 = vrot.lane.b32.xlu0 %v3976, 16
      %v4038 = vpop.permute.xlu0 %4037
      %4039 = vrot.lane.b32.xlu0 %v3978, 16
      %v4040 = vpop.permute.xlu0 %4039
      %4041 = vrot.lane.b32.xlu0 %v3980, 16
      %v4042 = vpop.permute.xlu0 %4041
      %4043 = vrot.lane.b32.xlu0 %v3982, 16
      %v4044 = vpop.permute.xlu0 %4043
      %v4045 = vsel %vm478, %v4030, %v4038
      %v4046 = vsel %vm478, %v4032, %v4040
      %v4047 = vsel %vm478, %v4034, %v4042
      %v4048 = vsel %vm478, %v4036, %v4044
      %v4049 = vsel %vm478, %v4038, %v4030
      %v4050 = vsel %vm478, %v4040, %v4032
      %v4051 = vsel %vm478, %v4042, %v4034
      %v4052 = vsel %vm478, %v4044, %v4036
      %v4053 = vsel %vm466, %v4049, 0.0
      %v4054 = vsel %vm467, %v4045, 0.0
      %v4055 = vsel %vm466, %v4050, 0.0
      %v4056 = vsel %vm467, %v4046, 0.0
      %v4057 = vsel %vm466, %v4051, 0.0
      %v4058 = vsel %vm467, %v4047, 0.0
      %v4059 = vsel %vm466, %v4052, 0.0
      %v4060 = vsel %vm467, %v4048, 0.0
      %4061 = vrot.lane.b32.xlu0 %v3975, 15
      %v4062 = vpop.permute.xlu0 %4061
      %4063 = vrot.lane.b32.xlu0 %v3977, 15
      %v4064 = vpop.permute.xlu0 %4063
      %4065 = vrot.lane.b32.xlu0 %v3979, 15
      %v4066 = vpop.permute.xlu0 %4065
      %4067 = vrot.lane.b32.xlu0 %v3981, 15
      %v4068 = vpop.permute.xlu0 %4067
      %4069 = vrot.lane.b32.xlu0 %v3976, 15
      %v4070 = vpop.permute.xlu0 %4069
      %4071 = vrot.lane.b32.xlu0 %v3978, 15
      %v4072 = vpop.permute.xlu0 %4071
      %4073 = vrot.lane.b32.xlu0 %v3980, 15
      %v4074 = vpop.permute.xlu0 %4073
      %4075 = vrot.lane.b32.xlu0 %v3982, 15
      %v4076 = vpop.permute.xlu0 %4075
      %v4077 = vsel %vm487, %v4062, %v4070
      %v4078 = vsel %vm487, %v4064, %v4072
      %v4079 = vsel %vm487, %v4066, %v4074
      %v4080 = vsel %vm487, %v4068, %v4076
      %v4081 = vsel %vm487, %v4070, %v4062
      %v4082 = vsel %vm487, %v4072, %v4064
      %v4083 = vsel %vm487, %v4074, %v4066
      %v4084 = vsel %vm487, %v4076, %v4068
      %v4085 = vsel %vm492, %v4081, 0.0
      %v4086 = vsel %vm493, %v4077, 0.0
      %v4087 = vsel %vm492, %v4082, 0.0
      %v4088 = vsel %vm493, %v4078, 0.0
      %v4089 = vsel %vm492, %v4083, 0.0
      %v4090 = vsel %vm493, %v4079, 0.0
      %v4091 = vsel %vm492, %v4084, 0.0
      %v4092 = vsel %vm493, %v4080, 0.0
      %4093 = vrot.lane.b32.xlu0 %v3975, 1
      %v4094 = vpop.permute.xlu0 %4093
      %4095 = vrot.lane.b32.xlu0 %v3977, 1
      %v4096 = vpop.permute.xlu0 %4095
      %4097 = vrot.lane.b32.xlu0 %v3979, 1
      %v4098 = vpop.permute.xlu0 %4097
      %4099 = vrot.lane.b32.xlu0 %v3981, 1
      %v4100 = vpop.permute.xlu0 %4099
      %4101 = vrot.lane.b32.xlu0 %v3976, 1
      %v4102 = vpop.permute.xlu0 %4101
      %4103 = vrot.lane.b32.xlu0 %v3978, 1
      %v4104 = vpop.permute.xlu0 %4103
      %4105 = vrot.lane.b32.xlu0 %v3980, 1
      %v4106 = vpop.permute.xlu0 %4105
      %4107 = vrot.lane.b32.xlu0 %v3982, 1
      %v4108 = vpop.permute.xlu0 %4107
      %v4109 = vsel %vm500, %v4094, %v4102
      %v4110 = vsel %vm500, %v4096, %v4104
      %v4111 = vsel %vm500, %v4098, %v4106
      %v4112 = vsel %vm500, %v4100, %v4108
      %v4113 = vsel %vm500, %v4102, %v4094
      %v4114 = vsel %vm500, %v4104, %v4096
      %v4115 = vsel %vm500, %v4106, %v4098
      %v4116 = vsel %vm500, %v4108, %v4100
      %v4117 = vsel %vm468, %v4113, 0.0
      %v4118 = vsel %vm469, %v4109, 0.0
      %v4119 = vsel %vm468, %v4114, 0.0
      %v4120 = vsel %vm469, %v4110, 0.0
      %v4121 = vsel %vm468, %v4115, 0.0
      %v4122 = vsel %vm469, %v4111, 0.0
      %v4123 = vsel %vm468, %v4116, 0.0
      %v4124 = vsel %vm469, %v4112, 0.0
      %4125 = vrot.lane.b32.xlu0 %v3975, 127
      %v4126 = vpop.permute.xlu0 %4125
      %4127 = vrot.lane.b32.xlu0 %v3977, 127
      %v4128 = vpop.permute.xlu0 %4127
      %4129 = vrot.lane.b32.xlu0 %v3979, 127
      %v4130 = vpop.permute.xlu0 %4129
      %4131 = vrot.lane.b32.xlu0 %v3981, 127
      %v4132 = vpop.permute.xlu0 %4131
      %4133 = vrot.lane.b32.xlu0 %v3976, 127
      %v4134 = vpop.permute.xlu0 %4133
      %4135 = vrot.lane.b32.xlu0 %v3978, 127
      %v4136 = vpop.permute.xlu0 %4135
      %4137 = vrot.lane.b32.xlu0 %v3980, 127
      %v4138 = vpop.permute.xlu0 %4137
      %4139 = vrot.lane.b32.xlu0 %v3982, 127
      %v4140 = vpop.permute.xlu0 %4139
      %v4141 = vsel %vm509, %v4126, %v4134
      %v4142 = vsel %vm509, %v4128, %v4136
      %v4143 = vsel %vm509, %v4130, %v4138
      %v4144 = vsel %vm509, %v4132, %v4140
      %v4145 = vsel %vm509, %v4134, %v4126
      %v4146 = vsel %vm509, %v4136, %v4128
      %v4147 = vsel %vm509, %v4138, %v4130
      %v4148 = vsel %vm509, %v4140, %v4132
      %v4149 = vsel %vm490, %v4141, 0.0
      %v4150 = vsel %vm491, %v4145, 0.0
      %v4151 = vsel %vm490, %v4142, 0.0
      %v4152 = vsel %vm491, %v4146, 0.0
      %v4153 = vsel %vm490, %v4143, 0.0
      %v4154 = vsel %vm491, %v4147, 0.0
      %v4155 = vsel %vm490, %v4144, 0.0
      %v4156 = vsel %vm491, %v4148, 0.0
      %4157 = vrot.lane.b32.xlu0 %v3975, 113
      %v4158 = vpop.permute.xlu0 %4157
      %4159 = vrot.lane.b32.xlu0 %v3977, 113
      %v4160 = vpop.permute.xlu0 %4159
      %4161 = vrot.lane.b32.xlu0 %v3979, 113
      %v4162 = vpop.permute.xlu0 %4161
      %4163 = vrot.lane.b32.xlu0 %v3981, 113
      %v4164 = vpop.permute.xlu0 %4163
      %4165 = vrot.lane.b32.xlu0 %v3976, 113
      %v4166 = vpop.permute.xlu0 %4165
      %4167 = vrot.lane.b32.xlu0 %v3978, 113
      %v4168 = vpop.permute.xlu0 %4167
      %4169 = vrot.lane.b32.xlu0 %v3980, 113
      %v4170 = vpop.permute.xlu0 %4169
      %4171 = vrot.lane.b32.xlu0 %v3982, 113
      %v4172 = vpop.permute.xlu0 %4171
      %v4173 = vsel %vm518, %v4158, %v4166
      %v4174 = vsel %vm518, %v4160, %v4168
      %v4175 = vsel %vm518, %v4162, %v4170
      %v4176 = vsel %vm518, %v4164, %v4172
      %v4177 = vsel %vm518, %v4166, %v4158
      %v4178 = vsel %vm518, %v4168, %v4160
      %v4179 = vsel %vm518, %v4170, %v4162
      %v4180 = vsel %vm518, %v4172, %v4164
      %v4181 = vsel %vm523, %v4173, 0.0
      %v4182 = vsel %vm524, %v4177, 0.0
      %v4183 = vsel %vm523, %v4174, 0.0
      %v4184 = vsel %vm524, %v4178, 0.0
      %v4185 = vsel %vm523, %v4175, 0.0
      %v4186 = vsel %vm524, %v4179, 0.0
      %v4187 = vsel %vm523, %v4176, 0.0
      %v4188 = vsel %vm524, %v4180, 0.0
      %4189 = vrot.lane.b32.xlu0 %v3975, 112
      %v4190 = vpop.permute.xlu0 %4189
      %4191 = vrot.lane.b32.xlu0 %v3977, 112
      %v4192 = vpop.permute.xlu0 %4191
      %4193 = vrot.lane.b32.xlu0 %v3979, 112
      %v4194 = vpop.permute.xlu0 %4193
      %4195 = vrot.lane.b32.xlu0 %v3981, 112
      %v4196 = vpop.permute.xlu0 %4195
      %4197 = vrot.lane.b32.xlu0 %v3976, 112
      %v4198 = vpop.permute.xlu0 %4197
      %4199 = vrot.lane.b32.xlu0 %v3978, 112
      %v4200 = vpop.permute.xlu0 %4199
      %4201 = vrot.lane.b32.xlu0 %v3980, 112
      %v4202 = vpop.permute.xlu0 %4201
      %4203 = vrot.lane.b32.xlu0 %v3982, 112
      %v4204 = vpop.permute.xlu0 %4203
      %v4205 = vsel %vm531, %v4190, %v4198
      %v4206 = vsel %vm531, %v4192, %v4200
      %v4207 = vsel %vm531, %v4194, %v4202
      %v4208 = vsel %vm531, %v4196, %v4204
      %v4209 = vsel %vm531, %v4198, %v4190
      %v4210 = vsel %vm531, %v4200, %v4192
      %v4211 = vsel %vm531, %v4202, %v4194
      %v4212 = vsel %vm531, %v4204, %v4196
      %v4213 = vsel %vm521, %v4205, 0.0
      %v4214 = vsel %vm522, %v4209, 0.0
      %v4215 = vsel %vm521, %v4206, 0.0
      %v4216 = vsel %vm522, %v4210, 0.0
      %v4217 = vsel %vm521, %v4207, 0.0
      %v4218 = vsel %vm522, %v4211, 0.0
      %v4219 = vsel %vm521, %v4208, 0.0
      %v4220 = vsel %vm522, %v4212, 0.0
      %4221 = vrot.lane.b32.xlu0 %v3975, 111
      %v4222 = vpop.permute.xlu0 %4221
      %4223 = vrot.lane.b32.xlu0 %v3977, 111
      %v4224 = vpop.permute.xlu0 %4223
      %4225 = vrot.lane.b32.xlu0 %v3979, 111
      %v4226 = vpop.permute.xlu0 %4225
      %4227 = vrot.lane.b32.xlu0 %v3981, 111
      %v4228 = vpop.permute.xlu0 %4227
      %4229 = vrot.lane.b32.xlu0 %v3976, 111
      %v4230 = vpop.permute.xlu0 %4229
      %4231 = vrot.lane.b32.xlu0 %v3978, 111
      %v4232 = vpop.permute.xlu0 %4231
      %4233 = vrot.lane.b32.xlu0 %v3980, 111
      %v4234 = vpop.permute.xlu0 %4233
      %4235 = vrot.lane.b32.xlu0 %v3982, 111
      %v4236 = vpop.permute.xlu0 %4235
      %v4237 = vsel %vm540, %v4222, %v4230
      %v4238 = vsel %vm540, %v4224, %v4232
      %v4239 = vsel %vm540, %v4226, %v4234
      %v4240 = vsel %vm540, %v4228, %v4236
      %v4241 = vsel %vm540, %v4230, %v4222
      %v4242 = vsel %vm540, %v4232, %v4224
      %v4243 = vsel %vm540, %v4234, %v4226
      %v4244 = vsel %vm540, %v4236, %v4228
      %v4245 = vsel %vm543, %v4237, 0.0
      %v4246 = vsel %vm544, %v4241, 0.0
      %v4247 = vsel %vm543, %v4238, 0.0
      %v4248 = vsel %vm544, %v4242, 0.0
      %v4249 = vsel %vm543, %v4239, 0.0
      %v4250 = vsel %vm544, %v4243, 0.0
      %v4251 = vsel %vm543, %v4240, 0.0
      %v4252 = vsel %vm544, %v4244, 0.0
      %v4253 = vpack.c.bf16 %v4023, %v4021
      %v4254 = vpack.c.bf16 %v4024, %v4022
      %v4255 = vpack.c.bf16 %v4027, %v4025
      %v4256 = vpack.c.bf16 %v4028, %v4026
      %v4257 = vpack.c.bf16 %v4055, %v4053
      %v4258 = vpack.c.bf16 %v4056, %v4054
      %v4259 = vpack.c.bf16 %v4059, %v4057
      %v4260 = vpack.c.bf16 %v4060, %v4058
      %v4261 = vpack.c.bf16 %v4087, %v4085
      %v4262 = vpack.c.bf16 %v4088, %v4086
      %v4263 = vpack.c.bf16 %v4091, %v4089
      %v4264 = vpack.c.bf16 %v4092, %v4090
      %v4265 = vpack.c.bf16 %v4119, %v4117
      %v4266 = vpack.c.bf16 %v4120, %v4118
      %v4267 = vpack.c.bf16 %v4123, %v4121
      %v4268 = vpack.c.bf16 %v4124, %v4122
      %v4269 = vpack.c.bf16 %v3977, %v3975
      %v4270 = vpack.c.bf16 %v3978, %v3976
      %v4271 = vpack.c.bf16 %v3981, %v3979
      %v4272 = vpack.c.bf16 %v3982, %v3980
      %v4273 = vpack.c.bf16 %v4151, %v4149
      %v4274 = vpack.c.bf16 %v4152, %v4150
      %v4275 = vpack.c.bf16 %v4155, %v4153
      %v4276 = vpack.c.bf16 %v4156, %v4154
      %v4277 = vpack.c.bf16 %v4183, %v4181
      %v4278 = vpack.c.bf16 %v4184, %v4182
      %v4279 = vpack.c.bf16 %v4187, %v4185
      %v4280 = vpack.c.bf16 %v4188, %v4186
      %v4281 = vpack.c.bf16 %v4215, %v4213
      %v4282 = vpack.c.bf16 %v4216, %v4214
      %v4283 = vpack.c.bf16 %v4219, %v4217
      %v4284 = vpack.c.bf16 %v4220, %v4218
      %v4285 = vpack.c.bf16 %v4247, %v4245
      %v4286 = vpack.c.bf16 %v4248, %v4246
      %v4287 = vpack.c.bf16 %v4251, %v4249
      %v4288 = vpack.c.bf16 %v4252, %v4250
      %4290 = vset.pattern.permute.xlu0 0
      %4291 = vperm.xlu0 %4290, %v3993
      %v4292 = vpop.permute.xlu0 %4291
      %4295 = vset.pattern.permute.xlu0 0
      %4296 = vperm.xlu0 %4295, %v3994
      %v4297 = vpop.permute.xlu0 %4296
      %4300 = vset.pattern.permute.xlu0 0
      %4301 = vperm.xlu0 %4300, %v3995
      %v4302 = vpop.permute.xlu0 %4301
      %4305 = vset.pattern.permute.xlu0 0
      %4306 = vperm.xlu0 %4305, %v3996
      %v4307 = vpop.permute.xlu0 %4306
      %v4317 = vunpack.c.l.b16 %v3984
      %v4318 = vunpack.c.h.b16 %v3984
      %v4319 = vunpack.c.l.b16 %v3985
      %v4320 = vunpack.c.l.b16 %v3986
      %v4321 = vunpack.c.h.b16 %v3986
      %v4322 = vunpack.c.l.b16 %v3987
      %v4323 = vunpack.c.l.b16 %v3988
      %v4324 = vunpack.c.h.b16 %v3988
      %v4325 = vunpack.c.l.b16 %v3989
      %v4326 = vunpack.c.l.b16 %v3990
      %v4327 = vunpack.c.h.b16 %v3990
      %v4328 = vunpack.c.l.b16 %v3991
      %v4329 = vpack.c.b16 %v4320, %v4317
      %v4330 = vpack.c.b16 %v4321, %v4318
      %v4331 = vpack.c.b16 %v4322, %v4319
      %v4332 = vpack.c.b16 %v4326, %v4323
      %v4333 = vpack.c.b16 %v4327, %v4324
      %v4334 = vpack.c.b16 %v4328, %v4325
      %v4340 = vsel %vm1008, %v4331, 0
      %v4343 = vsel %vm1008, %v4334, 0
      %4345 = vmatprep.subr.bf16.mxu0 %v4254
      %4346 = vmatpush1.bf16.msra.mxu0 %v4253
      %4347 = vmatprep.subr.bf16.mxu0 %v4256
      %4348 = vmatpush1.bf16.msra.mxu0 %v4255
      %4349 = vmatprep.subr.bf16.mxu0 %v4258
      %4350 = vmatpush1.bf16.msra.mxu0 %v4257
      %4351 = vmatprep.subr.bf16.mxu0 %v4260
      %4352 = vmatpush1.bf16.msra.mxu0 %v4259
      %4353 = vmatprep.subr.bf16.mxu0 %v4262
      %4354 = vmatpush1.bf16.msra.mxu0 %v4261
      %4355 = vmatprep.subr.bf16.mxu0 %v4264
      %4356 = vmatpush1.bf16.msra.mxu0 %v4263
      %4357 = vmatprep.subr.bf16.mxu0 %v4266
      %4358 = vmatpush1.bf16.msra.mxu0 %v4265
      %4359 = vmatprep.subr.bf16.mxu0 %v4268
      %4360 = vmatpush1.bf16.msra.mxu0 %v4267
      %4361 = vmatprep.subr.bf16.mxu0 %v4270
      %4362 = vmatpush1.bf16.msra.mxu0 %v4269
      %4363 = vmatprep.subr.bf16.mxu0 %v4272
      %4364 = vmatpush1.bf16.msra.mxu0 %v4271
      %4365 = vmatprep.subr.bf16.mxu0 %v4274
      %4366 = vmatpush1.bf16.msra.mxu0 %v4273
      %4367 = vmatprep.subr.bf16.mxu0 %v4276
      %4368 = vmatpush1.bf16.msra.mxu0 %v4275
      %4369 = vmatprep.subr.bf16.mxu0 %v4278
      %4370 = vmatpush1.bf16.msra.mxu0 %v4277
      %4371 = vmatprep.subr.bf16.mxu0 %v4280
      %4372 = vmatpush1.bf16.msra.mxu0 %v4279
      %4373 = vmatprep.subr.bf16.mxu0 %v4282
      %4374 = vmatpush1.bf16.msra.mxu0 %v4281
      %4375 = vmatprep.subr.bf16.mxu0 %v4284
      %4376 = vmatpush1.bf16.msra.mxu0 %v4283
      %4377 = vmatprep.mubr.bf16.mxu0 %v4330
      %4378 = vmatmul.mubr.bf16.gmra.mrb[0].mxu0 %v4329
      %v4379 = vpop.f32.mrb[0].mxu0
      %v4380 = vadd.f32 %v4292, %v4379
      %v4381 = vpop.f32.mrb[0].mxu0
      %v4382 = vadd.f32 %v4292, %v4381
      %v4383 = vpop.f32.mrb[0].mxu0
      %v4384 = vadd.f32 %v4297, %v4383
      %v4385 = vpop.f32.mrb[0].mxu0
      %v4386 = vadd.f32 %v4297, %v4385
      %4387 = vmatprep.mubr.bf16.mxu0 %v4333
      %4388 = vmatmul.mubr.bf16.gmra.mrb[0].mxu0 %v4332
      %v4389 = vpop.f32.mrb[0].mxu0
      %v4390 = vadd.f32 %v4302, %v4389
      %v4391 = vpop.f32.mrb[0].mxu0
      %v4392 = vadd.f32 %v4302, %v4391
      %v4393 = vpop.f32.mrb[0].mxu0
      %v4394 = vadd.f32 %v4307, %v4393
      %v4395 = vpop.f32.mrb[0].mxu0
      %v4396 = vadd.f32 %v4307, %v4395
      %4397 = vdwg.mxu0
      %4398 = vmatprep.subr.bf16.mxu0 %v4286
      %4399 = vmatpush1.bf16.msra.mxu0 %v4285
      %4400 = vmatprep.subr.bf16.mxu0 %v4288
      %4401 = vmatpush1.bf16.msra.mxu0 %v4287
      %4402 = vmatprep.subr.bf16.mxu0 0
      %4403 = vmatpush1.bf16.msra.mxu0 0
      %4404 = vmatprep.subr.bf16.mxu0 0
      %4405 = vmatpush1.bf16.msra.mxu0 0
      %4406 = vmatprep.subr.bf16.mxu0 0
      %4407 = vmatpush1.bf16.msra.mxu0 0
      %4408 = vmatprep.subr.bf16.mxu0 0
      %4409 = vmatpush1.bf16.msra.mxu0 0
      %4410 = vmatprep.subr.bf16.mxu0 0
      %4411 = vmatpush1.bf16.msra.mxu0 0
      %4412 = vmatprep.subr.bf16.mxu0 0
      %4413 = vmatpush1.bf16.msra.mxu0 0
      %4414 = vmatprep.subr.bf16.mxu0 0
      %4415 = vmatpush1.bf16.msra.mxu0 0
      %4416 = vmatprep.subr.bf16.mxu0 0
      %4417 = vmatpush1.bf16.msra.mxu0 0
      %4418 = vmatprep.subr.bf16.mxu0 0
      %4419 = vmatpush1.bf16.msra.mxu0 0
      %4420 = vmatprep.subr.bf16.mxu0 0
      %4421 = vmatpush1.bf16.msra.mxu0 0
      %4422 = vmatprep.subr.bf16.mxu0 0
      %4423 = vmatpush1.bf16.msra.mxu0 0
      %4424 = vmatprep.subr.bf16.mxu0 0
      %4425 = vmatpush1.bf16.msra.mxu0 0
      %4426 = vmatprep.subr.bf16.mxu0 0
      %4427 = vmatpush1.bf16.msra.mxu0 0
      %4428 = vmatprep.subr.bf16.mxu0 0
      %4429 = vmatpush1.bf16.msra.mxu0 0
      %4430 = vmatprep.mubr.bf16.mxu0 0
      %4431 = vmatmul.mubr.bf16.gmra.mrb[0].mxu0 %v4340
      %v4432 = vpop.f32.mrb[0].mxu0
      %v4433 = vadd.f32 %v4380, %v4432
      %v4434 = vpop.f32.mrb[0].mxu0
      %v4435 = vadd.f32 %v4382, %v4434
      %v4436 = vpop.f32.mrb[0].mxu0
      %v4437 = vadd.f32 %v4384, %v4436
      %v4438 = vpop.f32.mrb[0].mxu0
      %v4439 = vadd.f32 %v4386, %v4438
      %4440 = vmatprep.mubr.bf16.mxu0 0
      %4441 = vmatmul.mubr.bf16.gmra.mrb[0].mxu0 %v4343
      %v4442 = vpop.f32.mrb[0].mxu0
      %v4443 = vadd.f32 %v4390, %v4442
      %v4444 = vpop.f32.mrb[0].mxu0
      %v4445 = vadd.f32 %v4392, %v4444
      %v4446 = vpop.f32.mrb[0].mxu0
      %v4447 = vadd.f32 %v4394, %v4446
      %v4448 = vpop.f32.mrb[0].mxu0
      %v4449 = vadd.f32 %v4396, %v4448
      %4450 = vdwg.mxu0
      %v4451 = vadd.f32 %v4433, %v3499
      %v4452 = vadd.f32 %v4435, %v3500
      %v4453 = vadd.f32 %v4437, %v3501
      %v4454 = vadd.f32 %v4439, %v3502
      %v4455 = vadd.f32 %v4443, %v3503
      %v4456 = vadd.f32 %v4445, %v3504
      %v4457 = vadd.f32 %v4447, %v3505
      %v4458 = vadd.f32 %v4449, %v3506
      %v4459 = vld [vmem:[%s7] sm:$0xff]
      %v4460 = vld [vmem:[%s7 + $0x8] sm:$0xf]
      %v4461 = vld [vmem:[%s7 + $0xc] sm:$0xff]
      %v4462 = vld [vmem:[%s7 + $0x14] sm:$0xf]
      %v4463 = vld [vmem:[%s7 + $0x18] sm:$0xff]
      %v4464 = vld [vmem:[%s7 + $0x20] sm:$0xf]
      %v4465 = vld [vmem:[%s7 + $0x24] sm:$0xff]
      %v4466 = vld [vmem:[%s7 + $0x2c] sm:$0xf]
      %v4467 = vld [vmem:[%s8] sm:$0xff]
      %v4468 = vld [vmem:[%s8 + $0x8] sm:$0xff]
      %v4469 = vld [vmem:[%s8 + $0x10] sm:$0xff]
      %v4470 = vld [vmem:[%s8 + $0x18] sm:$0xff]
      %4471 = vrot.lane.b32.xlu0 %v4451, 17
      %v4472 = vpop.permute.xlu0 %4471
      %4473 = vrot.lane.b32.xlu0 %v4453, 17
      %v4474 = vpop.permute.xlu0 %4473
      %4475 = vrot.lane.b32.xlu0 %v4455, 17
      %v4476 = vpop.permute.xlu0 %4475
      %4477 = vrot.lane.b32.xlu0 %v4457, 17
      %v4478 = vpop.permute.xlu0 %4477
      %4479 = vrot.lane.b32.xlu0 %v4452, 17
      %v4480 = vpop.permute.xlu0 %4479
      %4481 = vrot.lane.b32.xlu0 %v4454, 17
      %v4482 = vpop.permute.xlu0 %4481
      %4483 = vrot.lane.b32.xlu0 %v4456, 17
      %v4484 = vpop.permute.xlu0 %4483
      %4485 = vrot.lane.b32.xlu0 %v4458, 17
      %v4486 = vpop.permute.xlu0 %4485
      %v4487 = vsel %vm458, %v4472, %v4480
      %v4488 = vsel %vm458, %v4474, %v4482
      %v4489 = vsel %vm458, %v4476, %v4484
      %v4490 = vsel %vm458, %v4478, %v4486
      %v4491 = vsel %vm458, %v4480, %v4472
      %v4492 = vsel %vm458, %v4482, %v4474
      %v4493 = vsel %vm458, %v4484, %v4476
      %v4494 = vsel %vm458, %v4486, %v4478
      %v4495 = vsel %vm470, %v4491, 0.0
      %v4496 = vsel %vm471, %v4487, 0.0
      %v4497 = vsel %vm470, %v4492, 0.0
      %v4498 = vsel %vm471, %v4488, 0.0
      %v4499 = vsel %vm470, %v4493, 0.0
      %v4500 = vsel %vm471, %v4489, 0.0
      %v4501 = vsel %vm470, %v4494, 0.0
      %v4502 = vsel %vm471, %v4490, 0.0
      %4503 = vrot.lane.b32.xlu0 %v4451, 16
      %v4504 = vpop.permute.xlu0 %4503
      %4505 = vrot.lane.b32.xlu0 %v4453, 16
      %v4506 = vpop.permute.xlu0 %4505
      %4507 = vrot.lane.b32.xlu0 %v4455, 16
      %v4508 = vpop.permute.xlu0 %4507
      %4509 = vrot.lane.b32.xlu0 %v4457, 16
      %v4510 = vpop.permute.xlu0 %4509
      %4511 = vrot.lane.b32.xlu0 %v4452, 16
      %v4512 = vpop.permute.xlu0 %4511
      %4513 = vrot.lane.b32.xlu0 %v4454, 16
      %v4514 = vpop.permute.xlu0 %4513
      %4515 = vrot.lane.b32.xlu0 %v4456, 16
      %v4516 = vpop.permute.xlu0 %4515
      %4517 = vrot.lane.b32.xlu0 %v4458, 16
      %v4518 = vpop.permute.xlu0 %4517
      %v4519 = vsel %vm478, %v4504, %v4512
      %v4520 = vsel %vm478, %v4506, %v4514
      %v4521 = vsel %vm478, %v4508, %v4516
      %v4522 = vsel %vm478, %v4510, %v4518
      %v4523 = vsel %vm478, %v4512, %v4504
      %v4524 = vsel %vm478, %v4514, %v4506
      %v4525 = vsel %vm478, %v4516, %v4508
      %v4526 = vsel %vm478, %v4518, %v4510
      %v4527 = vsel %vm466, %v4523, 0.0
      %v4528 = vsel %vm467, %v4519, 0.0
      %v4529 = vsel %vm466, %v4524, 0.0
      %v4530 = vsel %vm467, %v4520, 0.0
      %v4531 = vsel %vm466, %v4525, 0.0
      %v4532 = vsel %vm467, %v4521, 0.0
      %v4533 = vsel %vm466, %v4526, 0.0
      %v4534 = vsel %vm467, %v4522, 0.0
      %4535 = vrot.lane.b32.xlu0 %v4451, 15
      %v4536 = vpop.permute.xlu0 %4535
      %4537 = vrot.lane.b32.xlu0 %v4453, 15
      %v4538 = vpop.permute.xlu0 %4537
      %4539 = vrot.lane.b32.xlu0 %v4455, 15
      %v4540 = vpop.permute.xlu0 %4539
      %4541 = vrot.lane.b32.xlu0 %v4457, 15
      %v4542 = vpop.permute.xlu0 %4541
      %4543 = vrot.lane.b32.xlu0 %v4452, 15
      %v4544 = vpop.permute.xlu0 %4543
      %4545 = vrot.lane.b32.xlu0 %v4454, 15
      %v4546 = vpop.permute.xlu0 %4545
      %4547 = vrot.lane.b32.xlu0 %v4456, 15
      %v4548 = vpop.permute.xlu0 %4547
      %4549 = vrot.lane.b32.xlu0 %v4458, 15
      %v4550 = vpop.permute.xlu0 %4549
      %v4551 = vsel %vm487, %v4536, %v4544
      %v4552 = vsel %vm487, %v4538, %v4546
      %v4553 = vsel %vm487, %v4540, %v4548
      %v4554 = vsel %vm487, %v4542, %v4550
      %v4555 = vsel %vm487, %v4544, %v4536
      %v4556 = vsel %vm487, %v4546, %v4538
      %v4557 = vsel %vm487, %v4548, %v4540
      %v4558 = vsel %vm487, %v4550, %v4542
      %v4559 = vsel %vm492, %v4555, 0.0
      %v4560 = vsel %vm493, %v4551, 0.0
      %v4561 = vsel %vm492, %v4556, 0.0
      %v4562 = vsel %vm493, %v4552, 0.0
      %v4563 = vsel %vm492, %v4557, 0.0
      %v4564 = vsel %vm493, %v4553, 0.0
      %v4565 = vsel %vm492, %v4558, 0.0
      %v4566 = vsel %vm493, %v4554, 0.0
      %4567 = vrot.lane.b32.xlu0 %v4451, 1
      %v4568 = vpop.permute.xlu0 %4567
      %4569 = vrot.lane.b32.xlu0 %v4453, 1
      %v4570 = vpop.permute.xlu0 %4569
      %4571 = vrot.lane.b32.xlu0 %v4455, 1
      %v4572 = vpop.permute.xlu0 %4571
      %4573 = vrot.lane.b32.xlu0 %v4457, 1
      %v4574 = vpop.permute.xlu0 %4573
      %4575 = vrot.lane.b32.xlu0 %v4452, 1
      %v4576 = vpop.permute.xlu0 %4575
      %4577 = vrot.lane.b32.xlu0 %v4454, 1
      %v4578 = vpop.permute.xlu0 %4577
      %4579 = vrot.lane.b32.xlu0 %v4456, 1
      %v4580 = vpop.permute.xlu0 %4579
      %4581 = vrot.lane.b32.xlu0 %v4458, 1
      %v4582 = vpop.permute.xlu0 %4581
      %v4583 = vsel %vm500, %v4568, %v4576
      %v4584 = vsel %vm500, %v4570, %v4578
      %v4585 = vsel %vm500, %v4572, %v4580
      %v4586 = vsel %vm500, %v4574, %v4582
      %v4587 = vsel %vm500, %v4576, %v4568
      %v4588 = vsel %vm500, %v4578, %v4570
      %v4589 = vsel %vm500, %v4580, %v4572
      %v4590 = vsel %vm500, %v4582, %v4574
      %v4591 = vsel %vm468, %v4587, 0.0
      %v4592 = vsel %vm469, %v4583, 0.0
      %v4593 = vsel %vm468, %v4588, 0.0
      %v4594 = vsel %vm469, %v4584, 0.0
      %v4595 = vsel %vm468, %v4589, 0.0
      %v4596 = vsel %vm469, %v4585, 0.0
      %v4597 = vsel %vm468, %v4590, 0.0
      %v4598 = vsel %vm469, %v4586, 0.0
      %4599 = vrot.lane.b32.xlu0 %v4451, 127
      %v4600 = vpop.permute.xlu0 %4599
      %4601 = vrot.lane.b32.xlu0 %v4453, 127
      %v4602 = vpop.permute.xlu0 %4601
      %4603 = vrot.lane.b32.xlu0 %v4455, 127
      %v4604 = vpop.permute.xlu0 %4603
      %4605 = vrot.lane.b32.xlu0 %v4457, 127
      %v4606 = vpop.permute.xlu0 %4605
      %4607 = vrot.lane.b32.xlu0 %v4452, 127
      %v4608 = vpop.permute.xlu0 %4607
      %4609 = vrot.lane.b32.xlu0 %v4454, 127
      %v4610 = vpop.permute.xlu0 %4609
      %4611 = vrot.lane.b32.xlu0 %v4456, 127
      %v4612 = vpop.permute.xlu0 %4611
      %4613 = vrot.lane.b32.xlu0 %v4458, 127
      %v4614 = vpop.permute.xlu0 %4613
      %v4615 = vsel %vm509, %v4600, %v4608
      %v4616 = vsel %vm509, %v4602, %v4610
      %v4617 = vsel %vm509, %v4604, %v4612
      %v4618 = vsel %vm509, %v4606, %v4614
      %v4619 = vsel %vm509, %v4608, %v4600
      %v4620 = vsel %vm509, %v4610, %v4602
      %v4621 = vsel %vm509, %v4612, %v4604
      %v4622 = vsel %vm509, %v4614, %v4606
      %v4623 = vsel %vm490, %v4615, 0.0
      %v4624 = vsel %vm491, %v4619, 0.0
      %v4625 = vsel %vm490, %v4616, 0.0
      %v4626 = vsel %vm491, %v4620, 0.0
      %v4627 = vsel %vm490, %v4617, 0.0
      %v4628 = vsel %vm491, %v4621, 0.0
      %v4629 = vsel %vm490, %v4618, 0.0
      %v4630 = vsel %vm491, %v4622, 0.0
      %4631 = vrot.lane.b32.xlu0 %v4451, 113
      %v4632 = vpop.permute.xlu0 %4631
      %4633 = vrot.lane.b32.xlu0 %v4453, 113
      %v4634 = vpop.permute.xlu0 %4633
      %4635 = vrot.lane.b32.xlu0 %v4455, 113
      %v4636 = vpop.permute.xlu0 %4635
      %4637 = vrot.lane.b32.xlu0 %v4457, 113
      %v4638 = vpop.permute.xlu0 %4637
      %4639 = vrot.lane.b32.xlu0 %v4452, 113
      %v4640 = vpop.permute.xlu0 %4639
      %4641 = vrot.lane.b32.xlu0 %v4454, 113
      %v4642 = vpop.permute.xlu0 %4641
      %4643 = vrot.lane.b32.xlu0 %v4456, 113
      %v4644 = vpop.permute.xlu0 %4643
      %4645 = vrot.lane.b32.xlu0 %v4458, 113
      %v4646 = vpop.permute.xlu0 %4645
      %v4647 = vsel %vm518, %v4632, %v4640
      %v4648 = vsel %vm518, %v4634, %v4642
      %v4649 = vsel %vm518, %v4636, %v4644
      %v4650 = vsel %vm518, %v4638, %v4646
      %v4651 = vsel %vm518, %v4640, %v4632
      %v4652 = vsel %vm518, %v4642, %v4634
      %v4653 = vsel %vm518, %v4644, %v4636
      %v4654 = vsel %vm518, %v4646, %v4638
      %v4655 = vsel %vm523, %v4647, 0.0
      %v4656 = vsel %vm524, %v4651, 0.0
      %v4657 = vsel %vm523, %v4648, 0.0
      %v4658 = vsel %vm524, %v4652, 0.0
      %v4659 = vsel %vm523, %v4649, 0.0
      %v4660 = vsel %vm524, %v4653, 0.0
      %v4661 = vsel %vm523, %v4650, 0.0
      %v4662 = vsel %vm524, %v4654, 0.0
      %4663 = vrot.lane.b32.xlu0 %v4451, 112
      %v4664 = vpop.permute.xlu0 %4663
      %4665 = vrot.lane.b32.xlu0 %v4453, 112
      %v4666 = vpop.permute.xlu0 %4665
      %4667 = vrot.lane.b32.xlu0 %v4455, 112
      %v4668 = vpop.permute.xlu0 %4667
      %4669 = vrot.lane.b32.xlu0 %v4457, 112
      %v4670 = vpop.permute.xlu0 %4669
      %4671 = vrot.lane.b32.xlu0 %v4452, 112
      %v4672 = vpop.permute.xlu0 %4671
      %4673 = vrot.lane.b32.xlu0 %v4454, 112
      %v4674 = vpop.permute.xlu0 %4673
      %4675 = vrot.lane.b32.xlu0 %v4456, 112
      %v4676 = vpop.permute.xlu0 %4675
      %4677 = vrot.lane.b32.xlu0 %v4458, 112
      %v4678 = vpop.permute.xlu0 %4677
      %v4679 = vsel %vm531, %v4664, %v4672
      %v4680 = vsel %vm531, %v4666, %v4674
      %v4681 = vsel %vm531, %v4668, %v4676
      %v4682 = vsel %vm531, %v4670, %v4678
      %v4683 = vsel %vm531, %v4672, %v4664
      %v4684 = vsel %vm531, %v4674, %v4666
      %v4685 = vsel %vm531, %v4676, %v4668
      %v4686 = vsel %vm531, %v4678, %v4670
      %v4687 = vsel %vm521, %v4679, 0.0
      %v4688 = vsel %vm522, %v4683, 0.0
      %v4689 = vsel %vm521, %v4680, 0.0
      %v4690 = vsel %vm522, %v4684, 0.0
      %v4691 = vsel %vm521, %v4681, 0.0
      %v4692 = vsel %vm522, %v4685, 0.0
      %v4693 = vsel %vm521, %v4682, 0.0
      %v4694 = vsel %vm522, %v4686, 0.0
      %4695 = vrot.lane.b32.xlu0 %v4451, 111
      %v4696 = vpop.permute.xlu0 %4695
      %4697 = vrot.lane.b32.xlu0 %v4453, 111
      %v4698 = vpop.permute.xlu0 %4697
      %4699 = vrot.lane.b32.xlu0 %v4455, 111
      %v4700 = vpop.permute.xlu0 %4699
      %4701 = vrot.lane.b32.xlu0 %v4457, 111
      %v4702 = vpop.permute.xlu0 %4701
      %4703 = vrot.lane.b32.xlu0 %v4452, 111
      %v4704 = vpop.permute.xlu0 %4703
      %4705 = vrot.lane.b32.xlu0 %v4454, 111
      %v4706 = vpop.permute.xlu0 %4705
      %4707 = vrot.lane.b32.xlu0 %v4456, 111
      %v4708 = vpop.permute.xlu0 %4707
      %4709 = vrot.lane.b32.xlu0 %v4458, 111
      %v4710 = vpop.permute.xlu0 %4709
      %v4711 = vsel %vm540, %v4696, %v4704
      %v4712 = vsel %vm540, %v4698, %v4706
      %v4713 = vsel %vm540, %v4700, %v4708
      %v4714 = vsel %vm540, %v4702, %v4710
      %v4715 = vsel %vm540, %v4704, %v4696
      %v4716 = vsel %vm540, %v4706, %v4698
      %v4717 = vsel %vm540, %v4708, %v4700
      %v4718 = vsel %vm540, %v4710, %v4702
      %v4719 = vsel %vm543, %v4711, 0.0
      %v4720 = vsel %vm544, %v4715, 0.0
      %v4721 = vsel %vm543, %v4712, 0.0
      %v4722 = vsel %vm544, %v4716, 0.0
      %v4723 = vsel %vm543, %v4713, 0.0
      %v4724 = vsel %vm544, %v4717, 0.0
      %v4725 = vsel %vm543, %v4714, 0.0
      %v4726 = vsel %vm544, %v4718, 0.0
      %v4727 = vpack.c.bf16 %v4497, %v4495
      %v4728 = vpack.c.bf16 %v4498, %v4496
      %v4729 = vpack.c.bf16 %v4501, %v4499
      %v4730 = vpack.c.bf16 %v4502, %v4500
      %v4731 = vpack.c.bf16 %v4529, %v4527
      %v4732 = vpack.c.bf16 %v4530, %v4528
      %v4733 = vpack.c.bf16 %v4533, %v4531
      %v4734 = vpack.c.bf16 %v4534, %v4532
      %v4735 = vpack.c.bf16 %v4561, %v4559
      %v4736 = vpack.c.bf16 %v4562, %v4560
      %v4737 = vpack.c.bf16 %v4565, %v4563
      %v4738 = vpack.c.bf16 %v4566, %v4564
      %v4739 = vpack.c.bf16 %v4593, %v4591
      %v4740 = vpack.c.bf16 %v4594, %v4592
      %v4741 = vpack.c.bf16 %v4597, %v4595
      %v4742 = vpack.c.bf16 %v4598, %v4596
      %v4743 = vpack.c.bf16 %v4453, %v4451
      %v4744 = vpack.c.bf16 %v4454, %v4452
      %v4745 = vpack.c.bf16 %v4457, %v4455
      %v4746 = vpack.c.bf16 %v4458, %v4456
      %v4747 = vpack.c.bf16 %v4625, %v4623
      %v4748 = vpack.c.bf16 %v4626, %v4624
      %v4749 = vpack.c.bf16 %v4629, %v4627
      %v4750 = vpack.c.bf16 %v4630, %v4628
      %v4751 = vpack.c.bf16 %v4657, %v4655
      %v4752 = vpack.c.bf16 %v4658, %v4656
      %v4753 = vpack.c.bf16 %v4661, %v4659
      %v4754 = vpack.c.bf16 %v4662, %v4660
      %v4755 = vpack.c.bf16 %v4689, %v4687
      %v4756 = vpack.c.bf16 %v4690, %v4688
      %v4757 = vpack.c.bf16 %v4693, %v4691
      %v4758 = vpack.c.bf16 %v4694, %v4692
      %v4759 = vpack.c.bf16 %v4721, %v4719
      %v4760 = vpack.c.bf16 %v4722, %v4720
      %v4761 = vpack.c.bf16 %v4725, %v4723
      %v4762 = vpack.c.bf16 %v4726, %v4724
      %4764 = vset.pattern.permute.xlu0 0
      %4765 = vperm.xlu0 %4764, %v4467
      %v4766 = vpop.permute.xlu0 %4765
      %4769 = vset.pattern.permute.xlu0 0
      %4770 = vperm.xlu0 %4769, %v4468
      %v4771 = vpop.permute.xlu0 %4770
      %4774 = vset.pattern.permute.xlu0 0
      %4775 = vperm.xlu0 %4774, %v4469
      %v4776 = vpop.permute.xlu0 %4775
      %4779 = vset.pattern.permute.xlu0 0
      %4780 = vperm.xlu0 %4779, %v4470
      %v4781 = vpop.permute.xlu0 %4780
      %v4791 = vunpack.c.l.b16 %v4459
      %v4792 = vunpack.c.h.b16 %v4459
      %v4793 = vunpack.c.l.b16 %v4460
      %v4794 = vunpack.c.l.b16 %v4461
      %v4795 = vunpack.c.h.b16 %v4461
      %v4796 = vunpack.c.l.b16 %v4462
      %v4797 = vunpack.c.l.b16 %v4463
      %v4798 = vunpack.c.h.b16 %v4463
      %v4799 = vunpack.c.l.b16 %v4464
      %v4800 = vunpack.c.l.b16 %v4465
      %v4801 = vunpack.c.h.b16 %v4465
      %v4802 = vunpack.c.l.b16 %v4466
      %v4803 = vpack.c.b16 %v4794, %v4791
      %v4804 = vpack.c.b16 %v4795, %v4792
      %v4805 = vpack.c.b16 %v4796, %v4793
      %v4806 = vpack.c.b16 %v4800, %v4797
      %v4807 = vpack.c.b16 %v4801, %v4798
      %v4808 = vpack.c.b16 %v4802, %v4799
      %v4814 = vsel %vm1008, %v4805, 0
      %v4817 = vsel %vm1008, %v4808, 0
      %4819 = vmatprep.subr.bf16.mxu0 %v4728
      %4820 = vmatpush1.bf16.msra.mxu0 %v4727
      %4821 = vmatprep.subr.bf16.mxu0 %v4730
      %4822 = vmatpush1.bf16.msra.mxu0 %v4729
      %4823 = vmatprep.subr.bf16.mxu0 %v4732
      %4824 = vmatpush1.bf16.msra.mxu0 %v4731
      %4825 = vmatprep.subr.bf16.mxu0 %v4734
      %4826 = vmatpush1.bf16.msra.mxu0 %v4733
      %4827 = vmatprep.subr.bf16.mxu0 %v4736
      %4828 = vmatpush1.bf16.msra.mxu0 %v4735
      %4829 = vmatprep.subr.bf16.mxu0 %v4738
      %4830 = vmatpush1.bf16.msra.mxu0 %v4737
      %4831 = vmatprep.subr.bf16.mxu0 %v4740
      %4832 = vmatpush1.bf16.msra.mxu0 %v4739
      %4833 = vmatprep.subr.bf16.mxu0 %v4742
      %4834 = vmatpush1.bf16.msra.mxu0 %v4741
      %4835 = vmatprep.subr.bf16.mxu0 %v4744
      %4836 = vmatpush1.bf16.msra.mxu0 %v4743
      %4837 = vmatprep.subr.bf16.mxu0 %v4746
      %4838 = vmatpush1.bf16.msra.mxu0 %v4745
      %4839 = vmatprep.subr.bf16.mxu0 %v4748
      %4840 = vmatpush1.bf16.msra.mxu0 %v4747
      %4841 = vmatprep.subr.bf16.mxu0 %v4750
      %4842 = vmatpush1.bf16.msra.mxu0 %v4749
      %4843 = vmatprep.subr.bf16.mxu0 %v4752
      %4844 = vmatpush1.bf16.msra.mxu0 %v4751
      %4845 = vmatprep.subr.bf16.mxu0 %v4754
      %4846 = vmatpush1.bf16.msra.mxu0 %v4753
      %4847 = vmatprep.subr.bf16.mxu0 %v4756
      %4848 = vmatpush1.bf16.msra.mxu0 %v4755
      %4849 = vmatprep.subr.bf16.mxu0 %v4758
      %4850 = vmatpush1.bf16.msra.mxu0 %v4757
      %4851 = vmatprep.mubr.bf16.mxu0 %v4804
      %4852 = vmatmul.mubr.bf16.gmra.mrb[0].mxu0 %v4803
      %v4853 = vpop.f32.mrb[0].mxu0
      %v4854 = vadd.f32 %v4766, %v4853
      %v4855 = vpop.f32.mrb[0].mxu0
      %v4856 = vadd.f32 %v4766, %v4855
      %v4857 = vpop.f32.mrb[0].mxu0
      %v4858 = vadd.f32 %v4771, %v4857
      %v4859 = vpop.f32.mrb[0].mxu0
      %v4860 = vadd.f32 %v4771, %v4859
      %4861 = vmatprep.mubr.bf16.mxu0 %v4807
      %4862 = vmatmul.mubr.bf16.gmra.mrb[0].mxu0 %v4806
      %v4863 = vpop.f32.mrb[0].mxu0
      %v4864 = vadd.f32 %v4776, %v4863
      %v4865 = vpop.f32.mrb[0].mxu0
      %v4866 = vadd.f32 %v4776, %v4865
      %v4867 = vpop.f32.mrb[0].mxu0
      %v4868 = vadd.f32 %v4781, %v4867
      %v4869 = vpop.f32.mrb[0].mxu0
      %v4870 = vadd.f32 %v4781, %v4869
      %4871 = vdwg.mxu0
      %4872 = vmatprep.subr.bf16.mxu0 %v4760
      %4873 = vmatpush1.bf16.msra.mxu0 %v4759
      %4874 = vmatprep.subr.bf16.mxu0 %v4762
      %4875 = vmatpush1.bf16.msra.mxu0 %v4761
      %4876 = vmatprep.subr.bf16.mxu0 0
      %4877 = vmatpush1.bf16.msra.mxu0 0
      %4878 = vmatprep.subr.bf16.mxu0 0
      %4879 = vmatpush1.bf16.msra.mxu0 0
      %4880 = vmatprep.subr.bf16.mxu0 0
      %4881 = vmatpush1.bf16.msra.mxu0 0
      %4882 = vmatprep.subr.bf16.mxu0 0
      %4883 = vmatpush1.bf16.msra.mxu0 0
      %4884 = vmatprep.subr.bf16.mxu0 0
      %4885 = vmatpush1.bf16.msra.mxu0 0
      %4886 = vmatprep.subr.bf16.mxu0 0
      %4887 = vmatpush1.bf16.msra.mxu0 0
      %4888 = vmatprep.subr.bf16.mxu0 0
      %4889 = vmatpush1.bf16.msra.mxu0 0
      %4890 = vmatprep.subr.bf16.mxu0 0
      %4891 = vmatpush1.bf16.msra.mxu0 0
      %4892 = vmatprep.subr.bf16.mxu0 0
      %4893 = vmatpush1.bf16.msra.mxu0 0
      %4894 = vmatprep.subr.bf16.mxu0 0
      %4895 = vmatpush1.bf16.msra.mxu0 0
      %4896 = vmatprep.subr.bf16.mxu0 0
      %4897 = vmatpush1.bf16.msra.mxu0 0
      %4898 = vmatprep.subr.bf16.mxu0 0
      %4899 = vmatpush1.bf16.msra.mxu0 0
      %4900 = vmatprep.subr.bf16.mxu0 0
      %4901 = vmatpush1.bf16.msra.mxu0 0
      %4902 = vmatprep.subr.bf16.mxu0 0
      %4903 = vmatpush1.bf16.msra.mxu0 0
      %4904 = vmatprep.mubr.bf16.mxu0 0
      %4905 = vmatmul.mubr.bf16.gmra.mrb[0].mxu0 %v4814
      %v4906 = vpop.f32.mrb[0].mxu0
      %v4907 = vadd.f32 %v4854, %v4906
      %v4908 = vpop.f32.mrb[0].mxu0
      %v4909 = vadd.f32 %v4856, %v4908
      %v4910 = vpop.f32.mrb[0].mxu0
      %v4911 = vadd.f32 %v4858, %v4910
      %v4912 = vpop.f32.mrb[0].mxu0
      %v4913 = vadd.f32 %v4860, %v4912
      %4914 = vmatprep.mubr.bf16.mxu0 0
      %4915 = vmatmul.mubr.bf16.gmra.mrb[0].mxu0 %v4817
      %v4916 = vpop.f32.mrb[0].mxu0
      %v4917 = vadd.f32 %v4864, %v4916
      %v4918 = vpop.f32.mrb[0].mxu0
      %v4919 = vadd.f32 %v4866, %v4918
      %v4920 = vpop.f32.mrb[0].mxu0
      %v4921 = vadd.f32 %v4868, %v4920
      %v4922 = vpop.f32.mrb[0].mxu0
      %v4923 = vadd.f32 %v4870, %v4922
      %4924 = vdwg.mxu0
      %v4925 = vadd.f32 %v4907, %v636
      %v4926 = vadd.f32 %v4909, %v638
      %v4927 = vadd.f32 %v4911, %v640
      %v4928 = vadd.f32 %v4913, %v642
      %v4929 = vadd.f32 %v4917, %v646
      %v4930 = vadd.f32 %v4919, %v648
      %v4931 = vadd.f32 %v4921, %v650
      %v4932 = vadd.f32 %v4923, %v652
      %v4933 = vld [vmem:[%s9] sm:$0xff]
      %v4934 = vld [vmem:[%s9 + $0x8] sm:$0xf]
      %v4935 = vld [vmem:[%s9 + $0xc] sm:$0xff]
      %v4936 = vld [vmem:[%s9 + $0x14] sm:$0xf]
      %v4937 = vld [vmem:[%s9 + $0x18] sm:$0xff]
      %v4938 = vld [vmem:[%s9 + $0x20] sm:$0xf]
      %v4939 = vld [vmem:[%s9 + $0x24] sm:$0xff]
      %v4940 = vld [vmem:[%s9 + $0x2c] sm:$0xf]
      %v4941 = vld [vmem:[%s9 + $0x30] sm:$0xff]
      %v4942 = vld [vmem:[%s9 + $0x38] sm:$0xf]
      %v4943 = vld [vmem:[%s9 + $0x3c] sm:$0xff]
      %v4944 = vld [vmem:[%s9 + $0x44] sm:$0xf]
      %v4945 = vld [vmem:[%s9 + $0x48] sm:$0xff]
      %v4946 = vld [vmem:[%s9 + $0x50] sm:$0xf]
      %v4947 = vld [vmem:[%s9 + $0x54] sm:$0xff]
      %v4948 = vld [vmem:[%s9 + $0x5c] sm:$0xf]
      %v4949 = vld [vmem:[%s9 + $0x60] sm:$0xff]
      %v4950 = vld [vmem:[%s9 + $0x68] sm:$0xf]
      %v4951 = vld [vmem:[%s9 + $0x6c] sm:$0xff]
      %v4952 = vld [vmem:[%s9 + $0x74] sm:$0xf]
      %v4953 = vld [vmem:[%s9 + $0x78] sm:$0xff]
      %v4954 = vld [vmem:[%s9 + $0x80] sm:$0xf]
      %v4955 = vld [vmem:[%s9 + $0x84] sm:$0xff]
      %v4956 = vld [vmem:[%s9 + $0x8c] sm:$0xf]
      %v4957 = vld [vmem:[%s9 + $0x90] sm:$0xff]
      %v4958 = vld [vmem:[%s9 + $0x98] sm:$0xf]
      %v4959 = vld [vmem:[%s9 + $0x9c] sm:$0xff]
      %v4960 = vld [vmem:[%s9 + $0xa4] sm:$0xf]
      %v4961 = vld [vmem:[%s9 + $0xa8] sm:$0xff]
      %v4962 = vld [vmem:[%s9 + $0xb0] sm:$0xf]
      %v4963 = vld [vmem:[%s9 + $0xb4] sm:$0xff]
      %v4964 = vld [vmem:[%s9 + $0xbc] sm:$0xf]
      %v4965 = vld [vmem:[%s10] sm:$0xff]
      %v4966 = vld [vmem:[%s10 + $0x8] sm:$0xff]
      %v4967 = vld [vmem:[%s10 + $0x10] sm:$0xff]
      %v4968 = vld [vmem:[%s10 + $0x18] sm:$0xff]
      %v4969 = vld [vmem:[%s10 + $0x20] sm:$0xff]
      %v4970 = vld [vmem:[%s10 + $0x28] sm:$0xff]
      %v4971 = vld [vmem:[%s10 + $0x30] sm:$0xff]
      %v4972 = vld [vmem:[%s10 + $0x38] sm:$0xff]
      %v4973 = vld [vmem:[%s10 + $0x40] sm:$0xff]
      %v4974 = vld [vmem:[%s10 + $0x48] sm:$0xff]
      %v4975 = vld [vmem:[%s10 + $0x50] sm:$0xff]
      %v4976 = vld [vmem:[%s10 + $0x58] sm:$0xff]
      %v4977 = vld [vmem:[%s10 + $0x60] sm:$0xff]
      %v4978 = vld [vmem:[%s10 + $0x68] sm:$0xff]
      %v4979 = vld [vmem:[%s10 + $0x70] sm:$0xff]
      %v4980 = vld [vmem:[%s10 + $0x78] sm:$0xff]
      %4981 = vrot.lane.b32.xlu0 %v4925, 17
      %v4982 = vpop.permute.xlu0 %4981
      %4983 = vrot.lane.b32.xlu0 %v4927, 17
      %v4984 = vpop.permute.xlu0 %4983
      %4985 = vrot.lane.b32.xlu0 %v4929, 17
      %v4986 = vpop.permute.xlu0 %4985
      %4987 = vrot.lane.b32.xlu0 %v4931, 17
      %v4988 = vpop.permute.xlu0 %4987
      %4989 = vrot.lane.b32.xlu0 %v4926, 17
      %v4990 = vpop.permute.xlu0 %4989
      %4991 = vrot.lane.b32.xlu0 %v4928, 17
      %v4992 = vpop.permute.xlu0 %4991
      %4993 = vrot.lane.b32.xlu0 %v4930, 17
      %v4994 = vpop.permute.xlu0 %4993
      %4995 = vrot.lane.b32.xlu0 %v4932, 17
      %v4996 = vpop.permute.xlu0 %4995
      %v4997 = vsel %vm458, %v4982, %v4990
      %v4998 = vsel %vm458, %v4984, %v4992
      %v4999 = vsel %vm458, %v4986, %v4994
      %v5000 = vsel %vm458, %v4988, %v4996
      %v5001 = vsel %vm458, %v4990, %v4982
      %v5002 = vsel %vm458, %v4992, %v4984
      %v5003 = vsel %vm458, %v4994, %v4986
      %v5004 = vsel %vm458, %v4996, %v4988
      %v5005 = vsel %vm470, %v5001, 0.0
      %v5006 = vsel %vm471, %v4997, 0.0
      %v5007 = vsel %vm470, %v5002, 0.0
      %v5008 = vsel %vm471, %v4998, 0.0
      %v5009 = vsel %vm470, %v5003, 0.0
      %v5010 = vsel %vm471, %v4999, 0.0
      %v5011 = vsel %vm470, %v5004, 0.0
      %v5012 = vsel %vm471, %v5000, 0.0
      %5013 = vrot.lane.b32.xlu0 %v4925, 16
      %v5014 = vpop.permute.xlu0 %5013
      %5015 = vrot.lane.b32.xlu0 %v4927, 16
      %v5016 = vpop.permute.xlu0 %5015
      %5017 = vrot.lane.b32.xlu0 %v4929, 16
      %v5018 = vpop.permute.xlu0 %5017
      %5019 = vrot.lane.b32.xlu0 %v4931, 16
      %v5020 = vpop.permute.xlu0 %5019
      %5021 = vrot.lane.b32.xlu0 %v4926, 16
      %v5022 = vpop.permute.xlu0 %5021
      %5023 = vrot.lane.b32.xlu0 %v4928, 16
      %v5024 = vpop.permute.xlu0 %5023
      %5025 = vrot.lane.b32.xlu0 %v4930, 16
      %v5026 = vpop.permute.xlu0 %5025
      %5027 = vrot.lane.b32.xlu0 %v4932, 16
      %v5028 = vpop.permute.xlu0 %5027
      %v5029 = vsel %vm478, %v5014, %v5022
      %v5030 = vsel %vm478, %v5016, %v5024
      %v5031 = vsel %vm478, %v5018, %v5026
      %v5032 = vsel %vm478, %v5020, %v5028
      %v5033 = vsel %vm478, %v5022, %v5014
      %v5034 = vsel %vm478, %v5024, %v5016
      %v5035 = vsel %vm478, %v5026, %v5018
      %v5036 = vsel %vm478, %v5028, %v5020
      %v5037 = vsel %vm466, %v5033, 0.0
      %v5038 = vsel %vm467, %v5029, 0.0
      %v5039 = vsel %vm466, %v5034, 0.0
      %v5040 = vsel %vm467, %v5030, 0.0
      %v5041 = vsel %vm466, %v5035, 0.0
      %v5042 = vsel %vm467, %v5031, 0.0
      %v5043 = vsel %vm466, %v5036, 0.0
      %v5044 = vsel %vm467, %v5032, 0.0
      %5045 = vrot.lane.b32.xlu0 %v4925, 15
      %v5046 = vpop.permute.xlu0 %5045
      %5047 = vrot.lane.b32.xlu0 %v4927, 15
      %v5048 = vpop.permute.xlu0 %5047
      %5049 = vrot.lane.b32.xlu0 %v4929, 15
      %v5050 = vpop.permute.xlu0 %5049
      %5051 = vrot.lane.b32.xlu0 %v4931, 15
      %v5052 = vpop.permute.xlu0 %5051
      %5053 = vrot.lane.b32.xlu0 %v4926, 15
      %v5054 = vpop.permute.xlu0 %5053
      %5055 = vrot.lane.b32.xlu0 %v4928, 15
      %v5056 = vpop.permute.xlu0 %5055
      %5057 = vrot.lane.b32.xlu0 %v4930, 15
      %v5058 = vpop.permute.xlu0 %5057
      %5059 = vrot.lane.b32.xlu0 %v4932, 15
      %v5060 = vpop.permute.xlu0 %5059
      %v5061 = vsel %vm487, %v5046, %v5054
      %v5062 = vsel %vm487, %v5048, %v5056
      %v5063 = vsel %vm487, %v5050, %v5058
      %v5064 = vsel %vm487, %v5052, %v5060
      %v5065 = vsel %vm487, %v5054, %v5046
      %v5066 = vsel %vm487, %v5056, %v5048
      %v5067 = vsel %vm487, %v5058, %v5050
      %v5068 = vsel %vm487, %v5060, %v5052
      %v5069 = vsel %vm492, %v5065, 0.0
      %v5070 = vsel %vm493, %v5061, 0.0
      %v5071 = vsel %vm492, %v5066, 0.0
      %v5072 = vsel %vm493, %v5062, 0.0
      %v5073 = vsel %vm492, %v5067, 0.0
      %v5074 = vsel %vm493, %v5063, 0.0
      %v5075 = vsel %vm492, %v5068, 0.0
      %v5076 = vsel %vm493, %v5064, 0.0
      %5077 = vrot.lane.b32.xlu0 %v4925, 1
      %v5078 = vpop.permute.xlu0 %5077
      %5079 = vrot.lane.b32.xlu0 %v4927, 1
      %v5080 = vpop.permute.xlu0 %5079
      %5081 = vrot.lane.b32.xlu0 %v4929, 1
      %v5082 = vpop.permute.xlu0 %5081
      %5083 = vrot.lane.b32.xlu0 %v4931, 1
      %v5084 = vpop.permute.xlu0 %5083
      %5085 = vrot.lane.b32.xlu0 %v4926, 1
      %v5086 = vpop.permute.xlu0 %5085
      %5087 = vrot.lane.b32.xlu0 %v4928, 1
      %v5088 = vpop.permute.xlu0 %5087
      %5089 = vrot.lane.b32.xlu0 %v4930, 1
      %v5090 = vpop.permute.xlu0 %5089
      %5091 = vrot.lane.b32.xlu0 %v4932, 1
      %v5092 = vpop.permute.xlu0 %5091
      %v5093 = vsel %vm500, %v5078, %v5086
      %v5094 = vsel %vm500, %v5080, %v5088
      %v5095 = vsel %vm500, %v5082, %v5090
      %v5096 = vsel %vm500, %v5084, %v5092
      %v5097 = vsel %vm500, %v5086, %v5078
      %v5098 = vsel %vm500, %v5088, %v5080
      %v5099 = vsel %vm500, %v5090, %v5082
      %v5100 = vsel %vm500, %v5092, %v5084
      %v5101 = vsel %vm468, %v5097, 0.0
      %v5102 = vsel %vm469, %v5093, 0.0
      %v5103 = vsel %vm468, %v5098, 0.0
      %v5104 = vsel %vm469, %v5094, 0.0
      %v5105 = vsel %vm468, %v5099, 0.0
      %v5106 = vsel %vm469, %v5095, 0.0
      %v5107 = vsel %vm468, %v5100, 0.0
      %v5108 = vsel %vm469, %v5096, 0.0
      %5109 = vrot.lane.b32.xlu0 %v4925, 127
      %v5110 = vpop.permute.xlu0 %5109
      %5111 = vrot.lane.b32.xlu0 %v4927, 127
      %v5112 = vpop.permute.xlu0 %5111
      %5113 = vrot.lane.b32.xlu0 %v4929, 127
      %v5114 = vpop.permute.xlu0 %5113
      %5115 = vrot.lane.b32.xlu0 %v4931, 127
      %v5116 = vpop.permute.xlu0 %5115
      %5117 = vrot.lane.b32.xlu0 %v4926, 127
      %v5118 = vpop.permute.xlu0 %5117
      %5119 = vrot.lane.b32.xlu0 %v4928, 127
      %v5120 = vpop.permute.xlu0 %5119
      %5121 = vrot.lane.b32.xlu0 %v4930, 127
      %v5122 = vpop.permute.xlu0 %5121
      %5123 = vrot.lane.b32.xlu0 %v4932, 127
      %v5124 = vpop.permute.xlu0 %5123
      %v5125 = vsel %vm509, %v5110, %v5118
      %v5126 = vsel %vm509, %v5112, %v5120
      %v5127 = vsel %vm509, %v5114, %v5122
      %v5128 = vsel %vm509, %v5116, %v5124
      %v5129 = vsel %vm509, %v5118, %v5110
      %v5130 = vsel %vm509, %v5120, %v5112
      %v5131 = vsel %vm509, %v5122, %v5114
      %v5132 = vsel %vm509, %v5124, %v5116
      %v5133 = vsel %vm490, %v5125, 0.0
      %v5134 = vsel %vm491, %v5129, 0.0
      %v5135 = vsel %vm490, %v5126, 0.0
      %v5136 = vsel %vm491, %v5130, 0.0
      %v5137 = vsel %vm490, %v5127, 0.0
      %v5138 = vsel %vm491, %v5131, 0.0
      %v5139 = vsel %vm490, %v5128, 0.0
      %v5140 = vsel %vm491, %v5132, 0.0
      %5141 = vrot.lane.b32.xlu0 %v4925, 113
      %v5142 = vpop.permute.xlu0 %5141
      %5143 = vrot.lane.b32.xlu0 %v4927, 113
      %v5144 = vpop.permute.xlu0 %5143
      %5145 = vrot.lane.b32.xlu0 %v4929, 113
      %v5146 = vpop.permute.xlu0 %5145
      %5147 = vrot.lane.b32.xlu0 %v4931, 113
      %v5148 = vpop.permute.xlu0 %5147
      %5149 = vrot.lane.b32.xlu0 %v4926, 113
      %v5150 = vpop.permute.xlu0 %5149
      %5151 = vrot.lane.b32.xlu0 %v4928, 113
      %v5152 = vpop.permute.xlu0 %5151
      %5153 = vrot.lane.b32.xlu0 %v4930, 113
      %v5154 = vpop.permute.xlu0 %5153
      %5155 = vrot.lane.b32.xlu0 %v4932, 113
      %v5156 = vpop.permute.xlu0 %5155
      %v5157 = vsel %vm518, %v5142, %v5150
      %v5158 = vsel %vm518, %v5144, %v5152
      %v5159 = vsel %vm518, %v5146, %v5154
      %v5160 = vsel %vm518, %v5148, %v5156
      %v5161 = vsel %vm518, %v5150, %v5142
      %v5162 = vsel %vm518, %v5152, %v5144
      %v5163 = vsel %vm518, %v5154, %v5146
      %v5164 = vsel %vm518, %v5156, %v5148
      %v5165 = vsel %vm523, %v5157, 0.0
      %v5166 = vsel %vm524, %v5161, 0.0
      %v5167 = vsel %vm523, %v5158, 0.0
      %v5168 = vsel %vm524, %v5162, 0.0
      %v5169 = vsel %vm523, %v5159, 0.0
      %v5170 = vsel %vm524, %v5163, 0.0
      %v5171 = vsel %vm523, %v5160, 0.0
      %v5172 = vsel %vm524, %v5164, 0.0
      %5173 = vrot.lane.b32.xlu0 %v4925, 112
      %v5174 = vpop.permute.xlu0 %5173
      %5175 = vrot.lane.b32.xlu0 %v4927, 112
      %v5176 = vpop.permute.xlu0 %5175
      %5177 = vrot.lane.b32.xlu0 %v4929, 112
      %v5178 = vpop.permute.xlu0 %5177
      %5179 = vrot.lane.b32.xlu0 %v4931, 112
      %v5180 = vpop.permute.xlu0 %5179
      %5181 = vrot.lane.b32.xlu0 %v4926, 112
      %v5182 = vpop.permute.xlu0 %5181
      %5183 = vrot.lane.b32.xlu0 %v4928, 112
      %v5184 = vpop.permute.xlu0 %5183
      %5185 = vrot.lane.b32.xlu0 %v4930, 112
      %v5186 = vpop.permute.xlu0 %5185
      %5187 = vrot.lane.b32.xlu0 %v4932, 112
      %v5188 = vpop.permute.xlu0 %5187
      %v5189 = vsel %vm531, %v5174, %v5182
      %v5190 = vsel %vm531, %v5176, %v5184
      %v5191 = vsel %vm531, %v5178, %v5186
      %v5192 = vsel %vm531, %v5180, %v5188
      %v5193 = vsel %vm531, %v5182, %v5174
      %v5194 = vsel %vm531, %v5184, %v5176
      %v5195 = vsel %vm531, %v5186, %v5178
      %v5196 = vsel %vm531, %v5188, %v5180
      %v5197 = vsel %vm521, %v5189, 0.0
      %v5198 = vsel %vm522, %v5193, 0.0
      %v5199 = vsel %vm521, %v5190, 0.0
      %v5200 = vsel %vm522, %v5194, 0.0
      %v5201 = vsel %vm521, %v5191, 0.0
      %v5202 = vsel %vm522, %v5195, 0.0
      %v5203 = vsel %vm521, %v5192, 0.0
      %v5204 = vsel %vm522, %v5196, 0.0
      %5205 = vrot.lane.b32.xlu0 %v4925, 111
      %v5206 = vpop.permute.xlu0 %5205
      %5207 = vrot.lane.b32.xlu0 %v4927, 111
      %v5208 = vpop.permute.xlu0 %5207
      %5209 = vrot.lane.b32.xlu0 %v4929, 111
      %v5210 = vpop.permute.xlu0 %5209
      %5211 = vrot.lane.b32.xlu0 %v4931, 111
      %v5212 = vpop.permute.xlu0 %5211
      %5213 = vrot.lane.b32.xlu0 %v4926, 111
      %v5214 = vpop.permute.xlu0 %5213
      %5215 = vrot.lane.b32.xlu0 %v4928, 111
      %v5216 = vpop.permute.xlu0 %5215
      %5217 = vrot.lane.b32.xlu0 %v4930, 111
      %v5218 = vpop.permute.xlu0 %5217
      %5219 = vrot.lane.b32.xlu0 %v4932, 111
      %v5220 = vpop.permute.xlu0 %5219
      %v5221 = vsel %vm540, %v5206, %v5214
      %v5222 = vsel %vm540, %v5208, %v5216
      %v5223 = vsel %vm540, %v5210, %v5218
      %v5224 = vsel %vm540, %v5212, %v5220
      %v5225 = vsel %vm540, %v5214, %v5206
      %v5226 = vsel %vm540, %v5216, %v5208
      %v5227 = vsel %vm540, %v5218, %v5210
      %v5228 = vsel %vm540, %v5220, %v5212
      %v5229 = vsel %vm543, %v5221, 0.0
      %v5230 = vsel %vm544, %v5225, 0.0
      %v5231 = vsel %vm543, %v5222, 0.0
      %v5232 = vsel %vm544, %v5226, 0.0
      %v5233 = vsel %vm543, %v5223, 0.0
      %v5234 = vsel %vm544, %v5227, 0.0
      %v5235 = vsel %vm543, %v5224, 0.0
      %v5236 = vsel %vm544, %v5228, 0.0
      %v5237 = vpack.c.bf16 %v5007, %v5005
      %v5238 = vpack.c.bf16 %v5008, %v5006
      %v5239 = vpack.c.bf16 %v5011, %v5009
      %v5240 = vpack.c.bf16 %v5012, %v5010
      %v5241 = vpack.c.bf16 %v5039, %v5037
      %v5242 = vpack.c.bf16 %v5040, %v5038
      %v5243 = vpack.c.bf16 %v5043, %v5041
      %v5244 = vpack.c.bf16 %v5044, %v5042
      %v5245 = vpack.c.bf16 %v5071, %v5069
      %v5246 = vpack.c.bf16 %v5072, %v5070
      %v5247 = vpack.c.bf16 %v5075, %v5073
      %v5248 = vpack.c.bf16 %v5076, %v5074
      %v5249 = vpack.c.bf16 %v5103, %v5101
      %v5250 = vpack.c.bf16 %v5104, %v5102
      %v5251 = vpack.c.bf16 %v5107, %v5105
      %v5252 = vpack.c.bf16 %v5108, %v5106
      %v5253 = vpack.c.bf16 %v4927, %v4925
      %v5254 = vpack.c.bf16 %v4928, %v4926
      %v5255 = vpack.c.bf16 %v4931, %v4929
      %v5256 = vpack.c.bf16 %v4932, %v4930
      %v5257 = vpack.c.bf16 %v5135, %v5133
      %v5258 = vpack.c.bf16 %v5136, %v5134
      %v5259 = vpack.c.bf16 %v5139, %v5137
      %v5260 = vpack.c.bf16 %v5140, %v5138
      %v5261 = vpack.c.bf16 %v5167, %v5165
      %v5262 = vpack.c.bf16 %v5168, %v5166
      %v5263 = vpack.c.bf16 %v5171, %v5169
      %v5264 = vpack.c.bf16 %v5172, %v5170
      %v5265 = vpack.c.bf16 %v5199, %v5197
      %v5266 = vpack.c.bf16 %v5200, %v5198
      %v5267 = vpack.c.bf16 %v5203, %v5201
      %v5268 = vpack.c.bf16 %v5204, %v5202
      %v5269 = vpack.c.bf16 %v5231, %v5229
      %v5270 = vpack.c.bf16 %v5232, %v5230
      %v5271 = vpack.c.bf16 %v5235, %v5233
      %v5272 = vpack.c.bf16 %v5236, %v5234
      %5274 = vset.pattern.permute.xlu0 0
      %5275 = vperm.xlu0 %5274, %v4965
      %v5276 = vpop.permute.xlu0 %5275
      %5279 = vset.pattern.permute.xlu0 0
      %5280 = vperm.xlu0 %5279, %v4966
      %v5281 = vpop.permute.xlu0 %5280
      %5284 = vset.pattern.permute.xlu0 0
      %5285 = vperm.xlu0 %5284, %v4967
      %v5286 = vpop.permute.xlu0 %5285
      %5289 = vset.pattern.permute.xlu0 0
      %5290 = vperm.xlu0 %5289, %v4968
      %v5291 = vpop.permute.xlu0 %5290
      %5294 = vset.pattern.permute.xlu0 0
      %5295 = vperm.xlu0 %5294, %v4969
      %v5296 = vpop.permute.xlu0 %5295
      %5299 = vset.pattern.permute.xlu0 0
      %5300 = vperm.xlu0 %5299, %v4970
      %v5301 = vpop.permute.xlu0 %5300
      %5304 = vset.pattern.permute.xlu0 0
      %5305 = vperm.xlu0 %5304, %v4971
      %v5306 = vpop.permute.xlu0 %5305
      %5309 = vset.pattern.permute.xlu0 0
      %5310 = vperm.xlu0 %5309, %v4972
      %v5311 = vpop.permute.xlu0 %5310
      %5314 = vset.pattern.permute.xlu0 0
      %5315 = vperm.xlu0 %5314, %v4973
      %v5316 = vpop.permute.xlu0 %5315
      %5319 = vset.pattern.permute.xlu0 0
      %5320 = vperm.xlu0 %5319, %v4974
      %v5321 = vpop.permute.xlu0 %5320
      %5324 = vset.pattern.permute.xlu0 0
      %5325 = vperm.xlu0 %5324, %v4975
      %v5326 = vpop.permute.xlu0 %5325
      %5329 = vset.pattern.permute.xlu0 0
      %5330 = vperm.xlu0 %5329, %v4976
      %v5331 = vpop.permute.xlu0 %5330
      %5334 = vset.pattern.permute.xlu0 0
      %5335 = vperm.xlu0 %5334, %v4977
      %v5336 = vpop.permute.xlu0 %5335
      %5339 = vset.pattern.permute.xlu0 0
      %5340 = vperm.xlu0 %5339, %v4978
      %v5341 = vpop.permute.xlu0 %5340
      %5344 = vset.pattern.permute.xlu0 0
      %5345 = vperm.xlu0 %5344, %v4979
      %v5346 = vpop.permute.xlu0 %5345
      %5349 = vset.pattern.permute.xlu0 0
      %5350 = vperm.xlu0 %5349, %v4980
      %v5351 = vpop.permute.xlu0 %5350
      %v5385 = vunpack.c.l.b16 %v4933
      %v5386 = vunpack.c.h.b16 %v4933
      %v5387 = vunpack.c.l.b16 %v4934
      %v5388 = vunpack.c.l.b16 %v4935
      %v5389 = vunpack.c.h.b16 %v4935
      %v5390 = vunpack.c.l.b16 %v4936
      %v5391 = vunpack.c.l.b16 %v4937
      %v5392 = vunpack.c.h.b16 %v4937
      %v5393 = vunpack.c.l.b16 %v4938
      %v5394 = vunpack.c.l.b16 %v4939
      %v5395 = vunpack.c.h.b16 %v4939
      %v5396 = vunpack.c.l.b16 %v4940
      %v5397 = vunpack.c.l.b16 %v4941
      %v5398 = vunpack.c.h.b16 %v4941
      %v5399 = vunpack.c.l.b16 %v4942
      %v5400 = vunpack.c.l.b16 %v4943
      %v5401 = vunpack.c.h.b16 %v4943
      %v5402 = vunpack.c.l.b16 %v4944
      %v5403 = vunpack.c.l.b16 %v4945
      %v5404 = vunpack.c.h.b16 %v4945
      %v5405 = vunpack.c.l.b16 %v4946
      %v5406 = vunpack.c.l.b16 %v4947
      %v5407 = vunpack.c.h.b16 %v4947
      %v5408 = vunpack.c.l.b16 %v4948
      %v5409 = vunpack.c.l.b16 %v4949
      %v5410 = vunpack.c.h.b16 %v4949
      %v5411 = vunpack.c.l.b16 %v4950
      %v5412 = vunpack.c.l.b16 %v4951
      %v5413 = vunpack.c.h.b16 %v4951
      %v5414 = vunpack.c.l.b16 %v4952
      %v5415 = vunpack.c.l.b16 %v4953
      %v5416 = vunpack.c.h.b16 %v4953
      %v5417 = vunpack.c.l.b16 %v4954
      %v5418 = vunpack.c.l.b16 %v4955
      %v5419 = vunpack.c.h.b16 %v4955
      %v5420 = vunpack.c.l.b16 %v4956
      %v5421 = vunpack.c.l.b16 %v4957
      %v5422 = vunpack.c.h.b16 %v4957
      %v5423 = vunpack.c.l.b16 %v4958
      %v5424 = vunpack.c.l.b16 %v4959
      %v5425 = vunpack.c.h.b16 %v4959
      %v5426 = vunpack.c.l.b16 %v4960
      %v5427 = vunpack.c.l.b16 %v4961
      %v5428 = vunpack.c.h.b16 %v4961
      %v5429 = vunpack.c.l.b16 %v4962
      %v5430 = vunpack.c.l.b16 %v4963
      %v5431 = vunpack.c.h.b16 %v4963
      %v5432 = vunpack.c.l.b16 %v4964
      %v5433 = vpack.c.b16 %v5388, %v5385
      %v5434 = vpack.c.b16 %v5389, %v5386
      %v5435 = vpack.c.b16 %v5390, %v5387
      %v5436 = vpack.c.b16 %v5394, %v5391
      %v5437 = vpack.c.b16 %v5395, %v5392
      %v5438 = vpack.c.b16 %v5396, %v5393
      %v5439 = vpack.c.b16 %v5400, %v5397
      %v5440 = vpack.c.b16 %v5401, %v5398
      %v5441 = vpack.c.b16 %v5402, %v5399
      %v5442 = vpack.c.b16 %v5406, %v5403
      %v5443 = vpack.c.b16 %v5407, %v5404
      %v5444 = vpack.c.b16 %v5408, %v5405
      %v5445 = vpack.c.b16 %v5412, %v5409
      %v5446 = vpack.c.b16 %v5413, %v5410
      %v5447 = vpack.c.b16 %v5414, %v5411
      %v5448 = vpack.c.b16 %v5418, %v5415
      %v5449 = vpack.c.b16 %v5419, %v5416
      %v5450 = vpack.c.b16 %v5420, %v5417
      %v5451 = vpack.c.b16 %v5424, %v5421
      %v5452 = vpack.c.b16 %v5425, %v5422
      %v5453 = vpack.c.b16 %v5426, %v5423
      %v5454 = vpack.c.b16 %v5430, %v5427
      %v5455 = vpack.c.b16 %v5431, %v5428
      %v5456 = vpack.c.b16 %v5432, %v5429
      %v5474 = vsel %vm1008, %v5435, 0
      %v5477 = vsel %vm1008, %v5438, 0
      %v5480 = vsel %vm1008, %v5441, 0
      %v5483 = vsel %vm1008, %v5444, 0
      %v5486 = vsel %vm1008, %v5447, 0
      %v5489 = vsel %vm1008, %v5450, 0
      %v5492 = vsel %vm1008, %v5453, 0
      %v5495 = vsel %vm1008, %v5456, 0
      %5497 = vmatprep.subr.bf16.mxu0 %v5238
      %5498 = vmatpush1.bf16.msra.mxu0 %v5237
      %5499 = vmatprep.subr.bf16.mxu0 %v5240
      %5500 = vmatpush1.bf16.msra.mxu0 %v5239
      %5501 = vmatprep.subr.bf16.mxu0 %v5242
      %5502 = vmatpush1.bf16.msra.mxu0 %v5241
      %5503 = vmatprep.subr.bf16.mxu0 %v5244
      %5504 = vmatpush1.bf16.msra.mxu0 %v5243
      %5505 = vmatprep.subr.bf16.mxu0 %v5246
      %5506 = vmatpush1.bf16.msra.mxu0 %v5245
      %5507 = vmatprep.subr.bf16.mxu0 %v5248
      %5508 = vmatpush1.bf16.msra.mxu0 %v5247
      %5509 = vmatprep.subr.bf16.mxu0 %v5250
      %5510 = vmatpush1.bf16.msra.mxu0 %v5249
      %5511 = vmatprep.subr.bf16.mxu0 %v5252
      %5512 = vmatpush1.bf16.msra.mxu0 %v5251
      %5513 = vmatprep.subr.bf16.mxu0 %v5254
      %5514 = vmatpush1.bf16.msra.mxu0 %v5253
      %5515 = vmatprep.subr.bf16.mxu0 %v5256
      %5516 = vmatpush1.bf16.msra.mxu0 %v5255
      %5517 = vmatprep.subr.bf16.mxu0 %v5258
      %5518 = vmatpush1.bf16.msra.mxu0 %v5257
      %5519 = vmatprep.subr.bf16.mxu0 %v5260
      %5520 = vmatpush1.bf16.msra.mxu0 %v5259
      %5521 = vmatprep.subr.bf16.mxu0 %v5262
      %5522 = vmatpush1.bf16.msra.mxu0 %v5261
      %5523 = vmatprep.subr.bf16.mxu0 %v5264
      %5524 = vmatpush1.bf16.msra.mxu0 %v5263
      %5525 = vmatprep.subr.bf16.mxu0 %v5266
      %5526 = vmatpush1.bf16.msra.mxu0 %v5265
      %5527 = vmatprep.subr.bf16.mxu0 %v5268
      %5528 = vmatpush1.bf16.msra.mxu0 %v5267
      %5529 = vmatprep.mubr.bf16.mxu0 %v5434
      %5530 = vmatmul.mubr.bf16.gmra.mrb[0].mxu0 %v5433
      %v5531 = vpop.f32.mrb[0].mxu0
      %v5532 = vadd.f32 %v5276, %v5531
      %v5533 = vpop.f32.mrb[0].mxu0
      %v5534 = vadd.f32 %v5276, %v5533
      %v5535 = vpop.f32.mrb[0].mxu0
      %v5536 = vadd.f32 %v5281, %v5535
      %v5537 = vpop.f32.mrb[0].mxu0
      %v5538 = vadd.f32 %v5281, %v5537
      %5539 = vmatprep.mubr.bf16.mxu0 %v5437
      %5540 = vmatmul.mubr.bf16.gmra.mrb[0].mxu0 %v5436
      %v5541 = vpop.f32.mrb[0].mxu0
      %v5542 = vadd.f32 %v5286, %v5541
      %v5543 = vpop.f32.mrb[0].mxu0
      %v5544 = vadd.f32 %v5286, %v5543
      %v5545 = vpop.f32.mrb[0].mxu0
      %v5546 = vadd.f32 %v5291, %v5545
      %v5547 = vpop.f32.mrb[0].mxu0
      %v5548 = vadd.f32 %v5291, %v5547
      %5549 = vmatprep.mubr.bf16.mxu0 %v5440
      %5550 = vmatmul.mubr.bf16.gmra.mrb[0].mxu0 %v5439
      %v5551 = vpop.f32.mrb[0].mxu0
      %v5552 = vadd.f32 %v5296, %v5551
      %v5553 = vpop.f32.mrb[0].mxu0
      %v5554 = vadd.f32 %v5296, %v5553
      %v5555 = vpop.f32.mrb[0].mxu0
      %v5556 = vadd.f32 %v5301, %v5555
      %v5557 = vpop.f32.mrb[0].mxu0
      %v5558 = vadd.f32 %v5301, %v5557
      %5559 = vmatprep.mubr.bf16.mxu0 %v5443
      %5560 = vmatmul.mubr.bf16.gmra.mrb[0].mxu0 %v5442
      %v5561 = vpop.f32.mrb[0].mxu0
      %v5562 = vadd.f32 %v5306, %v5561
      %v5563 = vpop.f32.mrb[0].mxu0
      %v5564 = vadd.f32 %v5306, %v5563
      %v5565 = vpop.f32.mrb[0].mxu0
      %v5566 = vadd.f32 %v5311, %v5565
      %v5567 = vpop.f32.mrb[0].mxu0
      %v5568 = vadd.f32 %v5311, %v5567
      %5569 = vmatprep.mubr.bf16.mxu0 %v5446
      %5570 = vmatmul.mubr.bf16.gmra.mrb[0].mxu0 %v5445
      %v5571 = vpop.f32.mrb[0].mxu0
      %v5572 = vadd.f32 %v5316, %v5571
      %v5573 = vpop.f32.mrb[0].mxu0
      %v5574 = vadd.f32 %v5316, %v5573
      %v5575 = vpop.f32.mrb[0].mxu0
      %v5576 = vadd.f32 %v5321, %v5575
      %v5577 = vpop.f32.mrb[0].mxu0
      %v5578 = vadd.f32 %v5321, %v5577
      %5579 = vmatprep.mubr.bf16.mxu0 %v5449
      %5580 = vmatmul.mubr.bf16.gmra.mrb[0].mxu0 %v5448
      %v5581 = vpop.f32.mrb[0].mxu0
      %v5582 = vadd.f32 %v5326, %v5581
      %v5583 = vpop.f32.mrb[0].mxu0
      %v5584 = vadd.f32 %v5326, %v5583
      %v5585 = vpop.f32.mrb[0].mxu0
      %v5586 = vadd.f32 %v5331, %v5585
      %v5587 = vpop.f32.mrb[0].mxu0
      %v5588 = vadd.f32 %v5331, %v5587
      %5589 = vmatprep.mubr.bf16.mxu0 %v5452
      %5590 = vmatmul.mubr.bf16.gmra.mrb[0].mxu0 %v5451
      %v5591 = vpop.f32.mrb[0].mxu0
      %v5592 = vadd.f32 %v5336, %v5591
      %v5593 = vpop.f32.mrb[0].mxu0
      %v5594 = vadd.f32 %v5336, %v5593
      %v5595 = vpop.f32.mrb[0].mxu0
      %v5596 = vadd.f32 %v5341, %v5595
      %v5597 = vpop.f32.mrb[0].mxu0
      %v5598 = vadd.f32 %v5341, %v5597
      %5599 = vmatprep.mubr.bf16.mxu0 %v5455
      %5600 = vmatmul.mubr.bf16.gmra.mrb[0].mxu0 %v5454
      %v5601 = vpop.f32.mrb[0].mxu0
      %v5602 = vadd.f32 %v5346, %v5601
      %v5603 = vpop.f32.mrb[0].mxu0
      %v5604 = vadd.f32 %v5346, %v5603
      %v5605 = vpop.f32.mrb[0].mxu0
      %v5606 = vadd.f32 %v5351, %v5605
      %v5607 = vpop.f32.mrb[0].mxu0
      %v5608 = vadd.f32 %v5351, %v5607
      %5609 = vdwg.mxu0
      %5610 = vmatprep.subr.bf16.mxu0 %v5270
      %5611 = vmatpush1.bf16.msra.mxu0 %v5269
      %5612 = vmatprep.subr.bf16.mxu0 %v5272
      %5613 = vmatpush1.bf16.msra.mxu0 %v5271
      %5614 = vmatprep.subr.bf16.mxu0 0
      %5615 = vmatpush1.bf16.msra.mxu0 0
      %5616 = vmatprep.subr.bf16.mxu0 0
      %5617 = vmatpush1.bf16.msra.mxu0 0
      %5618 = vmatprep.subr.bf16.mxu0 0
      %5619 = vmatpush1.bf16.msra.mxu0 0
      %5620 = vmatprep.subr.bf16.mxu0 0
      %5621 = vmatpush1.bf16.msra.mxu0 0
      %5622 = vmatprep.subr.bf16.mxu0 0
      %5623 = vmatpush1.bf16.msra.mxu0 0
      %5624 = vmatprep.subr.bf16.mxu0 0
      %5625 = vmatpush1.bf16.msra.mxu0 0
      %5626 = vmatprep.subr.bf16.mxu0 0
      %5627 = vmatpush1.bf16.msra.mxu0 0
      %5628 = vmatprep.subr.bf16.mxu0 0
      %5629 = vmatpush1.bf16.msra.mxu0 0
      %5630 = vmatprep.subr.bf16.mxu0 0
      %5631 = vmatpush1.bf16.msra.mxu0 0
      %5632 = vmatprep.subr.bf16.mxu0 0
      %5633 = vmatpush1.bf16.msra.mxu0 0
      %5634 = vmatprep.subr.bf16.mxu0 0
      %5635 = vmatpush1.bf16.msra.mxu0 0
      %5636 = vmatprep.subr.bf16.mxu0 0
      %5637 = vmatpush1.bf16.msra.mxu0 0
      %5638 = vmatprep.subr.bf16.mxu0 0
      %5639 = vmatpush1.bf16.msra.mxu0 0
      %5640 = vmatprep.subr.bf16.mxu0 0
      %5641 = vmatpush1.bf16.msra.mxu0 0
      %5642 = vmatprep.mubr.bf16.mxu0 0
      %5643 = vmatmul.mubr.bf16.gmra.mrb[0].mxu0 %v5474
      %v5644 = vpop.f32.mrb[0].mxu0
      %v5645 = vadd.f32 %v5532, %v5644
      %v5646 = vpop.f32.mrb[0].mxu0
      %v5647 = vadd.f32 %v5534, %v5646
      %v5648 = vpop.f32.mrb[0].mxu0
      %v5649 = vadd.f32 %v5536, %v5648
      %v5650 = vpop.f32.mrb[0].mxu0
      %v5651 = vadd.f32 %v5538, %v5650
      %5652 = vmatprep.mubr.bf16.mxu0 0
      %5653 = vmatmul.mubr.bf16.gmra.mrb[0].mxu0 %v5477
      %v5654 = vpop.f32.mrb[0].mxu0
      %v5655 = vadd.f32 %v5542, %v5654
      %v5656 = vpop.f32.mrb[0].mxu0
      %v5657 = vadd.f32 %v5544, %v5656
      %v5658 = vpop.f32.mrb[0].mxu0
      %v5659 = vadd.f32 %v5546, %v5658
      %v5660 = vpop.f32.mrb[0].mxu0
      %v5661 = vadd.f32 %v5548, %v5660
      %5662 = vmatprep.mubr.bf16.mxu0 0
      %5663 = vmatmul.mubr.bf16.gmra.mrb[0].mxu0 %v5480
      %v5664 = vpop.f32.mrb[0].mxu0
      %v5665 = vadd.f32 %v5552, %v5664
      %v5666 = vpop.f32.mrb[0].mxu0
      %v5667 = vadd.f32 %v5554, %v5666
      %v5668 = vpop.f32.mrb[0].mxu0
      %v5669 = vadd.f32 %v5556, %v5668
      %v5670 = vpop.f32.mrb[0].mxu0
      %v5671 = vadd.f32 %v5558, %v5670
      %5672 = vmatprep.mubr.bf16.mxu0 0
      %5673 = vmatmul.mubr.bf16.gmra.mrb[0].mxu0 %v5483
      %v5674 = vpop.f32.mrb[0].mxu0
      %v5675 = vadd.f32 %v5562, %v5674
      %v5676 = vpop.f32.mrb[0].mxu0
      %v5677 = vadd.f32 %v5564, %v5676
      %v5678 = vpop.f32.mrb[0].mxu0
      %v5679 = vadd.f32 %v5566, %v5678
      %v5680 = vpop.f32.mrb[0].mxu0
      %v5681 = vadd.f32 %v5568, %v5680
      %5682 = vmatprep.mubr.bf16.mxu0 0
      %5683 = vmatmul.mubr.bf16.gmra.mrb[0].mxu0 %v5486
      %v5684 = vpop.f32.mrb[0].mxu0
      %v5685 = vadd.f32 %v5572, %v5684
      %v5686 = vpop.f32.mrb[0].mxu0
      %v5687 = vadd.f32 %v5574, %v5686
      %v5688 = vpop.f32.mrb[0].mxu0
      %v5689 = vadd.f32 %v5576, %v5688
      %v5690 = vpop.f32.mrb[0].mxu0
      %v5691 = vadd.f32 %v5578, %v5690
      %5692 = vmatprep.mubr.bf16.mxu0 0
      %5693 = vmatmul.mubr.bf16.gmra.mrb[0].mxu0 %v5489
      %v5694 = vpop.f32.mrb[0].mxu0
      %v5695 = vadd.f32 %v5582, %v5694
      %v5696 = vpop.f32.mrb[0].mxu0
      %v5697 = vadd.f32 %v5584, %v5696
      %v5698 = vpop.f32.mrb[0].mxu0
      %v5699 = vadd.f32 %v5586, %v5698
      %v5700 = vpop.f32.mrb[0].mxu0
      %v5701 = vadd.f32 %v5588, %v5700
      %5702 = vmatprep.mubr.bf16.mxu0 0
      %5703 = vmatmul.mubr.bf16.gmra.mrb[0].mxu0 %v5492
      %v5704 = vpop.f32.mrb[0].mxu0
      %v5705 = vadd.f32 %v5592, %v5704
      %v5706 = vpop.f32.mrb[0].mxu0
      %v5707 = vadd.f32 %v5594, %v5706
      %v5708 = vpop.f32.mrb[0].mxu0
      %v5709 = vadd.f32 %v5596, %v5708
      %v5710 = vpop.f32.mrb[0].mxu0
      %v5711 = vadd.f32 %v5598, %v5710
      %5712 = vmatprep.mubr.bf16.mxu0 0
      %5713 = vmatmul.mubr.bf16.gmra.mrb[0].mxu0 %v5495
      %v5714 = vpop.f32.mrb[0].mxu0
      %v5715 = vadd.f32 %v5602, %v5714
      %v5716 = vpop.f32.mrb[0].mxu0
      %v5717 = vadd.f32 %v5604, %v5716
      %v5718 = vpop.f32.mrb[0].mxu0
      %v5719 = vadd.f32 %v5606, %v5718
      %v5720 = vpop.f32.mrb[0].mxu0
      %v5721 = vadd.f32 %v5608, %v5720
      %5722 = vdwg.mxu0
      %v5723 = vmax.f32 %v5645, 0.0
      %v5724 = vmax.f32 %v5647, 0.0
      %v5725 = vmax.f32 %v5649, 0.0
      %v5726 = vmax.f32 %v5651, 0.0
      %v5727 = vmax.f32 %v5655, 0.0
      %v5728 = vmax.f32 %v5657, 0.0
      %v5729 = vmax.f32 %v5659, 0.0
      %v5730 = vmax.f32 %v5661, 0.0
      %v5731 = vmax.f32 %v5665, 0.0
      %v5732 = vmax.f32 %v5667, 0.0
      %v5733 = vmax.f32 %v5669, 0.0
      %v5734 = vmax.f32 %v5671, 0.0
      %v5735 = vmax.f32 %v5675, 0.0
      %v5736 = vmax.f32 %v5677, 0.0
      %v5737 = vmax.f32 %v5679, 0.0
      %v5738 = vmax.f32 %v5681, 0.0
      %v5739 = vmax.f32 %v5685, 0.0
      %v5740 = vmax.f32 %v5687, 0.0
      %v5741 = vmax.f32 %v5689, 0.0
      %v5742 = vmax.f32 %v5691, 0.0
      %v5743 = vmax.f32 %v5695, 0.0
      %v5744 = vmax.f32 %v5697, 0.0
      %v5745 = vmax.f32 %v5699, 0.0
      %v5746 = vmax.f32 %v5701, 0.0
      %v5747 = vmax.f32 %v5705, 0.0
      %v5748 = vmax.f32 %v5707, 0.0
      %v5749 = vmax.f32 %v5709, 0.0
      %v5750 = vmax.f32 %v5711, 0.0
      %v5751 = vmax.f32 %v5715, 0.0
      %v5752 = vmax.f32 %v5717, 0.0
      %v5753 = vmax.f32 %v5719, 0.0
      %v5754 = vmax.f32 %v5721, 0.0
      %5755 = vrot.lane.b32.xlu0 %v5747, 17
      %v5756 = vpop.permute.xlu0 %5755
      %5757 = vrot.lane.b32.xlu0 %v5749, 17
      %v5758 = vpop.permute.xlu0 %5757
      %5759 = vrot.lane.b32.xlu0 %v5751, 17
      %v5760 = vpop.permute.xlu0 %5759
      %5761 = vrot.lane.b32.xlu0 %v5753, 17
      %v5762 = vpop.permute.xlu0 %5761
      %5763 = vrot.lane.b32.xlu0 %v5748, 17
      %v5764 = vpop.permute.xlu0 %5763
      %5765 = vrot.lane.b32.xlu0 %v5750, 17
      %v5766 = vpop.permute.xlu0 %5765
      %5767 = vrot.lane.b32.xlu0 %v5752, 17
      %v5768 = vpop.permute.xlu0 %5767
      %5769 = vrot.lane.b32.xlu0 %v5754, 17
      %v5770 = vpop.permute.xlu0 %5769
      %v5771 = vsel %vm458, %v5756, %v5764
      %v5772 = vsel %vm458, %v5758, %v5766
      %v5773 = vsel %vm458, %v5760, %v5768
      %v5774 = vsel %vm458, %v5762, %v5770
      %v5775 = vsel %vm458, %v5764, %v5756
      %v5776 = vsel %vm458, %v5766, %v5758
      %v5777 = vsel %vm458, %v5768, %v5760
      %v5778 = vsel %vm458, %v5770, %v5762
      %v5779 = vsel %vm470, %v5775, 0.0
      %v5780 = vsel %vm471, %v5771, 0.0
      %v5781 = vsel %vm470, %v5776, 0.0
      %v5782 = vsel %vm471, %v5772, 0.0
      %v5783 = vsel %vm470, %v5777, 0.0
      %v5784 = vsel %vm471, %v5773, 0.0
      %v5785 = vsel %vm470, %v5778, 0.0
      %v5786 = vsel %vm471, %v5774, 0.0
      %v5787 = vpack.c.bf16 %v5781, %v5779
      %v5788 = vpack.c.bf16 %v5782, %v5780
      %v5789 = vpack.c.bf16 %v5785, %v5783
      %v5790 = vpack.c.bf16 %v5786, %v5784
      %5791 = vrot.lane.b32.xlu0 %v5739, 16
      %v5792 = vpop.permute.xlu0 %5791
      %5793 = vrot.lane.b32.xlu0 %v5741, 16
      %v5794 = vpop.permute.xlu0 %5793
      %5795 = vrot.lane.b32.xlu0 %v5743, 16
      %v5796 = vpop.permute.xlu0 %5795
      %5797 = vrot.lane.b32.xlu0 %v5745, 16
      %v5798 = vpop.permute.xlu0 %5797
      %5799 = vrot.lane.b32.xlu0 %v5740, 16
      %v5800 = vpop.permute.xlu0 %5799
      %5801 = vrot.lane.b32.xlu0 %v5742, 16
      %v5802 = vpop.permute.xlu0 %5801
      %5803 = vrot.lane.b32.xlu0 %v5744, 16
      %v5804 = vpop.permute.xlu0 %5803
      %5805 = vrot.lane.b32.xlu0 %v5746, 16
      %v5806 = vpop.permute.xlu0 %5805
      %v5807 = vsel %vm478, %v5792, %v5800
      %v5808 = vsel %vm478, %v5794, %v5802
      %v5809 = vsel %vm478, %v5796, %v5804
      %v5810 = vsel %vm478, %v5798, %v5806
      %v5811 = vsel %vm478, %v5800, %v5792
      %v5812 = vsel %vm478, %v5802, %v5794
      %v5813 = vsel %vm478, %v5804, %v5796
      %v5814 = vsel %vm478, %v5806, %v5798
      %v5815 = vsel %vm466, %v5811, 0.0
      %v5816 = vsel %vm467, %v5807, 0.0
      %v5817 = vsel %vm466, %v5812, 0.0
      %v5818 = vsel %vm467, %v5808, 0.0
      %v5819 = vsel %vm466, %v5813, 0.0
      %v5820 = vsel %vm467, %v5809, 0.0
      %v5821 = vsel %vm466, %v5814, 0.0
      %v5822 = vsel %vm467, %v5810, 0.0
      %v5823 = vpack.c.bf16 %v5817, %v5815
      %v5824 = vpack.c.bf16 %v5818, %v5816
      %v5825 = vpack.c.bf16 %v5821, %v5819
      %v5826 = vpack.c.bf16 %v5822, %v5820
      %5827 = vrot.lane.b32.xlu0 %v5747, 16
      %v5828 = vpop.permute.xlu0 %5827
      %5829 = vrot.lane.b32.xlu0 %v5749, 16
      %v5830 = vpop.permute.xlu0 %5829
      %5831 = vrot.lane.b32.xlu0 %v5751, 16
      %v5832 = vpop.permute.xlu0 %5831
      %5833 = vrot.lane.b32.xlu0 %v5753, 16
      %v5834 = vpop.permute.xlu0 %5833
      %5835 = vrot.lane.b32.xlu0 %v5748, 16
      %v5836 = vpop.permute.xlu0 %5835
      %5837 = vrot.lane.b32.xlu0 %v5750, 16
      %v5838 = vpop.permute.xlu0 %5837
      %5839 = vrot.lane.b32.xlu0 %v5752, 16
      %v5840 = vpop.permute.xlu0 %5839
      %5841 = vrot.lane.b32.xlu0 %v5754, 16
      %v5842 = vpop.permute.xlu0 %5841
      %v5843 = vsel %vm478, %v5828, %v5836
      %v5844 = vsel %vm478, %v5830, %v5838
      %v5845 = vsel %vm478, %v5832, %v5840
      %v5846 = vsel %vm478, %v5834, %v5842
      %v5847 = vsel %vm478, %v5836, %v5828
      %v5848 = vsel %vm478, %v5838, %v5830
      %v5849 = vsel %vm478, %v5840, %v5832
      %v5850 = vsel %vm478, %v5842, %v5834
      %v5851 = vsel %vm466, %v5847, 0.0
      %v5852 = vsel %vm467, %v5843, 0.0
      %v5853 = vsel %vm466, %v5848, 0.0
      %v5854 = vsel %vm467, %v5844, 0.0
      %v5855 = vsel %vm466, %v5849, 0.0
      %v5856 = vsel %vm467, %v5845, 0.0
      %v5857 = vsel %vm466, %v5850, 0.0
      %v5858 = vsel %vm467, %v5846, 0.0
      %v5859 = vpack.c.bf16 %v5853, %v5851
      %v5860 = vpack.c.bf16 %v5854, %v5852
      %v5861 = vpack.c.bf16 %v5857, %v5855
      %v5862 = vpack.c.bf16 %v5858, %v5856
      %5863 = vrot.lane.b32.xlu0 %v5731, 1
      %v5864 = vpop.permute.xlu0 %5863
      %5865 = vrot.lane.b32.xlu0 %v5733, 1
      %v5866 = vpop.permute.xlu0 %5865
      %5867 = vrot.lane.b32.xlu0 %v5735, 1
      %v5868 = vpop.permute.xlu0 %5867
      %5869 = vrot.lane.b32.xlu0 %v5737, 1
      %v5870 = vpop.permute.xlu0 %5869
      %5871 = vrot.lane.b32.xlu0 %v5732, 1
      %v5872 = vpop.permute.xlu0 %5871
      %5873 = vrot.lane.b32.xlu0 %v5734, 1
      %v5874 = vpop.permute.xlu0 %5873
      %5875 = vrot.lane.b32.xlu0 %v5736, 1
      %v5876 = vpop.permute.xlu0 %5875
      %5877 = vrot.lane.b32.xlu0 %v5738, 1
      %v5878 = vpop.permute.xlu0 %5877
      %v5879 = vsel %vm500, %v5864, %v5872
      %v5880 = vsel %vm500, %v5866, %v5874
      %v5881 = vsel %vm500, %v5868, %v5876
      %v5882 = vsel %vm500, %v5870, %v5878
      %v5883 = vsel %vm500, %v5872, %v5864
      %v5884 = vsel %vm500, %v5874, %v5866
      %v5885 = vsel %vm500, %v5876, %v5868
      %v5886 = vsel %vm500, %v5878, %v5870
      %v5887 = vsel %vm468, %v5883, 0.0
      %v5888 = vsel %vm469, %v5879, 0.0
      %v5889 = vsel %vm468, %v5884, 0.0
      %v5890 = vsel %vm469, %v5880, 0.0
      %v5891 = vsel %vm468, %v5885, 0.0
      %v5892 = vsel %vm469, %v5881, 0.0
      %v5893 = vsel %vm468, %v5886, 0.0
      %v5894 = vsel %vm469, %v5882, 0.0
      %v5895 = vpack.c.bf16 %v5889, %v5887
      %v5896 = vpack.c.bf16 %v5890, %v5888
      %v5897 = vpack.c.bf16 %v5893, %v5891
      %v5898 = vpack.c.bf16 %v5894, %v5892
      %v5899 = vpack.c.bf16 %v5725, %v5723
      %v5900 = vpack.c.bf16 %v5726, %v5724
      %v5901 = vpack.c.bf16 %v5729, %v5727
      %v5902 = vpack.c.bf16 %v5730, %v5728
      %v5903 = vpack.c.bf16 %v5733, %v5731
      %v5904 = vpack.c.bf16 %v5734, %v5732
      %v5905 = vpack.c.bf16 %v5737, %v5735
      %v5906 = vpack.c.bf16 %v5738, %v5736
      %5907 = vrot.lane.b32.xlu0 %v5747, 1
      %v5908 = vpop.permute.xlu0 %5907
      %5909 = vrot.lane.b32.xlu0 %v5749, 1
      %v5910 = vpop.permute.xlu0 %5909
      %5911 = vrot.lane.b32.xlu0 %v5751, 1
      %v5912 = vpop.permute.xlu0 %5911
      %5913 = vrot.lane.b32.xlu0 %v5753, 1
      %v5914 = vpop.permute.xlu0 %5913
      %5915 = vrot.lane.b32.xlu0 %v5748, 1
      %v5916 = vpop.permute.xlu0 %5915
      %5917 = vrot.lane.b32.xlu0 %v5750, 1
      %v5918 = vpop.permute.xlu0 %5917
      %5919 = vrot.lane.b32.xlu0 %v5752, 1
      %v5920 = vpop.permute.xlu0 %5919
      %5921 = vrot.lane.b32.xlu0 %v5754, 1
      %v5922 = vpop.permute.xlu0 %5921
      %v5923 = vsel %vm500, %v5908, %v5916
      %v5924 = vsel %vm500, %v5910, %v5918
      %v5925 = vsel %vm500, %v5912, %v5920
      %v5926 = vsel %vm500, %v5914, %v5922
      %v5927 = vsel %vm500, %v5916, %v5908
      %v5928 = vsel %vm500, %v5918, %v5910
      %v5929 = vsel %vm500, %v5920, %v5912
      %v5930 = vsel %vm500, %v5922, %v5914
      %v5931 = vsel %vm468, %v5927, 0.0
      %v5932 = vsel %vm469, %v5923, 0.0
      %v5933 = vsel %vm468, %v5928, 0.0
      %v5934 = vsel %vm469, %v5924, 0.0
      %v5935 = vsel %vm468, %v5929, 0.0
      %v5936 = vsel %vm469, %v5925, 0.0
      %v5937 = vsel %vm468, %v5930, 0.0
      %v5938 = vsel %vm469, %v5926, 0.0
      %v5939 = vpack.c.bf16 %v5933, %v5931
      %v5940 = vpack.c.bf16 %v5934, %v5932
      %v5941 = vpack.c.bf16 %v5937, %v5935
      %v5942 = vpack.c.bf16 %v5938, %v5936
      %v5943 = vpack.c.bf16 %v5741, %v5739
      %v5944 = vpack.c.bf16 %v5742, %v5740
      %v5945 = vpack.c.bf16 %v5745, %v5743
      %v5946 = vpack.c.bf16 %v5746, %v5744
      %v5947 = vpack.c.bf16 %v5749, %v5747
      %v5948 = vpack.c.bf16 %v5750, %v5748
      %v5949 = vpack.c.bf16 %v5753, %v5751
      %v5950 = vpack.c.bf16 %v5754, %v5752
      %5951 = vrot.lane.b32.xlu0 %v5739, 15
      %v5952 = vpop.permute.xlu0 %5951
      %5953 = vrot.lane.b32.xlu0 %v5741, 15
      %v5954 = vpop.permute.xlu0 %5953
      %5955 = vrot.lane.b32.xlu0 %v5743, 15
      %v5956 = vpop.permute.xlu0 %5955
      %5957 = vrot.lane.b32.xlu0 %v5745, 15
      %v5958 = vpop.permute.xlu0 %5957
      %5959 = vrot.lane.b32.xlu0 %v5740, 15
      %v5960 = vpop.permute.xlu0 %5959
      %5961 = vrot.lane.b32.xlu0 %v5742, 15
      %v5962 = vpop.permute.xlu0 %5961
      %5963 = vrot.lane.b32.xlu0 %v5744, 15
      %v5964 = vpop.permute.xlu0 %5963
      %5965 = vrot.lane.b32.xlu0 %v5746, 15
      %v5966 = vpop.permute.xlu0 %5965
      %v5967 = vsel %vm487, %v5952, %v5960
      %v5968 = vsel %vm487, %v5954, %v5962
      %v5969 = vsel %vm487, %v5956, %v5964
      %v5970 = vsel %vm487, %v5958, %v5966
      %v5971 = vsel %vm487, %v5960, %v5952
      %v5972 = vsel %vm487, %v5962, %v5954
      %v5973 = vsel %vm487, %v5964, %v5956
      %v5974 = vsel %vm487, %v5966, %v5958
      %v5975 = vsel %vm492, %v5971, 0.0
      %v5976 = vsel %vm493, %v5967, 0.0
      %v5977 = vsel %vm492, %v5972, 0.0
      %v5978 = vsel %vm493, %v5968, 0.0
      %v5979 = vsel %vm492, %v5973, 0.0
      %v5980 = vsel %vm493, %v5969, 0.0
      %v5981 = vsel %vm492, %v5974, 0.0
      %v5982 = vsel %vm493, %v5970, 0.0
      %v5983 = vpack.c.bf16 %v5977, %v5975
      %v5984 = vpack.c.bf16 %v5978, %v5976
      %v5985 = vpack.c.bf16 %v5981, %v5979
      %v5986 = vpack.c.bf16 %v5982, %v5980
      %5987 = vrot.lane.b32.xlu0 %v5723, 127
      %v5988 = vpop.permute.xlu0 %5987
      %5989 = vrot.lane.b32.xlu0 %v5725, 127
      %v5990 = vpop.permute.xlu0 %5989
      %5991 = vrot.lane.b32.xlu0 %v5727, 127
      %v5992 = vpop.permute.xlu0 %5991
      %5993 = vrot.lane.b32.xlu0 %v5729, 127
      %v5994 = vpop.permute.xlu0 %5993
      %5995 = vrot.lane.b32.xlu0 %v5724, 127
      %v5996 = vpop.permute.xlu0 %5995
      %5997 = vrot.lane.b32.xlu0 %v5726, 127
      %v5998 = vpop.permute.xlu0 %5997
      %5999 = vrot.lane.b32.xlu0 %v5728, 127
      %v6000 = vpop.permute.xlu0 %5999
      %6001 = vrot.lane.b32.xlu0 %v5730, 127
      %v6002 = vpop.permute.xlu0 %6001
      %v6003 = vsel %vm509, %v5988, %v5996
      %v6004 = vsel %vm509, %v5990, %v5998
      %v6005 = vsel %vm509, %v5992, %v6000
      %v6006 = vsel %vm509, %v5994, %v6002
      %v6007 = vsel %vm509, %v5996, %v5988
      %v6008 = vsel %vm509, %v5998, %v5990
      %v6009 = vsel %vm509, %v6000, %v5992
      %v6010 = vsel %vm509, %v6002, %v5994
      %v6011 = vsel %vm490, %v6003, 0.0
      %v6012 = vsel %vm491, %v6007, 0.0
      %v6013 = vsel %vm490, %v6004, 0.0
      %v6014 = vsel %vm491, %v6008, 0.0
      %v6015 = vsel %vm490, %v6005, 0.0
      %v6016 = vsel %vm491, %v6009, 0.0
      %v6017 = vsel %vm490, %v6006, 0.0
      %v6018 = vsel %vm491, %v6010, 0.0
      %v6019 = vpack.c.bf16 %v6013, %v6011
      %v6020 = vpack.c.bf16 %v6014, %v6012
      %v6021 = vpack.c.bf16 %v6017, %v6015
      %v6022 = vpack.c.bf16 %v6018, %v6016
      %6023 = vrot.lane.b32.xlu0 %v5739, 127
      %v6024 = vpop.permute.xlu0 %6023
      %6025 = vrot.lane.b32.xlu0 %v5741, 127
      %v6026 = vpop.permute.xlu0 %6025
      %6027 = vrot.lane.b32.xlu0 %v5743, 127
      %v6028 = vpop.permute.xlu0 %6027
      %6029 = vrot.lane.b32.xlu0 %v5745, 127
      %v6030 = vpop.permute.xlu0 %6029
      %6031 = vrot.lane.b32.xlu0 %v5740, 127
      %v6032 = vpop.permute.xlu0 %6031
      %6033 = vrot.lane.b32.xlu0 %v5742, 127
      %v6034 = vpop.permute.xlu0 %6033
      %6035 = vrot.lane.b32.xlu0 %v5744, 127
      %v6036 = vpop.permute.xlu0 %6035
      %6037 = vrot.lane.b32.xlu0 %v5746, 127
      %v6038 = vpop.permute.xlu0 %6037
      %v6039 = vsel %vm509, %v6024, %v6032
      %v6040 = vsel %vm509, %v6026, %v6034
      %v6041 = vsel %vm509, %v6028, %v6036
      %v6042 = vsel %vm509, %v6030, %v6038
      %v6043 = vsel %vm509, %v6032, %v6024
      %v6044 = vsel %vm509, %v6034, %v6026
      %v6045 = vsel %vm509, %v6036, %v6028
      %v6046 = vsel %vm509, %v6038, %v6030
      %v6047 = vsel %vm490, %v6039, 0.0
      %v6048 = vsel %vm491, %v6043, 0.0
      %v6049 = vsel %vm490, %v6040, 0.0
      %v6050 = vsel %vm491, %v6044, 0.0
      %v6051 = vsel %vm490, %v6041, 0.0
      %v6052 = vsel %vm491, %v6045, 0.0
      %v6053 = vsel %vm490, %v6042, 0.0
      %v6054 = vsel %vm491, %v6046, 0.0
      %v6055 = vpack.c.bf16 %v6049, %v6047
      %v6056 = vpack.c.bf16 %v6050, %v6048
      %v6057 = vpack.c.bf16 %v6053, %v6051
      %v6058 = vpack.c.bf16 %v6054, %v6052
      %6059 = vrot.lane.b32.xlu0 %v5731, 113
      %v6060 = vpop.permute.xlu0 %6059
      %6061 = vrot.lane.b32.xlu0 %v5733, 113
      %v6062 = vpop.permute.xlu0 %6061
      %6063 = vrot.lane.b32.xlu0 %v5735, 113
      %v6064 = vpop.permute.xlu0 %6063
      %6065 = vrot.lane.b32.xlu0 %v5737, 113
      %v6066 = vpop.permute.xlu0 %6065
      %6067 = vrot.lane.b32.xlu0 %v5732, 113
      %v6068 = vpop.permute.xlu0 %6067
      %6069 = vrot.lane.b32.xlu0 %v5734, 113
      %v6070 = vpop.permute.xlu0 %6069
      %6071 = vrot.lane.b32.xlu0 %v5736, 113
      %v6072 = vpop.permute.xlu0 %6071
      %6073 = vrot.lane.b32.xlu0 %v5738, 113
      %v6074 = vpop.permute.xlu0 %6073
      %v6075 = vsel %vm518, %v6060, %v6068
      %v6076 = vsel %vm518, %v6062, %v6070
      %v6077 = vsel %vm518, %v6064, %v6072
      %v6078 = vsel %vm518, %v6066, %v6074
      %v6079 = vsel %vm518, %v6068, %v6060
      %v6080 = vsel %vm518, %v6070, %v6062
      %v6081 = vsel %vm518, %v6072, %v6064
      %v6082 = vsel %vm518, %v6074, %v6066
      %v6083 = vsel %vm523, %v6075, 0.0
      %v6084 = vsel %vm524, %v6079, 0.0
      %v6085 = vsel %vm523, %v6076, 0.0
      %v6086 = vsel %vm524, %v6080, 0.0
      %v6087 = vsel %vm523, %v6077, 0.0
      %v6088 = vsel %vm524, %v6081, 0.0
      %v6089 = vsel %vm523, %v6078, 0.0
      %v6090 = vsel %vm524, %v6082, 0.0
      %v6091 = vpack.c.bf16 %v6085, %v6083
      %v6092 = vpack.c.bf16 %v6086, %v6084
      %v6093 = vpack.c.bf16 %v6089, %v6087
      %v6094 = vpack.c.bf16 %v6090, %v6088
      %6095 = vrot.lane.b32.xlu0 %v5723, 112
      %v6096 = vpop.permute.xlu0 %6095
      %6097 = vrot.lane.b32.xlu0 %v5725, 112
      %v6098 = vpop.permute.xlu0 %6097
      %6099 = vrot.lane.b32.xlu0 %v5727, 112
      %v6100 = vpop.permute.xlu0 %6099
      %6101 = vrot.lane.b32.xlu0 %v5729, 112
      %v6102 = vpop.permute.xlu0 %6101
      %6103 = vrot.lane.b32.xlu0 %v5724, 112
      %v6104 = vpop.permute.xlu0 %6103
      %6105 = vrot.lane.b32.xlu0 %v5726, 112
      %v6106 = vpop.permute.xlu0 %6105
      %6107 = vrot.lane.b32.xlu0 %v5728, 112
      %v6108 = vpop.permute.xlu0 %6107
      %6109 = vrot.lane.b32.xlu0 %v5730, 112
      %v6110 = vpop.permute.xlu0 %6109
      %v6111 = vsel %vm531, %v6096, %v6104
      %v6112 = vsel %vm531, %v6098, %v6106
      %v6113 = vsel %vm531, %v6100, %v6108
      %v6114 = vsel %vm531, %v6102, %v6110
      %v6115 = vsel %vm531, %v6104, %v6096
      %v6116 = vsel %vm531, %v6106, %v6098
      %v6117 = vsel %vm531, %v6108, %v6100
      %v6118 = vsel %vm531, %v6110, %v6102
      %v6119 = vsel %vm521, %v6111, 0.0
      %v6120 = vsel %vm522, %v6115, 0.0
      %v6121 = vsel %vm521, %v6112, 0.0
      %v6122 = vsel %vm522, %v6116, 0.0
      %v6123 = vsel %vm521, %v6113, 0.0
      %v6124 = vsel %vm522, %v6117, 0.0
      %v6125 = vsel %vm521, %v6114, 0.0
      %v6126 = vsel %vm522, %v6118, 0.0
      %v6127 = vpack.c.bf16 %v6121, %v6119
      %v6128 = vpack.c.bf16 %v6122, %v6120
      %v6129 = vpack.c.bf16 %v6125, %v6123
      %v6130 = vpack.c.bf16 %v6126, %v6124
      %6131 = vrot.lane.b32.xlu0 %v5731, 112
      %v6132 = vpop.permute.xlu0 %6131
      %6133 = vrot.lane.b32.xlu0 %v5733, 112
      %v6134 = vpop.permute.xlu0 %6133
      %6135 = vrot.lane.b32.xlu0 %v5735, 112
      %v6136 = vpop.permute.xlu0 %6135
      %6137 = vrot.lane.b32.xlu0 %v5737, 112
      %v6138 = vpop.permute.xlu0 %6137
      %6139 = vrot.lane.b32.xlu0 %v5732, 112
      %v6140 = vpop.permute.xlu0 %6139
      %6141 = vrot.lane.b32.xlu0 %v5734, 112
      %v6142 = vpop.permute.xlu0 %6141
      %6143 = vrot.lane.b32.xlu0 %v5736, 112
      %v6144 = vpop.permute.xlu0 %6143
      %6145 = vrot.lane.b32.xlu0 %v5738, 112
      %v6146 = vpop.permute.xlu0 %6145
      %v6147 = vsel %vm531, %v6132, %v6140
      %v6148 = vsel %vm531, %v6134, %v6142
      %v6149 = vsel %vm531, %v6136, %v6144
      %v6150 = vsel %vm531, %v6138, %v6146
      %v6151 = vsel %vm531, %v6140, %v6132
      %v6152 = vsel %vm531, %v6142, %v6134
      %v6153 = vsel %vm531, %v6144, %v6136
      %v6154 = vsel %vm531, %v6146, %v6138
      %v6155 = vsel %vm521, %v6147, 0.0
      %v6156 = vsel %vm522, %v6151, 0.0
      %v6157 = vsel %vm521, %v6148, 0.0
      %v6158 = vsel %vm522, %v6152, 0.0
      %v6159 = vsel %vm521, %v6149, 0.0
      %v6160 = vsel %vm522, %v6153, 0.0
      %v6161 = vsel %vm521, %v6150, 0.0
      %v6162 = vsel %vm522, %v6154, 0.0
      %v6163 = vpack.c.bf16 %v6157, %v6155
      %v6164 = vpack.c.bf16 %v6158, %v6156
      %v6165 = vpack.c.bf16 %v6161, %v6159
      %v6166 = vpack.c.bf16 %v6162, %v6160
      %6167 = vrot.lane.b32.xlu0 %v5723, 111
      %v6168 = vpop.permute.xlu0 %6167
      %6169 = vrot.lane.b32.xlu0 %v5725, 111
      %v6170 = vpop.permute.xlu0 %6169
      %6171 = vrot.lane.b32.xlu0 %v5727, 111
      %v6172 = vpop.permute.xlu0 %6171
      %6173 = vrot.lane.b32.xlu0 %v5729, 111
      %v6174 = vpop.permute.xlu0 %6173
      %6175 = vrot.lane.b32.xlu0 %v5724, 111
      %v6176 = vpop.permute.xlu0 %6175
      %6177 = vrot.lane.b32.xlu0 %v5726, 111
      %v6178 = vpop.permute.xlu0 %6177
      %6179 = vrot.lane.b32.xlu0 %v5728, 111
      %v6180 = vpop.permute.xlu0 %6179
      %6181 = vrot.lane.b32.xlu0 %v5730, 111
      %v6182 = vpop.permute.xlu0 %6181
      %v6183 = vsel %vm540, %v6168, %v6176
      %v6184 = vsel %vm540, %v6170, %v6178
      %v6185 = vsel %vm540, %v6172, %v6180
      %v6186 = vsel %vm540, %v6174, %v6182
      %v6187 = vsel %vm540, %v6176, %v6168
      %v6188 = vsel %vm540, %v6178, %v6170
      %v6189 = vsel %vm540, %v6180, %v6172
      %v6190 = vsel %vm540, %v6182, %v6174
      %v6191 = vsel %vm543, %v6183, 0.0
      %v6192 = vsel %vm544, %v6187, 0.0
      %v6193 = vsel %vm543, %v6184, 0.0
      %v6194 = vsel %vm544, %v6188, 0.0
      %v6195 = vsel %vm543, %v6185, 0.0
      %v6196 = vsel %vm544, %v6189, 0.0
      %v6197 = vsel %vm543, %v6186, 0.0
      %v6198 = vsel %vm544, %v6190, 0.0
      %v6199 = vpack.c.bf16 %v6193, %v6191
      %v6200 = vpack.c.bf16 %v6194, %v6192
      %v6201 = vpack.c.bf16 %v6197, %v6195
      %v6202 = vpack.c.bf16 %v6198, %v6196
      %v6203 = vld [vmem:[%s11] sm:$0x3f]
      %v6204 = vld [vmem:[%s12] sm:$0xf]
      %6206 = vset.pattern.permute.xlu0 0
      %6207 = vperm.xlu0 %6206, %v6204
      %v6208 = vpop.permute.xlu0 %6207
      %v6211 = vcombine.high %v6203, %v6203
      %v6213 = vunpack.c.l.s4 1983009808
      %v6214 = vunpack.c.0.s8 %v6213
      %v6215 = vlaneseq
      %v6216 = vshrl.u32 %v6215, 7
      %v6217 = vsub.s32 %v6214, %v6216
      %v6218 = vrot.slane %v6203, %v6217
      %v6220 = vunpack.c.l.s4 1983009808
      %v6221 = vunpack.c.0.s8 %v6220
      %v6222 = vlaneseq
      %v6223 = vshrl.u32 %v6222, 7
      %v6224 = vsub.s32 %v6221, %v6223
      %v6225 = vrot.slane %v6211, %v6224
      %v6226 = vcombine.high %v6218, %v6218
      %v6230 = vsel %vm1008, %v6225, 0
      %6232 = vmatprep.subr.bf16.mxu0 %v5788
      %6233 = vmatpush1.bf16.msra.mxu0 %v5787
      %6234 = vmatprep.subr.bf16.mxu0 %v5790
      %6235 = vmatpush1.bf16.msra.mxu0 %v5789
      %6236 = vmatprep.subr.bf16.mxu0 %v5824
      %6237 = vmatpush1.bf16.msra.mxu0 %v5823
      %6238 = vmatprep.subr.bf16.mxu0 %v5826
      %6239 = vmatpush1.bf16.msra.mxu0 %v5825
      %6240 = vmatprep.subr.bf16.mxu0 %v5860
      %6241 = vmatpush1.bf16.msra.mxu0 %v5859
      %6242 = vmatprep.subr.bf16.mxu0 %v5862
      %6243 = vmatpush1.bf16.msra.mxu0 %v5861
      %6244 = vmatprep.subr.bf16.mxu0 %v5896
      %6245 = vmatpush1.bf16.msra.mxu0 %v5895
      %6246 = vmatprep.subr.bf16.mxu0 %v5898
      %6247 = vmatpush1.bf16.msra.mxu0 %v5897
      %6248 = vmatprep.subr.bf16.mxu0 %v5900
      %6249 = vmatpush1.bf16.msra.mxu0 %v5899
      %6250 = vmatprep.subr.bf16.mxu0 %v5902
      %6251 = vmatpush1.bf16.msra.mxu0 %v5901
      %6252 = vmatprep.subr.bf16.mxu0 %v5904
      %6253 = vmatpush1.bf16.msra.mxu0 %v5903
      %6254 = vmatprep.subr.bf16.mxu0 %v5906
      %6255 = vmatpush1.bf16.msra.mxu0 %v5905
      %6256 = vmatprep.subr.bf16.mxu0 %v5940
      %6257 = vmatpush1.bf16.msra.mxu0 %v5939
      %6258 = vmatprep.subr.bf16.mxu0 %v5942
      %6259 = vmatpush1.bf16.msra.mxu0 %v5941
      %6260 = vmatprep.subr.bf16.mxu0 %v5944
      %6261 = vmatpush1.bf16.msra.mxu0 %v5943
      %6262 = vmatprep.subr.bf16.mxu0 %v5946
      %6263 = vmatpush1.bf16.msra.mxu0 %v5945
      %6264 = vmatprep.mubr.bf16.mxu0 %v6226
      %6265 = vmatmul.mubr.bf16.gmra.mrb[0].mxu0 %v6218
      %v6266 = vpop.f32.mrb[0].mxu0
      %v6267 = vadd.f32 %v6208, %v6266
      %v6268 = vpop.f32.mrb[0].mxu0
      %v6269 = vadd.f32 %v6208, %v6268
      %v6270 = vpop.f32.mrb[0].mxu0
      %v6271 = vpop.f32.mrb[0].mxu0
      %6272 = vdwg.mxu0
      %6273 = vmatprep.subr.bf16.mxu0 %v5948
      %6274 = vmatpush1.bf16.msra.mxu0 %v5947
      %6275 = vmatprep.subr.bf16.mxu0 %v5950
      %6276 = vmatpush1.bf16.msra.mxu0 %v5949
      %6277 = vmatprep.subr.bf16.mxu0 0
      %6278 = vmatpush1.bf16.msra.mxu0 0
      %6279 = vmatprep.subr.bf16.mxu0 0
      %6280 = vmatpush1.bf16.msra.mxu0 0
      %6281 = vmatprep.subr.bf16.mxu0 0
      %6282 = vmatpush1.bf16.msra.mxu0 0
      %6283 = vmatprep.subr.bf16.mxu0 0
      %6284 = vmatpush1.bf16.msra.mxu0 0
      %6285 = vmatprep.subr.bf16.mxu0 0
      %6286 = vmatpush1.bf16.msra.mxu0 0
      %6287 = vmatprep.subr.bf16.mxu0 0
      %6288 = vmatpush1.bf16.msra.mxu0 0
      %6289 = vmatprep.subr.bf16.mxu0 0
      %6290 = vmatpush1.bf16.msra.mxu0 0
      %6291 = vmatprep.subr.bf16.mxu0 0
      %6292 = vmatpush1.bf16.msra.mxu0 0
      %6293 = vmatprep.subr.bf16.mxu0 0
      %6294 = vmatpush1.bf16.msra.mxu0 0
      %6295 = vmatprep.subr.bf16.mxu0 0
      %6296 = vmatpush1.bf16.msra.mxu0 0
      %6297 = vmatprep.subr.bf16.mxu0 0
      %6298 = vmatpush1.bf16.msra.mxu0 0
      %6299 = vmatprep.subr.bf16.mxu0 0
      %6300 = vmatpush1.bf16.msra.mxu0 0
      %6301 = vmatprep.subr.bf16.mxu0 0
      %6302 = vmatpush1.bf16.msra.mxu0 0
      %6303 = vmatprep.subr.bf16.mxu0 0
      %6304 = vmatpush1.bf16.msra.mxu0 0
      %6305 = vmatprep.mubr.bf16.mxu0 0
      %6306 = vmatmul.mubr.bf16.gmra.mrb[0].mxu0 %v6230
      %v6307 = vpop.f32.mrb[0].mxu0
      %v6308 = vadd.f32 %v6267, %v6307
      %v6309 = vpop.f32.mrb[0].mxu0
      %v6310 = vadd.f32 %v6269, %v6309
      %v6311 = vpop.f32.mrb[0].mxu0
      %v6312 = vpop.f32.mrb[0].mxu0
      %6313 = vdwg.mxu0
      %6314 = vmatprep.subr.bf16.mxu0 %v5824
      %6315 = vmatpush1.bf16.msra.mxu0 %v5823
      %6316 = vmatprep.subr.bf16.mxu0 %v5826
      %6317 = vmatpush1.bf16.msra.mxu0 %v5825
      %6318 = vmatprep.subr.bf16.mxu0 %v5860
      %6319 = vmatpush1.bf16.msra.mxu0 %v5859
      %6320 = vmatprep.subr.bf16.mxu0 %v5862
      %6321 = vmatpush1.bf16.msra.mxu0 %v5861
      %6322 = vmatprep.subr.bf16.mxu0 %v5984
      %6323 = vmatpush1.bf16.msra.mxu0 %v5983
      %6324 = vmatprep.subr.bf16.mxu0 %v5986
      %6325 = vmatpush1.bf16.msra.mxu0 %v5985
      %6326 = vmatprep.subr.bf16.mxu0 %v5900
      %6327 = vmatpush1.bf16.msra.mxu0 %v5899
      %6328 = vmatprep.subr.bf16.mxu0 %v5902
      %6329 = vmatpush1.bf16.msra.mxu0 %v5901
      %6330 = vmatprep.subr.bf16.mxu0 %v5904
      %6331 = vmatpush1.bf16.msra.mxu0 %v5903
      %6332 = vmatprep.subr.bf16.mxu0 %v5906
      %6333 = vmatpush1.bf16.msra.mxu0 %v5905
      %6334 = vmatprep.subr.bf16.mxu0 %v6020
      %6335 = vmatpush1.bf16.msra.mxu0 %v6019
      %6336 = vmatprep.subr.bf16.mxu0 %v6022
      %6337 = vmatpush1.bf16.msra.mxu0 %v6021
      %6338 = vmatprep.subr.bf16.mxu0 %v5944
      %6339 = vmatpush1.bf16.msra.mxu0 %v5943
      %6340 = vmatprep.subr.bf16.mxu0 %v5946
      %6341 = vmatpush1.bf16.msra.mxu0 %v5945
      %6342 = vmatprep.subr.bf16.mxu0 %v5948
      %6343 = vmatpush1.bf16.msra.mxu0 %v5947
      %6344 = vmatprep.subr.bf16.mxu0 %v5950
      %6345 = vmatpush1.bf16.msra.mxu0 %v5949
      %6346 = vmatprep.mubr.bf16.mxu0 %v6226
      %6347 = vmatmul.mubr.bf16.gmra.mrb[0].mxu0 %v6218
      %v6348 = vpop.f32.mrb[0].mxu0
      %v6349 = vadd.f32 %v6208, %v6348
      %v6350 = vpop.f32.mrb[0].mxu0
      %v6351 = vadd.f32 %v6208, %v6350
      %v6352 = vpop.f32.mrb[0].mxu0
      %v6353 = vpop.f32.mrb[0].mxu0
      %6354 = vdwg.mxu0
      %6355 = vmatprep.subr.bf16.mxu0 %v6056
      %6356 = vmatpush1.bf16.msra.mxu0 %v6055
      %6357 = vmatprep.subr.bf16.mxu0 %v6058
      %6358 = vmatpush1.bf16.msra.mxu0 %v6057
      %6359 = vmatprep.subr.bf16.mxu0 0
      %6360 = vmatpush1.bf16.msra.mxu0 0
      %6361 = vmatprep.subr.bf16.mxu0 0
      %6362 = vmatpush1.bf16.msra.mxu0 0
      %6363 = vmatprep.subr.bf16.mxu0 0
      %6364 = vmatpush1.bf16.msra.mxu0 0
      %6365 = vmatprep.subr.bf16.mxu0 0
      %6366 = vmatpush1.bf16.msra.mxu0 0
      %6367 = vmatprep.subr.bf16.mxu0 0
      %6368 = vmatpush1.bf16.msra.mxu0 0
      %6369 = vmatprep.subr.bf16.mxu0 0
      %6370 = vmatpush1.bf16.msra.mxu0 0
      %6371 = vmatprep.subr.bf16.mxu0 0
      %6372 = vmatpush1.bf16.msra.mxu0 0
      %6373 = vmatprep.subr.bf16.mxu0 0
      %6374 = vmatpush1.bf16.msra.mxu0 0
      %6375 = vmatprep.subr.bf16.mxu0 0
      %6376 = vmatpush1.bf16.msra.mxu0 0
      %6377 = vmatprep.subr.bf16.mxu0 0
      %6378 = vmatpush1.bf16.msra.mxu0 0
      %6379 = vmatprep.subr.bf16.mxu0 0
      %6380 = vmatpush1.bf16.msra.mxu0 0
      %6381 = vmatprep.subr.bf16.mxu0 0
      %6382 = vmatpush1.bf16.msra.mxu0 0
      %6383 = vmatprep.subr.bf16.mxu0 0
      %6384 = vmatpush1.bf16.msra.mxu0 0
      %6385 = vmatprep.subr.bf16.mxu0 0
      %6386 = vmatpush1.bf16.msra.mxu0 0
      %6387 = vmatprep.mubr.bf16.mxu0 0
      %6388 = vmatmul.mubr.bf16.gmra.mrb[0].mxu0 %v6230
      %v6389 = vpop.f32.mrb[0].mxu0
      %v6390 = vadd.f32 %v6349, %v6389
      %v6391 = vpop.f32.mrb[0].mxu0
      %v6392 = vadd.f32 %v6351, %v6391
      %v6393 = vpop.f32.mrb[0].mxu0
      %v6394 = vpop.f32.mrb[0].mxu0
      %6395 = vdwg.mxu0
      %6396 = vmatprep.subr.bf16.mxu0 %v5896
      %6397 = vmatpush1.bf16.msra.mxu0 %v5895
      %6398 = vmatprep.subr.bf16.mxu0 %v5898
      %6399 = vmatpush1.bf16.msra.mxu0 %v5897
      %6400 = vmatprep.subr.bf16.mxu0 %v5900
      %6401 = vmatpush1.bf16.msra.mxu0 %v5899
      %6402 = vmatprep.subr.bf16.mxu0 %v5902
      %6403 = vmatpush1.bf16.msra.mxu0 %v5901
      %6404 = vmatprep.subr.bf16.mxu0 %v5904
      %6405 = vmatpush1.bf16.msra.mxu0 %v5903
      %6406 = vmatprep.subr.bf16.mxu0 %v5906
      %6407 = vmatpush1.bf16.msra.mxu0 %v5905
      %6408 = vmatprep.subr.bf16.mxu0 %v5940
      %6409 = vmatpush1.bf16.msra.mxu0 %v5939
      %6410 = vmatprep.subr.bf16.mxu0 %v5942
      %6411 = vmatpush1.bf16.msra.mxu0 %v5941
      %6412 = vmatprep.subr.bf16.mxu0 %v5944
      %6413 = vmatpush1.bf16.msra.mxu0 %v5943
      %6414 = vmatprep.subr.bf16.mxu0 %v5946
      %6415 = vmatpush1.bf16.msra.mxu0 %v5945
      %6416 = vmatprep.subr.bf16.mxu0 %v5948
      %6417 = vmatpush1.bf16.msra.mxu0 %v5947
      %6418 = vmatprep.subr.bf16.mxu0 %v5950
      %6419 = vmatpush1.bf16.msra.mxu0 %v5949
      %6420 = vmatprep.subr.bf16.mxu0 %v6092
      %6421 = vmatpush1.bf16.msra.mxu0 %v6091
      %6422 = vmatprep.subr.bf16.mxu0 %v6094
      %6423 = vmatpush1.bf16.msra.mxu0 %v6093
      %6424 = vmatprep.subr.bf16.mxu0 %v6128
      %6425 = vmatpush1.bf16.msra.mxu0 %v6127
      %6426 = vmatprep.subr.bf16.mxu0 %v6130
      %6427 = vmatpush1.bf16.msra.mxu0 %v6129
      %6428 = vmatprep.mubr.bf16.mxu0 %v6226
      %6429 = vmatmul.mubr.bf16.gmra.mrb[0].mxu0 %v6218
      %v6430 = vpop.f32.mrb[0].mxu0
      %v6431 = vadd.f32 %v6208, %v6430
      %v6432 = vpop.f32.mrb[0].mxu0
      %v6433 = vadd.f32 %v6208, %v6432
      %v6434 = vpop.f32.mrb[0].mxu0
      %v6435 = vpop.f32.mrb[0].mxu0
      %6436 = vdwg.mxu0
      %6437 = vmatprep.subr.bf16.mxu0 %v6164
      %6438 = vmatpush1.bf16.msra.mxu0 %v6163
      %6439 = vmatprep.subr.bf16.mxu0 %v6166
      %6440 = vmatpush1.bf16.msra.mxu0 %v6165
      %6441 = vmatprep.subr.bf16.mxu0 0
      %6442 = vmatpush1.bf16.msra.mxu0 0
      %6443 = vmatprep.subr.bf16.mxu0 0
      %6444 = vmatpush1.bf16.msra.mxu0 0
      %6445 = vmatprep.subr.bf16.mxu0 0
      %6446 = vmatpush1.bf16.msra.mxu0 0
      %6447 = vmatprep.subr.bf16.mxu0 0
      %6448 = vmatpush1.bf16.msra.mxu0 0
      %6449 = vmatprep.subr.bf16.mxu0 0
      %6450 = vmatpush1.bf16.msra.mxu0 0
      %6451 = vmatprep.subr.bf16.mxu0 0
      %6452 = vmatpush1.bf16.msra.mxu0 0
      %6453 = vmatprep.subr.bf16.mxu0 0
      %6454 = vmatpush1.bf16.msra.mxu0 0
      %6455 = vmatprep.subr.bf16.mxu0 0
      %6456 = vmatpush1.bf16.msra.mxu0 0
      %6457 = vmatprep.subr.bf16.mxu0 0
      %6458 = vmatpush1.bf16.msra.mxu0 0
      %6459 = vmatprep.subr.bf16.mxu0 0
      %6460 = vmatpush1.bf16.msra.mxu0 0
      %6461 = vmatprep.subr.bf16.mxu0 0
      %6462 = vmatpush1.bf16.msra.mxu0 0
      %6463 = vmatprep.subr.bf16.mxu0 0
      %6464 = vmatpush1.bf16.msra.mxu0 0
      %6465 = vmatprep.subr.bf16.mxu0 0
      %6466 = vmatpush1.bf16.msra.mxu0 0
      %6467 = vmatprep.subr.bf16.mxu0 0
      %6468 = vmatpush1.bf16.msra.mxu0 0
      %6469 = vmatprep.mubr.bf16.mxu0 0
      %6470 = vmatmul.mubr.bf16.gmra.mrb[0].mxu0 %v6230
      %v6471 = vpop.f32.mrb[0].mxu0
      %v6472 = vadd.f32 %v6431, %v6471
      %v6473 = vpop.f32.mrb[0].mxu0
      %v6474 = vadd.f32 %v6433, %v6473
      %v6475 = vpop.f32.mrb[0].mxu0
      %v6476 = vpop.f32.mrb[0].mxu0
      %6477 = vdwg.mxu0
      %6478 = vmatprep.subr.bf16.mxu0 %v5900
      %6479 = vmatpush1.bf16.msra.mxu0 %v5899
      %6480 = vmatprep.subr.bf16.mxu0 %v5902
      %6481 = vmatpush1.bf16.msra.mxu0 %v5901
      %6482 = vmatprep.subr.bf16.mxu0 %v5904
      %6483 = vmatpush1.bf16.msra.mxu0 %v5903
      %6484 = vmatprep.subr.bf16.mxu0 %v5906
      %6485 = vmatpush1.bf16.msra.mxu0 %v5905
      %6486 = vmatprep.subr.bf16.mxu0 %v6020
      %6487 = vmatpush1.bf16.msra.mxu0 %v6019
      %6488 = vmatprep.subr.bf16.mxu0 %v6022
      %6489 = vmatpush1.bf16.msra.mxu0 %v6021
      %6490 = vmatprep.subr.bf16.mxu0 %v5944
      %6491 = vmatpush1.bf16.msra.mxu0 %v5943
      %6492 = vmatprep.subr.bf16.mxu0 %v5946
      %6493 = vmatpush1.bf16.msra.mxu0 %v5945
      %6494 = vmatprep.subr.bf16.mxu0 %v5948
      %6495 = vmatpush1.bf16.msra.mxu0 %v5947
      %6496 = vmatprep.subr.bf16.mxu0 %v5950
      %6497 = vmatpush1.bf16.msra.mxu0 %v5949
      %6498 = vmatprep.subr.bf16.mxu0 %v6056
      %6499 = vmatpush1.bf16.msra.mxu0 %v6055
      %6500 = vmatprep.subr.bf16.mxu0 %v6058
      %6501 = vmatpush1.bf16.msra.mxu0 %v6057
      %6502 = vmatprep.subr.bf16.mxu0 %v6128
      %6503 = vmatpush1.bf16.msra.mxu0 %v6127
      %6504 = vmatprep.subr.bf16.mxu0 %v6130
      %6505 = vmatpush1.bf16.msra.mxu0 %v6129
      %6506 = vmatprep.subr.bf16.mxu0 %v6164
      %6507 = vmatpush1.bf16.msra.mxu0 %v6163
      %6508 = vmatprep.subr.bf16.mxu0 %v6166
      %6509 = vmatpush1.bf16.msra.mxu0 %v6165
      %6510 = vmatprep.mubr.bf16.mxu0 %v6226
      %6511 = vmatmul.mubr.bf16.gmra.mrb[0].mxu0 %v6218
      %v6512 = vpop.f32.mrb[0].mxu0
      %v6513 = vadd.f32 %v6208, %v6512
      %v6514 = vpop.f32.mrb[0].mxu0
      %v6515 = vadd.f32 %v6208, %v6514
      %v6516 = vpop.f32.mrb[0].mxu0
      %v6517 = vpop.f32.mrb[0].mxu0
      %6518 = vdwg.mxu0
      %6519 = vmatprep.subr.bf16.mxu0 %v6200
      %6520 = vmatpush1.bf16.msra.mxu0 %v6199
      %6521 = vmatprep.subr.bf16.mxu0 %v6202
      %6522 = vmatpush1.bf16.msra.mxu0 %v6201
      %6523 = vmatprep.subr.bf16.mxu0 0
      %6524 = vmatpush1.bf16.msra.mxu0 0
      %6525 = vmatprep.subr.bf16.mxu0 0
      %6526 = vmatpush1.bf16.msra.mxu0 0
      %6527 = vmatprep.subr.bf16.mxu0 0
      %6528 = vmatpush1.bf16.msra.mxu0 0
      %6529 = vmatprep.subr.bf16.mxu0 0
      %6530 = vmatpush1.bf16.msra.mxu0 0
      %6531 = vmatprep.subr.bf16.mxu0 0
      %6532 = vmatpush1.bf16.msra.mxu0 0
      %6533 = vmatprep.subr.bf16.mxu0 0
      %6534 = vmatpush1.bf16.msra.mxu0 0
      %6535 = vmatprep.subr.bf16.mxu0 0
      %6536 = vmatpush1.bf16.msra.mxu0 0
      %6537 = vmatprep.subr.bf16.mxu0 0
      %6538 = vmatpush1.bf16.msra.mxu0 0
      %6539 = vmatprep.subr.bf16.mxu0 0
      %6540 = vmatpush1.bf16.msra.mxu0 0
      %6541 = vmatprep.subr.bf16.mxu0 0
      %6542 = vmatpush1.bf16.msra.mxu0 0
      %6543 = vmatprep.subr.bf16.mxu0 0
      %6544 = vmatpush1.bf16.msra.mxu0 0
      %6545 = vmatprep.subr.bf16.mxu0 0
      %6546 = vmatpush1.bf16.msra.mxu0 0
      %6547 = vmatprep.subr.bf16.mxu0 0
      %6548 = vmatpush1.bf16.msra.mxu0 0
      %6549 = vmatprep.subr.bf16.mxu0 0
      %6550 = vmatpush1.bf16.msra.mxu0 0
      %6551 = vmatprep.mubr.bf16.mxu0 0
      %6552 = vmatmul.mubr.bf16.gmra.mrb[0].mxu0 %v6230
      %v6553 = vpop.f32.mrb[0].mxu0
      %v6554 = vadd.f32 %v6513, %v6553
      %v6555 = vpop.f32.mrb[0].mxu0
      %v6556 = vadd.f32 %v6515, %v6555
      %v6557 = vpop.f32.mrb[0].mxu0
      %v6558 = vpop.f32.mrb[0].mxu0
      %6559 = vdwg.mxu0
      %v6568 = vcombine.low %v6308, %v6310
      %v6569 = vcombine.low %v6390, %v6392
      %v6570 = vcombine.low %v6472, %v6474
      %v6571 = vcombine.low %v6554, %v6556
      %6576 = vst [vmem:[%s440] sm:$0xff] %v6568
      %6577 = vst [vmem:[%s440 + $0x8] sm:$0xff] %v6569
      %6578 = vst [vmem:[%s440 + $0x10] sm:$0xff] %v6570
      %6579 = vst [vmem:[%s440 + $0x18] sm:$0xff] %v6571
      %p6580 = scmp.lt.s32.totalorder %s24, 1
      %s6581 = scalar_select %p6580, %s24, 1
      %s6582 = smul.addr %s6581, 8
      %s6583 = smul.addr %s6582, 4
      %s6584 = scalar_lea.vmem %s13, %s6583
      // Predicated region
      $region73: #{edsr_forward.1} parent=71 // pred_check
        %p6585 = pneg %p320
      $region74: #{edsr_forward.1} parent=71 // pred_check_branch
        %6587 = sbr.rel (%p6585) target = $region76
      $region75: #{edsr_forward.1} parent=71 // pred_region
        _
      $region76: #{edsr_forward.1} parent=71 // pred_fallthru
        _
    $region72: #{edsr_forward.1} parent=5 // pred_fallthru
      _
    %p6588 = scmp.le.s32.totalorder 2, %s19
    // Predicated region
    $region77: #{edsr_forward.1} parent=5 // pred_check
      %p6589 = pneg %p6588
    $region78: #{edsr_forward.1} parent=5 // pred_check_branch
      %6591 = sbr.rel (%p6589) target = $region80
    $region79: #{edsr_forward.1} parent=5 // pred_region
      %s6592 = ssub.s32 %s19, 2
      // Predicated region
      $region81: #{edsr_forward.1} parent=79 // pred_check
        %p6593 = pneg %p326
      $region82: #{edsr_forward.1} parent=79 // pred_check_branch
        %6595 = sbr.rel (%p6593) target = $region84
      $region83: #{edsr_forward.1} parent=79 // pred_region
        %p6596 = scmp.lt.s32.totalorder %s25, 1
        %s6597 = scalar_select %p6596, %s25, 1
        %s6598 = smul.addr %s6597, 8
        %s6599 = smul.addr %s6598, 4
        %s6600 = scalar_lea.vmem %s13, %s6599
      $region84: #{edsr_forward.1} parent=79 // pred_fallthru
        _
    $region80: #{edsr_forward.1} parent=5 // pred_fallthru
      _
  $region6: #{edsr_forward.1} parent=0 // loop_footer
    %s23 = sadd.s32 1, %s19
  $region7: #{edsr_forward.1} parent=0 // loop_footer_branch
    %18 = sbr.rel target = $region3
  $region8: #{edsr_forward.1} parent=0 // loop_exit
    _

</llo_original>
